<compile_context>
chip_gen: v7x
topology: tpu7x:2x2x1
jax: 0.10.0
libtpu: 0.0.40
codegen_flags: <defaults>
</compile_context>

<pallas_src>
import jax
import jax.numpy as jnp
from jax import lax
from jax.experimental import pallas as pl
from jax.experimental.pallas import tpu as pltpu


# ----------------------------------------------------------------------------
# Kernel 1: fused feature extractor (one batch element per grid step)
# ----------------------------------------------------------------------------
def _features_kernel(xcol_ref, w1_ref, b1_ref, w2_ref, b2_ref, w3_ref, b3_ref,
                     o_ref, h1pad_ref, h2pad_ref):
    """Fused conv1+relu -> conv2+relu+maxpool -> conv3+relu+avgpool.

    xcol_ref : (1, 256, 32)  conv1 im2col patches (K padded 27->32)
    w1_ref   : (32, 64)      conv1 weights (im2col layout, zero K-pad rows)
    w2_ref   : (576, 128)    conv2 weights (row order (ky, kx, cin))
    w3_ref   : (1152, 256)   conv3 weights
    b*_ref   : (1, Cout)
    o_ref    : (1, 16, 256)  pooled features, row = y*4+x (NHWC-major flatten)
    h1pad_ref: VMEM (18, 18, 64)   zero-padded conv1 output
    h2pad_ref: VMEM (10, 10, 128)  zero-padded maxpool(conv2) output
    """
    f32 = jnp.float32

    # Zero the padded scratch buffers every step (scratch persists across grid
    # steps and is per-core, so this must not be gated on program_id==0).
    h1pad_ref[...] = jnp.zeros_like(h1pad_ref)
    h2pad_ref[...] = jnp.zeros_like(h2pad_ref)

    # ---- conv1 (3->64) + ReLU : one im2col matmul, M=256, K=32, N=64 ----------
    h1 = jnp.dot(xcol_ref[0], w1_ref[...], preferred_element_type=f32)
    h1 = jnp.maximum(h1 + b1_ref[...], 0.0)                       # (256, 64)
    h1pad_ref[pl.ds(1, 16), pl.ds(1, 16), :] = h1.reshape(16, 16, 64)

    # ---- conv2 (64->128) + ReLU + fused 2x2 maxpool ---------------------------
    # 4 chunks of 4 output rows: per-chunk patches (64, 576) stay <= 36 vregs.
    for ci in range(4):
        y0 = 4 * ci
        cols = [h1pad_ref[pl.ds(y0 + dy, 4), pl.ds(dx, 16), :].reshape(64, 64)
                for dy in range(3) for dx in range(3)]
        patches = jnp.concatenate(cols, axis=-1)                  # (64, 576)
        h2 = jnp.dot(patches, w2_ref[...], preferred_element_type=f32)
        h2 = jnp.maximum(h2 + b2_ref[...], 0.0).reshape(4, 16, 128)
        for py in range(2):                                       # pooled rows
            rowmax = jnp.maximum(h2[2 * py], h2[2 * py + 1])      # (16, 128)
            pooled = jnp.max(rowmax.reshape(8, 2, 128), axis=1)   # (8, 128)
            h2pad_ref[1 + 2 * ci + py, pl.ds(1, 8), :] = pooled

    # ---- conv3 (128->256) + ReLU + fused 2x2 avgpool --------------------------
    # (AdaptiveAvgPool2d((4,4)) on an 8x8 map == exact 2x2 average pool.)
    # 2 chunks of 4 output rows: per-chunk patches (32, 1152) stay <= 36 vregs.
    for ci in range(2):
        y0 = 4 * ci
        cols = [h2pad_ref[pl.ds(y0 + dy, 4), pl.ds(dx, 8), :].reshape(32, 128)
                for dy in range(3) for dx in range(3)]
        patches = jnp.concatenate(cols, axis=-1)                  # (32, 1152)
        h3 = jnp.dot(patches, w3_ref[...], preferred_element_type=f32)
        h3 = jnp.maximum(h3 + b3_ref[...], 0.0).reshape(4, 8, 256)
        for py in range(2):
            rowsum = h3[2 * py] + h3[2 * py + 1]                  # (8, 256)
            pooled = jnp.sum(rowsum.reshape(4, 2, 256), axis=1) * 0.25   # (4, 256)
            o_ref[0, pl.ds((2 * ci + py) * 4, 4), :] = pooled


def fused_features(xcol, cw1, cb1, cw2, cb2, cw3, cb3):
    """xcol: (B, 256, 32) conv1 im2col patches -> (B, 16, 256) pooled features."""
    B = xcol.shape[0]
    return pl.pallas_call(
        _features_kernel,
        out_shape=jax.ShapeDtypeStruct((B, 16, 256), jnp.float32),
        grid=(B,),
        in_specs=[
            pl.BlockSpec((1, 256, 32), lambda i: (i, 0, 0)),
            pl.BlockSpec((32, 64), lambda i: (0, 0)),
            pl.BlockSpec((1, 64), lambda i: (0, 0)),
            pl.BlockSpec((576, 128), lambda i: (0, 0)),
            pl.BlockSpec((1, 128), lambda i: (0, 0)),
            pl.BlockSpec((1152, 256), lambda i: (0, 0)),
            pl.BlockSpec((1, 256), lambda i: (0, 0)),
        ],
        out_specs=pl.BlockSpec((1, 16, 256), lambda i: (i, 0, 0)),
        scratch_shapes=[pltpu.VMEM((18, 18, 64), jnp.float32),
                        pltpu.VMEM((10, 10, 128), jnp.float32)],
        compiler_params=pltpu.CompilerParams(
            dimension_semantics=("parallel",)),
    )(xcol, cw1, cb1.reshape(1, -1), cw2, cb2.reshape(1, -1),
      cw3, cb3.reshape(1, -1))


# ----------------------------------------------------------------------------
# Kernel 2: classifier MLP, K-pipelined over fw1's 4096 input features
# ----------------------------------------------------------------------------
def _classifier_kernel(x_ref, w1_ref, b1_ref, w2_ref, b2_ref, w3_ref, b3_ref,
                       o_ref, acc_ref):
    k = pl.program_id(0)

    @pl.when(k == 0)
    def _():
        acc_ref[...] = jnp.zeros_like(acc_ref)

    # Streamed fc1 partial product: bf16 operands, f32 accumulation.
    acc_ref[...] += jnp.dot(x_ref[...].astype(jnp.bfloat16), w1_ref[...],
                            preferred_element_type=jnp.float32)

    @pl.when(k == pl.num_programs(0) - 1)
    def _():
        h1 = jnp.maximum(acc_ref[...] + b1_ref[...], 0.0)
        # Dropout(p=0.5) is the identity in inference mode.
        h2 = jnp.dot(h1.astype(jnp.bfloat16), w2_ref[...],
                     preferred_element_type=jnp.float32)
        h2 = jnp.maximum(h2 + b2_ref[...], 0.0)
        out = jnp.dot(h2.astype(jnp.bfloat16), w3_ref[...],
                      preferred_element_type=jnp.float32)
        o_ref[...] = out + b3_ref[...]


def classifier_mlp(x, fw1, fb1, fw2, fb2, fw3, fb3, *, kt=1024):
    """x: (B, 4096) NHWC-major features -> (B, num_classes)."""
    B, K = x.shape
    nk = K // kt
    d1 = fw1.shape[1]
    n_out = fw3.shape[1]
    return pl.pallas_call(
        _classifier_kernel,
        out_shape=jax.ShapeDtypeStruct((B, n_out), jnp.float32),
        grid=(nk,),
        in_specs=[
            pl.BlockSpec((B, kt), lambda k: (0, k)),
            pl.BlockSpec((kt, d1), lambda k: (k, 0)),
            pl.BlockSpec((1, d1), lambda k: (0, 0)),
            pl.BlockSpec(fw2.shape, lambda k: (0, 0)),
            pl.BlockSpec((1, fw2.shape[1]), lambda k: (0, 0)),
            pl.BlockSpec(fw3.shape, lambda k: (0, 0)),
            pl.BlockSpec((1, n_out), lambda k: (0, 0)),
        ],
        out_specs=pl.BlockSpec((B, n_out), lambda k: (0, 0)),
        scratch_shapes=[pltpu.VMEM((B, d1), jnp.float32)],
        compiler_params=pltpu.CompilerParams(
            dimension_semantics=("arbitrary",)),
    )(x, fw1, fb1.reshape(1, -1), fw2, fb2.reshape(1, -1),
      fw3, fb3.reshape(1, -1))


# ----------------------------------------------------------------------------
# Parameters (deterministic, synthetic) and full forward
# ----------------------------------------------------------------------------
def init_params(key, num_classes=10):
    ks = jax.random.split(key, 12)

    def conv_w(k, cin, cout):
        w = jax.random.normal(k, (3, 3, cin, cout), jnp.float32) / jnp.sqrt(9.0 * cin)
        return w.reshape(9 * cin, cout)          # im2col layout, rows = (ky, kx, cin)

    def lin_w(k, din, dout):
        return jax.random.normal(k, (din, dout), jnp.float32) / jnp.sqrt(float(din))

    cw1 = jnp.pad(conv_w(ks[0], 3, 64), ((0, 5), (0, 0)))   # K 27 -> 32 (zero rows)
    cw2 = conv_w(ks[2], 64, 128)
    cw3 = conv_w(ks[4], 128, 256)

    # fc1 weights are generated in PyTorch's flatten order (row = c*16 + y*4 + x)
    # and row-permuted once so the kernels can consume the NHWC-major flatten
    # directly (this removes the NHWC->NCHW transpose before the classifier).
    fw1_torch = lin_w(ks[6], 256 * 16, 512)
    hw = jnp.arange(16)                           # y*4 + x
    ch = jnp.arange(256)
    perm = (ch[None, :] * 16 + hw[:, None]).reshape(-1)      # NHWC pos -> torch row
    fw1 = fw1_torch[perm].astype(jnp.bfloat16)    # bf16: classifier is HBM-bound

    return dict(
        cw1=cw1, cb1=0.01 * jax.random.normal(ks[1], (64,), jnp.float32),
        cw2=cw2, cb2=0.01 * jax.random.normal(ks[3], (128,), jnp.float32),
        cw3=cw3, cb3=0.01 * jax.random.normal(ks[5], (256,), jnp.float32),
        fw1=fw1, fb1=0.01 * jax.random.normal(ks[7], (512,), jnp.float32),
        fw2=lin_w(ks[8], 512, 128).astype(jnp.bfloat16),
        fb2=0.01 * jax.random.normal(ks[9], (128,), jnp.float32),
        fw3=lin_w(ks[10], 128, num_classes).astype(jnp.bfloat16),
        fb3=0.01 * jax.random.normal(ks[11], (num_classes,), jnp.float32),
    )


@jax.jit
def demo_net_forward(x_nchw, params):
    B, C, H, W = x_nchw.shape
    # TODO(synk): generalize to spatial sizes other than 16x16 (AdaptiveAvgPool2d
    # then needs non-2x2 binning and the fused kernel different chunk sizes).
    assert C == 3 and H == 16 and W == 16, (C, H, W)

    # NCHW -> NHWC + conv1 im2col built in the wrapper.  The raw input is tiny
    # (B*16*16*3 f32 = 6 KB), so this glue is negligible; it gives conv1 a single
    # K=32 matmul and removes all per-layer padding from the HBM path.
    x = jnp.transpose(x_nchw, (0, 2, 3, 1)).astype(jnp.float32)
    xp = jnp.pad(x, ((0, 0), (1, 1), (1, 1), (0, 0)))
    cols = [xp[:, dy:dy + H, dx:dx + W, :] for dy in range(3) for dx in range(3)]
    xcol = jnp.concatenate(cols, axis=-1).reshape(B, H * W, 9 * C)
    xcol = jnp.pad(xcol, ((0, 0), (0, 0), (0, 32 - 9 * C)))          # K 27 -> 32

    feats = fused_features(xcol, params["cw1"], params["cb1"],
                           params["cw2"], params["cb2"],
                           params["cw3"], params["cb3"])             # (B, 16, 256)

    # NHWC-major flatten (contiguous reshape, no transpose): fw1 was permuted at
    # init to match this order.
    logits = classifier_mlp(feats.reshape(B, 16 * 256),
                            params["fw1"], params["fb1"],
                            params["fw2"], params["fb2"],
                            params["fw3"], params["fb3"])            # (B, 10)
    return logits


# ----------------------------------------------------------------------------
# Pure-JAX reference (validation only)
# ----------------------------------------------------------------------------
def _reference_forward(x_nchw, params):
    def conv(x, w9, b, cin, cout):
        w = w9[:9 * cin].reshape(3, 3, cin, cout)          # strip conv1's K pad
        y = lax.conv_general_dilated(x, w, (1, 1), ((1, 1), (1, 1)),
                                     dimension_numbers=("NHWC", "HWIO", "NHWC"))
        return jax.nn.relu(y + b)

    x = jnp.transpose(x_nchw, (0, 2, 3, 1)).astype(jnp.float32)
    x = conv(x, params["cw1"], params["cb1"], 3, 64)
    x = conv(x, params["cw2"], params["cb2"], 64, 128)
    x = lax.reduce_window(x, -jnp.inf, lax.max, (1, 2, 2, 1), (1, 2, 2, 1), "VALID")
    x = conv(x, params["cw3"], params["cb3"], 128, 256)
    x = lax.reduce_window(x, 0.0, lax.add, (1, 2, 2, 1), (1, 2, 2, 1), "VALID") * 0.25
    B = x.shape[0]
    x = x.reshape(B, 16 * 256)                             # NHWC-major flatten
    h = jax.nn.relu(x @ params["fw1"].astype(jnp.float32) + params["fb1"])
    h = jax.nn.relu(h @ params["fw2"].astype(jnp.float32) + params["fb2"])
    return h @ params["fw3"].astype(jnp.float32) + params["fb3"]


if __name__ == "__main__":
    key = jax.random.PRNGKey(0)
    k_x, k_p = jax.random.split(key)
    x = jax.random.normal(k_x, (2, 3, 16, 16), jnp.float32)   # NCHW like PyTorch
    params = init_params(k_p, num_classes=10)

    out = demo_net_forward(x, params)
    out = jax.block_until_ready(out)

    assert out.shape == (2, 10), out.shape
    assert bool(jnp.all(jnp.isfinite(out)))

    ref = _reference_forward(x, params)
    assert bool(jnp.allclose(out, ref, atol=3e-2, rtol=3e-2)), (
        float(jnp.max(jnp.abs(out - ref))))

    print("KERNEL_OK")
</pallas_src>

<mosaic_0001>
module attributes {stable_mosaic.version = 11 : i64} {
  func.func @_features_kernel(%arg0: i32, %arg1: memref<1x256x32xf32, #tpu.memory_space<vmem>>, %arg2: memref<32x64xf32, #tpu.memory_space<vmem>>, %arg3: memref<1x64xf32, #tpu.memory_space<vmem>>, %arg4: memref<576x128xf32, #tpu.memory_space<vmem>>, %arg5: memref<1x128xf32, #tpu.memory_space<vmem>>, %arg6: memref<1152x256xf32, #tpu.memory_space<vmem>>, %arg7: memref<1x256xf32, #tpu.memory_space<vmem>>, %arg8: memref<1x16x256xf32, #tpu.memory_space<vmem>>, %arg9: memref<18x18x64xf32, #tpu.memory_space<vmem>>, %arg10: memref<10x10x128xf32, #tpu.memory_space<vmem>>) attributes {dimension_semantics = [#tpu.dimension_semantics<parallel>], iteration_bounds = array<i64: 2>, scalar_prefetch = 0 : i64, scratch_operands = 2 : i64, tpu.core_type = #tpu.core_type<tc>, window_params = [{transform_indices = @transform_0, window_bounds = array<i64: 1, 256, 32>}, {pipeline_mode = #tpu.pipeline_mode<synchronous>, transform_indices = @transform_1, window_bounds = array<i64: 32, 64>}, {pipeline_mode = #tpu.pipeline_mode<synchronous>, transform_indices = @transform_2, window_bounds = array<i64: 1, 64>}, {pipeline_mode = #tpu.pipeline_mode<synchronous>, transform_indices = @transform_3, window_bounds = array<i64: 576, 128>}, {pipeline_mode = #tpu.pipeline_mode<synchronous>, transform_indices = @transform_4, window_bounds = array<i64: 1, 128>}, {pipeline_mode = #tpu.pipeline_mode<synchronous>, transform_indices = @transform_5, window_bounds = array<i64: 1152, 256>}, {pipeline_mode = #tpu.pipeline_mode<synchronous>, transform_indices = @transform_6, window_bounds = array<i64: 1, 256>}, {transform_indices = @transform_7, window_bounds = array<i64: 1, 16, 256>}]} {
    %cst = arith.constant 0.000000e+00 : f32
    %0 = vector.broadcast %cst : f32 to vector<18x18x64xf32>
    %c0 = arith.constant 0 : index
    %c0_0 = arith.constant 0 : index
    %c0_1 = arith.constant 0 : index
    %1 = vector.load %arg9[%c0, %c0_0, %c0_1] : memref<18x18x64xf32, #tpu.memory_space<vmem>>, vector<18x18x64xf32>
    tpu.vector_store %arg9[%c0, %c0_0, %c0_1], %0 {strides = array<i32>} : memref<18x18x64xf32, #tpu.memory_space<vmem>>, vector<18x18x64xf32>,
    %cst_2 = arith.constant 0.000000e+00 : f32
    %2 = vector.broadcast %cst_2 : f32 to vector<10x10x128xf32>
    %c0_3 = arith.constant 0 : index
    %c0_4 = arith.constant 0 : index
    %c0_5 = arith.constant 0 : index
    %3 = vector.load %arg10[%c0_3, %c0_4, %c0_5] : memref<10x10x128xf32, #tpu.memory_space<vmem>>, vector<10x10x128xf32>
    tpu.vector_store %arg10[%c0_3, %c0_4, %c0_5], %2 {strides = array<i32>} : memref<10x10x128xf32, #tpu.memory_space<vmem>>, vector<10x10x128xf32>,
    %c0_6 = arith.constant 0 : index
    %c0_7 = arith.constant 0 : index
    %c0_8 = arith.constant 0 : index
    %4 = vector.load %arg1[%c0_6, %c0_7, %c0_8] : memref<1x256x32xf32, #tpu.memory_space<vmem>>, vector<1x256x32xf32>
    %5 = vector.shape_cast %4 : vector<1x256x32xf32> to vector<256x32xf32>
    %c0_9 = arith.constant 0 : index
    %c0_10 = arith.constant 0 : index
    %6 = vector.load %arg2[%c0_9, %c0_10] : memref<32x64xf32, #tpu.memory_space<vmem>>, vector<32x64xf32>
    %cst_11 = arith.constant dense<0.000000e+00> : vector<256x64xf32>
    %7 = tpu.matmul %5, %6, %cst_11 {dimension_numbers = #tpu.dot_dimension_numbers<[1], [0], [0], [1], [0, 0, 1, 1], [], []>} : vector<256x32xf32>, vector<32x64xf32>, vector<256x64xf32> -> vector<256x64xf32>
    %c0_12 = arith.constant 0 : index
    %c0_13 = arith.constant 0 : index
    %8 = vector.load %arg3[%c0_12, %c0_13] : memref<1x64xf32, #tpu.memory_space<vmem>>, vector<1x64xf32>
    %9 = vector.broadcast %8 : vector<1x64xf32> to vector<256x64xf32>
    %10 = arith.addf %7, %9 : vector<256x64xf32>
    %cst_14 = arith.constant 0.000000e+00 : f32
    %11 = vector.broadcast %cst_14 : f32 to vector<256x64xf32>
    %12 = arith.maximumf %10, %11 : vector<256x64xf32>
    %13 = vector.shape_cast %12 : vector<256x64xf32> to vector<16x16x64xf32>
    %c1 = arith.constant 1 : index
    %c1_15 = arith.constant 1 : index
    %c0_16 = arith.constant 0 : index
    %14 = vector.load %arg9[%c1, %c1_15, %c0_16] : memref<18x18x64xf32, #tpu.memory_space<vmem>>, vector<16x16x64xf32>
    tpu.vector_store %arg9[%c1, %c1_15, %c0_16], %13 {strides = array<i32>} : memref<18x18x64xf32, #tpu.memory_space<vmem>>, vector<16x16x64xf32>,
    %c0_17 = arith.constant 0 : index
    %c0_18 = arith.constant 0 : index
    %c0_19 = arith.constant 0 : index
    %15 = vector.load %arg9[%c0_17, %c0_18, %c0_19] : memref<18x18x64xf32, #tpu.memory_space<vmem>>, vector<4x16x64xf32>
    %16 = vector.shape_cast %15 : vector<4x16x64xf32> to vector<64x64xf32>
    %c0_20 = arith.constant 0 : index
    %c1_21 = arith.constant 1 : index
    %c0_22 = arith.constant 0 : index
    %17 = vector.load %arg9[%c0_20, %c1_21, %c0_22] : memref<18x18x64xf32, #tpu.memory_space<vmem>>, vector<4x16x64xf32>
    %18 = vector.shape_cast %17 : vector<4x16x64xf32> to vector<64x64xf32>
    %c0_23 = arith.constant 0 : index
    %c2 = arith.constant 2 : index
    %c0_24 = arith.constant 0 : index
    %19 = vector.load %arg9[%c0_23, %c2, %c0_24] : memref<18x18x64xf32, #tpu.memory_space<vmem>>, vector<4x16x64xf32>
    %20 = vector.shape_cast %19 : vector<4x16x64xf32> to vector<64x64xf32>
    %c1_25 = arith.constant 1 : index
    %c0_26 = arith.constant 0 : index
    %c0_27 = arith.constant 0 : index
    %21 = vector.load %arg9[%c1_25, %c0_26, %c0_27] : memref<18x18x64xf32, #tpu.memory_space<vmem>>, vector<4x16x64xf32>
    %22 = vector.shape_cast %21 : vector<4x16x64xf32> to vector<64x64xf32>
    %c1_28 = arith.constant 1 : index
    %c1_29 = arith.constant 1 : index
    %c0_30 = arith.constant 0 : index
    %23 = vector.load %arg9[%c1_28, %c1_29, %c0_30] : memref<18x18x64xf32, #tpu.memory_space<vmem>>, vector<4x16x64xf32>
    %24 = vector.shape_cast %23 : vector<4x16x64xf32> to vector<64x64xf32>
    %c1_31 = arith.constant 1 : index
    %c2_32 = arith.constant 2 : index
    %c0_33 = arith.constant 0 : index
    %25 = vector.load %arg9[%c1_31, %c2_32, %c0_33] : memref<18x18x64xf32, #tpu.memory_space<vmem>>, vector<4x16x64xf32>
    %26 = vector.shape_cast %25 : vector<4x16x64xf32> to vector<64x64xf32>
    %c2_34 = arith.constant 2 : index
    %c0_35 = arith.constant 0 : index
    %c0_36 = arith.constant 0 : index
    %27 = vector.load %arg9[%c2_34, %c0_35, %c0_36] : memref<18x18x64xf32, #tpu.memory_space<vmem>>, vector<4x16x64xf32>
    %28 = vector.shape_cast %27 : vector<4x16x64xf32> to vector<64x64xf32>
    %c2_37 = arith.constant 2 : index
    %c1_38 = arith.constant 1 : index
    %c0_39 = arith.constant 0 : index
    %29 = vector.load %arg9[%c2_37, %c1_38, %c0_39] : memref<18x18x64xf32, #tpu.memory_space<vmem>>, vector<4x16x64xf32>
    %30 = vector.shape_cast %29 : vector<4x16x64xf32> to vector<64x64xf32>
    %c2_40 = arith.constant 2 : index
    %c2_41 = arith.constant 2 : index
    %c0_42 = arith.constant 0 : index
    %31 = vector.load %arg9[%c2_40, %c2_41, %c0_42] : memref<18x18x64xf32, #tpu.memory_space<vmem>>, vector<4x16x64xf32>
    %32 = vector.shape_cast %31 : vector<4x16x64xf32> to vector<64x64xf32>
    %33 = tpu.concatenate %16, %18, %20, %22, %24, %26, %28, %30, %32 in 1 : vector<64x64xf32>, vector<64x64xf32>, vector<64x64xf32>, vector<64x64xf32>, vector<64x64xf32>, vector<64x64xf32>, vector<64x64xf32>, vector<64x64xf32>, vector<64x64xf32> -> vector<64x576xf32>
    %c0_43 = arith.constant 0 : index
    %c0_44 = arith.constant 0 : index
    %34 = vector.load %arg4[%c0_43, %c0_44] : memref<576x128xf32, #tpu.memory_space<vmem>>, vector<576x128xf32>
    %cst_45 = arith.constant dense<0.000000e+00> : vector<64x128xf32>
    %35 = tpu.matmul %33, %34, %cst_45 {dimension_numbers = #tpu.dot_dimension_numbers<[1], [0], [0], [1], [0, 0, 1, 1], [], []>} : vector<64x576xf32>, vector<576x128xf32>, vector<64x128xf32> -> vector<64x128xf32>
    %c0_46 = arith.constant 0 : index
    %c0_47 = arith.constant 0 : index
    %36 = vector.load %arg5[%c0_46, %c0_47] : memref<1x128xf32, #tpu.memory_space<vmem>>, vector<1x128xf32>
    %37 = vector.broadcast %36 : vector<1x128xf32> to vector<64x128xf32>
    %38 = arith.addf %35, %37 : vector<64x128xf32>
    %cst_48 = arith.constant 0.000000e+00 : f32
    %39 = vector.broadcast %cst_48 : f32 to vector<64x128xf32>
    %40 = arith.maximumf %38, %39 : vector<64x128xf32>
    %41 = vector.shape_cast %40 : vector<64x128xf32> to vector<4x16x128xf32>
    %42 = vector.extract_strided_slice %41 {offsets = [0, 0, 0], sizes = [1, 16, 128], strides = [1, 1, 1]} : vector<4x16x128xf32> to vector<1x16x128xf32>
    %43 = vector.shape_cast %42 : vector<1x16x128xf32> to vector<16x128xf32>
    %44 = vector.extract_strided_slice %41 {offsets = [1, 0, 0], sizes = [1, 16, 128], strides = [1, 1, 1]} : vector<4x16x128xf32> to vector<1x16x128xf32>
    %45 = vector.shape_cast %44 : vector<1x16x128xf32> to vector<16x128xf32>
    %46 = arith.maximumf %43, %45 : vector<16x128xf32>
    %47 = vector.shape_cast %46 : vector<16x128xf32> to vector<8x2x128xf32>
    %cst_49 = arith.constant dense<0xFF800000> : vector<8x128xf32>
    %48 = vector.multi_reduction <maximumf>, %47, %cst_49 [1] : vector<8x2x128xf32> to vector<8x128xf32>
    %c1_50 = arith.constant 1 : index
    %c1_51 = arith.constant 1 : index
    %c0_52 = arith.constant 0 : index
    %49 = vector.load %arg10[%c1_50, %c1_51, %c0_52] : memref<10x10x128xf32, #tpu.memory_space<vmem>>, vector<1x8x128xf32>
    %50 = vector.shape_cast %49 : vector<1x8x128xf32> to vector<8x128xf32>
    %51 = vector.shape_cast %48 : vector<8x128xf32> to vector<1x8x128xf32>
    tpu.vector_store %arg10[%c1_50, %c1_51, %c0_52], %51 {strides = array<i32>} : memref<10x10x128xf32, #tpu.memory_space<vmem>>, vector<1x8x128xf32>,
    %52 = vector.extract_strided_slice %41 {offsets = [2, 0, 0], sizes = [1, 16, 128], strides = [1, 1, 1]} : vector<4x16x128xf32> to vector<1x16x128xf32>
    %53 = vector.shape_cast %52 : vector<1x16x128xf32> to vector<16x128xf32>
    %54 = vector.extract_strided_slice %41 {offsets = [3, 0, 0], sizes = [1, 16, 128], strides = [1, 1, 1]} : vector<4x16x128xf32> to vector<1x16x128xf32>
    %55 = vector.shape_cast %54 : vector<1x16x128xf32> to vector<16x128xf32>
    %56 = arith.maximumf %53, %55 : vector<16x128xf32>
    %57 = vector.shape_cast %56 : vector<16x128xf32> to vector<8x2x128xf32>
    %cst_53 = arith.constant dense<0xFF800000> : vector<8x128xf32>
    %58 = vector.multi_reduction <maximumf>, %57, %cst_53 [1] : vector<8x2x128xf32> to vector<8x128xf32>
    %c2_54 = arith.constant 2 : index
    %c1_55 = arith.constant 1 : index
    %c0_56 = arith.constant 0 : index
    %59 = vector.load %arg10[%c2_54, %c1_55, %c0_56] : memref<10x10x128xf32, #tpu.memory_space<vmem>>, vector<1x8x128xf32>
    %60 = vector.shape_cast %59 : vector<1x8x128xf32> to vector<8x128xf32>
    %61 = vector.shape_cast %58 : vector<8x128xf32> to vector<1x8x128xf32>
    tpu.vector_store %arg10[%c2_54, %c1_55, %c0_56], %61 {strides = array<i32>} : memref<10x10x128xf32, #tpu.memory_space<vmem>>, vector<1x8x128xf32>,
    %c4 = arith.constant 4 : index
    %c0_57 = arith.constant 0 : index
    %c0_58 = arith.constant 0 : index
    %62 = vector.load %arg9[%c4, %c0_57, %c0_58] : memref<18x18x64xf32, #tpu.memory_space<vmem>>, vector<4x16x64xf32>
    %63 = vector.shape_cast %62 : vector<4x16x64xf32> to vector<64x64xf32>
    %c4_59 = arith.constant 4 : index
    %c1_60 = arith.constant 1 : index
    %c0_61 = arith.constant 0 : index
    %64 = vector.load %arg9[%c4_59, %c1_60, %c0_61] : memref<18x18x64xf32, #tpu.memory_space<vmem>>, vector<4x16x64xf32>
    %65 = vector.shape_cast %64 : vector<4x16x64xf32> to vector<64x64xf32>
    %c4_62 = arith.constant 4 : index
    %c2_63 = arith.constant 2 : index
    %c0_64 = arith.constant 0 : index
    %66 = vector.load %arg9[%c4_62, %c2_63, %c0_64] : memref<18x18x64xf32, #tpu.memory_space<vmem>>, vector<4x16x64xf32>
    %67 = vector.shape_cast %66 : vector<4x16x64xf32> to vector<64x64xf32>
    %c5 = arith.constant 5 : index
    %c0_65 = arith.constant 0 : index
    %c0_66 = arith.constant 0 : index
    %68 = vector.load %arg9[%c5, %c0_65, %c0_66] : memref<18x18x64xf32, #tpu.memory_space<vmem>>, vector<4x16x64xf32>
    %69 = vector.shape_cast %68 : vector<4x16x64xf32> to vector<64x64xf32>
    %c5_67 = arith.constant 5 : index
    %c1_68 = arith.constant 1 : index
    %c0_69 = arith.constant 0 : index
    %70 = vector.load %arg9[%c5_67, %c1_68, %c0_69] : memref<18x18x64xf32, #tpu.memory_space<vmem>>, vector<4x16x64xf32>
    %71 = vector.shape_cast %70 : vector<4x16x64xf32> to vector<64x64xf32>
    %c5_70 = arith.constant 5 : index
    %c2_71 = arith.constant 2 : index
    %c0_72 = arith.constant 0 : index
    %72 = vector.load %arg9[%c5_70, %c2_71, %c0_72] : memref<18x18x64xf32, #tpu.memory_space<vmem>>, vector<4x16x64xf32>
    %73 = vector.shape_cast %72 : vector<4x16x64xf32> to vector<64x64xf32>
    %c6 = arith.constant 6 : index
    %c0_73 = arith.constant 0 : index
    %c0_74 = arith.constant 0 : index
    %74 = vector.load %arg9[%c6, %c0_73, %c0_74] : memref<18x18x64xf32, #tpu.memory_space<vmem>>, vector<4x16x64xf32>
    %75 = vector.shape_cast %74 : vector<4x16x64xf32> to vector<64x64xf32>
    %c6_75 = arith.constant 6 : index
    %c1_76 = arith.constant 1 : index
    %c0_77 = arith.constant 0 : index
    %76 = vector.load %arg9[%c6_75, %c1_76, %c0_77] : memref<18x18x64xf32, #tpu.memory_space<vmem>>, vector<4x16x64xf32>
    %77 = vector.shape_cast %76 : vector<4x16x64xf32> to vector<64x64xf32>
    %c6_78 = arith.constant 6 : index
    %c2_79 = arith.constant 2 : index
    %c0_80 = arith.constant 0 : index
    %78 = vector.load %arg9[%c6_78, %c2_79, %c0_80] : memref<18x18x64xf32, #tpu.memory_space<vmem>>, vector<4x16x64xf32>
    %79 = vector.shape_cast %78 : vector<4x16x64xf32> to vector<64x64xf32>
    %80 = tpu.concatenate %63, %65, %67, %69, %71, %73, %75, %77, %79 in 1 : vector<64x64xf32>, vector<64x64xf32>, vector<64x64xf32>, vector<64x64xf32>, vector<64x64xf32>, vector<64x64xf32>, vector<64x64xf32>, vector<64x64xf32>, vector<64x64xf32> -> vector<64x576xf32>
    %c0_81 = arith.constant 0 : index
    %c0_82 = arith.constant 0 : index
    %81 = vector.load %arg4[%c0_81, %c0_82] : memref<576x128xf32, #tpu.memory_space<vmem>>, vector<576x128xf32>
    %cst_83 = arith.constant dense<0.000000e+00> : vector<64x128xf32>
    %82 = tpu.matmul %80, %81, %cst_83 {dimension_numbers = #tpu.dot_dimension_numbers<[1], [0], [0], [1], [0, 0, 1, 1], [], []>} : vector<64x576xf32>, vector<576x128xf32>, vector<64x128xf32> -> vector<64x128xf32>
    %c0_84 = arith.constant 0 : index
    %c0_85 = arith.constant 0 : index
    %83 = vector.load %arg5[%c0_84, %c0_85] : memref<1x128xf32, #tpu.memory_space<vmem>>, vector<1x128xf32>
    %84 = vector.broadcast %83 : vector<1x128xf32> to vector<64x128xf32>
    %85 = arith.addf %82, %84 : vector<64x128xf32>
    %cst_86 = arith.constant 0.000000e+00 : f32
    %86 = vector.broadcast %cst_86 : f32 to vector<64x128xf32>
    %87 = arith.maximumf %85, %86 : vector<64x128xf32>
    %88 = vector.shape_cast %87 : vector<64x128xf32> to vector<4x16x128xf32>
    %89 = vector.extract_strided_slice %88 {offsets = [0, 0, 0], sizes = [1, 16, 128], strides = [1, 1, 1]} : vector<4x16x128xf32> to vector<1x16x128xf32>
    %90 = vector.shape_cast %89 : vector<1x16x128xf32> to vector<16x128xf32>
    %91 = vector.extract_strided_slice %88 {offsets = [1, 0, 0], sizes = [1, 16, 128], strides = [1, 1, 1]} : vector<4x16x128xf32> to vector<1x16x128xf32>
    %92 = vector.shape_cast %91 : vector<1x16x128xf32> to vector<16x128xf32>
    %93 = arith.maximumf %90, %92 : vector<16x128xf32>
    %94 = vector.shape_cast %93 : vector<16x128xf32> to vector<8x2x128xf32>
    %cst_87 = arith.constant dense<0xFF800000> : vector<8x128xf32>
    %95 = vector.multi_reduction <maximumf>, %94, %cst_87 [1] : vector<8x2x128xf32> to vector<8x128xf32>
    %c3 = arith.constant 3 : index
    %c1_88 = arith.constant 1 : index
    %c0_89 = arith.constant 0 : index
    %96 = vector.load %arg10[%c3, %c1_88, %c0_89] : memref<10x10x128xf32, #tpu.memory_space<vmem>>, vector<1x8x128xf32>
    %97 = vector.shape_cast %96 : vector<1x8x128xf32> to vector<8x128xf32>
    %98 = vector.shape_cast %95 : vector<8x128xf32> to vector<1x8x128xf32>
    tpu.vector_store %arg10[%c3, %c1_88, %c0_89], %98 {strides = array<i32>} : memref<10x10x128xf32, #tpu.memory_space<vmem>>, vector<1x8x128xf32>,
    %99 = vector.extract_strided_slice %88 {offsets = [2, 0, 0], sizes = [1, 16, 128], strides = [1, 1, 1]} : vector<4x16x128xf32> to vector<1x16x128xf32>
    %100 = vector.shape_cast %99 : vector<1x16x128xf32> to vector<16x128xf32>
    %101 = vector.extract_strided_slice %88 {offsets = [3, 0, 0], sizes = [1, 16, 128], strides = [1, 1, 1]} : vector<4x16x128xf32> to vector<1x16x128xf32>
    %102 = vector.shape_cast %101 : vector<1x16x128xf32> to vector<16x128xf32>
    %103 = arith.maximumf %100, %102 : vector<16x128xf32>
    %104 = vector.shape_cast %103 : vector<16x128xf32> to vector<8x2x128xf32>
    %cst_90 = arith.constant dense<0xFF800000> : vector<8x128xf32>
    %105 = vector.multi_reduction <maximumf>, %104, %cst_90 [1] : vector<8x2x128xf32> to vector<8x128xf32>
    %c4_91 = arith.constant 4 : index
    %c1_92 = arith.constant 1 : index
    %c0_93 = arith.constant 0 : index
    %106 = vector.load %arg10[%c4_91, %c1_92, %c0_93] : memref<10x10x128xf32, #tpu.memory_space<vmem>>, vector<1x8x128xf32>
    %107 = vector.shape_cast %106 : vector<1x8x128xf32> to vector<8x128xf32>
    %108 = vector.shape_cast %105 : vector<8x128xf32> to vector<1x8x128xf32>
    tpu.vector_store %arg10[%c4_91, %c1_92, %c0_93], %108 {strides = array<i32>} : memref<10x10x128xf32, #tpu.memory_space<vmem>>, vector<1x8x128xf32>,
    %c8 = arith.constant 8 : index
    %c0_94 = arith.constant 0 : index
    %c0_95 = arith.constant 0 : index
    %109 = vector.load %arg9[%c8, %c0_94, %c0_95] : memref<18x18x64xf32, #tpu.memory_space<vmem>>, vector<4x16x64xf32>
    %110 = vector.shape_cast %109 : vector<4x16x64xf32> to vector<64x64xf32>
    %c8_96 = arith.constant 8 : index
    %c1_97 = arith.constant 1 : index
    %c0_98 = arith.constant 0 : index
    %111 = vector.load %arg9[%c8_96, %c1_97, %c0_98] : memref<18x18x64xf32, #tpu.memory_space<vmem>>, vector<4x16x64xf32>
    %112 = vector.shape_cast %111 : vector<4x16x64xf32> to vector<64x64xf32>
    %c8_99 = arith.constant 8 : index
    %c2_100 = arith.constant 2 : index
    %c0_101 = arith.constant 0 : index
    %113 = vector.load %arg9[%c8_99, %c2_100, %c0_101] : memref<18x18x64xf32, #tpu.memory_space<vmem>>, vector<4x16x64xf32>
    %114 = vector.shape_cast %113 : vector<4x16x64xf32> to vector<64x64xf32>
    %c9 = arith.constant 9 : index
    %c0_102 = arith.constant 0 : index
    %c0_103 = arith.constant 0 : index
    %115 = vector.load %arg9[%c9, %c0_102, %c0_103] : memref<18x18x64xf32, #tpu.memory_space<vmem>>, vector<4x16x64xf32>
    %116 = vector.shape_cast %115 : vector<4x16x64xf32> to vector<64x64xf32>
    %c9_104 = arith.constant 9 : index
    %c1_105 = arith.constant 1 : index
    %c0_106 = arith.constant 0 : index
    %117 = vector.load %arg9[%c9_104, %c1_105, %c0_106] : memref<18x18x64xf32, #tpu.memory_space<vmem>>, vector<4x16x64xf32>
    %118 = vector.shape_cast %117 : vector<4x16x64xf32> to vector<64x64xf32>
    %c9_107 = arith.constant 9 : index
    %c2_108 = arith.constant 2 : index
    %c0_109 = arith.constant 0 : index
    %119 = vector.load %arg9[%c9_107, %c2_108, %c0_109] : memref<18x18x64xf32, #tpu.memory_space<vmem>>, vector<4x16x64xf32>
    %120 = vector.shape_cast %119 : vector<4x16x64xf32> to vector<64x64xf32>
    %c10 = arith.constant 10 : index
    %c0_110 = arith.constant 0 : index
    %c0_111 = arith.constant 0 : index
    %121 = vector.load %arg9[%c10, %c0_110, %c0_111] : memref<18x18x64xf32, #tpu.memory_space<vmem>>, vector<4x16x64xf32>
    %122 = vector.shape_cast %121 : vector<4x16x64xf32> to vector<64x64xf32>
    %c10_112 = arith.constant 10 : index
    %c1_113 = arith.constant 1 : index
    %c0_114 = arith.constant 0 : index
    %123 = vector.load %arg9[%c10_112, %c1_113, %c0_114] : memref<18x18x64xf32, #tpu.memory_space<vmem>>, vector<4x16x64xf32>
    %124 = vector.shape_cast %123 : vector<4x16x64xf32> to vector<64x64xf32>
    %c10_115 = arith.constant 10 : index
    %c2_116 = arith.constant 2 : index
    %c0_117 = arith.constant 0 : index
    %125 = vector.load %arg9[%c10_115, %c2_116, %c0_117] : memref<18x18x64xf32, #tpu.memory_space<vmem>>, vector<4x16x64xf32>
    %126 = vector.shape_cast %125 : vector<4x16x64xf32> to vector<64x64xf32>
    %127 = tpu.concatenate %110, %112, %114, %116, %118, %120, %122, %124, %126 in 1 : vector<64x64xf32>, vector<64x64xf32>, vector<64x64xf32>, vector<64x64xf32>, vector<64x64xf32>, vector<64x64xf32>, vector<64x64xf32>, vector<64x64xf32>, vector<64x64xf32> -> vector<64x576xf32>
    %c0_118 = arith.constant 0 : index
    %c0_119 = arith.constant 0 : index
    %128 = vector.load %arg4[%c0_118, %c0_119] : memref<576x128xf32, #tpu.memory_space<vmem>>, vector<576x128xf32>
    %cst_120 = arith.constant dense<0.000000e+00> : vector<64x128xf32>
    %129 = tpu.matmul %127, %128, %cst_120 {dimension_numbers = #tpu.dot_dimension_numbers<[1], [0], [0], [1], [0, 0, 1, 1], [], []>} : vector<64x576xf32>, vector<576x128xf32>, vector<64x128xf32> -> vector<64x128xf32>
    %c0_121 = arith.constant 0 : index
    %c0_122 = arith.constant 0 : index
    %130 = vector.load %arg5[%c0_121, %c0_122] : memref<1x128xf32, #tpu.memory_space<vmem>>, vector<1x128xf32>
    %131 = vector.broadcast %130 : vector<1x128xf32> to vector<64x128xf32>
    %132 = arith.addf %129, %131 : vector<64x128xf32>
    %cst_123 = arith.constant 0.000000e+00 : f32
    %133 = vector.broadcast %cst_123 : f32 to vector<64x128xf32>
    %134 = arith.maximumf %132, %133 : vector<64x128xf32>
    %135 = vector.shape_cast %134 : vector<64x128xf32> to vector<4x16x128xf32>
    %136 = vector.extract_strided_slice %135 {offsets = [0, 0, 0], sizes = [1, 16, 128], strides = [1, 1, 1]} : vector<4x16x128xf32> to vector<1x16x128xf32>
    %137 = vector.shape_cast %136 : vector<1x16x128xf32> to vector<16x128xf32>
    %138 = vector.extract_strided_slice %135 {offsets = [1, 0, 0], sizes = [1, 16, 128], strides = [1, 1, 1]} : vector<4x16x128xf32> to vector<1x16x128xf32>
    %139 = vector.shape_cast %138 : vector<1x16x128xf32> to vector<16x128xf32>
    %140 = arith.maximumf %137, %139 : vector<16x128xf32>
    %141 = vector.shape_cast %140 : vector<16x128xf32> to vector<8x2x128xf32>
    %cst_124 = arith.constant dense<0xFF800000> : vector<8x128xf32>
    %142 = vector.multi_reduction <maximumf>, %141, %cst_124 [1] : vector<8x2x128xf32> to vector<8x128xf32>
    %c5_125 = arith.constant 5 : index
    %c1_126 = arith.constant 1 : index
    %c0_127 = arith.constant 0 : index
    %143 = vector.load %arg10[%c5_125, %c1_126, %c0_127] : memref<10x10x128xf32, #tpu.memory_space<vmem>>, vector<1x8x128xf32>
    %144 = vector.shape_cast %143 : vector<1x8x128xf32> to vector<8x128xf32>
    %145 = vector.shape_cast %142 : vector<8x128xf32> to vector<1x8x128xf32>
    tpu.vector_store %arg10[%c5_125, %c1_126, %c0_127], %145 {strides = array<i32>} : memref<10x10x128xf32, #tpu.memory_space<vmem>>, vector<1x8x128xf32>,
    %146 = vector.extract_strided_slice %135 {offsets = [2, 0, 0], sizes = [1, 16, 128], strides = [1, 1, 1]} : vector<4x16x128xf32> to vector<1x16x128xf32>
    %147 = vector.shape_cast %146 : vector<1x16x128xf32> to vector<16x128xf32>
    %148 = vector.extract_strided_slice %135 {offsets = [3, 0, 0], sizes = [1, 16, 128], strides = [1, 1, 1]} : vector<4x16x128xf32> to vector<1x16x128xf32>
    %149 = vector.shape_cast %148 : vector<1x16x128xf32> to vector<16x128xf32>
    %150 = arith.maximumf %147, %149 : vector<16x128xf32>
    %151 = vector.shape_cast %150 : vector<16x128xf32> to vector<8x2x128xf32>
    %cst_128 = arith.constant dense<0xFF800000> : vector<8x128xf32>
    %152 = vector.multi_reduction <maximumf>, %151, %cst_128 [1] : vector<8x2x128xf32> to vector<8x128xf32>
    %c6_129 = arith.constant 6 : index
    %c1_130 = arith.constant 1 : index
    %c0_131 = arith.constant 0 : index
    %153 = vector.load %arg10[%c6_129, %c1_130, %c0_131] : memref<10x10x128xf32, #tpu.memory_space<vmem>>, vector<1x8x128xf32>
    %154 = vector.shape_cast %153 : vector<1x8x128xf32> to vector<8x128xf32>
    %155 = vector.shape_cast %152 : vector<8x128xf32> to vector<1x8x128xf32>
    tpu.vector_store %arg10[%c6_129, %c1_130, %c0_131], %155 {strides = array<i32>} : memref<10x10x128xf32, #tpu.memory_space<vmem>>, vector<1x8x128xf32>,
    %c12 = arith.constant 12 : index
    %c0_132 = arith.constant 0 : index
    %c0_133 = arith.constant 0 : index
    %156 = vector.load %arg9[%c12, %c0_132, %c0_133] : memref<18x18x64xf32, #tpu.memory_space<vmem>>, vector<4x16x64xf32>
    %157 = vector.shape_cast %156 : vector<4x16x64xf32> to vector<64x64xf32>
    %c12_134 = arith.constant 12 : index
    %c1_135 = arith.constant 1 : index
    %c0_136 = arith.constant 0 : index
    %158 = vector.load %arg9[%c12_134, %c1_135, %c0_136] : memref<18x18x64xf32, #tpu.memory_space<vmem>>, vector<4x16x64xf32>
    %159 = vector.shape_cast %158 : vector<4x16x64xf32> to vector<64x64xf32>
    %c12_137 = arith.constant 12 : index
    %c2_138 = arith.constant 2 : index
    %c0_139 = arith.constant 0 : index
    %160 = vector.load %arg9[%c12_137, %c2_138, %c0_139] : memref<18x18x64xf32, #tpu.memory_space<vmem>>, vector<4x16x64xf32>
    %161 = vector.shape_cast %160 : vector<4x16x64xf32> to vector<64x64xf32>
    %c13 = arith.constant 13 : index
    %c0_140 = arith.constant 0 : index
    %c0_141 = arith.constant 0 : index
    %162 = vector.load %arg9[%c13, %c0_140, %c0_141] : memref<18x18x64xf32, #tpu.memory_space<vmem>>, vector<4x16x64xf32>
    %163 = vector.shape_cast %162 : vector<4x16x64xf32> to vector<64x64xf32>
    %c13_142 = arith.constant 13 : index
    %c1_143 = arith.constant 1 : index
    %c0_144 = arith.constant 0 : index
    %164 = vector.load %arg9[%c13_142, %c1_143, %c0_144] : memref<18x18x64xf32, #tpu.memory_space<vmem>>, vector<4x16x64xf32>
    %165 = vector.shape_cast %164 : vector<4x16x64xf32> to vector<64x64xf32>
    %c13_145 = arith.constant 13 : index
    %c2_146 = arith.constant 2 : index
    %c0_147 = arith.constant 0 : index
    %166 = vector.load %arg9[%c13_145, %c2_146, %c0_147] : memref<18x18x64xf32, #tpu.memory_space<vmem>>, vector<4x16x64xf32>
    %167 = vector.shape_cast %166 : vector<4x16x64xf32> to vector<64x64xf32>
    %c14 = arith.constant 14 : index
    %c0_148 = arith.constant 0 : index
    %c0_149 = arith.constant 0 : index
    %168 = vector.load %arg9[%c14, %c0_148, %c0_149] : memref<18x18x64xf32, #tpu.memory_space<vmem>>, vector<4x16x64xf32>
    %169 = vector.shape_cast %168 : vector<4x16x64xf32> to vector<64x64xf32>
    %c14_150 = arith.constant 14 : index
    %c1_151 = arith.constant 1 : index
    %c0_152 = arith.constant 0 : index
    %170 = vector.load %arg9[%c14_150, %c1_151, %c0_152] : memref<18x18x64xf32, #tpu.memory_space<vmem>>, vector<4x16x64xf32>
    %171 = vector.shape_cast %170 : vector<4x16x64xf32> to vector<64x64xf32>
    %c14_153 = arith.constant 14 : index
    %c2_154 = arith.constant 2 : index
    %c0_155 = arith.constant 0 : index
    %172 = vector.load %arg9[%c14_153, %c2_154, %c0_155] : memref<18x18x64xf32, #tpu.memory_space<vmem>>, vector<4x16x64xf32>
    %173 = vector.shape_cast %172 : vector<4x16x64xf32> to vector<64x64xf32>
    %174 = tpu.concatenate %157, %159, %161, %163, %165, %167, %169, %171, %173 in 1 : vector<64x64xf32>, vector<64x64xf32>, vector<64x64xf32>, vector<64x64xf32>, vector<64x64xf32>, vector<64x64xf32>, vector<64x64xf32>, vector<64x64xf32>, vector<64x64xf32> -> vector<64x576xf32>
    %c0_156 = arith.constant 0 : index
    %c0_157 = arith.constant 0 : index
    %175 = vector.load %arg4[%c0_156, %c0_157] : memref<576x128xf32, #tpu.memory_space<vmem>>, vector<576x128xf32>
    %cst_158 = arith.constant dense<0.000000e+00> : vector<64x128xf32>
    %176 = tpu.matmul %174, %175, %cst_158 {dimension_numbers = #tpu.dot_dimension_numbers<[1], [0], [0], [1], [0, 0, 1, 1], [], []>} : vector<64x576xf32>, vector<576x128xf32>, vector<64x128xf32> -> vector<64x128xf32>
    %c0_159 = arith.constant 0 : index
    %c0_160 = arith.constant 0 : index
    %177 = vector.load %arg5[%c0_159, %c0_160] : memref<1x128xf32, #tpu.memory_space<vmem>>, vector<1x128xf32>
    %178 = vector.broadcast %177 : vector<1x128xf32> to vector<64x128xf32>
    %179 = arith.addf %176, %178 : vector<64x128xf32>
    %cst_161 = arith.constant 0.000000e+00 : f32
    %180 = vector.broadcast %cst_161 : f32 to vector<64x128xf32>
    %181 = arith.maximumf %179, %180 : vector<64x128xf32>
    %182 = vector.shape_cast %181 : vector<64x128xf32> to vector<4x16x128xf32>
    %183 = vector.extract_strided_slice %182 {offsets = [0, 0, 0], sizes = [1, 16, 128], strides = [1, 1, 1]} : vector<4x16x128xf32> to vector<1x16x128xf32>
    %184 = vector.shape_cast %183 : vector<1x16x128xf32> to vector<16x128xf32>
    %185 = vector.extract_strided_slice %182 {offsets = [1, 0, 0], sizes = [1, 16, 128], strides = [1, 1, 1]} : vector<4x16x128xf32> to vector<1x16x128xf32>
    %186 = vector.shape_cast %185 : vector<1x16x128xf32> to vector<16x128xf32>
    %187 = arith.maximumf %184, %186 : vector<16x128xf32>
    %188 = vector.shape_cast %187 : vector<16x128xf32> to vector<8x2x128xf32>
    %cst_162 = arith.constant dense<0xFF800000> : vector<8x128xf32>
    %189 = vector.multi_reduction <maximumf>, %188, %cst_162 [1] : vector<8x2x128xf32> to vector<8x128xf32>
    %c7 = arith.constant 7 : index
    %c1_163 = arith.constant 1 : index
    %c0_164 = arith.constant 0 : index
    %190 = vector.load %arg10[%c7, %c1_163, %c0_164] : memref<10x10x128xf32, #tpu.memory_space<vmem>>, vector<1x8x128xf32>
    %191 = vector.shape_cast %190 : vector<1x8x128xf32> to vector<8x128xf32>
    %192 = vector.shape_cast %189 : vector<8x128xf32> to vector<1x8x128xf32>
    tpu.vector_store %arg10[%c7, %c1_163, %c0_164], %192 {strides = array<i32>} : memref<10x10x128xf32, #tpu.memory_space<vmem>>, vector<1x8x128xf32>,
    %193 = vector.extract_strided_slice %182 {offsets = [2, 0, 0], sizes = [1, 16, 128], strides = [1, 1, 1]} : vector<4x16x128xf32> to vector<1x16x128xf32>
    %194 = vector.shape_cast %193 : vector<1x16x128xf32> to vector<16x128xf32>
    %195 = vector.extract_strided_slice %182 {offsets = [3, 0, 0], sizes = [1, 16, 128], strides = [1, 1, 1]} : vector<4x16x128xf32> to vector<1x16x128xf32>
    %196 = vector.shape_cast %195 : vector<1x16x128xf32> to vector<16x128xf32>
    %197 = arith.maximumf %194, %196 : vector<16x128xf32>
    %198 = vector.shape_cast %197 : vector<16x128xf32> to vector<8x2x128xf32>
    %cst_165 = arith.constant dense<0xFF800000> : vector<8x128xf32>
    %199 = vector.multi_reduction <maximumf>, %198, %cst_165 [1] : vector<8x2x128xf32> to vector<8x128xf32>
    %c8_166 = arith.constant 8 : index
    %c1_167 = arith.constant 1 : index
    %c0_168 = arith.constant 0 : index
    %200 = vector.load %arg10[%c8_166, %c1_167, %c0_168] : memref<10x10x128xf32, #tpu.memory_space<vmem>>, vector<1x8x128xf32>
    %201 = vector.shape_cast %200 : vector<1x8x128xf32> to vector<8x128xf32>
    %202 = vector.shape_cast %199 : vector<8x128xf32> to vector<1x8x128xf32>
    tpu.vector_store %arg10[%c8_166, %c1_167, %c0_168], %202 {strides = array<i32>} : memref<10x10x128xf32, #tpu.memory_space<vmem>>, vector<1x8x128xf32>,
    %c0_169 = arith.constant 0 : index
    %c0_170 = arith.constant 0 : index
    %c0_171 = arith.constant 0 : index
    %203 = vector.load %arg10[%c0_169, %c0_170, %c0_171] : memref<10x10x128xf32, #tpu.memory_space<vmem>>, vector<4x8x128xf32>
    %204 = vector.shape_cast %203 : vector<4x8x128xf32> to vector<32x128xf32>
    %c0_172 = arith.constant 0 : index
    %c1_173 = arith.constant 1 : index
    %c0_174 = arith.constant 0 : index
    %205 = vector.load %arg10[%c0_172, %c1_173, %c0_174] : memref<10x10x128xf32, #tpu.memory_space<vmem>>, vector<4x8x128xf32>
    %206 = vector.shape_cast %205 : vector<4x8x128xf32> to vector<32x128xf32>
    %c0_175 = arith.constant 0 : index
    %c2_176 = arith.constant 2 : index
    %c0_177 = arith.constant 0 : index
    %207 = vector.load %arg10[%c0_175, %c2_176, %c0_177] : memref<10x10x128xf32, #tpu.memory_space<vmem>>, vector<4x8x128xf32>
    %208 = vector.shape_cast %207 : vector<4x8x128xf32> to vector<32x128xf32>
    %c1_178 = arith.constant 1 : index
    %c0_179 = arith.constant 0 : index
    %c0_180 = arith.constant 0 : index
    %209 = vector.load %arg10[%c1_178, %c0_179, %c0_180] : memref<10x10x128xf32, #tpu.memory_space<vmem>>, vector<4x8x128xf32>
    %210 = vector.shape_cast %209 : vector<4x8x128xf32> to vector<32x128xf32>
    %c1_181 = arith.constant 1 : index
    %c1_182 = arith.constant 1 : index
    %c0_183 = arith.constant 0 : index
    %211 = vector.load %arg10[%c1_181, %c1_182, %c0_183] : memref<10x10x128xf32, #tpu.memory_space<vmem>>, vector<4x8x128xf32>
    %212 = vector.shape_cast %211 : vector<4x8x128xf32> to vector<32x128xf32>
    %c1_184 = arith.constant 1 : index
    %c2_185 = arith.constant 2 : index
    %c0_186 = arith.constant 0 : index
    %213 = vector.load %arg10[%c1_184, %c2_185, %c0_186] : memref<10x10x128xf32, #tpu.memory_space<vmem>>, vector<4x8x128xf32>
    %214 = vector.shape_cast %213 : vector<4x8x128xf32> to vector<32x128xf32>
    %c2_187 = arith.constant 2 : index
    %c0_188 = arith.constant 0 : index
    %c0_189 = arith.constant 0 : index
    %215 = vector.load %arg10[%c2_187, %c0_188, %c0_189] : memref<10x10x128xf32, #tpu.memory_space<vmem>>, vector<4x8x128xf32>
    %216 = vector.shape_cast %215 : vector<4x8x128xf32> to vector<32x128xf32>
    %c2_190 = arith.constant 2 : index
    %c1_191 = arith.constant 1 : index
    %c0_192 = arith.constant 0 : index
    %217 = vector.load %arg10[%c2_190, %c1_191, %c0_192] : memref<10x10x128xf32, #tpu.memory_space<vmem>>, vector<4x8x128xf32>
    %218 = vector.shape_cast %217 : vector<4x8x128xf32> to vector<32x128xf32>
    %c2_193 = arith.constant 2 : index
    %c2_194 = arith.constant 2 : index
    %c0_195 = arith.constant 0 : index
    %219 = vector.load %arg10[%c2_193, %c2_194, %c0_195] : memref<10x10x128xf32, #tpu.memory_space<vmem>>, vector<4x8x128xf32>
    %220 = vector.shape_cast %219 : vector<4x8x128xf32> to vector<32x128xf32>
    %221 = tpu.concatenate %204, %206, %208, %210, %212, %214, %216, %218, %220 in 1 : vector<32x128xf32>, vector<32x128xf32>, vector<32x128xf32>, vector<32x128xf32>, vector<32x128xf32>, vector<32x128xf32>, vector<32x128xf32>, vector<32x128xf32>, vector<32x128xf32> -> vector<32x1152xf32>
    %c0_196 = arith.constant 0 : index
    %c0_197 = arith.constant 0 : index
    %222 = vector.load %arg6[%c0_196, %c0_197] : memref<1152x256xf32, #tpu.memory_space<vmem>>, vector<1152x256xf32>
    %cst_198 = arith.constant dense<0.000000e+00> : vector<32x256xf32>
    %223 = tpu.matmul %221, %222, %cst_198 {dimension_numbers = #tpu.dot_dimension_numbers<[1], [0], [0], [1], [0, 0, 1, 1], [], []>} : vector<32x1152xf32>, vector<1152x256xf32>, vector<32x256xf32> -> vector<32x256xf32>
    %c0_199 = arith.constant 0 : index
    %c0_200 = arith.constant 0 : index
    %224 = vector.load %arg7[%c0_199, %c0_200] : memref<1x256xf32, #tpu.memory_space<vmem>>, vector<1x256xf32>
    %225 = vector.broadcast %224 : vector<1x256xf32> to vector<32x256xf32>
    %226 = arith.addf %223, %225 : vector<32x256xf32>
    %cst_201 = arith.constant 0.000000e+00 : f32
    %227 = vector.broadcast %cst_201 : f32 to vector<32x256xf32>
    %228 = arith.maximumf %226, %227 : vector<32x256xf32>
    %229 = vector.shape_cast %228 : vector<32x256xf32> to vector<4x8x256xf32>
    %230 = vector.extract_strided_slice %229 {offsets = [0, 0, 0], sizes = [1, 8, 256], strides = [1, 1, 1]} : vector<4x8x256xf32> to vector<1x8x256xf32>
    %231 = vector.shape_cast %230 : vector<1x8x256xf32> to vector<8x256xf32>
    %232 = vector.extract_strided_slice %229 {offsets = [1, 0, 0], sizes = [1, 8, 256], strides = [1, 1, 1]} : vector<4x8x256xf32> to vector<1x8x256xf32>
    %233 = vector.shape_cast %232 : vector<1x8x256xf32> to vector<8x256xf32>
    %234 = arith.addf %231, %233 : vector<8x256xf32>
    %235 = vector.shape_cast %234 : vector<8x256xf32> to vector<4x2x256xf32>
    %cst_202 = arith.constant dense<0.000000e+00> : vector<4x256xf32>
    %236 = vector.multi_reduction <add>, %235, %cst_202 [1] : vector<4x2x256xf32> to vector<4x256xf32>
    %cst_203 = arith.constant 2.500000e-01 : f32
    %237 = vector.broadcast %cst_203 : f32 to vector<4x256xf32>
    %238 = arith.mulf %236, %237 : vector<4x256xf32>
    %c0_204 = arith.constant 0 : index
    %c0_205 = arith.constant 0 : index
    %c0_206 = arith.constant 0 : index
    %239 = vector.load %arg8[%c0_204, %c0_205, %c0_206] : memref<1x16x256xf32, #tpu.memory_space<vmem>>, vector<1x4x256xf32>
    %240 = vector.shape_cast %239 : vector<1x4x256xf32> to vector<4x256xf32>
    %241 = vector.shape_cast %238 : vector<4x256xf32> to vector<1x4x256xf32>
    tpu.vector_store %arg8[%c0_204, %c0_205, %c0_206], %241 {strides = array<i32>} : memref<1x16x256xf32, #tpu.memory_space<vmem>>, vector<1x4x256xf32>,
    %242 = vector.extract_strided_slice %229 {offsets = [2, 0, 0], sizes = [1, 8, 256], strides = [1, 1, 1]} : vector<4x8x256xf32> to vector<1x8x256xf32>
    %243 = vector.shape_cast %242 : vector<1x8x256xf32> to vector<8x256xf32>
    %244 = vector.extract_strided_slice %229 {offsets = [3, 0, 0], sizes = [1, 8, 256], strides = [1, 1, 1]} : vector<4x8x256xf32> to vector<1x8x256xf32>
    %245 = vector.shape_cast %244 : vector<1x8x256xf32> to vector<8x256xf32>
    %246 = arith.addf %243, %245 : vector<8x256xf32>
    %247 = vector.shape_cast %246 : vector<8x256xf32> to vector<4x2x256xf32>
    %cst_207 = arith.constant dense<0.000000e+00> : vector<4x256xf32>
    %248 = vector.multi_reduction <add>, %247, %cst_207 [1] : vector<4x2x256xf32> to vector<4x256xf32>
    %cst_208 = arith.constant 2.500000e-01 : f32
    %249 = vector.broadcast %cst_208 : f32 to vector<4x256xf32>
    %250 = arith.mulf %248, %249 : vector<4x256xf32>
    %c0_209 = arith.constant 0 : index
    %c4_210 = arith.constant 4 : index
    %c0_211 = arith.constant 0 : index
    %251 = vector.load %arg8[%c0_209, %c4_210, %c0_211] : memref<1x16x256xf32, #tpu.memory_space<vmem>>, vector<1x4x256xf32>
    %252 = vector.shape_cast %251 : vector<1x4x256xf32> to vector<4x256xf32>
    %253 = vector.shape_cast %250 : vector<4x256xf32> to vector<1x4x256xf32>
    tpu.vector_store %arg8[%c0_209, %c4_210, %c0_211], %253 {strides = array<i32>} : memref<1x16x256xf32, #tpu.memory_space<vmem>>, vector<1x4x256xf32>,
    %c4_212 = arith.constant 4 : index
    %c0_213 = arith.constant 0 : index
    %c0_214 = arith.constant 0 : index
    %254 = vector.load %arg10[%c4_212, %c0_213, %c0_214] : memref<10x10x128xf32, #tpu.memory_space<vmem>>, vector<4x8x128xf32>
    %255 = vector.shape_cast %254 : vector<4x8x128xf32> to vector<32x128xf32>
    %c4_215 = arith.constant 4 : index
    %c1_216 = arith.constant 1 : index
    %c0_217 = arith.constant 0 : index
    %256 = vector.load %arg10[%c4_215, %c1_216, %c0_217] : memref<10x10x128xf32, #tpu.memory_space<vmem>>, vector<4x8x128xf32>
    %257 = vector.shape_cast %256 : vector<4x8x128xf32> to vector<32x128xf32>
    %c4_218 = arith.constant 4 : index
    %c2_219 = arith.constant 2 : index
    %c0_220 = arith.constant 0 : index
    %258 = vector.load %arg10[%c4_218, %c2_219, %c0_220] : memref<10x10x128xf32, #tpu.memory_space<vmem>>, vector<4x8x128xf32>
    %259 = vector.shape_cast %258 : vector<4x8x128xf32> to vector<32x128xf32>
    %c5_221 = arith.constant 5 : index
    %c0_222 = arith.constant 0 : index
    %c0_223 = arith.constant 0 : index
    %260 = vector.load %arg10[%c5_221, %c0_222, %c0_223] : memref<10x10x128xf32, #tpu.memory_space<vmem>>, vector<4x8x128xf32>
    %261 = vector.shape_cast %260 : vector<4x8x128xf32> to vector<32x128xf32>
    %c5_224 = arith.constant 5 : index
    %c1_225 = arith.constant 1 : index
    %c0_226 = arith.constant 0 : index
    %262 = vector.load %arg10[%c5_224, %c1_225, %c0_226] : memref<10x10x128xf32, #tpu.memory_space<vmem>>, vector<4x8x128xf32>
    %263 = vector.shape_cast %262 : vector<4x8x128xf32> to vector<32x128xf32>
    %c5_227 = arith.constant 5 : index
    %c2_228 = arith.constant 2 : index
    %c0_229 = arith.constant 0 : index
    %264 = vector.load %arg10[%c5_227, %c2_228, %c0_229] : memref<10x10x128xf32, #tpu.memory_space<vmem>>, vector<4x8x128xf32>
    %265 = vector.shape_cast %264 : vector<4x8x128xf32> to vector<32x128xf32>
    %c6_230 = arith.constant 6 : index
    %c0_231 = arith.constant 0 : index
    %c0_232 = arith.constant 0 : index
    %266 = vector.load %arg10[%c6_230, %c0_231, %c0_232] : memref<10x10x128xf32, #tpu.memory_space<vmem>>, vector<4x8x128xf32>
    %267 = vector.shape_cast %266 : vector<4x8x128xf32> to vector<32x128xf32>
    %c6_233 = arith.constant 6 : index
    %c1_234 = arith.constant 1 : index
    %c0_235 = arith.constant 0 : index
    %268 = vector.load %arg10[%c6_233, %c1_234, %c0_235] : memref<10x10x128xf32, #tpu.memory_space<vmem>>, vector<4x8x128xf32>
    %269 = vector.shape_cast %268 : vector<4x8x128xf32> to vector<32x128xf32>
    %c6_236 = arith.constant 6 : index
    %c2_237 = arith.constant 2 : index
    %c0_238 = arith.constant 0 : index
    %270 = vector.load %arg10[%c6_236, %c2_237, %c0_238] : memref<10x10x128xf32, #tpu.memory_space<vmem>>, vector<4x8x128xf32>
    %271 = vector.shape_cast %270 : vector<4x8x128xf32> to vector<32x128xf32>
    %272 = tpu.concatenate %255, %257, %259, %261, %263, %265, %267, %269, %271 in 1 : vector<32x128xf32>, vector<32x128xf32>, vector<32x128xf32>, vector<32x128xf32>, vector<32x128xf32>, vector<32x128xf32>, vector<32x128xf32>, vector<32x128xf32>, vector<32x128xf32> -> vector<32x1152xf32>
    %c0_239 = arith.constant 0 : index
    %c0_240 = arith.constant 0 : index
    %273 = vector.load %arg6[%c0_239, %c0_240] : memref<1152x256xf32, #tpu.memory_space<vmem>>, vector<1152x256xf32>
    %cst_241 = arith.constant dense<0.000000e+00> : vector<32x256xf32>
    %274 = tpu.matmul %272, %273, %cst_241 {dimension_numbers = #tpu.dot_dimension_numbers<[1], [0], [0], [1], [0, 0, 1, 1], [], []>} : vector<32x1152xf32>, vector<1152x256xf32>, vector<32x256xf32> -> vector<32x256xf32>
    %c0_242 = arith.constant 0 : index
    %c0_243 = arith.constant 0 : index
    %275 = vector.load %arg7[%c0_242, %c0_243] : memref<1x256xf32, #tpu.memory_space<vmem>>, vector<1x256xf32>
    %276 = vector.broadcast %275 : vector<1x256xf32> to vector<32x256xf32>
    %277 = arith.addf %274, %276 : vector<32x256xf32>
    %cst_244 = arith.constant 0.000000e+00 : f32
    %278 = vector.broadcast %cst_244 : f32 to vector<32x256xf32>
    %279 = arith.maximumf %277, %278 : vector<32x256xf32>
    %280 = vector.shape_cast %279 : vector<32x256xf32> to vector<4x8x256xf32>
    %281 = vector.extract_strided_slice %280 {offsets = [0, 0, 0], sizes = [1, 8, 256], strides = [1, 1, 1]} : vector<4x8x256xf32> to vector<1x8x256xf32>
    %282 = vector.shape_cast %281 : vector<1x8x256xf32> to vector<8x256xf32>
    %283 = vector.extract_strided_slice %280 {offsets = [1, 0, 0], sizes = [1, 8, 256], strides = [1, 1, 1]} : vector<4x8x256xf32> to vector<1x8x256xf32>
    %284 = vector.shape_cast %283 : vector<1x8x256xf32> to vector<8x256xf32>
    %285 = arith.addf %282, %284 : vector<8x256xf32>
    %286 = vector.shape_cast %285 : vector<8x256xf32> to vector<4x2x256xf32>
    %cst_245 = arith.constant dense<0.000000e+00> : vector<4x256xf32>
    %287 = vector.multi_reduction <add>, %286, %cst_245 [1] : vector<4x2x256xf32> to vector<4x256xf32>
    %cst_246 = arith.constant 2.500000e-01 : f32
    %288 = vector.broadcast %cst_246 : f32 to vector<4x256xf32>
    %289 = arith.mulf %287, %288 : vector<4x256xf32>
    %c0_247 = arith.constant 0 : index
    %c8_248 = arith.constant 8 : index
    %c0_249 = arith.constant 0 : index
    %290 = vector.load %arg8[%c0_247, %c8_248, %c0_249] : memref<1x16x256xf32, #tpu.memory_space<vmem>>, vector<1x4x256xf32>
    %291 = vector.shape_cast %290 : vector<1x4x256xf32> to vector<4x256xf32>
    %292 = vector.shape_cast %289 : vector<4x256xf32> to vector<1x4x256xf32>
    tpu.vector_store %arg8[%c0_247, %c8_248, %c0_249], %292 {strides = array<i32>} : memref<1x16x256xf32, #tpu.memory_space<vmem>>, vector<1x4x256xf32>,
    %293 = vector.extract_strided_slice %280 {offsets = [2, 0, 0], sizes = [1, 8, 256], strides = [1, 1, 1]} : vector<4x8x256xf32> to vector<1x8x256xf32>
    %294 = vector.shape_cast %293 : vector<1x8x256xf32> to vector<8x256xf32>
    %295 = vector.extract_strided_slice %280 {offsets = [3, 0, 0], sizes = [1, 8, 256], strides = [1, 1, 1]} : vector<4x8x256xf32> to vector<1x8x256xf32>
    %296 = vector.shape_cast %295 : vector<1x8x256xf32> to vector<8x256xf32>
    %297 = arith.addf %294, %296 : vector<8x256xf32>
    %298 = vector.shape_cast %297 : vector<8x256xf32> to vector<4x2x256xf32>
    %cst_250 = arith.constant dense<0.000000e+00> : vector<4x256xf32>
    %299 = vector.multi_reduction <add>, %298, %cst_250 [1] : vector<4x2x256xf32> to vector<4x256xf32>
    %cst_251 = arith.constant 2.500000e-01 : f32
    %300 = vector.broadcast %cst_251 : f32 to vector<4x256xf32>
    %301 = arith.mulf %299, %300 : vector<4x256xf32>
    %c0_252 = arith.constant 0 : index
    %c12_253 = arith.constant 12 : index
    %c0_254 = arith.constant 0 : index
    %302 = vector.load %arg8[%c0_252, %c12_253, %c0_254] : memref<1x16x256xf32, #tpu.memory_space<vmem>>, vector<1x4x256xf32>
    %303 = vector.shape_cast %302 : vector<1x4x256xf32> to vector<4x256xf32>
    %304 = vector.shape_cast %301 : vector<4x256xf32> to vector<1x4x256xf32>
    tpu.vector_store %arg8[%c0_252, %c12_253, %c0_254], %304 {strides = array<i32>} : memref<1x16x256xf32, #tpu.memory_space<vmem>>, vector<1x4x256xf32>,
    return
  }
  func.func @transform_0(%arg0: i32) -> (i32, i32, i32) {
    %c0_i32 = arith.constant 0 : i32
    %c0_i32_0 = arith.constant 0 : i32
    %c0_i32_1 = arith.constant 0 : i32
    return %arg0, %c0_i32, %c0_i32_0 : i32, i32, i32
  }
  func.func @transform_1(%arg0: i32) -> (i32, i32) {
    %c0_i32 = arith.constant 0 : i32
    %c0_i32_0 = arith.constant 0 : i32
    %c0_i32_1 = arith.constant 0 : i32
    return %c0_i32, %c0_i32_0 : i32, i32
  }
  func.func @transform_2(%arg0: i32) -> (i32, i32) {
    %c0_i32 = arith.constant 0 : i32
    %c0_i32_0 = arith.constant 0 : i32
    %c0_i32_1 = arith.constant 0 : i32
    return %c0_i32, %c0_i32_0 : i32, i32
  }
  func.func @transform_3(%arg0: i32) -> (i32, i32) {
    %c0_i32 = arith.constant 0 : i32
    %c0_i32_0 = arith.constant 0 : i32
    %c0_i32_1 = arith.constant 0 : i32
    return %c0_i32, %c0_i32_0 : i32, i32
  }
  func.func @transform_4(%arg0: i32) -> (i32, i32) {
    %c0_i32 = arith.constant 0 : i32
    %c0_i32_0 = arith.constant 0 : i32
    %c0_i32_1 = arith.constant 0 : i32
    return %c0_i32, %c0_i32_0 : i32, i32
  }
  func.func @transform_5(%arg0: i32) -> (i32, i32) {
    %c0_i32 = arith.constant 0 : i32
    %c0_i32_0 = arith.constant 0 : i32
    %c0_i32_1 = arith.constant 0 : i32
    return %c0_i32, %c0_i32_0 : i32, i32
  }
  func.func @transform_6(%arg0: i32) -> (i32, i32) {
    %c0_i32 = arith.constant 0 : i32
    %c0_i32_0 = arith.constant 0 : i32
    %c0_i32_1 = arith.constant 0 : i32
    return %c0_i32, %c0_i32_0 : i32, i32
  }
  func.func @transform_7(%arg0: i32) -> (i32, i32, i32) {
    %c0_i32 = arith.constant 0 : i32
    %c0_i32_0 = arith.constant 0 : i32
    %c0_i32_1 = arith.constant 0 : i32
    return %arg0, %c0_i32, %c0_i32_0 : i32, i32, i32
  }
}

module attributes {stable_mosaic.version = 11 : i64} {
  func.func @_classifier_kernel(%arg0: i32, %arg1: memref<2x1024xf32, #tpu.memory_space<vmem>>, %arg2: memref<1024x512xbf16, #tpu.memory_space<vmem>>, %arg3: memref<1x512xf32, #tpu.memory_space<vmem>>, %arg4: memref<512x128xbf16, #tpu.memory_space<vmem>>, %arg5: memref<1x128xf32, #tpu.memory_space<vmem>>, %arg6: memref<128x10xbf16, #tpu.memory_space<vmem>>, %arg7: memref<1x10xf32, #tpu.memory_space<vmem>>, %arg8: memref<2x10xf32, #tpu.memory_space<vmem>>, %arg9: memref<2x512xf32, #tpu.memory_space<vmem>>) attributes {dimension_semantics = [#tpu.dimension_semantics<arbitrary>], iteration_bounds = array<i64: 4>, scalar_prefetch = 0 : i64, scratch_operands = 1 : i64, tpu.core_type = #tpu.core_type<tc>, window_params = [{transform_indices = @transform_0, window_bounds = array<i64: 2, 1024>}, {transform_indices = @transform_1, window_bounds = array<i64: 1024, 512>}, {pipeline_mode = #tpu.pipeline_mode<synchronous>, transform_indices = @transform_2, window_bounds = array<i64: 1, 512>}, {pipeline_mode = #tpu.pipeline_mode<synchronous>, transform_indices = @transform_3, window_bounds = array<i64: 512, 128>}, {pipeline_mode = #tpu.pipeline_mode<synchronous>, transform_indices = @transform_4, window_bounds = array<i64: 1, 128>}, {pipeline_mode = #tpu.pipeline_mode<synchronous>, transform_indices = @transform_5, window_bounds = array<i64: 128, 10>}, {pipeline_mode = #tpu.pipeline_mode<synchronous>, transform_indices = @transform_6, window_bounds = array<i64: 1, 10>}, {pipeline_mode = #tpu.pipeline_mode<synchronous>, transform_indices = @transform_7, window_bounds = array<i64: 2, 10>}]} {
    %c0_i32 = arith.constant 0 : i32
    %0 = arith.cmpi eq, %arg0, %c0_i32 : i32
    %1 = arith.extui %0 : i1 to i32
    %c0_i32_0 = arith.constant 0 : i32
    %2 = arith.cmpi ne, %1, %c0_i32_0 : i32
    scf.if %2 {
      %cst_9 = arith.constant 0.000000e+00 : f32
      %13 = vector.broadcast %cst_9 : f32 to vector<2x512xf32>
      %c0_10 = arith.constant 0 : index
      %c0_11 = arith.constant 0 : index
      %14 = vector.load %arg9[%c0_10, %c0_11] : memref<2x512xf32, #tpu.memory_space<vmem>>, vector<2x512xf32>
      tpu.vector_store %arg9[%c0_10, %c0_11], %13 {strides = array<i32>} : memref<2x512xf32, #tpu.memory_space<vmem>>, vector<2x512xf32>,
    } else {
    }
    %c0 = arith.constant 0 : index
    %c0_1 = arith.constant 0 : index
    %3 = vector.load %arg9[%c0, %c0_1] : memref<2x512xf32, #tpu.memory_space<vmem>>, vector<2x512xf32>
    %c0_2 = arith.constant 0 : index
    %c0_3 = arith.constant 0 : index
    %4 = vector.load %arg1[%c0_2, %c0_3] : memref<2x1024xf32, #tpu.memory_space<vmem>>, vector<2x1024xf32>
    %5 = arith.truncf %4 : vector<2x1024xf32> to vector<2x1024xbf16>
    %c0_4 = arith.constant 0 : index
    %c0_5 = arith.constant 0 : index
    %6 = vector.load %arg2[%c0_4, %c0_5] : memref<1024x512xbf16, #tpu.memory_space<vmem>>, vector<1024x512xbf16>
    %cst = arith.constant dense<0.000000e+00> : vector<2x512xf32>
    %7 = tpu.matmul %5, %6, %cst {dimension_numbers = #tpu.dot_dimension_numbers<[1], [0], [0], [1], [0, 0, 1, 1], [], []>} : vector<2x1024xbf16>, vector<1024x512xbf16>, vector<2x512xf32> -> vector<2x512xf32>
    %8 = arith.addf %3, %7 : vector<2x512xf32>
    %c0_6 = arith.constant 0 : index
    %c0_7 = arith.constant 0 : index
    %9 = vector.load %arg9[%c0_6, %c0_7] : memref<2x512xf32, #tpu.memory_space<vmem>>, vector<2x512xf32>
    tpu.vector_store %arg9[%c0_6, %c0_7], %8 {strides = array<i32>} : memref<2x512xf32, #tpu.memory_space<vmem>>, vector<2x512xf32>,
    %c3_i32 = arith.constant 3 : i32
    %10 = arith.cmpi eq, %arg0, %c3_i32 : i32
    %11 = arith.extui %10 : i1 to i32
    %c0_i32_8 = arith.constant 0 : i32
    %12 = arith.cmpi ne, %11, %c0_i32_8 : i32
    scf.if %12 {
      %c0_9 = arith.constant 0 : index
      %c0_10 = arith.constant 0 : index
      %13 = vector.load %arg9[%c0_9, %c0_10] : memref<2x512xf32, #tpu.memory_space<vmem>>, vector<2x512xf32>
      %c0_11 = arith.constant 0 : index
      %c0_12 = arith.constant 0 : index
      %14 = vector.load %arg3[%c0_11, %c0_12] : memref<1x512xf32, #tpu.memory_space<vmem>>, vector<1x512xf32>
      %15 = vector.broadcast %14 : vector<1x512xf32> to vector<2x512xf32>
      %16 = arith.addf %13, %15 : vector<2x512xf32>
      %cst_13 = arith.constant 0.000000e+00 : f32
      %17 = vector.broadcast %cst_13 : f32 to vector<2x512xf32>
      %18 = arith.maximumf %16, %17 : vector<2x512xf32>
      %19 = arith.truncf %18 : vector<2x512xf32> to vector<2x512xbf16>
      %c0_14 = arith.constant 0 : index
      %c0_15 = arith.constant 0 : index
      %20 = vector.load %arg4[%c0_14, %c0_15] : memref<512x128xbf16, #tpu.memory_space<vmem>>, vector<512x128xbf16>
      %cst_16 = arith.constant dense<0.000000e+00> : vector<2x128xf32>
      %21 = tpu.matmul %19, %20, %cst_16 {dimension_numbers = #tpu.dot_dimension_numbers<[1], [0], [0], [1], [0, 0, 1, 1], [], []>} : vector<2x512xbf16>, vector<512x128xbf16>, vector<2x128xf32> -> vector<2x128xf32>
      %c0_17 = arith.constant 0 : index
      %c0_18 = arith.constant 0 : index
      %22 = vector.load %arg5[%c0_17, %c0_18] : memref<1x128xf32, #tpu.memory_space<vmem>>, vector<1x128xf32>
      %23 = vector.broadcast %22 : vector<1x128xf32> to vector<2x128xf32>
      %24 = arith.addf %21, %23 : vector<2x128xf32>
      %cst_19 = arith.constant 0.000000e+00 : f32
      %25 = vector.broadcast %cst_19 : f32 to vector<2x128xf32>
      %26 = arith.maximumf %24, %25 : vector<2x128xf32>
      %27 = arith.truncf %26 : vector<2x128xf32> to vector<2x128xbf16>
      %c0_20 = arith.constant 0 : index
      %c0_21 = arith.constant 0 : index
      %28 = vector.load %arg6[%c0_20, %c0_21] : memref<128x10xbf16, #tpu.memory_space<vmem>>, vector<128x10xbf16>
      %cst_22 = arith.constant dense<0.000000e+00> : vector<2x10xf32>
      %29 = tpu.matmul %27, %28, %cst_22 {dimension_numbers = #tpu.dot_dimension_numbers<[1], [0], [0], [1], [0, 0, 1, 1], [], []>} : vector<2x128xbf16>, vector<128x10xbf16>, vector<2x10xf32> -> vector<2x10xf32>
      %c0_23 = arith.constant 0 : index
      %c0_24 = arith.constant 0 : index
      %30 = vector.load %arg7[%c0_23, %c0_24] : memref<1x10xf32, #tpu.memory_space<vmem>>, vector<1x10xf32>
      %31 = vector.broadcast %30 : vector<1x10xf32> to vector<2x10xf32>
      %32 = arith.addf %29, %31 : vector<2x10xf32>
      %c0_25 = arith.constant 0 : index
      %c0_26 = arith.constant 0 : index
      %33 = vector.load %arg8[%c0_25, %c0_26] : memref<2x10xf32, #tpu.memory_space<vmem>>, vector<2x10xf32>
      tpu.vector_store %arg8[%c0_25, %c0_26], %32 {strides = array<i32>} : memref<2x10xf32, #tpu.memory_space<vmem>>, vector<2x10xf32>,
    } else {
    }
    return
  }
  func.func @transform_0(%arg0: i32) -> (i32, i32) {
    %c0_i32 = arith.constant 0 : i32
    %c0_i32_0 = arith.constant 0 : i32
    return %c0_i32, %arg0 : i32, i32
  }
  func.func @transform_1(%arg0: i32) -> (i32, i32) {
    %c0_i32 = arith.constant 0 : i32
    %c0_i32_0 = arith.constant 0 : i32
    return %arg0, %c0_i32 : i32, i32
  }
  func.func @transform_2(%arg0: i32) -> (i32, i32) {
    %c0_i32 = arith.constant 0 : i32
    %c0_i32_0 = arith.constant 0 : i32
    %c0_i32_1 = arith.constant 0 : i32
    return %c0_i32, %c0_i32_0 : i32, i32
  }
  func.func @transform_3(%arg0: i32) -> (i32, i32) {
    %c0_i32 = arith.constant 0 : i32
    %c0_i32_0 = arith.constant 0 : i32
    %c0_i32_1 = arith.constant 0 : i32
    return %c0_i32, %c0_i32_0 : i32, i32
  }
  func.func @transform_4(%arg0: i32) -> (i32, i32) {
    %c0_i32 = arith.constant 0 : i32
    %c0_i32_0 = arith.constant 0 : i32
    %c0_i32_1 = arith.constant 0 : i32
    return %c0_i32, %c0_i32_0 : i32, i32
  }
  func.func @transform_5(%arg0: i32) -> (i32, i32) {
    %c0_i32 = arith.constant 0 : i32
    %c0_i32_0 = arith.constant 0 : i32
    %c0_i32_1 = arith.constant 0 : i32
    return %c0_i32, %c0_i32_0 : i32, i32
  }
  func.func @transform_6(%arg0: i32) -> (i32, i32) {
    %c0_i32 = arith.constant 0 : i32
    %c0_i32_0 = arith.constant 0 : i32
    %c0_i32_1 = arith.constant 0 : i32
    return %c0_i32, %c0_i32_0 : i32, i32
  }
  func.func @transform_7(%arg0: i32) -> (i32, i32) {
    %c0_i32 = arith.constant 0 : i32
    %c0_i32_0 = arith.constant 0 : i32
    %c0_i32_1 = arith.constant 0 : i32
    return %c0_i32, %c0_i32_0 : i32, i32
  }
}

</mosaic_0001>

<llo_original>
// kernel: demo_net_forward.3
$region0: #{demo_net_forward.3}
  #allocation0 [shape = 'u32[]', space=smem, size = 0x4, offset = 0x4, fixed_abs, tag = 'smem constant byte address 0x4 - core index']
  #allocation1 [shape = 'u32[144,128]{1,0:T(1,128)}', space=vmem, size = 0x12000, scoped, tag = 'internal scratch']
  #allocation2 [shape = 'f32[2,512]{1,0:T(2,128)}', space=vmem, size = 0x1000, scoped, tag = 'scratch operand']
  %s0 = inlined_call_operand.vmem [shape: f32[2,4096], index: 0, kind: input, shape index: {}]
  %s1 = inlined_call_operand.hbm [shape: bf16[4096,512], index: 1, kind: input, shape index: {}]
  %s2 = inlined_call_operand.hbm [shape: f32[1,512], index: 2, kind: input, shape index: {}]
  %s3 = inlined_call_operand.hbm [shape: bf16[512,128], index: 3, kind: input, shape index: {}]
  %s4 = inlined_call_operand.hbm [shape: f32[1,128], index: 4, kind: input, shape index: {}]
  %s5 = inlined_call_operand.vmem [shape: bf16[128,10], index: 5, kind: input, shape index: {}]
  %s6 = inlined_call_operand.hbm [shape: f32[1,10], index: 6, kind: input, shape index: {}]
  %s7 = inlined_call_operand.hbm [shape: f32[2,10], index: 7, kind: output, shape index: {}]
  %s8 = sld [smem:[#allocation0]]
  $region89: #{demo_net_forward.3} parent=0
    _
  %s10 = ssub.s32 1, %s8
  %s11 = scalar_select 0, %s10, %s8
  $region1: #{demo_net_forward.3} parent=0
    #allocation3 [shape = 'u8[2097152]{0}', space=vmem, size = 0x200000, scoped, tag = 'input window, operand 1']
    #allocation4 [shape = 's32[2]{0}', space=sflag, size = 0x8, scoped, tag = 'scoped memory for demo_net_forward.3']
    #allocation5 [shape = 's32[2]{0}', space=sflag, size = 0x8, scoped, tag = 'scoped memory for demo_net_forward.3']
    #allocation6 [shape = 'u8[2048]{0}', space=vmem, size = 0x800, scoped, tag = 'input window, operand 2, single buffered']
    #allocation7 [shape = 's32[1]{0}', space=sflag, size = 0x4, scoped, tag = 'scoped memory for demo_net_forward.3']
    #allocation8 [shape = 'u8[131072]{0}', space=vmem, size = 0x20000, scoped, tag = 'input window, operand 3, single buffered']
    #allocation9 [shape = 'u8[512]{0}', space=vmem, size = 0x400, scoped, tag = 'input window, operand 4, single buffered']
    #allocation10 [shape = 's32[1]{0}', space=sflag, size = 0x4, scoped, tag = 'scoped memory for demo_net_forward.3']
    #allocation11 [shape = 'u8[512]{0}', space=vmem, size = 0x400, scoped, tag = 'input window, operand 6, single buffered']
    #allocation12 [shape = 'u8[1024]{0}', space=vmem, size = 0x400, scoped, tag = 'output window, operand 0, single buffered']
    %12 = vsyncpa [#allocation4], 0
    %s13 = scalar_lea.sflag [#allocation4], 1
    %14 = vsyncpa %s13, 0
    %15 = vsyncpa [#allocation7], 0
    %16 = vsyncpa [#allocation10], 0
    %17 = vsyncpa [#allocation5], 0
    loop: start=0, step=1, limit=6
    $region2: #{demo_net_forward.3} parent=1 // loop_pre_header
      _
    $region3: #{demo_net_forward.3} parent=1 // loop_header
      %s19 = sphi 0, %s23
      %p20 = scmp.ge.s32.totalorder %s19, 6
      %s29 = sphi 0, %s31
      %s32 = sphi 0, %s29
      %s33 = sphi 0, %s32
      %s49 = sphi 0, %s33
      %s55 = sphi 0, %s57
      %s58 = sphi 0, %s55
      %s59 = sphi 0, %s58
      %s75 = sphi 0, %s59
      %s79 = sphi 0, %s79
      %s81 = sphi 0, %s79
      %s82 = sphi 0, %s81
      %s96 = sphi 0, %s82
      %s100 = sphi 0, %s100
      %s102 = sphi 0, %s100
      %s103 = sphi 0, %s102
      %s117 = sphi 0, %s103
      %s121 = sphi 0, %s121
      %s123 = sphi 0, %s121
      %s124 = sphi 0, %s123
      %s138 = sphi 0, %s124
      %s142 = sphi 0, %s142
      %s144 = sphi 0, %s142
      %s145 = sphi 0, %s144
      %s159 = sphi 0, %s145
      %s163 = sphi 0, %s163
      %s165 = sphi 0, %s163
      %s166 = sphi 0, %s165
      %s180 = sphi 0, %s166
      %s184 = sphi 0, %s184
      %s186 = sphi 0, %s184
      %s187 = sphi 0, %s186
      %s201 = sphi 0, %s187
    $region4: #{demo_net_forward.3} parent=1 // loop_header_branch
      %22 = sbr.rel (%p20) target = $region8
    $region5: #{demo_net_forward.3} parent=1 // loop_body
      %s24 = ssub.s32 %s19, 1
      %s25 = ssub.s32 %s19, 2
      %s26 = sadd.s32 %s19, 1
      %s27 = ssub.s32 %s19, %s26
      %p28 = scmp.eq.s32.totalorder %s27, 0
      %s30 = sadd.s32 %s29, 1
      %s31 = scalar_select %p28, %s29, %s30
      %p34 = pneg %p28
      %p35 = scmp.eq.s32.totalorder %s19, 3
      %p36 = por %p34, %p35
      %p37 = scmp.ne.s32.totalorder %s29, %s32
      %p38 = scmp.eq.s32.totalorder %s19, 0
      %p39 = por %p37, %p38
      %p40 = scmp.ne.s32.totalorder %s29, %s32
      %p41 = scmp.eq.s32.totalorder %s24, 3
      %p42 = por %p40, %p41
      %p43 = scmp.ne.s32.totalorder %s32, %s33
      %p44 = scmp.eq.s32.totalorder %s24, 0
      %p45 = por %p43, %p44
      %p46 = scmp.ne.s32.totalorder %s32, %s33
      %p47 = scmp.eq.s32.totalorder %s25, 3
      %p48 = por %p46, %p47
      %p50 = scmp.ne.s32.totalorder %s33, %s49
      %p51 = scmp.eq.s32.totalorder %s25, 0
      %p52 = por %p50, %p51
      %s53 = ssub.s32 %s19, %s26
      %p54 = scmp.eq.s32.totalorder %s53, 0
      %s56 = sadd.s32 %s55, 1
      %s57 = scalar_select %p54, %s55, %s56
      %p60 = pneg %p54
      %p61 = scmp.eq.s32.totalorder %s19, 3
      %p62 = por %p60, %p61
      %p63 = scmp.ne.s32.totalorder %s55, %s58
      %p64 = scmp.eq.s32.totalorder %s19, 0
      %p65 = por %p63, %p64
      %p66 = scmp.ne.s32.totalorder %s55, %s58
      %p67 = scmp.eq.s32.totalorder %s24, 3
      %p68 = por %p66, %p67
      %p69 = scmp.ne.s32.totalorder %s58, %s59
      %p70 = scmp.eq.s32.totalorder %s24, 0
      %p71 = por %p69, %p70
      %p72 = scmp.ne.s32.totalorder %s58, %s59
      %p73 = scmp.eq.s32.totalorder %s25, 3
      %p74 = por %p72, %p73
      %p76 = scmp.ne.s32.totalorder %s59, %s75
      %p77 = scmp.eq.s32.totalorder %s25, 0
      %p78 = por %p76, %p77
      %s80 = sadd.s32 %s79, 1
      %p83 = scmp.eq.s32.totalorder %s19, 3
      %p84 = scmp.ne.s32.totalorder %s79, %s81
      %p85 = scmp.eq.s32.totalorder %s19, 0
      %p86 = por %p84, %p85
      %p87 = scmp.ne.s32.totalorder %s79, %s81
      %p88 = scmp.eq.s32.totalorder %s24, 3
      %p89 = por %p87, %p88
      %p90 = scmp.ne.s32.totalorder %s81, %s82
      %p91 = scmp.eq.s32.totalorder %s24, 0
      %p92 = por %p90, %p91
      %p93 = scmp.ne.s32.totalorder %s81, %s82
      %p94 = scmp.eq.s32.totalorder %s25, 3
      %p95 = por %p93, %p94
      %p97 = scmp.ne.s32.totalorder %s82, %s96
      %p98 = scmp.eq.s32.totalorder %s25, 0
      %p99 = por %p97, %p98
      %s101 = sadd.s32 %s100, 1
      %p104 = scmp.eq.s32.totalorder %s19, 3
      %p105 = scmp.ne.s32.totalorder %s100, %s102
      %p106 = scmp.eq.s32.totalorder %s19, 0
      %p107 = por %p105, %p106
      %p108 = scmp.ne.s32.totalorder %s100, %s102
      %p109 = scmp.eq.s32.totalorder %s24, 3
      %p110 = por %p108, %p109
      %p111 = scmp.ne.s32.totalorder %s102, %s103
      %p112 = scmp.eq.s32.totalorder %s24, 0
      %p113 = por %p111, %p112
      %p114 = scmp.ne.s32.totalorder %s102, %s103
      %p115 = scmp.eq.s32.totalorder %s25, 3
      %p116 = por %p114, %p115
      %p118 = scmp.ne.s32.totalorder %s103, %s117
      %p119 = scmp.eq.s32.totalorder %s25, 0
      %p120 = por %p118, %p119
      %s122 = sadd.s32 %s121, 1
      %p125 = scmp.eq.s32.totalorder %s19, 3
      %p126 = scmp.ne.s32.totalorder %s121, %s123
      %p127 = scmp.eq.s32.totalorder %s19, 0
      %p128 = por %p126, %p127
      %p129 = scmp.ne.s32.totalorder %s121, %s123
      %p130 = scmp.eq.s32.totalorder %s24, 3
      %p131 = por %p129, %p130
      %p132 = scmp.ne.s32.totalorder %s123, %s124
      %p133 = scmp.eq.s32.totalorder %s24, 0
      %p134 = por %p132, %p133
      %p135 = scmp.ne.s32.totalorder %s123, %s124
      %p136 = scmp.eq.s32.totalorder %s25, 3
      %p137 = por %p135, %p136
      %p139 = scmp.ne.s32.totalorder %s124, %s138
      %p140 = scmp.eq.s32.totalorder %s25, 0
      %p141 = por %p139, %p140
      %s143 = sadd.s32 %s142, 1
      %p146 = scmp.eq.s32.totalorder %s19, 3
      %p147 = scmp.ne.s32.totalorder %s142, %s144
      %p148 = scmp.eq.s32.totalorder %s19, 0
      %p149 = por %p147, %p148
      %p150 = scmp.ne.s32.totalorder %s142, %s144
      %p151 = scmp.eq.s32.totalorder %s24, 3
      %p152 = por %p150, %p151
      %p153 = scmp.ne.s32.totalorder %s144, %s145
      %p154 = scmp.eq.s32.totalorder %s24, 0
      %p155 = por %p153, %p154
      %p156 = scmp.ne.s32.totalorder %s144, %s145
      %p157 = scmp.eq.s32.totalorder %s25, 3
      %p158 = por %p156, %p157
      %p160 = scmp.ne.s32.totalorder %s145, %s159
      %p161 = scmp.eq.s32.totalorder %s25, 0
      %p162 = por %p160, %p161
      %s164 = sadd.s32 %s163, 1
      %p167 = scmp.eq.s32.totalorder %s19, 3
      %p168 = scmp.ne.s32.totalorder %s163, %s165
      %p169 = scmp.eq.s32.totalorder %s19, 0
      %p170 = por %p168, %p169
      %p171 = scmp.ne.s32.totalorder %s163, %s165
      %p172 = scmp.eq.s32.totalorder %s24, 3
      %p173 = por %p171, %p172
      %p174 = scmp.ne.s32.totalorder %s165, %s166
      %p175 = scmp.eq.s32.totalorder %s24, 0
      %p176 = por %p174, %p175
      %p177 = scmp.ne.s32.totalorder %s165, %s166
      %p178 = scmp.eq.s32.totalorder %s25, 3
      %p179 = por %p177, %p178
      %p181 = scmp.ne.s32.totalorder %s166, %s180
      %p182 = scmp.eq.s32.totalorder %s25, 0
      %p183 = por %p181, %p182
      %s185 = sadd.s32 %s184, 1
      %p188 = scmp.eq.s32.totalorder %s19, 3
      %p189 = scmp.ne.s32.totalorder %s184, %s186
      %p190 = scmp.eq.s32.totalorder %s19, 0
      %p191 = por %p189, %p190
      %p192 = scmp.ne.s32.totalorder %s184, %s186
      %p193 = scmp.eq.s32.totalorder %s24, 3
      %p194 = por %p192, %p193
      %p195 = scmp.ne.s32.totalorder %s186, %s187
      %p196 = scmp.eq.s32.totalorder %s24, 0
      %p197 = por %p195, %p196
      %p198 = scmp.ne.s32.totalorder %s186, %s187
      %p199 = scmp.eq.s32.totalorder %s25, 3
      %p200 = por %p198, %p199
      %p202 = scmp.ne.s32.totalorder %s187, %s201
      %p203 = scmp.eq.s32.totalorder %s25, 0
      %p204 = por %p202, %p203
      %p205 = scmp.le.s32.totalorder 1, %s19
      %p206 = scmp.lt.s32.totalorder %s19, 5
      %p207 = pnand %p205, %p206
      %p208 = pneg %p207
      // Predicated region
      $region9: #{demo_net_forward.3} parent=5 // pred_check
        _
      $region10: #{demo_net_forward.3} parent=5 // pred_check_branch
        %210 = sbr.rel (%p207) target = $region12
      $region11: #{demo_net_forward.3} parent=5 // pred_region
        %s211 = ssub.s32 %s19, 1
        // Predicated region
        $region13: #{demo_net_forward.3} parent=11 // pred_check
          %p212 = pneg %p92
        $region14: #{demo_net_forward.3} parent=11 // pred_check_branch
          %214 = sbr.rel (%p212) target = $region16
        $region15: #{demo_net_forward.3} parent=11 // pred_region
          %s216 = ssub.s32 64, 64
          %217 = vsyncadd [#allocation7], %s216
          %s219 = sshll.u32 [#allocation6], 4
          %s220 = int_to_ptr.vmem [resolvable:$true] %s219
          %222 = dma.hbm_to_vmem [thread:$0]  %s2, 64, %s220, [#allocation7]
        $region16: #{demo_net_forward.3} parent=11 // pred_fallthru
          _
        // Predicated region
        $region17: #{demo_net_forward.3} parent=11 // pred_check
          %p223 = pneg %p113
        $region18: #{demo_net_forward.3} parent=11 // pred_check_branch
          %225 = sbr.rel (%p223) target = $region20
        $region19: #{demo_net_forward.3} parent=11 // pred_region
          %s227 = ssub.s32 4096, 4096
          %228 = vsyncadd [#allocation7], %s227
          %s229 = sshll.u32 [#allocation8], 4
          %s230 = int_to_ptr.vmem [resolvable:$true] %s229
          %235 = dma.hbm_to_vmem [thread:$0]  %s3, 4096, %s230, [#allocation7], 64, 64, 4
        $region20: #{demo_net_forward.3} parent=11 // pred_fallthru
          _
        // Predicated region
        $region21: #{demo_net_forward.3} parent=11 // pred_check
          %p236 = pneg %p134
        $region22: #{demo_net_forward.3} parent=11 // pred_check_branch
          %238 = sbr.rel (%p236) target = $region24
        $region23: #{demo_net_forward.3} parent=11 // pred_region
          %s240 = ssub.s32 16, 16
          %241 = vsyncadd [#allocation10], %s240
          %s243 = sshll.u32 [#allocation9], 4
          %s244 = int_to_ptr.vmem [resolvable:$true] %s243
          %246 = dma.hbm_to_vmem [thread:$0]  %s4, 16, %s244, [#allocation10]
        $region24: #{demo_net_forward.3} parent=11 // pred_fallthru
          _
        // Predicated region
        $region25: #{demo_net_forward.3} parent=11 // pred_check
          %p247 = pneg %p155
        $region26: #{demo_net_forward.3} parent=11 // pred_check_branch
          %249 = sbr.rel (%p247) target = $region28
        $region27: #{demo_net_forward.3} parent=11 // pred_region
          _
        $region28: #{demo_net_forward.3} parent=11 // pred_fallthru
          _
        // Predicated region
        $region29: #{demo_net_forward.3} parent=11 // pred_check
          %p250 = pneg %p176
        $region30: #{demo_net_forward.3} parent=11 // pred_check_branch
          %252 = sbr.rel (%p250) target = $region32
        $region31: #{demo_net_forward.3} parent=11 // pred_region
          %s254 = ssub.s32 16, 16
          %255 = vsyncadd [#allocation10], %s254
          %s257 = sshll.u32 [#allocation11], 4
          %s258 = int_to_ptr.vmem [resolvable:$true] %s257
          %260 = dma.hbm_to_vmem [thread:$0]  %s6, 16, %s258, [#allocation10]
        $region32: #{demo_net_forward.3} parent=11 // pred_fallthru
          _
      $region12: #{demo_net_forward.3} parent=5 // pred_fallthru
        _
      %p261 = scmp.lt.s32.totalorder %s19, 4
      // Predicated region
      $region33: #{demo_net_forward.3} parent=5 // pred_check
        %p262 = pneg %p261
      $region34: #{demo_net_forward.3} parent=5 // pred_check_branch
        %264 = sbr.rel (%p262) target = $region36
      $region35: #{demo_net_forward.3} parent=5 // pred_region
        // Predicated region
        $region37: #{demo_net_forward.3} parent=35 // pred_check
          %p265 = pneg %p39
        $region38: #{demo_net_forward.3} parent=35 // pred_check_branch
          %267 = sbr.rel (%p265) target = $region40
        $region39: #{demo_net_forward.3} parent=35 // pred_region
          %s268 = smul.u32 8, %s19
          %p269 = scmp.lt.s32.totalorder %s268, 31
          %s270 = scalar_select %p269, %s268, 31
          %s271 = smul.addr %s270, 2
          %s272 = scalar_lea.vmem %s0, %s271
          %s273 = smul.u32 8, %s19
        $region40: #{demo_net_forward.3} parent=35 // pred_fallthru
          _
        // Predicated region
        $region41: #{demo_net_forward.3} parent=35 // pred_check
          %p274 = pneg %p65
        $region42: #{demo_net_forward.3} parent=35 // pred_check_branch
          %276 = sbr.rel (%p274) target = $region44
        $region43: #{demo_net_forward.3} parent=35 // pred_region
          %s277 = sand.u32 %s55, 1
          %s278 = scalar_lea.sflag [#allocation4], %s277
          %s279 = sand.u32 %s55, 1
          %s280 = smul.addr %s279, 2048
          %s281 = scalar_lea.vmem [#allocation3], %s280
          %s282 = smul.u32 128, %s19
          %s284 = ssub.s32 32768, 32768
          %285 = vsyncadd %s278, %s284
          %s286 = smul.addr %s282, 4
          %s287 = smul.addr %s286, 64
          %s288 = scalar_lea.hbm %s1, %s287
          %s289 = sshll.u32 %s281, 4
          %s290 = int_to_ptr.vmem [resolvable:$true] %s289
          %295 = dma.hbm_to_vmem [thread:$0]  %s288, 32768, %s290, %s278, 256, 256, 16
        $region44: #{demo_net_forward.3} parent=35 // pred_fallthru
          _
      $region36: #{demo_net_forward.3} parent=5 // pred_fallthru
        _
      %p296 = scmp.le.s32.totalorder 1, %s19
      %p297 = scmp.lt.s32.totalorder %s19, 5
      %p298 = pnand %p296, %p297
      %p299 = pneg %p298
      // Predicated region
      $region45: #{demo_net_forward.3} parent=5 // pred_check
        _
      $region46: #{demo_net_forward.3} parent=5 // pred_check_branch
        %301 = sbr.rel (%p298) target = $region48
      $region47: #{demo_net_forward.3} parent=5 // pred_region
        %s302 = ssub.s32 %s19, 1
        %s303 = sand.u32 %s58, 1
        %s304 = scalar_lea.sflag [#allocation4], %s303
        %s305 = sand.u32 %s58, 1
        %s306 = smul.addr %s305, 2048
        %s307 = scalar_lea.vmem [#allocation3], %s306
        // Predicated region
        $region49: #{demo_net_forward.3} parent=47 // pred_check
          %p308 = pneg %p71
        $region50: #{demo_net_forward.3} parent=47 // pred_check_branch
          %310 = sbr.rel (%p308) target = $region52
        $region51: #{demo_net_forward.3} parent=47 // pred_region
          %311 = dma.done %s304, 32768
        $region52: #{demo_net_forward.3} parent=47 // pred_fallthru
          _
        // Predicated region
        $region53: #{demo_net_forward.3} parent=47 // pred_check
          %p312 = pneg %p92
        $region54: #{demo_net_forward.3} parent=47 // pred_check_branch
          %314 = sbr.rel (%p312) target = $region56
        $region55: #{demo_net_forward.3} parent=47 // pred_region
          %315 = dma.done [#allocation7], 64
        $region56: #{demo_net_forward.3} parent=47 // pred_fallthru
          _
        // Predicated region
        $region57: #{demo_net_forward.3} parent=47 // pred_check
          %p316 = pneg %p113
        $region58: #{demo_net_forward.3} parent=47 // pred_check_branch
          %318 = sbr.rel (%p316) target = $region60
        $region59: #{demo_net_forward.3} parent=47 // pred_region
          %319 = dma.done [#allocation7], 4096
        $region60: #{demo_net_forward.3} parent=47 // pred_fallthru
          _
        // Predicated region
        $region61: #{demo_net_forward.3} parent=47 // pred_check
          %p320 = pneg %p134
        $region62: #{demo_net_forward.3} parent=47 // pred_check_branch
          %322 = sbr.rel (%p320) target = $region64
        $region63: #{demo_net_forward.3} parent=47 // pred_region
          %323 = dma.done [#allocation10], 16
        $region64: #{demo_net_forward.3} parent=47 // pred_fallthru
          _
        // Predicated region
        $region65: #{demo_net_forward.3} parent=47 // pred_check
          %p324 = pneg %p176
        $region66: #{demo_net_forward.3} parent=47 // pred_check_branch
          %326 = sbr.rel (%p324) target = $region68
        $region67: #{demo_net_forward.3} parent=47 // pred_region
          %327 = dma.done [#allocation10], 16
        $region68: #{demo_net_forward.3} parent=47 // pred_fallthru
          _
        %s328 = smul.u32 8, %s24
        %p329 = scmp.lt.s32.totalorder %s328, 31
        %s330 = scalar_select %p329, %s328, 31
        %s331 = smul.addr %s330, 2
        %s332 = scalar_lea.vmem %s0, %s331
        %p333 = pneg %p45
        %p334 = pneg %p42
        %s335 = sand.u32 %s58, 1
        %s336 = scalar_lea.sflag [#allocation4], %s335
        %s337 = sand.u32 %s58, 1
        %s338 = smul.addr %s337, 2048
        %s339 = scalar_lea.vmem [#allocation3], %s338
        %p340 = pneg %p71
        %p341 = pneg %p68
        %p342 = pneg %p92
        %p343 = pneg %p89
        %p344 = pneg %p113
        %p345 = pneg %p110
        %p346 = pneg %p134
        %p347 = pneg %p131
        %p348 = pneg %p155
        %p349 = pneg %p152
        %p350 = pneg %p176
        %p351 = pneg %p173
        %p352 = pneg %p197
        %p353 = pneg %p194
        %s354 = smul.u32 8, %s24
        %p355 = scmp.lt.s32.totalorder %s354, 31
        %s356 = scalar_select %p355, %s354, 31
        %s357 = smul.addr %s356, 2
        %s358 = scalar_lea.vmem %s0, %s357
        %s359 = smul.u32 8, %s24
        %s360 = smul.u32 128, %s24
        %p362 = scmp.eq.s32.totalorder %s24, 0
        // Predicated region
        $region69: #{demo_net_forward.3} parent=47 // pred_check
          %p363 = pneg %p362
        $region70: #{demo_net_forward.3} parent=47 // pred_check_branch
          %365 = sbr.rel (%p363) target = $region72
        $region71: #{demo_net_forward.3} parent=47 // pred_region
          %366 = vst [vmem:[#allocation2] sm:$0xff] 0.0
        $region72: #{demo_net_forward.3} parent=47 // pred_fallthru
          _
        %v367 = vld [vmem:[#allocation2] sm:$0xff]
        %v368 = vld [vmem:[%s358] sm:$0xff]
        %v369 = vld [vmem:[%s358 + $0x8] sm:$0xff]
        %v372 = vcombine.high %v368, %v368
        %v374 = vunpack.c.l.s4 1983009808
        %v375 = vunpack.c.0.s8 %v374
        %v376 = vlaneseq
        %v377 = vshrl.u32 %v376, 7
        %v378 = vsub.s32 %v375, %v377
        %v379 = vrot.slane %v368, %v378
        %v381 = vunpack.c.l.s4 1983009808
        %v382 = vunpack.c.0.s8 %v381
        %v383 = vlaneseq
        %v384 = vshrl.u32 %v383, 7
        %v385 = vsub.s32 %v382, %v384
        %v386 = vrot.slane %v372, %v385
        %v387 = vcombine.high %v379, %v379
        %v388 = vcombine.high %v386, %v386
        %v389 = vcombine.high %v369, %v369
        %v391 = vunpack.c.l.s4 1983009808
        %v392 = vunpack.c.0.s8 %v391
        %v393 = vlaneseq
        %v394 = vshrl.u32 %v393, 7
        %v395 = vsub.s32 %v392, %v394
        %v396 = vrot.slane %v369, %v395
        %v398 = vunpack.c.l.s4 1983009808
        %v399 = vunpack.c.0.s8 %v398
        %v400 = vlaneseq
        %v401 = vshrl.u32 %v400, 7
        %v402 = vsub.s32 %v399, %v401
        %v403 = vrot.slane %v389, %v402
        %v404 = vcombine.high %v396, %v396
        %v405 = vcombine.high %v403, %v403
        %v414 = vpack.c.bf16 %v379, %v379
        %v415 = vpack.c.bf16 %v387, %v387
        %v416 = vpack.c.bf16 %v386, %v386
        %v417 = vpack.c.bf16 %v388, %v388
        %v418 = vpack.c.bf16 %v396, %v396
        %v419 = vpack.c.bf16 %v404, %v404
        %v420 = vpack.c.bf16 %v403, %v403
        %v421 = vpack.c.bf16 %v405, %v405
        %v422 = vld [vmem:[%s307] sm:$0xff]
        %v423 = vld [vmem:[%s307 + $0x8] sm:$0xff]
        %v424 = vld [vmem:[%s307 + $0x10] sm:$0xff]
        %v425 = vld [vmem:[%s307 + $0x18] sm:$0xff]
        %v426 = vld [vmem:[%s307 + $0x20] sm:$0xff]
        %v427 = vld [vmem:[%s307 + $0x28] sm:$0xff]
        %v428 = vld [vmem:[%s307 + $0x30] sm:$0xff]
        %v429 = vld [vmem:[%s307 + $0x38] sm:$0xff]
        %v430 = vld [vmem:[%s307 + $0x40] sm:$0xff]
        %v431 = vld [vmem:[%s307 + $0x48] sm:$0xff]
        %v432 = vld [vmem:[%s307 + $0x50] sm:$0xff]
        %v433 = vld [vmem:[%s307 + $0x58] sm:$0xff]
        %v434 = vld [vmem:[%s307 + $0x60] sm:$0xff]
        %v435 = vld [vmem:[%s307 + $0x68] sm:$0xff]
        %v436 = vld [vmem:[%s307 + $0x70] sm:$0xff]
        %v437 = vld [vmem:[%s307 + $0x78] sm:$0xff]
        %v438 = vld [vmem:[%s307 + $0x80] sm:$0xff]
        %v439 = vld [vmem:[%s307 + $0x88] sm:$0xff]
        %v440 = vld [vmem:[%s307 + $0x90] sm:$0xff]
        %v441 = vld [vmem:[%s307 + $0x98] sm:$0xff]
        %v442 = vld [vmem:[%s307 + $0xa0] sm:$0xff]
        %v443 = vld [vmem:[%s307 + $0xa8] sm:$0xff]
        %v444 = vld [vmem:[%s307 + $0xb0] sm:$0xff]
        %v445 = vld [vmem:[%s307 + $0xb8] sm:$0xff]
        %v446 = vld [vmem:[%s307 + $0xc0] sm:$0xff]
        %v447 = vld [vmem:[%s307 + $0xc8] sm:$0xff]
        %v448 = vld [vmem:[%s307 + $0xd0] sm:$0xff]
        %v449 = vld [vmem:[%s307 + $0xd8] sm:$0xff]
        %v450 = vld [vmem:[%s307 + $0xe0] sm:$0xff]
        %v451 = vld [vmem:[%s307 + $0xe8] sm:$0xff]
        %v452 = vld [vmem:[%s307 + $0xf0] sm:$0xff]
        %v453 = vld [vmem:[%s307 + $0xf8] sm:$0xff]
        %v454 = vld [vmem:[%s307 + $0x100] sm:$0xff]
        %v455 = vld [vmem:[%s307 + $0x108] sm:$0xff]
        %v456 = vld [vmem:[%s307 + $0x110] sm:$0xff]
        %v457 = vld [vmem:[%s307 + $0x118] sm:$0xff]
        %v458 = vld [vmem:[%s307 + $0x120] sm:$0xff]
        %v459 = vld [vmem:[%s307 + $0x128] sm:$0xff]
        %v460 = vld [vmem:[%s307 + $0x130] sm:$0xff]
        %v461 = vld [vmem:[%s307 + $0x138] sm:$0xff]
        %v462 = vld [vmem:[%s307 + $0x140] sm:$0xff]
        %v463 = vld [vmem:[%s307 + $0x148] sm:$0xff]
        %v464 = vld [vmem:[%s307 + $0x150] sm:$0xff]
        %v465 = vld [vmem:[%s307 + $0x158] sm:$0xff]
        %v466 = vld [vmem:[%s307 + $0x160] sm:$0xff]
        %v467 = vld [vmem:[%s307 + $0x168] sm:$0xff]
        %v468 = vld [vmem:[%s307 + $0x170] sm:$0xff]
        %v469 = vld [vmem:[%s307 + $0x178] sm:$0xff]
        %v470 = vld [vmem:[%s307 + $0x180] sm:$0xff]
        %v471 = vld [vmem:[%s307 + $0x188] sm:$0xff]
        %v472 = vld [vmem:[%s307 + $0x190] sm:$0xff]
        %v473 = vld [vmem:[%s307 + $0x198] sm:$0xff]
        %v474 = vld [vmem:[%s307 + $0x1a0] sm:$0xff]
        %v475 = vld [vmem:[%s307 + $0x1a8] sm:$0xff]
        %v476 = vld [vmem:[%s307 + $0x1b0] sm:$0xff]
        %v477 = vld [vmem:[%s307 + $0x1b8] sm:$0xff]
        %v478 = vld [vmem:[%s307 + $0x1c0] sm:$0xff]
        %v479 = vld [vmem:[%s307 + $0x1c8] sm:$0xff]
        %v480 = vld [vmem:[%s307 + $0x1d0] sm:$0xff]
        %v481 = vld [vmem:[%s307 + $0x1d8] sm:$0xff]
        %v482 = vld [vmem:[%s307 + $0x1e0] sm:$0xff]
        %v483 = vld [vmem:[%s307 + $0x1e8] sm:$0xff]
        %v484 = vld [vmem:[%s307 + $0x1f0] sm:$0xff]
        %v485 = vld [vmem:[%s307 + $0x1f8] sm:$0xff]
        %v486 = vld [vmem:[%s307 + $0x200] sm:$0xff]
        %v487 = vld [vmem:[%s307 + $0x208] sm:$0xff]
        %v488 = vld [vmem:[%s307 + $0x210] sm:$0xff]
        %v489 = vld [vmem:[%s307 + $0x218] sm:$0xff]
        %v490 = vld [vmem:[%s307 + $0x220] sm:$0xff]
        %v491 = vld [vmem:[%s307 + $0x228] sm:$0xff]
        %v492 = vld [vmem:[%s307 + $0x230] sm:$0xff]
        %v493 = vld [vmem:[%s307 + $0x238] sm:$0xff]
        %v494 = vld [vmem:[%s307 + $0x240] sm:$0xff]
        %v495 = vld [vmem:[%s307 + $0x248] sm:$0xff]
        %v496 = vld [vmem:[%s307 + $0x250] sm:$0xff]
        %v497 = vld [vmem:[%s307 + $0x258] sm:$0xff]
        %v498 = vld [vmem:[%s307 + $0x260] sm:$0xff]
        %v499 = vld [vmem:[%s307 + $0x268] sm:$0xff]
        %v500 = vld [vmem:[%s307 + $0x270] sm:$0xff]
        %v501 = vld [vmem:[%s307 + $0x278] sm:$0xff]
        %v502 = vld [vmem:[%s307 + $0x280] sm:$0xff]
        %v503 = vld [vmem:[%s307 + $0x288] sm:$0xff]
        %v504 = vld [vmem:[%s307 + $0x290] sm:$0xff]
        %v505 = vld [vmem:[%s307 + $0x298] sm:$0xff]
        %v506 = vld [vmem:[%s307 + $0x2a0] sm:$0xff]
        %v507 = vld [vmem:[%s307 + $0x2a8] sm:$0xff]
        %v508 = vld [vmem:[%s307 + $0x2b0] sm:$0xff]
        %v509 = vld [vmem:[%s307 + $0x2b8] sm:$0xff]
        %v510 = vld [vmem:[%s307 + $0x2c0] sm:$0xff]
        %v511 = vld [vmem:[%s307 + $0x2c8] sm:$0xff]
        %v512 = vld [vmem:[%s307 + $0x2d0] sm:$0xff]
        %v513 = vld [vmem:[%s307 + $0x2d8] sm:$0xff]
        %v514 = vld [vmem:[%s307 + $0x2e0] sm:$0xff]
        %v515 = vld [vmem:[%s307 + $0x2e8] sm:$0xff]
        %v516 = vld [vmem:[%s307 + $0x2f0] sm:$0xff]
        %v517 = vld [vmem:[%s307 + $0x2f8] sm:$0xff]
        %v518 = vld [vmem:[%s307 + $0x300] sm:$0xff]
        %v519 = vld [vmem:[%s307 + $0x308] sm:$0xff]
        %v520 = vld [vmem:[%s307 + $0x310] sm:$0xff]
        %v521 = vld [vmem:[%s307 + $0x318] sm:$0xff]
        %v522 = vld [vmem:[%s307 + $0x320] sm:$0xff]
        %v523 = vld [vmem:[%s307 + $0x328] sm:$0xff]
        %v524 = vld [vmem:[%s307 + $0x330] sm:$0xff]
        %v525 = vld [vmem:[%s307 + $0x338] sm:$0xff]
        %v526 = vld [vmem:[%s307 + $0x340] sm:$0xff]
        %v527 = vld [vmem:[%s307 + $0x348] sm:$0xff]
        %v528 = vld [vmem:[%s307 + $0x350] sm:$0xff]
        %v529 = vld [vmem:[%s307 + $0x358] sm:$0xff]
        %v530 = vld [vmem:[%s307 + $0x360] sm:$0xff]
        %v531 = vld [vmem:[%s307 + $0x368] sm:$0xff]
        %v532 = vld [vmem:[%s307 + $0x370] sm:$0xff]
        %v533 = vld [vmem:[%s307 + $0x378] sm:$0xff]
        %v534 = vld [vmem:[%s307 + $0x380] sm:$0xff]
        %v535 = vld [vmem:[%s307 + $0x388] sm:$0xff]
        %v536 = vld [vmem:[%s307 + $0x390] sm:$0xff]
        %v537 = vld [vmem:[%s307 + $0x398] sm:$0xff]
        %v538 = vld [vmem:[%s307 + $0x3a0] sm:$0xff]
        %v539 = vld [vmem:[%s307 + $0x3a8] sm:$0xff]
        %v540 = vld [vmem:[%s307 + $0x3b0] sm:$0xff]
        %v541 = vld [vmem:[%s307 + $0x3b8] sm:$0xff]
        %v542 = vld [vmem:[%s307 + $0x3c0] sm:$0xff]
        %v543 = vld [vmem:[%s307 + $0x3c8] sm:$0xff]
        %v544 = vld [vmem:[%s307 + $0x3d0] sm:$0xff]
        %v545 = vld [vmem:[%s307 + $0x3d8] sm:$0xff]
        %v546 = vld [vmem:[%s307 + $0x3e0] sm:$0xff]
        %v547 = vld [vmem:[%s307 + $0x3e8] sm:$0xff]
        %v548 = vld [vmem:[%s307 + $0x3f0] sm:$0xff]
        %v549 = vld [vmem:[%s307 + $0x3f8] sm:$0xff]
        %v550 = vld [vmem:[%s307 + $0x400] sm:$0xff]
        %v551 = vld [vmem:[%s307 + $0x408] sm:$0xff]
        %v552 = vld [vmem:[%s307 + $0x410] sm:$0xff]
        %v553 = vld [vmem:[%s307 + $0x418] sm:$0xff]
        %v554 = vld [vmem:[%s307 + $0x420] sm:$0xff]
        %v555 = vld [vmem:[%s307 + $0x428] sm:$0xff]
        %v556 = vld [vmem:[%s307 + $0x430] sm:$0xff]
        %v557 = vld [vmem:[%s307 + $0x438] sm:$0xff]
        %v558 = vld [vmem:[%s307 + $0x440] sm:$0xff]
        %v559 = vld [vmem:[%s307 + $0x448] sm:$0xff]
        %v560 = vld [vmem:[%s307 + $0x450] sm:$0xff]
        %v561 = vld [vmem:[%s307 + $0x458] sm:$0xff]
        %v562 = vld [vmem:[%s307 + $0x460] sm:$0xff]
        %v563 = vld [vmem:[%s307 + $0x468] sm:$0xff]
        %v564 = vld [vmem:[%s307 + $0x470] sm:$0xff]
        %v565 = vld [vmem:[%s307 + $0x478] sm:$0xff]
        %v566 = vld [vmem:[%s307 + $0x480] sm:$0xff]
        %v567 = vld [vmem:[%s307 + $0x488] sm:$0xff]
        %v568 = vld [vmem:[%s307 + $0x490] sm:$0xff]
        %v569 = vld [vmem:[%s307 + $0x498] sm:$0xff]
        %v570 = vld [vmem:[%s307 + $0x4a0] sm:$0xff]
        %v571 = vld [vmem:[%s307 + $0x4a8] sm:$0xff]
        %v572 = vld [vmem:[%s307 + $0x4b0] sm:$0xff]
        %v573 = vld [vmem:[%s307 + $0x4b8] sm:$0xff]
        %v574 = vld [vmem:[%s307 + $0x4c0] sm:$0xff]
        %v575 = vld [vmem:[%s307 + $0x4c8] sm:$0xff]
        %v576 = vld [vmem:[%s307 + $0x4d0] sm:$0xff]
        %v577 = vld [vmem:[%s307 + $0x4d8] sm:$0xff]
        %v578 = vld [vmem:[%s307 + $0x4e0] sm:$0xff]
        %v579 = vld [vmem:[%s307 + $0x4e8] sm:$0xff]
        %v580 = vld [vmem:[%s307 + $0x4f0] sm:$0xff]
        %v581 = vld [vmem:[%s307 + $0x4f8] sm:$0xff]
        %v582 = vld [vmem:[%s307 + $0x500] sm:$0xff]
        %v583 = vld [vmem:[%s307 + $0x508] sm:$0xff]
        %v584 = vld [vmem:[%s307 + $0x510] sm:$0xff]
        %v585 = vld [vmem:[%s307 + $0x518] sm:$0xff]
        %v586 = vld [vmem:[%s307 + $0x520] sm:$0xff]
        %v587 = vld [vmem:[%s307 + $0x528] sm:$0xff]
        %v588 = vld [vmem:[%s307 + $0x530] sm:$0xff]
        %v589 = vld [vmem:[%s307 + $0x538] sm:$0xff]
        %v590 = vld [vmem:[%s307 + $0x540] sm:$0xff]
        %v591 = vld [vmem:[%s307 + $0x548] sm:$0xff]
        %v592 = vld [vmem:[%s307 + $0x550] sm:$0xff]
        %v593 = vld [vmem:[%s307 + $0x558] sm:$0xff]
        %v594 = vld [vmem:[%s307 + $0x560] sm:$0xff]
        %v595 = vld [vmem:[%s307 + $0x568] sm:$0xff]
        %v596 = vld [vmem:[%s307 + $0x570] sm:$0xff]
        %v597 = vld [vmem:[%s307 + $0x578] sm:$0xff]
        %v598 = vld [vmem:[%s307 + $0x580] sm:$0xff]
        %v599 = vld [vmem:[%s307 + $0x588] sm:$0xff]
        %v600 = vld [vmem:[%s307 + $0x590] sm:$0xff]
        %v601 = vld [vmem:[%s307 + $0x598] sm:$0xff]
        %v602 = vld [vmem:[%s307 + $0x5a0] sm:$0xff]
        %v603 = vld [vmem:[%s307 + $0x5a8] sm:$0xff]
        %v604 = vld [vmem:[%s307 + $0x5b0] sm:$0xff]
        %v605 = vld [vmem:[%s307 + $0x5b8] sm:$0xff]
        %v606 = vld [vmem:[%s307 + $0x5c0] sm:$0xff]
        %v607 = vld [vmem:[%s307 + $0x5c8] sm:$0xff]
        %v608 = vld [vmem:[%s307 + $0x5d0] sm:$0xff]
        %v609 = vld [vmem:[%s307 + $0x5d8] sm:$0xff]
        %v610 = vld [vmem:[%s307 + $0x5e0] sm:$0xff]
        %v611 = vld [vmem:[%s307 + $0x5e8] sm:$0xff]
        %v612 = vld [vmem:[%s307 + $0x5f0] sm:$0xff]
        %v613 = vld [vmem:[%s307 + $0x5f8] sm:$0xff]
        %v614 = vld [vmem:[%s307 + $0x600] sm:$0xff]
        %v615 = vld [vmem:[%s307 + $0x608] sm:$0xff]
        %v616 = vld [vmem:[%s307 + $0x610] sm:$0xff]
        %v617 = vld [vmem:[%s307 + $0x618] sm:$0xff]
        %v618 = vld [vmem:[%s307 + $0x620] sm:$0xff]
        %v619 = vld [vmem:[%s307 + $0x628] sm:$0xff]
        %v620 = vld [vmem:[%s307 + $0x630] sm:$0xff]
        %v621 = vld [vmem:[%s307 + $0x638] sm:$0xff]
        %v622 = vld [vmem:[%s307 + $0x640] sm:$0xff]
        %v623 = vld [vmem:[%s307 + $0x648] sm:$0xff]
        %v624 = vld [vmem:[%s307 + $0x650] sm:$0xff]
        %v625 = vld [vmem:[%s307 + $0x658] sm:$0xff]
        %v626 = vld [vmem:[%s307 + $0x660] sm:$0xff]
        %v627 = vld [vmem:[%s307 + $0x668] sm:$0xff]
        %v628 = vld [vmem:[%s307 + $0x670] sm:$0xff]
        %v629 = vld [vmem:[%s307 + $0x678] sm:$0xff]
        %v630 = vld [vmem:[%s307 + $0x680] sm:$0xff]
        %v631 = vld [vmem:[%s307 + $0x688] sm:$0xff]
        %v632 = vld [vmem:[%s307 + $0x690] sm:$0xff]
        %v633 = vld [vmem:[%s307 + $0x698] sm:$0xff]
        %v634 = vld [vmem:[%s307 + $0x6a0] sm:$0xff]
        %v635 = vld [vmem:[%s307 + $0x6a8] sm:$0xff]
        %v636 = vld [vmem:[%s307 + $0x6b0] sm:$0xff]
        %v637 = vld [vmem:[%s307 + $0x6b8] sm:$0xff]
        %v638 = vld [vmem:[%s307 + $0x6c0] sm:$0xff]
        %v639 = vld [vmem:[%s307 + $0x6c8] sm:$0xff]
        %v640 = vld [vmem:[%s307 + $0x6d0] sm:$0xff]
        %v641 = vld [vmem:[%s307 + $0x6d8] sm:$0xff]
        %v642 = vld [vmem:[%s307 + $0x6e0] sm:$0xff]
        %v643 = vld [vmem:[%s307 + $0x6e8] sm:$0xff]
        %v644 = vld [vmem:[%s307 + $0x6f0] sm:$0xff]
        %v645 = vld [vmem:[%s307 + $0x6f8] sm:$0xff]
        %v646 = vld [vmem:[%s307 + $0x700] sm:$0xff]
        %v647 = vld [vmem:[%s307 + $0x708] sm:$0xff]
        %v648 = vld [vmem:[%s307 + $0x710] sm:$0xff]
        %v649 = vld [vmem:[%s307 + $0x718] sm:$0xff]
        %v650 = vld [vmem:[%s307 + $0x720] sm:$0xff]
        %v651 = vld [vmem:[%s307 + $0x728] sm:$0xff]
        %v652 = vld [vmem:[%s307 + $0x730] sm:$0xff]
        %v653 = vld [vmem:[%s307 + $0x738] sm:$0xff]
        %v654 = vld [vmem:[%s307 + $0x740] sm:$0xff]
        %v655 = vld [vmem:[%s307 + $0x748] sm:$0xff]
        %v656 = vld [vmem:[%s307 + $0x750] sm:$0xff]
        %v657 = vld [vmem:[%s307 + $0x758] sm:$0xff]
        %v658 = vld [vmem:[%s307 + $0x760] sm:$0xff]
        %v659 = vld [vmem:[%s307 + $0x768] sm:$0xff]
        %v660 = vld [vmem:[%s307 + $0x770] sm:$0xff]
        %v661 = vld [vmem:[%s307 + $0x778] sm:$0xff]
        %v662 = vld [vmem:[%s307 + $0x780] sm:$0xff]
        %v663 = vld [vmem:[%s307 + $0x788] sm:$0xff]
        %v664 = vld [vmem:[%s307 + $0x790] sm:$0xff]
        %v665 = vld [vmem:[%s307 + $0x798] sm:$0xff]
        %v666 = vld [vmem:[%s307 + $0x7a0] sm:$0xff]
        %v667 = vld [vmem:[%s307 + $0x7a8] sm:$0xff]
        %v668 = vld [vmem:[%s307 + $0x7b0] sm:$0xff]
        %v669 = vld [vmem:[%s307 + $0x7b8] sm:$0xff]
        %v670 = vld [vmem:[%s307 + $0x7c0] sm:$0xff]
        %v671 = vld [vmem:[%s307 + $0x7c8] sm:$0xff]
        %v672 = vld [vmem:[%s307 + $0x7d0] sm:$0xff]
        %v673 = vld [vmem:[%s307 + $0x7d8] sm:$0xff]
        %v674 = vld [vmem:[%s307 + $0x7e0] sm:$0xff]
        %v675 = vld [vmem:[%s307 + $0x7e8] sm:$0xff]
        %v676 = vld [vmem:[%s307 + $0x7f0] sm:$0xff]
        %v677 = vld [vmem:[%s307 + $0x7f8] sm:$0xff]
        %v934 = vunpack.c.l.b16 %v422
        %v935 = vunpack.c.h.b16 %v422
        %v936 = vunpack.c.l.b16 %v423
        %v937 = vunpack.c.h.b16 %v423
        %v938 = vunpack.c.l.b16 %v424
        %v939 = vunpack.c.h.b16 %v424
        %v940 = vunpack.c.l.b16 %v425
        %v941 = vunpack.c.h.b16 %v425
        %v942 = vunpack.c.l.b16 %v426
        %v943 = vunpack.c.h.b16 %v426
        %v944 = vunpack.c.l.b16 %v427
        %v945 = vunpack.c.h.b16 %v427
        %v946 = vunpack.c.l.b16 %v428
        %v947 = vunpack.c.h.b16 %v428
        %v948 = vunpack.c.l.b16 %v429
        %v949 = vunpack.c.h.b16 %v429
        %v950 = vunpack.c.l.b16 %v430
        %v951 = vunpack.c.h.b16 %v430
        %v952 = vunpack.c.l.b16 %v431
        %v953 = vunpack.c.h.b16 %v431
        %v954 = vunpack.c.l.b16 %v432
        %v955 = vunpack.c.h.b16 %v432
        %v956 = vunpack.c.l.b16 %v433
        %v957 = vunpack.c.h.b16 %v433
        %v958 = vunpack.c.l.b16 %v434
        %v959 = vunpack.c.h.b16 %v434
        %v960 = vunpack.c.l.b16 %v435
        %v961 = vunpack.c.h.b16 %v435
        %v962 = vunpack.c.l.b16 %v436
        %v963 = vunpack.c.h.b16 %v436
        %v964 = vunpack.c.l.b16 %v437
        %v965 = vunpack.c.h.b16 %v437
        %v966 = vunpack.c.l.b16 %v438
        %v967 = vunpack.c.h.b16 %v438
        %v968 = vunpack.c.l.b16 %v439
        %v969 = vunpack.c.h.b16 %v439
        %v970 = vunpack.c.l.b16 %v440
        %v971 = vunpack.c.h.b16 %v440
        %v972 = vunpack.c.l.b16 %v441
        %v973 = vunpack.c.h.b16 %v441
        %v974 = vunpack.c.l.b16 %v442
        %v975 = vunpack.c.h.b16 %v442
        %v976 = vunpack.c.l.b16 %v443
        %v977 = vunpack.c.h.b16 %v443
        %v978 = vunpack.c.l.b16 %v444
        %v979 = vunpack.c.h.b16 %v444
        %v980 = vunpack.c.l.b16 %v445
        %v981 = vunpack.c.h.b16 %v445
        %v982 = vunpack.c.l.b16 %v446
        %v983 = vunpack.c.h.b16 %v446
        %v984 = vunpack.c.l.b16 %v447
        %v985 = vunpack.c.h.b16 %v447
        %v986 = vunpack.c.l.b16 %v448
        %v987 = vunpack.c.h.b16 %v448
        %v988 = vunpack.c.l.b16 %v449
        %v989 = vunpack.c.h.b16 %v449
        %v990 = vunpack.c.l.b16 %v450
        %v991 = vunpack.c.h.b16 %v450
        %v992 = vunpack.c.l.b16 %v451
        %v993 = vunpack.c.h.b16 %v451
        %v994 = vunpack.c.l.b16 %v452
        %v995 = vunpack.c.h.b16 %v452
        %v996 = vunpack.c.l.b16 %v453
        %v997 = vunpack.c.h.b16 %v453
        %v998 = vunpack.c.l.b16 %v454
        %v999 = vunpack.c.h.b16 %v454
        %v1000 = vunpack.c.l.b16 %v455
        %v1001 = vunpack.c.h.b16 %v455
        %v1002 = vunpack.c.l.b16 %v456
        %v1003 = vunpack.c.h.b16 %v456
        %v1004 = vunpack.c.l.b16 %v457
        %v1005 = vunpack.c.h.b16 %v457
        %v1006 = vunpack.c.l.b16 %v458
        %v1007 = vunpack.c.h.b16 %v458
        %v1008 = vunpack.c.l.b16 %v459
        %v1009 = vunpack.c.h.b16 %v459
        %v1010 = vunpack.c.l.b16 %v460
        %v1011 = vunpack.c.h.b16 %v460
        %v1012 = vunpack.c.l.b16 %v461
        %v1013 = vunpack.c.h.b16 %v461
        %v1014 = vunpack.c.l.b16 %v462
        %v1015 = vunpack.c.h.b16 %v462
        %v1016 = vunpack.c.l.b16 %v463
        %v1017 = vunpack.c.h.b16 %v463
        %v1018 = vunpack.c.l.b16 %v464
        %v1019 = vunpack.c.h.b16 %v464
        %v1020 = vunpack.c.l.b16 %v465
        %v1021 = vunpack.c.h.b16 %v465
        %v1022 = vunpack.c.l.b16 %v466
        %v1023 = vunpack.c.h.b16 %v466
        %v1024 = vunpack.c.l.b16 %v467
        %v1025 = vunpack.c.h.b16 %v467
        %v1026 = vunpack.c.l.b16 %v468
        %v1027 = vunpack.c.h.b16 %v468
        %v1028 = vunpack.c.l.b16 %v469
        %v1029 = vunpack.c.h.b16 %v469
        %v1030 = vunpack.c.l.b16 %v470
        %v1031 = vunpack.c.h.b16 %v470
        %v1032 = vunpack.c.l.b16 %v471
        %v1033 = vunpack.c.h.b16 %v471
        %v1034 = vunpack.c.l.b16 %v472
        %v1035 = vunpack.c.h.b16 %v472
        %v1036 = vunpack.c.l.b16 %v473
        %v1037 = vunpack.c.h.b16 %v473
        %v1038 = vunpack.c.l.b16 %v474
        %v1039 = vunpack.c.h.b16 %v474
        %v1040 = vunpack.c.l.b16 %v475
        %v1041 = vunpack.c.h.b16 %v475
        %v1042 = vunpack.c.l.b16 %v476
        %v1043 = vunpack.c.h.b16 %v476
        %v1044 = vunpack.c.l.b16 %v477
        %v1045 = vunpack.c.h.b16 %v477
        %v1046 = vunpack.c.l.b16 %v478
        %v1047 = vunpack.c.h.b16 %v478
        %v1048 = vunpack.c.l.b16 %v479
        %v1049 = vunpack.c.h.b16 %v479
        %v1050 = vunpack.c.l.b16 %v480
        %v1051 = vunpack.c.h.b16 %v480
        %v1052 = vunpack.c.l.b16 %v481
        %v1053 = vunpack.c.h.b16 %v481
        %v1054 = vunpack.c.l.b16 %v482
        %v1055 = vunpack.c.h.b16 %v482
        %v1056 = vunpack.c.l.b16 %v483
        %v1057 = vunpack.c.h.b16 %v483
        %v1058 = vunpack.c.l.b16 %v484
        %v1059 = vunpack.c.h.b16 %v484
        %v1060 = vunpack.c.l.b16 %v485
        %v1061 = vunpack.c.h.b16 %v485
        %v1062 = vunpack.c.l.b16 %v486
        %v1063 = vunpack.c.h.b16 %v486
        %v1064 = vunpack.c.l.b16 %v487
        %v1065 = vunpack.c.h.b16 %v487
        %v1066 = vunpack.c.l.b16 %v488
        %v1067 = vunpack.c.h.b16 %v488
        %v1068 = vunpack.c.l.b16 %v489
        %v1069 = vunpack.c.h.b16 %v489
        %v1070 = vunpack.c.l.b16 %v490
        %v1071 = vunpack.c.h.b16 %v490
        %v1072 = vunpack.c.l.b16 %v491
        %v1073 = vunpack.c.h.b16 %v491
        %v1074 = vunpack.c.l.b16 %v492
        %v1075 = vunpack.c.h.b16 %v492
        %v1076 = vunpack.c.l.b16 %v493
        %v1077 = vunpack.c.h.b16 %v493
        %v1078 = vunpack.c.l.b16 %v494
        %v1079 = vunpack.c.h.b16 %v494
        %v1080 = vunpack.c.l.b16 %v495
        %v1081 = vunpack.c.h.b16 %v495
        %v1082 = vunpack.c.l.b16 %v496
        %v1083 = vunpack.c.h.b16 %v496
        %v1084 = vunpack.c.l.b16 %v497
        %v1085 = vunpack.c.h.b16 %v497
        %v1086 = vunpack.c.l.b16 %v498
        %v1087 = vunpack.c.h.b16 %v498
        %v1088 = vunpack.c.l.b16 %v499
        %v1089 = vunpack.c.h.b16 %v499
        %v1090 = vunpack.c.l.b16 %v500
        %v1091 = vunpack.c.h.b16 %v500
        %v1092 = vunpack.c.l.b16 %v501
        %v1093 = vunpack.c.h.b16 %v501
        %v1094 = vunpack.c.l.b16 %v502
        %v1095 = vunpack.c.h.b16 %v502
        %v1096 = vunpack.c.l.b16 %v503
        %v1097 = vunpack.c.h.b16 %v503
        %v1098 = vunpack.c.l.b16 %v504
        %v1099 = vunpack.c.h.b16 %v504
        %v1100 = vunpack.c.l.b16 %v505
        %v1101 = vunpack.c.h.b16 %v505
        %v1102 = vunpack.c.l.b16 %v506
        %v1103 = vunpack.c.h.b16 %v506
        %v1104 = vunpack.c.l.b16 %v507
        %v1105 = vunpack.c.h.b16 %v507
        %v1106 = vunpack.c.l.b16 %v508
        %v1107 = vunpack.c.h.b16 %v508
        %v1108 = vunpack.c.l.b16 %v509
        %v1109 = vunpack.c.h.b16 %v509
        %v1110 = vunpack.c.l.b16 %v510
        %v1111 = vunpack.c.h.b16 %v510
        %v1112 = vunpack.c.l.b16 %v511
        %v1113 = vunpack.c.h.b16 %v511
        %v1114 = vunpack.c.l.b16 %v512
        %v1115 = vunpack.c.h.b16 %v512
        %v1116 = vunpack.c.l.b16 %v513
        %v1117 = vunpack.c.h.b16 %v513
        %v1118 = vunpack.c.l.b16 %v514
        %v1119 = vunpack.c.h.b16 %v514
        %v1120 = vunpack.c.l.b16 %v515
        %v1121 = vunpack.c.h.b16 %v515
        %v1122 = vunpack.c.l.b16 %v516
        %v1123 = vunpack.c.h.b16 %v516
        %v1124 = vunpack.c.l.b16 %v517
        %v1125 = vunpack.c.h.b16 %v517
        %v1126 = vunpack.c.l.b16 %v518
        %v1127 = vunpack.c.h.b16 %v518
        %v1128 = vunpack.c.l.b16 %v519
        %v1129 = vunpack.c.h.b16 %v519
        %v1130 = vunpack.c.l.b16 %v520
        %v1131 = vunpack.c.h.b16 %v520
        %v1132 = vunpack.c.l.b16 %v521
        %v1133 = vunpack.c.h.b16 %v521
        %v1134 = vunpack.c.l.b16 %v522
        %v1135 = vunpack.c.h.b16 %v522
        %v1136 = vunpack.c.l.b16 %v523
        %v1137 = vunpack.c.h.b16 %v523
        %v1138 = vunpack.c.l.b16 %v524
        %v1139 = vunpack.c.h.b16 %v524
        %v1140 = vunpack.c.l.b16 %v525
        %v1141 = vunpack.c.h.b16 %v525
        %v1142 = vunpack.c.l.b16 %v526
        %v1143 = vunpack.c.h.b16 %v526
        %v1144 = vunpack.c.l.b16 %v527
        %v1145 = vunpack.c.h.b16 %v527
        %v1146 = vunpack.c.l.b16 %v528
        %v1147 = vunpack.c.h.b16 %v528
        %v1148 = vunpack.c.l.b16 %v529
        %v1149 = vunpack.c.h.b16 %v529
        %v1150 = vunpack.c.l.b16 %v530
        %v1151 = vunpack.c.h.b16 %v530
        %v1152 = vunpack.c.l.b16 %v531
        %v1153 = vunpack.c.h.b16 %v531
        %v1154 = vunpack.c.l.b16 %v532
        %v1155 = vunpack.c.h.b16 %v532
        %v1156 = vunpack.c.l.b16 %v533
        %v1157 = vunpack.c.h.b16 %v533
        %v1158 = vunpack.c.l.b16 %v534
        %v1159 = vunpack.c.h.b16 %v534
        %v1160 = vunpack.c.l.b16 %v535
        %v1161 = vunpack.c.h.b16 %v535
        %v1162 = vunpack.c.l.b16 %v536
        %v1163 = vunpack.c.h.b16 %v536
        %v1164 = vunpack.c.l.b16 %v537
        %v1165 = vunpack.c.h.b16 %v537
        %v1166 = vunpack.c.l.b16 %v538
        %v1167 = vunpack.c.h.b16 %v538
        %v1168 = vunpack.c.l.b16 %v539
        %v1169 = vunpack.c.h.b16 %v539
        %v1170 = vunpack.c.l.b16 %v540
        %v1171 = vunpack.c.h.b16 %v540
        %v1172 = vunpack.c.l.b16 %v541
        %v1173 = vunpack.c.h.b16 %v541
        %v1174 = vunpack.c.l.b16 %v542
        %v1175 = vunpack.c.h.b16 %v542
        %v1176 = vunpack.c.l.b16 %v543
        %v1177 = vunpack.c.h.b16 %v543
        %v1178 = vunpack.c.l.b16 %v544
        %v1179 = vunpack.c.h.b16 %v544
        %v1180 = vunpack.c.l.b16 %v545
        %v1181 = vunpack.c.h.b16 %v545
        %v1182 = vunpack.c.l.b16 %v546
        %v1183 = vunpack.c.h.b16 %v546
        %v1184 = vunpack.c.l.b16 %v547
        %v1185 = vunpack.c.h.b16 %v547
        %v1186 = vunpack.c.l.b16 %v548
        %v1187 = vunpack.c.h.b16 %v548
        %v1188 = vunpack.c.l.b16 %v549
        %v1189 = vunpack.c.h.b16 %v549
        %v1190 = vunpack.c.l.b16 %v550
        %v1191 = vunpack.c.h.b16 %v550
        %v1192 = vunpack.c.l.b16 %v551
        %v1193 = vunpack.c.h.b16 %v551
        %v1194 = vunpack.c.l.b16 %v552
        %v1195 = vunpack.c.h.b16 %v552
        %v1196 = vunpack.c.l.b16 %v553
        %v1197 = vunpack.c.h.b16 %v553
        %v1198 = vunpack.c.l.b16 %v554
        %v1199 = vunpack.c.h.b16 %v554
        %v1200 = vunpack.c.l.b16 %v555
        %v1201 = vunpack.c.h.b16 %v555
        %v1202 = vunpack.c.l.b16 %v556
        %v1203 = vunpack.c.h.b16 %v556
        %v1204 = vunpack.c.l.b16 %v557
        %v1205 = vunpack.c.h.b16 %v557
        %v1206 = vunpack.c.l.b16 %v558
        %v1207 = vunpack.c.h.b16 %v558
        %v1208 = vunpack.c.l.b16 %v559
        %v1209 = vunpack.c.h.b16 %v559
        %v1210 = vunpack.c.l.b16 %v560
        %v1211 = vunpack.c.h.b16 %v560
        %v1212 = vunpack.c.l.b16 %v561
        %v1213 = vunpack.c.h.b16 %v561
        %v1214 = vunpack.c.l.b16 %v562
        %v1215 = vunpack.c.h.b16 %v562
        %v1216 = vunpack.c.l.b16 %v563
        %v1217 = vunpack.c.h.b16 %v563
        %v1218 = vunpack.c.l.b16 %v564
        %v1219 = vunpack.c.h.b16 %v564
        %v1220 = vunpack.c.l.b16 %v565
        %v1221 = vunpack.c.h.b16 %v565
        %v1222 = vunpack.c.l.b16 %v566
        %v1223 = vunpack.c.h.b16 %v566
        %v1224 = vunpack.c.l.b16 %v567
        %v1225 = vunpack.c.h.b16 %v567
        %v1226 = vunpack.c.l.b16 %v568
        %v1227 = vunpack.c.h.b16 %v568
        %v1228 = vunpack.c.l.b16 %v569
        %v1229 = vunpack.c.h.b16 %v569
        %v1230 = vunpack.c.l.b16 %v570
        %v1231 = vunpack.c.h.b16 %v570
        %v1232 = vunpack.c.l.b16 %v571
        %v1233 = vunpack.c.h.b16 %v571
        %v1234 = vunpack.c.l.b16 %v572
        %v1235 = vunpack.c.h.b16 %v572
        %v1236 = vunpack.c.l.b16 %v573
        %v1237 = vunpack.c.h.b16 %v573
        %v1238 = vunpack.c.l.b16 %v574
        %v1239 = vunpack.c.h.b16 %v574
        %v1240 = vunpack.c.l.b16 %v575
        %v1241 = vunpack.c.h.b16 %v575
        %v1242 = vunpack.c.l.b16 %v576
        %v1243 = vunpack.c.h.b16 %v576
        %v1244 = vunpack.c.l.b16 %v577
        %v1245 = vunpack.c.h.b16 %v577
        %v1246 = vunpack.c.l.b16 %v578
        %v1247 = vunpack.c.h.b16 %v578
        %v1248 = vunpack.c.l.b16 %v579
        %v1249 = vunpack.c.h.b16 %v579
        %v1250 = vunpack.c.l.b16 %v580
        %v1251 = vunpack.c.h.b16 %v580
        %v1252 = vunpack.c.l.b16 %v581
        %v1253 = vunpack.c.h.b16 %v581
        %v1254 = vunpack.c.l.b16 %v582
        %v1255 = vunpack.c.h.b16 %v582
        %v1256 = vunpack.c.l.b16 %v583
        %v1257 = vunpack.c.h.b16 %v583
        %v1258 = vunpack.c.l.b16 %v584
        %v1259 = vunpack.c.h.b16 %v584
        %v1260 = vunpack.c.l.b16 %v585
        %v1261 = vunpack.c.h.b16 %v585
        %v1262 = vunpack.c.l.b16 %v586
        %v1263 = vunpack.c.h.b16 %v586
        %v1264 = vunpack.c.l.b16 %v587
        %v1265 = vunpack.c.h.b16 %v587
        %v1266 = vunpack.c.l.b16 %v588
        %v1267 = vunpack.c.h.b16 %v588
        %v1268 = vunpack.c.l.b16 %v589
        %v1269 = vunpack.c.h.b16 %v589
        %v1270 = vunpack.c.l.b16 %v590
        %v1271 = vunpack.c.h.b16 %v590
        %v1272 = vunpack.c.l.b16 %v591
        %v1273 = vunpack.c.h.b16 %v591
        %v1274 = vunpack.c.l.b16 %v592
        %v1275 = vunpack.c.h.b16 %v592
        %v1276 = vunpack.c.l.b16 %v593
        %v1277 = vunpack.c.h.b16 %v593
        %v1278 = vunpack.c.l.b16 %v594
        %v1279 = vunpack.c.h.b16 %v594
        %v1280 = vunpack.c.l.b16 %v595
        %v1281 = vunpack.c.h.b16 %v595
        %v1282 = vunpack.c.l.b16 %v596
        %v1283 = vunpack.c.h.b16 %v596
        %v1284 = vunpack.c.l.b16 %v597
        %v1285 = vunpack.c.h.b16 %v597
        %v1286 = vunpack.c.l.b16 %v598
        %v1287 = vunpack.c.h.b16 %v598
        %v1288 = vunpack.c.l.b16 %v599
        %v1289 = vunpack.c.h.b16 %v599
        %v1290 = vunpack.c.l.b16 %v600
        %v1291 = vunpack.c.h.b16 %v600
        %v1292 = vunpack.c.l.b16 %v601
        %v1293 = vunpack.c.h.b16 %v601
        %v1294 = vunpack.c.l.b16 %v602
        %v1295 = vunpack.c.h.b16 %v602
        %v1296 = vunpack.c.l.b16 %v603
        %v1297 = vunpack.c.h.b16 %v603
        %v1298 = vunpack.c.l.b16 %v604
        %v1299 = vunpack.c.h.b16 %v604
        %v1300 = vunpack.c.l.b16 %v605
        %v1301 = vunpack.c.h.b16 %v605
        %v1302 = vunpack.c.l.b16 %v606
        %v1303 = vunpack.c.h.b16 %v606
        %v1304 = vunpack.c.l.b16 %v607
        %v1305 = vunpack.c.h.b16 %v607
        %v1306 = vunpack.c.l.b16 %v608
        %v1307 = vunpack.c.h.b16 %v608
        %v1308 = vunpack.c.l.b16 %v609
        %v1309 = vunpack.c.h.b16 %v609
        %v1310 = vunpack.c.l.b16 %v610
        %v1311 = vunpack.c.h.b16 %v610
        %v1312 = vunpack.c.l.b16 %v611
        %v1313 = vunpack.c.h.b16 %v611
        %v1314 = vunpack.c.l.b16 %v612
        %v1315 = vunpack.c.h.b16 %v612
        %v1316 = vunpack.c.l.b16 %v613
        %v1317 = vunpack.c.h.b16 %v613
        %v1318 = vunpack.c.l.b16 %v614
        %v1319 = vunpack.c.h.b16 %v614
        %v1320 = vunpack.c.l.b16 %v615
        %v1321 = vunpack.c.h.b16 %v615
        %v1322 = vunpack.c.l.b16 %v616
        %v1323 = vunpack.c.h.b16 %v616
        %v1324 = vunpack.c.l.b16 %v617
        %v1325 = vunpack.c.h.b16 %v617
        %v1326 = vunpack.c.l.b16 %v618
        %v1327 = vunpack.c.h.b16 %v618
        %v1328 = vunpack.c.l.b16 %v619
        %v1329 = vunpack.c.h.b16 %v619
        %v1330 = vunpack.c.l.b16 %v620
        %v1331 = vunpack.c.h.b16 %v620
        %v1332 = vunpack.c.l.b16 %v621
        %v1333 = vunpack.c.h.b16 %v621
        %v1334 = vunpack.c.l.b16 %v622
        %v1335 = vunpack.c.h.b16 %v622
        %v1336 = vunpack.c.l.b16 %v623
        %v1337 = vunpack.c.h.b16 %v623
        %v1338 = vunpack.c.l.b16 %v624
        %v1339 = vunpack.c.h.b16 %v624
        %v1340 = vunpack.c.l.b16 %v625
        %v1341 = vunpack.c.h.b16 %v625
        %v1342 = vunpack.c.l.b16 %v626
        %v1343 = vunpack.c.h.b16 %v626
        %v1344 = vunpack.c.l.b16 %v627
        %v1345 = vunpack.c.h.b16 %v627
        %v1346 = vunpack.c.l.b16 %v628
        %v1347 = vunpack.c.h.b16 %v628
        %v1348 = vunpack.c.l.b16 %v629
        %v1349 = vunpack.c.h.b16 %v629
        %v1350 = vunpack.c.l.b16 %v630
        %v1351 = vunpack.c.h.b16 %v630
        %v1352 = vunpack.c.l.b16 %v631
        %v1353 = vunpack.c.h.b16 %v631
        %v1354 = vunpack.c.l.b16 %v632
        %v1355 = vunpack.c.h.b16 %v632
        %v1356 = vunpack.c.l.b16 %v633
        %v1357 = vunpack.c.h.b16 %v633
        %v1358 = vunpack.c.l.b16 %v634
        %v1359 = vunpack.c.h.b16 %v634
        %v1360 = vunpack.c.l.b16 %v635
        %v1361 = vunpack.c.h.b16 %v635
        %v1362 = vunpack.c.l.b16 %v636
        %v1363 = vunpack.c.h.b16 %v636
        %v1364 = vunpack.c.l.b16 %v637
        %v1365 = vunpack.c.h.b16 %v637
        %v1366 = vunpack.c.l.b16 %v638
        %v1367 = vunpack.c.h.b16 %v638
        %v1368 = vunpack.c.l.b16 %v639
        %v1369 = vunpack.c.h.b16 %v639
        %v1370 = vunpack.c.l.b16 %v640
        %v1371 = vunpack.c.h.b16 %v640
        %v1372 = vunpack.c.l.b16 %v641
        %v1373 = vunpack.c.h.b16 %v641
        %v1374 = vunpack.c.l.b16 %v642
        %v1375 = vunpack.c.h.b16 %v642
        %v1376 = vunpack.c.l.b16 %v643
        %v1377 = vunpack.c.h.b16 %v643
        %v1378 = vunpack.c.l.b16 %v644
        %v1379 = vunpack.c.h.b16 %v644
        %v1380 = vunpack.c.l.b16 %v645
        %v1381 = vunpack.c.h.b16 %v645
        %v1382 = vunpack.c.l.b16 %v646
        %v1383 = vunpack.c.h.b16 %v646
        %v1384 = vunpack.c.l.b16 %v647
        %v1385 = vunpack.c.h.b16 %v647
        %v1386 = vunpack.c.l.b16 %v648
        %v1387 = vunpack.c.h.b16 %v648
        %v1388 = vunpack.c.l.b16 %v649
        %v1389 = vunpack.c.h.b16 %v649
        %v1390 = vunpack.c.l.b16 %v650
        %v1391 = vunpack.c.h.b16 %v650
        %v1392 = vunpack.c.l.b16 %v651
        %v1393 = vunpack.c.h.b16 %v651
        %v1394 = vunpack.c.l.b16 %v652
        %v1395 = vunpack.c.h.b16 %v652
        %v1396 = vunpack.c.l.b16 %v653
        %v1397 = vunpack.c.h.b16 %v653
        %v1398 = vunpack.c.l.b16 %v654
        %v1399 = vunpack.c.h.b16 %v654
        %v1400 = vunpack.c.l.b16 %v655
        %v1401 = vunpack.c.h.b16 %v655
        %v1402 = vunpack.c.l.b16 %v656
        %v1403 = vunpack.c.h.b16 %v656
        %v1404 = vunpack.c.l.b16 %v657
        %v1405 = vunpack.c.h.b16 %v657
        %v1406 = vunpack.c.l.b16 %v658
        %v1407 = vunpack.c.h.b16 %v658
        %v1408 = vunpack.c.l.b16 %v659
        %v1409 = vunpack.c.h.b16 %v659
        %v1410 = vunpack.c.l.b16 %v660
        %v1411 = vunpack.c.h.b16 %v660
        %v1412 = vunpack.c.l.b16 %v661
        %v1413 = vunpack.c.h.b16 %v661
        %v1414 = vunpack.c.l.b16 %v662
        %v1415 = vunpack.c.h.b16 %v662
        %v1416 = vunpack.c.l.b16 %v663
        %v1417 = vunpack.c.h.b16 %v663
        %v1418 = vunpack.c.l.b16 %v664
        %v1419 = vunpack.c.h.b16 %v664
        %v1420 = vunpack.c.l.b16 %v665
        %v1421 = vunpack.c.h.b16 %v665
        %v1422 = vunpack.c.l.b16 %v666
        %v1423 = vunpack.c.h.b16 %v666
        %v1424 = vunpack.c.l.b16 %v667
        %v1425 = vunpack.c.h.b16 %v667
        %v1426 = vunpack.c.l.b16 %v668
        %v1427 = vunpack.c.h.b16 %v668
        %v1428 = vunpack.c.l.b16 %v669
        %v1429 = vunpack.c.h.b16 %v669
        %v1430 = vunpack.c.l.b16 %v670
        %v1431 = vunpack.c.h.b16 %v670
        %v1432 = vunpack.c.l.b16 %v671
        %v1433 = vunpack.c.h.b16 %v671
        %v1434 = vunpack.c.l.b16 %v672
        %v1435 = vunpack.c.h.b16 %v672
        %v1436 = vunpack.c.l.b16 %v673
        %v1437 = vunpack.c.h.b16 %v673
        %v1438 = vunpack.c.l.b16 %v674
        %v1439 = vunpack.c.h.b16 %v674
        %v1440 = vunpack.c.l.b16 %v675
        %v1441 = vunpack.c.h.b16 %v675
        %v1442 = vunpack.c.l.b16 %v676
        %v1443 = vunpack.c.h.b16 %v676
        %v1444 = vunpack.c.l.b16 %v677
        %v1445 = vunpack.c.h.b16 %v677
        %v1446 = vpack.c.b16 %v938, %v934
        %v1447 = vpack.c.b16 %v939, %v935
        %v1448 = vpack.c.b16 %v940, %v936
        %v1449 = vpack.c.b16 %v941, %v937
        %v1450 = vpack.c.b16 %v946, %v942
        %v1451 = vpack.c.b16 %v947, %v943
        %v1452 = vpack.c.b16 %v948, %v944
        %v1453 = vpack.c.b16 %v949, %v945
        %v1454 = vpack.c.b16 %v954, %v950
        %v1455 = vpack.c.b16 %v955, %v951
        %v1456 = vpack.c.b16 %v956, %v952
        %v1457 = vpack.c.b16 %v957, %v953
        %v1458 = vpack.c.b16 %v962, %v958
        %v1459 = vpack.c.b16 %v963, %v959
        %v1460 = vpack.c.b16 %v964, %v960
        %v1461 = vpack.c.b16 %v965, %v961
        %v1462 = vpack.c.b16 %v970, %v966
        %v1463 = vpack.c.b16 %v971, %v967
        %v1464 = vpack.c.b16 %v972, %v968
        %v1465 = vpack.c.b16 %v973, %v969
        %v1466 = vpack.c.b16 %v978, %v974
        %v1467 = vpack.c.b16 %v979, %v975
        %v1468 = vpack.c.b16 %v980, %v976
        %v1469 = vpack.c.b16 %v981, %v977
        %v1470 = vpack.c.b16 %v986, %v982
        %v1471 = vpack.c.b16 %v987, %v983
        %v1472 = vpack.c.b16 %v988, %v984
        %v1473 = vpack.c.b16 %v989, %v985
        %v1474 = vpack.c.b16 %v994, %v990
        %v1475 = vpack.c.b16 %v995, %v991
        %v1476 = vpack.c.b16 %v996, %v992
        %v1477 = vpack.c.b16 %v997, %v993
        %v1478 = vpack.c.b16 %v1002, %v998
        %v1479 = vpack.c.b16 %v1003, %v999
        %v1480 = vpack.c.b16 %v1004, %v1000
        %v1481 = vpack.c.b16 %v1005, %v1001
        %v1482 = vpack.c.b16 %v1010, %v1006
        %v1483 = vpack.c.b16 %v1011, %v1007
        %v1484 = vpack.c.b16 %v1012, %v1008
        %v1485 = vpack.c.b16 %v1013, %v1009
        %v1486 = vpack.c.b16 %v1018, %v1014
        %v1487 = vpack.c.b16 %v1019, %v1015
        %v1488 = vpack.c.b16 %v1020, %v1016
        %v1489 = vpack.c.b16 %v1021, %v1017
        %v1490 = vpack.c.b16 %v1026, %v1022
        %v1491 = vpack.c.b16 %v1027, %v1023
        %v1492 = vpack.c.b16 %v1028, %v1024
        %v1493 = vpack.c.b16 %v1029, %v1025
        %v1494 = vpack.c.b16 %v1034, %v1030
        %v1495 = vpack.c.b16 %v1035, %v1031
        %v1496 = vpack.c.b16 %v1036, %v1032
        %v1497 = vpack.c.b16 %v1037, %v1033
        %v1498 = vpack.c.b16 %v1042, %v1038
        %v1499 = vpack.c.b16 %v1043, %v1039
        %v1500 = vpack.c.b16 %v1044, %v1040
        %v1501 = vpack.c.b16 %v1045, %v1041
        %v1502 = vpack.c.b16 %v1050, %v1046
        %v1503 = vpack.c.b16 %v1051, %v1047
        %v1504 = vpack.c.b16 %v1052, %v1048
        %v1505 = vpack.c.b16 %v1053, %v1049
        %v1506 = vpack.c.b16 %v1058, %v1054
        %v1507 = vpack.c.b16 %v1059, %v1055
        %v1508 = vpack.c.b16 %v1060, %v1056
        %v1509 = vpack.c.b16 %v1061, %v1057
        %v1510 = vpack.c.b16 %v1066, %v1062
        %v1511 = vpack.c.b16 %v1067, %v1063
        %v1512 = vpack.c.b16 %v1068, %v1064
        %v1513 = vpack.c.b16 %v1069, %v1065
        %v1514 = vpack.c.b16 %v1074, %v1070
        %v1515 = vpack.c.b16 %v1075, %v1071
        %v1516 = vpack.c.b16 %v1076, %v1072
        %v1517 = vpack.c.b16 %v1077, %v1073
        %v1518 = vpack.c.b16 %v1082, %v1078
        %v1519 = vpack.c.b16 %v1083, %v1079
        %v1520 = vpack.c.b16 %v1084, %v1080
        %v1521 = vpack.c.b16 %v1085, %v1081
        %v1522 = vpack.c.b16 %v1090, %v1086
        %v1523 = vpack.c.b16 %v1091, %v1087
        %v1524 = vpack.c.b16 %v1092, %v1088
        %v1525 = vpack.c.b16 %v1093, %v1089
        %v1526 = vpack.c.b16 %v1098, %v1094
        %v1527 = vpack.c.b16 %v1099, %v1095
        %v1528 = vpack.c.b16 %v1100, %v1096
        %v1529 = vpack.c.b16 %v1101, %v1097
        %v1530 = vpack.c.b16 %v1106, %v1102
        %v1531 = vpack.c.b16 %v1107, %v1103
        %v1532 = vpack.c.b16 %v1108, %v1104
        %v1533 = vpack.c.b16 %v1109, %v1105
        %v1534 = vpack.c.b16 %v1114, %v1110
        %v1535 = vpack.c.b16 %v1115, %v1111
        %v1536 = vpack.c.b16 %v1116, %v1112
        %v1537 = vpack.c.b16 %v1117, %v1113
        %v1538 = vpack.c.b16 %v1122, %v1118
        %v1539 = vpack.c.b16 %v1123, %v1119
        %v1540 = vpack.c.b16 %v1124, %v1120
        %v1541 = vpack.c.b16 %v1125, %v1121
        %v1542 = vpack.c.b16 %v1130, %v1126
        %v1543 = vpack.c.b16 %v1131, %v1127
        %v1544 = vpack.c.b16 %v1132, %v1128
        %v1545 = vpack.c.b16 %v1133, %v1129
        %v1546 = vpack.c.b16 %v1138, %v1134
        %v1547 = vpack.c.b16 %v1139, %v1135
        %v1548 = vpack.c.b16 %v1140, %v1136
        %v1549 = vpack.c.b16 %v1141, %v1137
        %v1550 = vpack.c.b16 %v1146, %v1142
        %v1551 = vpack.c.b16 %v1147, %v1143
        %v1552 = vpack.c.b16 %v1148, %v1144
        %v1553 = vpack.c.b16 %v1149, %v1145
        %v1554 = vpack.c.b16 %v1154, %v1150
        %v1555 = vpack.c.b16 %v1155, %v1151
        %v1556 = vpack.c.b16 %v1156, %v1152
        %v1557 = vpack.c.b16 %v1157, %v1153
        %v1558 = vpack.c.b16 %v1162, %v1158
        %v1559 = vpack.c.b16 %v1163, %v1159
        %v1560 = vpack.c.b16 %v1164, %v1160
        %v1561 = vpack.c.b16 %v1165, %v1161
        %v1562 = vpack.c.b16 %v1170, %v1166
        %v1563 = vpack.c.b16 %v1171, %v1167
        %v1564 = vpack.c.b16 %v1172, %v1168
        %v1565 = vpack.c.b16 %v1173, %v1169
        %v1566 = vpack.c.b16 %v1178, %v1174
        %v1567 = vpack.c.b16 %v1179, %v1175
        %v1568 = vpack.c.b16 %v1180, %v1176
        %v1569 = vpack.c.b16 %v1181, %v1177
        %v1570 = vpack.c.b16 %v1186, %v1182
        %v1571 = vpack.c.b16 %v1187, %v1183
        %v1572 = vpack.c.b16 %v1188, %v1184
        %v1573 = vpack.c.b16 %v1189, %v1185
        %v1574 = vpack.c.b16 %v1194, %v1190
        %v1575 = vpack.c.b16 %v1195, %v1191
        %v1576 = vpack.c.b16 %v1196, %v1192
        %v1577 = vpack.c.b16 %v1197, %v1193
        %v1578 = vpack.c.b16 %v1202, %v1198
        %v1579 = vpack.c.b16 %v1203, %v1199
        %v1580 = vpack.c.b16 %v1204, %v1200
        %v1581 = vpack.c.b16 %v1205, %v1201
        %v1582 = vpack.c.b16 %v1210, %v1206
        %v1583 = vpack.c.b16 %v1211, %v1207
        %v1584 = vpack.c.b16 %v1212, %v1208
        %v1585 = vpack.c.b16 %v1213, %v1209
        %v1586 = vpack.c.b16 %v1218, %v1214
        %v1587 = vpack.c.b16 %v1219, %v1215
        %v1588 = vpack.c.b16 %v1220, %v1216
        %v1589 = vpack.c.b16 %v1221, %v1217
        %v1590 = vpack.c.b16 %v1226, %v1222
        %v1591 = vpack.c.b16 %v1227, %v1223
        %v1592 = vpack.c.b16 %v1228, %v1224
        %v1593 = vpack.c.b16 %v1229, %v1225
        %v1594 = vpack.c.b16 %v1234, %v1230
        %v1595 = vpack.c.b16 %v1235, %v1231
        %v1596 = vpack.c.b16 %v1236, %v1232
        %v1597 = vpack.c.b16 %v1237, %v1233
        %v1598 = vpack.c.b16 %v1242, %v1238
        %v1599 = vpack.c.b16 %v1243, %v1239
        %v1600 = vpack.c.b16 %v1244, %v1240
        %v1601 = vpack.c.b16 %v1245, %v1241
        %v1602 = vpack.c.b16 %v1250, %v1246
        %v1603 = vpack.c.b16 %v1251, %v1247
        %v1604 = vpack.c.b16 %v1252, %v1248
        %v1605 = vpack.c.b16 %v1253, %v1249
        %v1606 = vpack.c.b16 %v1258, %v1254
        %v1607 = vpack.c.b16 %v1259, %v1255
        %v1608 = vpack.c.b16 %v1260, %v1256
        %v1609 = vpack.c.b16 %v1261, %v1257
        %v1610 = vpack.c.b16 %v1266, %v1262
        %v1611 = vpack.c.b16 %v1267, %v1263
        %v1612 = vpack.c.b16 %v1268, %v1264
        %v1613 = vpack.c.b16 %v1269, %v1265
        %v1614 = vpack.c.b16 %v1274, %v1270
        %v1615 = vpack.c.b16 %v1275, %v1271
        %v1616 = vpack.c.b16 %v1276, %v1272
        %v1617 = vpack.c.b16 %v1277, %v1273
        %v1618 = vpack.c.b16 %v1282, %v1278
        %v1619 = vpack.c.b16 %v1283, %v1279
        %v1620 = vpack.c.b16 %v1284, %v1280
        %v1621 = vpack.c.b16 %v1285, %v1281
        %v1622 = vpack.c.b16 %v1290, %v1286
        %v1623 = vpack.c.b16 %v1291, %v1287
        %v1624 = vpack.c.b16 %v1292, %v1288
        %v1625 = vpack.c.b16 %v1293, %v1289
        %v1626 = vpack.c.b16 %v1298, %v1294
        %v1627 = vpack.c.b16 %v1299, %v1295
        %v1628 = vpack.c.b16 %v1300, %v1296
        %v1629 = vpack.c.b16 %v1301, %v1297
        %v1630 = vpack.c.b16 %v1306, %v1302
        %v1631 = vpack.c.b16 %v1307, %v1303
        %v1632 = vpack.c.b16 %v1308, %v1304
        %v1633 = vpack.c.b16 %v1309, %v1305
        %v1634 = vpack.c.b16 %v1314, %v1310
        %v1635 = vpack.c.b16 %v1315, %v1311
        %v1636 = vpack.c.b16 %v1316, %v1312
        %v1637 = vpack.c.b16 %v1317, %v1313
        %v1638 = vpack.c.b16 %v1322, %v1318
        %v1639 = vpack.c.b16 %v1323, %v1319
        %v1640 = vpack.c.b16 %v1324, %v1320
        %v1641 = vpack.c.b16 %v1325, %v1321
        %v1642 = vpack.c.b16 %v1330, %v1326
        %v1643 = vpack.c.b16 %v1331, %v1327
        %v1644 = vpack.c.b16 %v1332, %v1328
        %v1645 = vpack.c.b16 %v1333, %v1329
        %v1646 = vpack.c.b16 %v1338, %v1334
        %v1647 = vpack.c.b16 %v1339, %v1335
        %v1648 = vpack.c.b16 %v1340, %v1336
        %v1649 = vpack.c.b16 %v1341, %v1337
        %v1650 = vpack.c.b16 %v1346, %v1342
        %v1651 = vpack.c.b16 %v1347, %v1343
        %v1652 = vpack.c.b16 %v1348, %v1344
        %v1653 = vpack.c.b16 %v1349, %v1345
        %v1654 = vpack.c.b16 %v1354, %v1350
        %v1655 = vpack.c.b16 %v1355, %v1351
        %v1656 = vpack.c.b16 %v1356, %v1352
        %v1657 = vpack.c.b16 %v1357, %v1353
        %v1658 = vpack.c.b16 %v1362, %v1358
        %v1659 = vpack.c.b16 %v1363, %v1359
        %v1660 = vpack.c.b16 %v1364, %v1360
        %v1661 = vpack.c.b16 %v1365, %v1361
        %v1662 = vpack.c.b16 %v1370, %v1366
        %v1663 = vpack.c.b16 %v1371, %v1367
        %v1664 = vpack.c.b16 %v1372, %v1368
        %v1665 = vpack.c.b16 %v1373, %v1369
        %v1666 = vpack.c.b16 %v1378, %v1374
        %v1667 = vpack.c.b16 %v1379, %v1375
        %v1668 = vpack.c.b16 %v1380, %v1376
        %v1669 = vpack.c.b16 %v1381, %v1377
        %v1670 = vpack.c.b16 %v1386, %v1382
        %v1671 = vpack.c.b16 %v1387, %v1383
        %v1672 = vpack.c.b16 %v1388, %v1384
        %v1673 = vpack.c.b16 %v1389, %v1385
        %v1674 = vpack.c.b16 %v1394, %v1390
        %v1675 = vpack.c.b16 %v1395, %v1391
        %v1676 = vpack.c.b16 %v1396, %v1392
        %v1677 = vpack.c.b16 %v1397, %v1393
        %v1678 = vpack.c.b16 %v1402, %v1398
        %v1679 = vpack.c.b16 %v1403, %v1399
        %v1680 = vpack.c.b16 %v1404, %v1400
        %v1681 = vpack.c.b16 %v1405, %v1401
        %v1682 = vpack.c.b16 %v1410, %v1406
        %v1683 = vpack.c.b16 %v1411, %v1407
        %v1684 = vpack.c.b16 %v1412, %v1408
        %v1685 = vpack.c.b16 %v1413, %v1409
        %v1686 = vpack.c.b16 %v1418, %v1414
        %v1687 = vpack.c.b16 %v1419, %v1415
        %v1688 = vpack.c.b16 %v1420, %v1416
        %v1689 = vpack.c.b16 %v1421, %v1417
        %v1690 = vpack.c.b16 %v1426, %v1422
        %v1691 = vpack.c.b16 %v1427, %v1423
        %v1692 = vpack.c.b16 %v1428, %v1424
        %v1693 = vpack.c.b16 %v1429, %v1425
        %v1694 = vpack.c.b16 %v1434, %v1430
        %v1695 = vpack.c.b16 %v1435, %v1431
        %v1696 = vpack.c.b16 %v1436, %v1432
        %v1697 = vpack.c.b16 %v1437, %v1433
        %v1698 = vpack.c.b16 %v1442, %v1438
        %v1699 = vpack.c.b16 %v1443, %v1439
        %v1700 = vpack.c.b16 %v1444, %v1440
        %v1701 = vpack.c.b16 %v1445, %v1441
        %1958 = vmatprep.subr.bf16.mxu0 %v1447
        %1959 = vmatpush1.bf16.msra.mxu0 %v1446
        %1960 = vmatprep.subr.bf16.mxu0 %v1451
        %1961 = vmatpush1.bf16.msra.mxu0 %v1450
        %1962 = vmatprep.subr.bf16.mxu0 %v1455
        %1963 = vmatpush1.bf16.msra.mxu0 %v1454
        %1964 = vmatprep.subr.bf16.mxu0 %v1459
        %1965 = vmatpush1.bf16.msra.mxu0 %v1458
        %1966 = vmatprep.subr.bf16.mxu0 %v1463
        %1967 = vmatpush1.bf16.msra.mxu0 %v1462
        %1968 = vmatprep.subr.bf16.mxu0 %v1467
        %1969 = vmatpush1.bf16.msra.mxu0 %v1466
        %1970 = vmatprep.subr.bf16.mxu0 %v1471
        %1971 = vmatpush1.bf16.msra.mxu0 %v1470
        %1972 = vmatprep.subr.bf16.mxu0 %v1475
        %1973 = vmatpush1.bf16.msra.mxu0 %v1474
        %1974 = vmatprep.subr.bf16.mxu0 %v1479
        %1975 = vmatpush1.bf16.msra.mxu0 %v1478
        %1976 = vmatprep.subr.bf16.mxu0 %v1483
        %1977 = vmatpush1.bf16.msra.mxu0 %v1482
        %1978 = vmatprep.subr.bf16.mxu0 %v1487
        %1979 = vmatpush1.bf16.msra.mxu0 %v1486
        %1980 = vmatprep.subr.bf16.mxu0 %v1491
        %1981 = vmatpush1.bf16.msra.mxu0 %v1490
        %1982 = vmatprep.subr.bf16.mxu0 %v1495
        %1983 = vmatpush1.bf16.msra.mxu0 %v1494
        %1984 = vmatprep.subr.bf16.mxu0 %v1499
        %1985 = vmatpush1.bf16.msra.mxu0 %v1498
        %1986 = vmatprep.subr.bf16.mxu0 %v1503
        %1987 = vmatpush1.bf16.msra.mxu0 %v1502
        %1988 = vmatprep.subr.bf16.mxu0 %v1507
        %1989 = vmatpush1.bf16.msra.mxu0 %v1506
        %1990 = vmatprep.mubr.bf16.mxu0 %v415
        %1991 = vmatmul.mubr.bf16.gmra.mrb[0].mxu0 %v414
        %v1992 = vpop.f32.mrb[0].mxu0
        %v1993 = vadd.f32 0.0, %v1992
        %v1994 = vpop.f32.mrb[0].mxu0
        %v1995 = vadd.f32 0.0, %v1994
        %v1996 = vpop.f32.mrb[0].mxu0
        %v1997 = vpop.f32.mrb[0].mxu0
        %1998 = vdwg.mxu0
        %1999 = vmatprep.subr.bf16.mxu0 %v1511
        %2000 = vmatpush1.bf16.msra.mxu0 %v1510
        %2001 = vmatprep.subr.bf16.mxu0 %v1515
        %2002 = vmatpush1.bf16.msra.mxu0 %v1514
        %2003 = vmatprep.subr.bf16.mxu0 %v1519
        %2004 = vmatpush1.bf16.msra.mxu0 %v1518
        %2005 = vmatprep.subr.bf16.mxu0 %v1523
        %2006 = vmatpush1.bf16.msra.mxu0 %v1522
        %2007 = vmatprep.subr.bf16.mxu0 %v1527
        %2008 = vmatpush1.bf16.msra.mxu0 %v1526
        %2009 = vmatprep.subr.bf16.mxu0 %v1531
        %2010 = vmatpush1.bf16.msra.mxu0 %v1530
        %2011 = vmatprep.subr.bf16.mxu0 %v1535
        %2012 = vmatpush1.bf16.msra.mxu0 %v1534
        %2013 = vmatprep.subr.bf16.mxu0 %v1539
        %2014 = vmatpush1.bf16.msra.mxu0 %v1538
        %2015 = vmatprep.subr.bf16.mxu0 %v1543
        %2016 = vmatpush1.bf16.msra.mxu0 %v1542
        %2017 = vmatprep.subr.bf16.mxu0 %v1547
        %2018 = vmatpush1.bf16.msra.mxu0 %v1546
        %2019 = vmatprep.subr.bf16.mxu0 %v1551
        %2020 = vmatpush1.bf16.msra.mxu0 %v1550
        %2021 = vmatprep.subr.bf16.mxu0 %v1555
        %2022 = vmatpush1.bf16.msra.mxu0 %v1554
        %2023 = vmatprep.subr.bf16.mxu0 %v1559
        %2024 = vmatpush1.bf16.msra.mxu0 %v1558
        %2025 = vmatprep.subr.bf16.mxu0 %v1563
        %2026 = vmatpush1.bf16.msra.mxu0 %v1562
        %2027 = vmatprep.subr.bf16.mxu0 %v1567
        %2028 = vmatpush1.bf16.msra.mxu0 %v1566
        %2029 = vmatprep.subr.bf16.mxu0 %v1571
        %2030 = vmatpush1.bf16.msra.mxu0 %v1570
        %2031 = vmatprep.mubr.bf16.mxu0 %v417
        %2032 = vmatmul.mubr.bf16.gmra.mrb[0].mxu0 %v416
        %v2033 = vpop.f32.mrb[0].mxu0
        %v2034 = vadd.f32 %v1993, %v2033
        %v2035 = vpop.f32.mrb[0].mxu0
        %v2036 = vadd.f32 %v1995, %v2035
        %v2037 = vpop.f32.mrb[0].mxu0
        %v2038 = vpop.f32.mrb[0].mxu0
        %2039 = vdwg.mxu0
        %2040 = vmatprep.subr.bf16.mxu0 %v1575
        %2041 = vmatpush1.bf16.msra.mxu0 %v1574
        %2042 = vmatprep.subr.bf16.mxu0 %v1579
        %2043 = vmatpush1.bf16.msra.mxu0 %v1578
        %2044 = vmatprep.subr.bf16.mxu0 %v1583
        %2045 = vmatpush1.bf16.msra.mxu0 %v1582
        %2046 = vmatprep.subr.bf16.mxu0 %v1587
        %2047 = vmatpush1.bf16.msra.mxu0 %v1586
        %2048 = vmatprep.subr.bf16.mxu0 %v1591
        %2049 = vmatpush1.bf16.msra.mxu0 %v1590
        %2050 = vmatprep.subr.bf16.mxu0 %v1595
        %2051 = vmatpush1.bf16.msra.mxu0 %v1594
        %2052 = vmatprep.subr.bf16.mxu0 %v1599
        %2053 = vmatpush1.bf16.msra.mxu0 %v1598
        %2054 = vmatprep.subr.bf16.mxu0 %v1603
        %2055 = vmatpush1.bf16.msra.mxu0 %v1602
        %2056 = vmatprep.subr.bf16.mxu0 %v1607
        %2057 = vmatpush1.bf16.msra.mxu0 %v1606
        %2058 = vmatprep.subr.bf16.mxu0 %v1611
        %2059 = vmatpush1.bf16.msra.mxu0 %v1610
        %2060 = vmatprep.subr.bf16.mxu0 %v1615
        %2061 = vmatpush1.bf16.msra.mxu0 %v1614
        %2062 = vmatprep.subr.bf16.mxu0 %v1619
        %2063 = vmatpush1.bf16.msra.mxu0 %v1618
        %2064 = vmatprep.subr.bf16.mxu0 %v1623
        %2065 = vmatpush1.bf16.msra.mxu0 %v1622
        %2066 = vmatprep.subr.bf16.mxu0 %v1627
        %2067 = vmatpush1.bf16.msra.mxu0 %v1626
        %2068 = vmatprep.subr.bf16.mxu0 %v1631
        %2069 = vmatpush1.bf16.msra.mxu0 %v1630
        %2070 = vmatprep.subr.bf16.mxu0 %v1635
        %2071 = vmatpush1.bf16.msra.mxu0 %v1634
        %2072 = vmatprep.mubr.bf16.mxu0 %v419
        %2073 = vmatmul.mubr.bf16.gmra.mrb[0].mxu0 %v418
        %v2074 = vpop.f32.mrb[0].mxu0
        %v2075 = vadd.f32 %v2034, %v2074
        %v2076 = vpop.f32.mrb[0].mxu0
        %v2077 = vadd.f32 %v2036, %v2076
        %v2078 = vpop.f32.mrb[0].mxu0
        %v2079 = vpop.f32.mrb[0].mxu0
        %2080 = vdwg.mxu0
        %2081 = vmatprep.subr.bf16.mxu0 %v1639
        %2082 = vmatpush1.bf16.msra.mxu0 %v1638
        %2083 = vmatprep.subr.bf16.mxu0 %v1643
        %2084 = vmatpush1.bf16.msra.mxu0 %v1642
        %2085 = vmatprep.subr.bf16.mxu0 %v1647
        %2086 = vmatpush1.bf16.msra.mxu0 %v1646
        %2087 = vmatprep.subr.bf16.mxu0 %v1651
        %2088 = vmatpush1.bf16.msra.mxu0 %v1650
        %2089 = vmatprep.subr.bf16.mxu0 %v1655
        %2090 = vmatpush1.bf16.msra.mxu0 %v1654
        %2091 = vmatprep.subr.bf16.mxu0 %v1659
        %2092 = vmatpush1.bf16.msra.mxu0 %v1658
        %2093 = vmatprep.subr.bf16.mxu0 %v1663
        %2094 = vmatpush1.bf16.msra.mxu0 %v1662
        %2095 = vmatprep.subr.bf16.mxu0 %v1667
        %2096 = vmatpush1.bf16.msra.mxu0 %v1666
        %2097 = vmatprep.subr.bf16.mxu0 %v1671
        %2098 = vmatpush1.bf16.msra.mxu0 %v1670
        %2099 = vmatprep.subr.bf16.mxu0 %v1675
        %2100 = vmatpush1.bf16.msra.mxu0 %v1674
        %2101 = vmatprep.subr.bf16.mxu0 %v1679
        %2102 = vmatpush1.bf16.msra.mxu0 %v1678
        %2103 = vmatprep.subr.bf16.mxu0 %v1683
        %2104 = vmatpush1.bf16.msra.mxu0 %v1682
        %2105 = vmatprep.subr.bf16.mxu0 %v1687
        %2106 = vmatpush1.bf16.msra.mxu0 %v1686
        %2107 = vmatprep.subr.bf16.mxu0 %v1691
        %2108 = vmatpush1.bf16.msra.mxu0 %v1690
        %2109 = vmatprep.subr.bf16.mxu0 %v1695
        %2110 = vmatpush1.bf16.msra.mxu0 %v1694
        %2111 = vmatprep.subr.bf16.mxu0 %v1699
        %2112 = vmatpush1.bf16.msra.mxu0 %v1698
        %2113 = vmatprep.mubr.bf16.mxu0 %v421
        %2114 = vmatmul.mubr.bf16.gmra.mrb[0].mxu0 %v420
        %v2115 = vpop.f32.mrb[0].mxu0
        %v2116 = vadd.f32 %v2075, %v2115
        %v2117 = vpop.f32.mrb[0].mxu0
        %v2118 = vadd.f32 %v2077, %v2117
        %v2119 = vpop.f32.mrb[0].mxu0
        %v2120 = vpop.f32.mrb[0].mxu0
        %2121 = vdwg.mxu0
        %2122 = vmatprep.subr.bf16.mxu0 %v1449
        %2123 = vmatpush1.bf16.msra.mxu0 %v1448
        %2124 = vmatprep.subr.bf16.mxu0 %v1453
        %2125 = vmatpush1.bf16.msra.mxu0 %v1452
        %2126 = vmatprep.subr.bf16.mxu0 %v1457
        %2127 = vmatpush1.bf16.msra.mxu0 %v1456
        %2128 = vmatprep.subr.bf16.mxu0 %v1461
        %2129 = vmatpush1.bf16.msra.mxu0 %v1460
        %2130 = vmatprep.subr.bf16.mxu0 %v1465
        %2131 = vmatpush1.bf16.msra.mxu0 %v1464
        %2132 = vmatprep.subr.bf16.mxu0 %v1469
        %2133 = vmatpush1.bf16.msra.mxu0 %v1468
        %2134 = vmatprep.subr.bf16.mxu0 %v1473
        %2135 = vmatpush1.bf16.msra.mxu0 %v1472
        %2136 = vmatprep.subr.bf16.mxu0 %v1477
        %2137 = vmatpush1.bf16.msra.mxu0 %v1476
        %2138 = vmatprep.subr.bf16.mxu0 %v1481
        %2139 = vmatpush1.bf16.msra.mxu0 %v1480
        %2140 = vmatprep.subr.bf16.mxu0 %v1485
        %2141 = vmatpush1.bf16.msra.mxu0 %v1484
        %2142 = vmatprep.subr.bf16.mxu0 %v1489
        %2143 = vmatpush1.bf16.msra.mxu0 %v1488
        %2144 = vmatprep.subr.bf16.mxu0 %v1493
        %2145 = vmatpush1.bf16.msra.mxu0 %v1492
        %2146 = vmatprep.subr.bf16.mxu0 %v1497
        %2147 = vmatpush1.bf16.msra.mxu0 %v1496
        %2148 = vmatprep.subr.bf16.mxu0 %v1501
        %2149 = vmatpush1.bf16.msra.mxu0 %v1500
        %2150 = vmatprep.subr.bf16.mxu0 %v1505
        %2151 = vmatpush1.bf16.msra.mxu0 %v1504
        %2152 = vmatprep.subr.bf16.mxu0 %v1509
        %2153 = vmatpush1.bf16.msra.mxu0 %v1508
        %2154 = vmatprep.mubr.bf16.mxu0 %v415
        %2155 = vmatmul.mubr.bf16.gmra.mrb[0].mxu0 %v414
        %v2156 = vpop.f32.mrb[0].mxu0
        %v2157 = vadd.f32 0.0, %v2156
        %v2158 = vpop.f32.mrb[0].mxu0
        %v2159 = vadd.f32 0.0, %v2158
        %v2160 = vpop.f32.mrb[0].mxu0
        %v2161 = vpop.f32.mrb[0].mxu0
        %2162 = vdwg.mxu0
        %2163 = vmatprep.subr.bf16.mxu0 %v1513
        %2164 = vmatpush1.bf16.msra.mxu0 %v1512
        %2165 = vmatprep.subr.bf16.mxu0 %v1517
        %2166 = vmatpush1.bf16.msra.mxu0 %v1516
        %2167 = vmatprep.subr.bf16.mxu0 %v1521
        %2168 = vmatpush1.bf16.msra.mxu0 %v1520
        %2169 = vmatprep.subr.bf16.mxu0 %v1525
        %2170 = vmatpush1.bf16.msra.mxu0 %v1524
        %2171 = vmatprep.subr.bf16.mxu0 %v1529
        %2172 = vmatpush1.bf16.msra.mxu0 %v1528
        %2173 = vmatprep.subr.bf16.mxu0 %v1533
        %2174 = vmatpush1.bf16.msra.mxu0 %v1532
        %2175 = vmatprep.subr.bf16.mxu0 %v1537
        %2176 = vmatpush1.bf16.msra.mxu0 %v1536
        %2177 = vmatprep.subr.bf16.mxu0 %v1541
        %2178 = vmatpush1.bf16.msra.mxu0 %v1540
        %2179 = vmatprep.subr.bf16.mxu0 %v1545
        %2180 = vmatpush1.bf16.msra.mxu0 %v1544
        %2181 = vmatprep.subr.bf16.mxu0 %v1549
        %2182 = vmatpush1.bf16.msra.mxu0 %v1548
        %2183 = vmatprep.subr.bf16.mxu0 %v1553
        %2184 = vmatpush1.bf16.msra.mxu0 %v1552
        %2185 = vmatprep.subr.bf16.mxu0 %v1557
        %2186 = vmatpush1.bf16.msra.mxu0 %v1556
        %2187 = vmatprep.subr.bf16.mxu0 %v1561
        %2188 = vmatpush1.bf16.msra.mxu0 %v1560
        %2189 = vmatprep.subr.bf16.mxu0 %v1565
        %2190 = vmatpush1.bf16.msra.mxu0 %v1564
        %2191 = vmatprep.subr.bf16.mxu0 %v1569
        %2192 = vmatpush1.bf16.msra.mxu0 %v1568
        %2193 = vmatprep.subr.bf16.mxu0 %v1573
        %2194 = vmatpush1.bf16.msra.mxu0 %v1572
        %2195 = vmatprep.mubr.bf16.mxu0 %v417
        %2196 = vmatmul.mubr.bf16.gmra.mrb[0].mxu0 %v416
        %v2197 = vpop.f32.mrb[0].mxu0
        %v2198 = vadd.f32 %v2157, %v2197
        %v2199 = vpop.f32.mrb[0].mxu0
        %v2200 = vadd.f32 %v2159, %v2199
        %v2201 = vpop.f32.mrb[0].mxu0
        %v2202 = vpop.f32.mrb[0].mxu0
        %2203 = vdwg.mxu0
        %2204 = vmatprep.subr.bf16.mxu0 %v1577
        %2205 = vmatpush1.bf16.msra.mxu0 %v1576
        %2206 = vmatprep.subr.bf16.mxu0 %v1581
        %2207 = vmatpush1.bf16.msra.mxu0 %v1580
        %2208 = vmatprep.subr.bf16.mxu0 %v1585
        %2209 = vmatpush1.bf16.msra.mxu0 %v1584
        %2210 = vmatprep.subr.bf16.mxu0 %v1589
        %2211 = vmatpush1.bf16.msra.mxu0 %v1588
        %2212 = vmatprep.subr.bf16.mxu0 %v1593
        %2213 = vmatpush1.bf16.msra.mxu0 %v1592
        %2214 = vmatprep.subr.bf16.mxu0 %v1597
        %2215 = vmatpush1.bf16.msra.mxu0 %v1596
        %2216 = vmatprep.subr.bf16.mxu0 %v1601
        %2217 = vmatpush1.bf16.msra.mxu0 %v1600
        %2218 = vmatprep.subr.bf16.mxu0 %v1605
        %2219 = vmatpush1.bf16.msra.mxu0 %v1604
        %2220 = vmatprep.subr.bf16.mxu0 %v1609
        %2221 = vmatpush1.bf16.msra.mxu0 %v1608
        %2222 = vmatprep.subr.bf16.mxu0 %v1613
        %2223 = vmatpush1.bf16.msra.mxu0 %v1612
        %2224 = vmatprep.subr.bf16.mxu0 %v1617
        %2225 = vmatpush1.bf16.msra.mxu0 %v1616
        %2226 = vmatprep.subr.bf16.mxu0 %v1621
        %2227 = vmatpush1.bf16.msra.mxu0 %v1620
        %2228 = vmatprep.subr.bf16.mxu0 %v1625
        %2229 = vmatpush1.bf16.msra.mxu0 %v1624
        %2230 = vmatprep.subr.bf16.mxu0 %v1629
        %2231 = vmatpush1.bf16.msra.mxu0 %v1628
        %2232 = vmatprep.subr.bf16.mxu0 %v1633
        %2233 = vmatpush1.bf16.msra.mxu0 %v1632
        %2234 = vmatprep.subr.bf16.mxu0 %v1637
        %2235 = vmatpush1.bf16.msra.mxu0 %v1636
        %2236 = vmatprep.mubr.bf16.mxu0 %v419
        %2237 = vmatmul.mubr.bf16.gmra.mrb[0].mxu0 %v418
        %v2238 = vpop.f32.mrb[0].mxu0
        %v2239 = vadd.f32 %v2198, %v2238
        %v2240 = vpop.f32.mrb[0].mxu0
        %v2241 = vadd.f32 %v2200, %v2240
        %v2242 = vpop.f32.mrb[0].mxu0
        %v2243 = vpop.f32.mrb[0].mxu0
        %2244 = vdwg.mxu0
        %2245 = vmatprep.subr.bf16.mxu0 %v1641
        %2246 = vmatpush1.bf16.msra.mxu0 %v1640
        %2247 = vmatprep.subr.bf16.mxu0 %v1645
        %2248 = vmatpush1.bf16.msra.mxu0 %v1644
        %2249 = vmatprep.subr.bf16.mxu0 %v1649
        %2250 = vmatpush1.bf16.msra.mxu0 %v1648
        %2251 = vmatprep.subr.bf16.mxu0 %v1653
        %2252 = vmatpush1.bf16.msra.mxu0 %v1652
        %2253 = vmatprep.subr.bf16.mxu0 %v1657
        %2254 = vmatpush1.bf16.msra.mxu0 %v1656
        %2255 = vmatprep.subr.bf16.mxu0 %v1661
        %2256 = vmatpush1.bf16.msra.mxu0 %v1660
        %2257 = vmatprep.subr.bf16.mxu0 %v1665
        %2258 = vmatpush1.bf16.msra.mxu0 %v1664
        %2259 = vmatprep.subr.bf16.mxu0 %v1669
        %2260 = vmatpush1.bf16.msra.mxu0 %v1668
        %2261 = vmatprep.subr.bf16.mxu0 %v1673
        %2262 = vmatpush1.bf16.msra.mxu0 %v1672
        %2263 = vmatprep.subr.bf16.mxu0 %v1677
        %2264 = vmatpush1.bf16.msra.mxu0 %v1676
        %2265 = vmatprep.subr.bf16.mxu0 %v1681
        %2266 = vmatpush1.bf16.msra.mxu0 %v1680
        %2267 = vmatprep.subr.bf16.mxu0 %v1685
        %2268 = vmatpush1.bf16.msra.mxu0 %v1684
        %2269 = vmatprep.subr.bf16.mxu0 %v1689
        %2270 = vmatpush1.bf16.msra.mxu0 %v1688
        %2271 = vmatprep.subr.bf16.mxu0 %v1693
        %2272 = vmatpush1.bf16.msra.mxu0 %v1692
        %2273 = vmatprep.subr.bf16.mxu0 %v1697
        %2274 = vmatpush1.bf16.msra.mxu0 %v1696
        %2275 = vmatprep.subr.bf16.mxu0 %v1701
        %2276 = vmatpush1.bf16.msra.mxu0 %v1700
        %2277 = vmatprep.mubr.bf16.mxu0 %v421
        %2278 = vmatmul.mubr.bf16.gmra.mrb[0].mxu0 %v420
        %v2279 = vpop.f32.mrb[0].mxu0
        %v2280 = vadd.f32 %v2239, %v2279
        %v2281 = vpop.f32.mrb[0].mxu0
        %v2282 = vadd.f32 %v2241, %v2281
        %v2283 = vpop.f32.mrb[0].mxu0
        %v2284 = vpop.f32.mrb[0].mxu0
        %2285 = vdwg.mxu0
        %v2290 = vcombine.low %v2116, %v2118
        %v2291 = vcombine.low %v2280, %v2282
        %v2293 = vunpack.c.l.s4 1983009808
        %v2294 = vunpack.c.0.s8 %v2293
        %v2295 = vlaneseq
        %v2296 = vshrl.u32 %v2295, 7
        %v2297 = vsub.s32 %v2294, %v2296
        %v2298 = vrot.slane %v2290, %v2297
        %v2300 = vunpack.c.l.s4 1983009808
        %v2301 = vunpack.c.0.s8 %v2300
        %v2302 = vlaneseq
        %v2303 = vshrl.u32 %v2302, 7
        %v2304 = vsub.s32 %v2301, %v2303
        %v2305 = vrot.slane %v2291, %v2304
        %v2306 = vcombine.low %v2298, %v2305
        %v2308 = vadd.f32 %v367, %v2306
        %2309 = vst [vmem:[#allocation2] sm:$0xff] %v2308
        %p2310 = scmp.eq.s32.totalorder %s24, 3
        // Predicated region
        $region73: #{demo_net_forward.3} parent=47 // pred_check
          %p2311 = pneg %p2310
        $region74: #{demo_net_forward.3} parent=47 // pred_check_branch
          %2313 = sbr.rel (%p2311) target = $region76
        $region75: #{demo_net_forward.3} parent=47 // pred_region
          %v2314 = vld [vmem:[#allocation2] sm:$0xff]
          %v2315 = vld [vmem:[#allocation6] sm:$0xf]
          %v2317 = vlaneseq
          %v2318 = vshrl.u32 %v2317, 7
          %v2319 = vsub.s32 0, %v2318
          %v2320 = vrot.slane %v2315, %v2319
          %v2321 = vlaneseq
          %v2322 = vshrl.u32 %v2321, 7
          %v2323 = vsub.s32 1, %v2322
          %v2324 = vrot.slane %v2315, %v2323
          %v2325 = vlaneseq
          %v2326 = vshrl.u32 %v2325, 7
          %v2327 = vsub.s32 2, %v2326
          %v2328 = vrot.slane %v2315, %v2327
          %v2329 = vlaneseq
          %v2330 = vshrl.u32 %v2329, 7
          %v2331 = vsub.s32 3, %v2330
          %v2332 = vrot.slane %v2315, %v2331
          %v2333 = vcombine.low %v2320, %v2324
          %v2334 = vcombine.low %v2328, %v2332
          %v2336 = vunpack.c.l.s4 1983009808
          %v2337 = vunpack.c.0.s8 %v2336
          %v2338 = vlaneseq
          %v2339 = vshrl.u32 %v2338, 7
          %v2340 = vsub.s32 %v2337, %v2339
          %v2341 = vrot.slane %v2333, %v2340
          %v2343 = vunpack.c.l.s4 1983009808
          %v2344 = vunpack.c.0.s8 %v2343
          %v2345 = vlaneseq
          %v2346 = vshrl.u32 %v2345, 7
          %v2347 = vsub.s32 %v2344, %v2346
          %v2348 = vrot.slane %v2334, %v2347
          %v2349 = vcombine.low %v2341, %v2348
          %v2351 = vadd.f32 %v2314, %v2349
          %v2352 = vmax.f32 %v2351, 0.0
          %v2354 = vcombine.high %v2352, %v2352
          %v2356 = vunpack.c.l.s4 1983009808
          %v2357 = vunpack.c.0.s8 %v2356
          %v2358 = vlaneseq
          %v2359 = vshrl.u32 %v2358, 7
          %v2360 = vsub.s32 %v2357, %v2359
          %v2361 = vrot.slane %v2352, %v2360
          %v2363 = vunpack.c.l.s4 1983009808
          %v2364 = vunpack.c.0.s8 %v2363
          %v2365 = vlaneseq
          %v2366 = vshrl.u32 %v2365, 7
          %v2367 = vsub.s32 %v2364, %v2366
          %v2368 = vrot.slane %v2354, %v2367
          %v2369 = vcombine.high %v2361, %v2361
          %v2370 = vcombine.high %v2368, %v2368
          %v2375 = vpack.c.bf16 %v2361, %v2361
          %v2376 = vpack.c.bf16 %v2369, %v2369
          %v2377 = vpack.c.bf16 %v2368, %v2368
          %v2378 = vpack.c.bf16 %v2370, %v2370
          %v2379 = vld [vmem:[#allocation8] sm:$0xf]
          %v2380 = vld [vmem:[#allocation8 + $0x4] sm:$0xf]
          %v2381 = vld [vmem:[#allocation8 + $0x8] sm:$0xf]
          %v2382 = vld [vmem:[#allocation8 + $0xc] sm:$0xf]
          %v2383 = vld [vmem:[#allocation8 + $0x10] sm:$0xf]
          %v2384 = vld [vmem:[#allocation8 + $0x14] sm:$0xf]
          %v2385 = vld [vmem:[#allocation8 + $0x18] sm:$0xf]
          %v2386 = vld [vmem:[#allocation8 + $0x1c] sm:$0xf]
          %v2387 = vld [vmem:[#allocation8 + $0x20] sm:$0xf]
          %v2388 = vld [vmem:[#allocation8 + $0x24] sm:$0xf]
          %v2389 = vld [vmem:[#allocation8 + $0x28] sm:$0xf]
          %v2390 = vld [vmem:[#allocation8 + $0x2c] sm:$0xf]
          %v2391 = vld [vmem:[#allocation8 + $0x30] sm:$0xf]
          %v2392 = vld [vmem:[#allocation8 + $0x34] sm:$0xf]
          %v2393 = vld [vmem:[#allocation8 + $0x38] sm:$0xf]
          %v2394 = vld [vmem:[#allocation8 + $0x3c] sm:$0xf]
          %v2395 = vld [vmem:[#allocation8 + $0x40] sm:$0xf]
          %v2396 = vld [vmem:[#allocation8 + $0x44] sm:$0xf]
          %v2397 = vld [vmem:[#allocation8 + $0x48] sm:$0xf]
          %v2398 = vld [vmem:[#allocation8 + $0x4c] sm:$0xf]
          %v2399 = vld [vmem:[#allocation8 + $0x50] sm:$0xf]
          %v2400 = vld [vmem:[#allocation8 + $0x54] sm:$0xf]
          %v2401 = vld [vmem:[#allocation8 + $0x58] sm:$0xf]
          %v2402 = vld [vmem:[#allocation8 + $0x5c] sm:$0xf]
          %v2403 = vld [vmem:[#allocation8 + $0x60] sm:$0xf]
          %v2404 = vld [vmem:[#allocation8 + $0x64] sm:$0xf]
          %v2405 = vld [vmem:[#allocation8 + $0x68] sm:$0xf]
          %v2406 = vld [vmem:[#allocation8 + $0x6c] sm:$0xf]
          %v2407 = vld [vmem:[#allocation8 + $0x70] sm:$0xf]
          %v2408 = vld [vmem:[#allocation8 + $0x74] sm:$0xf]
          %v2409 = vld [vmem:[#allocation8 + $0x78] sm:$0xf]
          %v2410 = vld [vmem:[#allocation8 + $0x7c] sm:$0xf]
          %v2411 = vld [vmem:[#allocation8 + $0x80] sm:$0xf]
          %v2412 = vld [vmem:[#allocation8 + $0x84] sm:$0xf]
          %v2413 = vld [vmem:[#allocation8 + $0x88] sm:$0xf]
          %v2414 = vld [vmem:[#allocation8 + $0x8c] sm:$0xf]
          %v2415 = vld [vmem:[#allocation8 + $0x90] sm:$0xf]
          %v2416 = vld [vmem:[#allocation8 + $0x94] sm:$0xf]
          %v2417 = vld [vmem:[#allocation8 + $0x98] sm:$0xf]
          %v2418 = vld [vmem:[#allocation8 + $0x9c] sm:$0xf]
          %v2419 = vld [vmem:[#allocation8 + $0xa0] sm:$0xf]
          %v2420 = vld [vmem:[#allocation8 + $0xa4] sm:$0xf]
          %v2421 = vld [vmem:[#allocation8 + $0xa8] sm:$0xf]
          %v2422 = vld [vmem:[#allocation8 + $0xac] sm:$0xf]
          %v2423 = vld [vmem:[#allocation8 + $0xb0] sm:$0xf]
          %v2424 = vld [vmem:[#allocation8 + $0xb4] sm:$0xf]
          %v2425 = vld [vmem:[#allocation8 + $0xb8] sm:$0xf]
          %v2426 = vld [vmem:[#allocation8 + $0xbc] sm:$0xf]
          %v2427 = vld [vmem:[#allocation8 + $0xc0] sm:$0xf]
          %v2428 = vld [vmem:[#allocation8 + $0xc4] sm:$0xf]
          %v2429 = vld [vmem:[#allocation8 + $0xc8] sm:$0xf]
          %v2430 = vld [vmem:[#allocation8 + $0xcc] sm:$0xf]
          %v2431 = vld [vmem:[#allocation8 + $0xd0] sm:$0xf]
          %v2432 = vld [vmem:[#allocation8 + $0xd4] sm:$0xf]
          %v2433 = vld [vmem:[#allocation8 + $0xd8] sm:$0xf]
          %v2434 = vld [vmem:[#allocation8 + $0xdc] sm:$0xf]
          %v2435 = vld [vmem:[#allocation8 + $0xe0] sm:$0xf]
          %v2436 = vld [vmem:[#allocation8 + $0xe4] sm:$0xf]
          %v2437 = vld [vmem:[#allocation8 + $0xe8] sm:$0xf]
          %v2438 = vld [vmem:[#allocation8 + $0xec] sm:$0xf]
          %v2439 = vld [vmem:[#allocation8 + $0xf0] sm:$0xf]
          %v2440 = vld [vmem:[#allocation8 + $0xf4] sm:$0xf]
          %v2441 = vld [vmem:[#allocation8 + $0xf8] sm:$0xf]
          %v2442 = vld [vmem:[#allocation8 + $0xfc] sm:$0xf]
          %v2443 = vld [vmem:[#allocation9] sm:$0x1]
          %v2445 = vlaneseq
          %v2446 = vshrl.u32 %v2445, 7
          %v2447 = vsub.s32 0, %v2446
          %v2448 = vrot.slane %v2443, %v2447
          %v2514 = vunpack.c.l.b16 %v2379
          %v2515 = vunpack.c.l.b16 %v2380
          %v2516 = vunpack.c.l.b16 %v2381
          %v2517 = vunpack.c.l.b16 %v2382
          %v2518 = vunpack.c.l.b16 %v2383
          %v2519 = vunpack.c.l.b16 %v2384
          %v2520 = vunpack.c.l.b16 %v2385
          %v2521 = vunpack.c.l.b16 %v2386
          %v2522 = vunpack.c.l.b16 %v2387
          %v2523 = vunpack.c.l.b16 %v2388
          %v2524 = vunpack.c.l.b16 %v2389
          %v2525 = vunpack.c.l.b16 %v2390
          %v2526 = vunpack.c.l.b16 %v2391
          %v2527 = vunpack.c.l.b16 %v2392
          %v2528 = vunpack.c.l.b16 %v2393
          %v2529 = vunpack.c.l.b16 %v2394
          %v2530 = vunpack.c.l.b16 %v2395
          %v2531 = vunpack.c.l.b16 %v2396
          %v2532 = vunpack.c.l.b16 %v2397
          %v2533 = vunpack.c.l.b16 %v2398
          %v2534 = vunpack.c.l.b16 %v2399
          %v2535 = vunpack.c.l.b16 %v2400
          %v2536 = vunpack.c.l.b16 %v2401
          %v2537 = vunpack.c.l.b16 %v2402
          %v2538 = vunpack.c.l.b16 %v2403
          %v2539 = vunpack.c.l.b16 %v2404
          %v2540 = vunpack.c.l.b16 %v2405
          %v2541 = vunpack.c.l.b16 %v2406
          %v2542 = vunpack.c.l.b16 %v2407
          %v2543 = vunpack.c.l.b16 %v2408
          %v2544 = vunpack.c.l.b16 %v2409
          %v2545 = vunpack.c.l.b16 %v2410
          %v2546 = vunpack.c.l.b16 %v2411
          %v2547 = vunpack.c.l.b16 %v2412
          %v2548 = vunpack.c.l.b16 %v2413
          %v2549 = vunpack.c.l.b16 %v2414
          %v2550 = vunpack.c.l.b16 %v2415
          %v2551 = vunpack.c.l.b16 %v2416
          %v2552 = vunpack.c.l.b16 %v2417
          %v2553 = vunpack.c.l.b16 %v2418
          %v2554 = vunpack.c.l.b16 %v2419
          %v2555 = vunpack.c.l.b16 %v2420
          %v2556 = vunpack.c.l.b16 %v2421
          %v2557 = vunpack.c.l.b16 %v2422
          %v2558 = vunpack.c.l.b16 %v2423
          %v2559 = vunpack.c.l.b16 %v2424
          %v2560 = vunpack.c.l.b16 %v2425
          %v2561 = vunpack.c.l.b16 %v2426
          %v2562 = vunpack.c.l.b16 %v2427
          %v2563 = vunpack.c.l.b16 %v2428
          %v2564 = vunpack.c.l.b16 %v2429
          %v2565 = vunpack.c.l.b16 %v2430
          %v2566 = vunpack.c.l.b16 %v2431
          %v2567 = vunpack.c.l.b16 %v2432
          %v2568 = vunpack.c.l.b16 %v2433
          %v2569 = vunpack.c.l.b16 %v2434
          %v2570 = vunpack.c.l.b16 %v2435
          %v2571 = vunpack.c.l.b16 %v2436
          %v2572 = vunpack.c.l.b16 %v2437
          %v2573 = vunpack.c.l.b16 %v2438
          %v2574 = vunpack.c.l.b16 %v2439
          %v2575 = vunpack.c.l.b16 %v2440
          %v2576 = vunpack.c.l.b16 %v2441
          %v2577 = vunpack.c.l.b16 %v2442
          %v2578 = vpack.c.b16 %v2515, %v2514
          %v2579 = vpack.c.b16 %v2517, %v2516
          %v2580 = vpack.c.b16 %v2519, %v2518
          %v2581 = vpack.c.b16 %v2521, %v2520
          %v2582 = vpack.c.b16 %v2523, %v2522
          %v2583 = vpack.c.b16 %v2525, %v2524
          %v2584 = vpack.c.b16 %v2527, %v2526
          %v2585 = vpack.c.b16 %v2529, %v2528
          %v2586 = vpack.c.b16 %v2531, %v2530
          %v2587 = vpack.c.b16 %v2533, %v2532
          %v2588 = vpack.c.b16 %v2535, %v2534
          %v2589 = vpack.c.b16 %v2537, %v2536
          %v2590 = vpack.c.b16 %v2539, %v2538
          %v2591 = vpack.c.b16 %v2541, %v2540
          %v2592 = vpack.c.b16 %v2543, %v2542
          %v2593 = vpack.c.b16 %v2545, %v2544
          %v2594 = vpack.c.b16 %v2547, %v2546
          %v2595 = vpack.c.b16 %v2549, %v2548
          %v2596 = vpack.c.b16 %v2551, %v2550
          %v2597 = vpack.c.b16 %v2553, %v2552
          %v2598 = vpack.c.b16 %v2555, %v2554
          %v2599 = vpack.c.b16 %v2557, %v2556
          %v2600 = vpack.c.b16 %v2559, %v2558
          %v2601 = vpack.c.b16 %v2561, %v2560
          %v2602 = vpack.c.b16 %v2563, %v2562
          %v2603 = vpack.c.b16 %v2565, %v2564
          %v2604 = vpack.c.b16 %v2567, %v2566
          %v2605 = vpack.c.b16 %v2569, %v2568
          %v2606 = vpack.c.b16 %v2571, %v2570
          %v2607 = vpack.c.b16 %v2573, %v2572
          %v2608 = vpack.c.b16 %v2575, %v2574
          %v2609 = vpack.c.b16 %v2577, %v2576
          %2642 = vmatprep.subr.bf16.mxu0 0
          %2643 = vmatpush1.bf16.msra.mxu0 %v2578
          %2644 = vmatprep.subr.bf16.mxu0 0
          %2645 = vmatpush1.bf16.msra.mxu0 %v2579
          %2646 = vmatprep.subr.bf16.mxu0 0
          %2647 = vmatpush1.bf16.msra.mxu0 %v2580
          %2648 = vmatprep.subr.bf16.mxu0 0
          %2649 = vmatpush1.bf16.msra.mxu0 %v2581
          %2650 = vmatprep.subr.bf16.mxu0 0
          %2651 = vmatpush1.bf16.msra.mxu0 %v2582
          %2652 = vmatprep.subr.bf16.mxu0 0
          %2653 = vmatpush1.bf16.msra.mxu0 %v2583
          %2654 = vmatprep.subr.bf16.mxu0 0
          %2655 = vmatpush1.bf16.msra.mxu0 %v2584
          %2656 = vmatprep.subr.bf16.mxu0 0
          %2657 = vmatpush1.bf16.msra.mxu0 %v2585
          %2658 = vmatprep.subr.bf16.mxu0 0
          %2659 = vmatpush1.bf16.msra.mxu0 %v2586
          %2660 = vmatprep.subr.bf16.mxu0 0
          %2661 = vmatpush1.bf16.msra.mxu0 %v2587
          %2662 = vmatprep.subr.bf16.mxu0 0
          %2663 = vmatpush1.bf16.msra.mxu0 %v2588
          %2664 = vmatprep.subr.bf16.mxu0 0
          %2665 = vmatpush1.bf16.msra.mxu0 %v2589
          %2666 = vmatprep.subr.bf16.mxu0 0
          %2667 = vmatpush1.bf16.msra.mxu0 %v2590
          %2668 = vmatprep.subr.bf16.mxu0 0
          %2669 = vmatpush1.bf16.msra.mxu0 %v2591
          %2670 = vmatprep.subr.bf16.mxu0 0
          %2671 = vmatpush1.bf16.msra.mxu0 %v2592
          %2672 = vmatprep.subr.bf16.mxu0 0
          %2673 = vmatpush1.bf16.msra.mxu0 %v2593
          %2674 = vmatprep.mubr.bf16.mxu0 %v2376
          %2675 = vmatmul.mubr.bf16.gmra.mrb[0].mxu0 %v2375
          %v2676 = vpop.f32.mrb[0].mxu0
          %v2677 = vadd.f32 %v2448, %v2676
          %v2678 = vpop.f32.mrb[0].mxu0
          %v2679 = vpop.f32.mrb[0].mxu0
          %v2680 = vpop.f32.mrb[0].mxu0
          %2681 = vdwg.mxu0
          %2682 = vmatprep.subr.bf16.mxu0 0
          %2683 = vmatpush1.bf16.msra.mxu0 %v2594
          %2684 = vmatprep.subr.bf16.mxu0 0
          %2685 = vmatpush1.bf16.msra.mxu0 %v2595
          %2686 = vmatprep.subr.bf16.mxu0 0
          %2687 = vmatpush1.bf16.msra.mxu0 %v2596
          %2688 = vmatprep.subr.bf16.mxu0 0
          %2689 = vmatpush1.bf16.msra.mxu0 %v2597
          %2690 = vmatprep.subr.bf16.mxu0 0
          %2691 = vmatpush1.bf16.msra.mxu0 %v2598
          %2692 = vmatprep.subr.bf16.mxu0 0
          %2693 = vmatpush1.bf16.msra.mxu0 %v2599
          %2694 = vmatprep.subr.bf16.mxu0 0
          %2695 = vmatpush1.bf16.msra.mxu0 %v2600
          %2696 = vmatprep.subr.bf16.mxu0 0
          %2697 = vmatpush1.bf16.msra.mxu0 %v2601
          %2698 = vmatprep.subr.bf16.mxu0 0
          %2699 = vmatpush1.bf16.msra.mxu0 %v2602
          %2700 = vmatprep.subr.bf16.mxu0 0
          %2701 = vmatpush1.bf16.msra.mxu0 %v2603
          %2702 = vmatprep.subr.bf16.mxu0 0
          %2703 = vmatpush1.bf16.msra.mxu0 %v2604
          %2704 = vmatprep.subr.bf16.mxu0 0
          %2705 = vmatpush1.bf16.msra.mxu0 %v2605
          %2706 = vmatprep.subr.bf16.mxu0 0
          %2707 = vmatpush1.bf16.msra.mxu0 %v2606
          %2708 = vmatprep.subr.bf16.mxu0 0
          %2709 = vmatpush1.bf16.msra.mxu0 %v2607
          %2710 = vmatprep.subr.bf16.mxu0 0
          %2711 = vmatpush1.bf16.msra.mxu0 %v2608
          %2712 = vmatprep.subr.bf16.mxu0 0
          %2713 = vmatpush1.bf16.msra.mxu0 %v2609
          %2714 = vmatprep.mubr.bf16.mxu0 %v2378
          %2715 = vmatmul.mubr.bf16.gmra.mrb[0].mxu0 %v2377
          %v2716 = vpop.f32.mrb[0].mxu0
          %v2717 = vadd.f32 %v2677, %v2716
          %v2718 = vpop.f32.mrb[0].mxu0
          %v2719 = vpop.f32.mrb[0].mxu0
          %v2720 = vpop.f32.mrb[0].mxu0
          %2721 = vdwg.mxu0
          %v2722 = vmax.f32 %v2717, 0.0
          %v2723 = vpack.c.bf16 %v2722, %v2722
          %v2724 = vld [vmem:[%s5] sm:$0xf]
          %v2725 = vld [vmem:[%s5 + $0x4] sm:$0xf]
          %v2726 = vld [vmem:[%s5 + $0x8] sm:$0xf]
          %v2727 = vld [vmem:[%s5 + $0xc] sm:$0xf]
          %v2728 = vld [vmem:[%s5 + $0x10] sm:$0xf]
          %v2729 = vld [vmem:[%s5 + $0x14] sm:$0xf]
          %v2730 = vld [vmem:[%s5 + $0x18] sm:$0xf]
          %v2731 = vld [vmem:[%s5 + $0x1c] sm:$0xf]
          %v2732 = vld [vmem:[%s5 + $0x20] sm:$0xf]
          %v2733 = vld [vmem:[%s5 + $0x24] sm:$0xf]
          %v2734 = vld [vmem:[%s5 + $0x28] sm:$0xf]
          %v2735 = vld [vmem:[%s5 + $0x2c] sm:$0xf]
          %v2736 = vld [vmem:[%s5 + $0x30] sm:$0xf]
          %v2737 = vld [vmem:[%s5 + $0x34] sm:$0xf]
          %v2738 = vld [vmem:[%s5 + $0x38] sm:$0xf]
          %v2739 = vld [vmem:[%s5 + $0x3c] sm:$0xf]
          %v2740 = vld [vmem:[#allocation11] sm:$0x1]
          %v2742 = vlaneseq
          %v2743 = vshrl.u32 %v2742, 7
          %v2744 = vsub.s32 0, %v2743
          %v2745 = vrot.slane %v2740, %v2744
          %v2763 = vunpack.c.l.b16 %v2724
          %v2764 = vunpack.c.l.b16 %v2725
          %v2765 = vunpack.c.l.b16 %v2726
          %v2766 = vunpack.c.l.b16 %v2727
          %v2767 = vunpack.c.l.b16 %v2728
          %v2768 = vunpack.c.l.b16 %v2729
          %v2769 = vunpack.c.l.b16 %v2730
          %v2770 = vunpack.c.l.b16 %v2731
          %v2771 = vunpack.c.l.b16 %v2732
          %v2772 = vunpack.c.l.b16 %v2733
          %v2773 = vunpack.c.l.b16 %v2734
          %v2774 = vunpack.c.l.b16 %v2735
          %v2775 = vunpack.c.l.b16 %v2736
          %v2776 = vunpack.c.l.b16 %v2737
          %v2777 = vunpack.c.l.b16 %v2738
          %v2778 = vunpack.c.l.b16 %v2739
          %v2779 = vpack.c.b16 %v2764, %v2763
          %v2780 = vpack.c.b16 %v2766, %v2765
          %v2781 = vpack.c.b16 %v2768, %v2767
          %v2782 = vpack.c.b16 %v2770, %v2769
          %v2783 = vpack.c.b16 %v2772, %v2771
          %v2784 = vpack.c.b16 %v2774, %v2773
          %v2785 = vpack.c.b16 %v2776, %v2775
          %v2786 = vpack.c.b16 %v2778, %v2777
          %2795 = vmatprep.subr.bf16.mxu0 0
          %2796 = vmatpush1.bf16.msra.mxu0 %v2779
          %2797 = vmatprep.subr.bf16.mxu0 0
          %2798 = vmatpush1.bf16.msra.mxu0 %v2780
          %2799 = vmatprep.subr.bf16.mxu0 0
          %2800 = vmatpush1.bf16.msra.mxu0 %v2781
          %2801 = vmatprep.subr.bf16.mxu0 0
          %2802 = vmatpush1.bf16.msra.mxu0 %v2782
          %2803 = vmatprep.subr.bf16.mxu0 0
          %2804 = vmatpush1.bf16.msra.mxu0 %v2783
          %2805 = vmatprep.subr.bf16.mxu0 0
          %2806 = vmatpush1.bf16.msra.mxu0 %v2784
          %2807 = vmatprep.subr.bf16.mxu0 0
          %2808 = vmatpush1.bf16.msra.mxu0 %v2785
          %2809 = vmatprep.subr.bf16.mxu0 0
          %2810 = vmatpush1.bf16.msra.mxu0 %v2786
          %2811 = vmatprep.subr.bf16.mxu0 0
          %2812 = vmatpush1.bf16.msra.mxu0 0
          %2813 = vmatprep.subr.bf16.mxu0 0
          %2814 = vmatpush1.bf16.msra.mxu0 0
          %2815 = vmatprep.subr.bf16.mxu0 0
          %2816 = vmatpush1.bf16.msra.mxu0 0
          %2817 = vmatprep.subr.bf16.mxu0 0
          %2818 = vmatpush1.bf16.msra.mxu0 0
          %2819 = vmatprep.subr.bf16.mxu0 0
          %2820 = vmatpush1.bf16.msra.mxu0 0
          %2821 = vmatprep.subr.bf16.mxu0 0
          %2822 = vmatpush1.bf16.msra.mxu0 0
          %2823 = vmatprep.subr.bf16.mxu0 0
          %2824 = vmatpush1.bf16.msra.mxu0 0
          %2825 = vmatprep.subr.bf16.mxu0 0
          %2826 = vmatpush1.bf16.msra.mxu0 0
          %2827 = vmatprep.mubr.bf16.mxu0 0
          %2828 = vmatmul.mubr.bf16.gmra.mrb[0].mxu0 %v2723
          %v2829 = vpop.f32.mrb[0].mxu0
          %v2830 = vadd.f32 %v2745, %v2829
          %v2831 = vpop.f32.mrb[0].mxu0
          %v2832 = vpop.f32.mrb[0].mxu0
          %v2833 = vpop.f32.mrb[0].mxu0
          %2834 = vdwg.mxu0
          %vm2835 = vcmask 74752
          %2836 = vst.msk [vmem:[#allocation12] sm:$0x3] %vm2835, %v2830
        $region76: #{demo_net_forward.3} parent=47 // pred_fallthru
          _
        // Predicated region
        $region77: #{demo_net_forward.3} parent=47 // pred_check
          %p2837 = pneg %p194
        $region78: #{demo_net_forward.3} parent=47 // pred_check_branch
          %2839 = sbr.rel (%p2837) target = $region80
        $region79: #{demo_net_forward.3} parent=47 // pred_region
          %s2841 = ssub.s32 32, 32
          %2842 = vsyncadd [#allocation5], %s2841
          %s2844 = sshll.u32 [#allocation12], 4
          %s2845 = int_to_ptr.vmem [resolvable:$true] %s2844
          %2847 = dma.vmem_to_hbm [thread:$0]  %s2845, 32, %s7, [#allocation5]
        $region80: #{demo_net_forward.3} parent=47 // pred_fallthru
          _
        // Predicated region
        $region81: #{demo_net_forward.3} parent=47 // pred_check
          %p2848 = pneg %p194
        $region82: #{demo_net_forward.3} parent=47 // pred_check_branch
          %2850 = sbr.rel (%p2848) target = $region84
        $region83: #{demo_net_forward.3} parent=47 // pred_region
          %2851 = dma.done [#allocation5], 32
        $region84: #{demo_net_forward.3} parent=47 // pred_fallthru
          _
      $region48: #{demo_net_forward.3} parent=5 // pred_fallthru
        _
      %p2852 = scmp.le.s32.totalorder 2, %s19
      // Predicated region
      $region85: #{demo_net_forward.3} parent=5 // pred_check
        %p2853 = pneg %p2852
      $region86: #{demo_net_forward.3} parent=5 // pred_check_branch
        %2855 = sbr.rel (%p2853) target = $region88
      $region87: #{demo_net_forward.3} parent=5 // pred_region
        %s2856 = ssub.s32 %s19, 2
      $region88: #{demo_net_forward.3} parent=5 // pred_fallthru
        _
    $region6: #{demo_net_forward.3} parent=1 // loop_footer
      %s23 = sadd.s32 1, %s19
    $region7: #{demo_net_forward.3} parent=1 // loop_footer_branch
      %18 = sbr.rel target = $region3
    $region8: #{demo_net_forward.3} parent=1 // loop_exit
      _
    %2857 = vsyncpa [#allocation4], 1
    %s2858 = scalar_lea.sflag [#allocation4], 1
    %2859 = vsyncpa %s2858, 1
    %2860 = vsyncpa [#allocation7], 1
    %2861 = vsyncpa [#allocation10], 1
    %2862 = vsyncpa [#allocation5], 1
    %s2863 = scalar_lea.sflag [#allocation5], 1
    %2864 = vsyncpa %s2863, 1

// kernel: demo_net_forward.2
$region0: #{demo_net_forward.2}
  #allocation0 [shape = 'u32[]', space=smem, size = 0x4, offset = 0x4, fixed_abs, tag = 'smem constant byte address 0x4 - core index']
  #allocation1 [shape = 'u32[144,128]{1,0:T(1,128)}', space=vmem, size = 0x12000, scoped, tag = 'internal scratch']
  #allocation2 [shape = 'f32[18,18,64]{2,1,0:T(8,128)}', space=vmem, size = 0x36000, scoped, tag = 'scratch operand']
  #allocation3 [shape = 'f32[10,10,128]{2,1,0:T(8,128)}', space=vmem, size = 0x14000, scoped, tag = 'scratch operand']
  %s0 = inlined_call_operand.vmem [shape: f32[2,256,32], index: 0, kind: input, shape index: {}]
  %s1 = inlined_call_operand.hbm [shape: f32[32,64], index: 1, kind: input, shape index: {}]
  %s2 = inlined_call_operand.hbm [shape: f32[1,64], index: 2, kind: input, shape index: {}]
  %s3 = inlined_call_operand.hbm [shape: f32[576,128], index: 3, kind: input, shape index: {}]
  %s4 = inlined_call_operand.hbm [shape: f32[1,128], index: 4, kind: input, shape index: {}]
  %s5 = inlined_call_operand.hbm [shape: f32[1152,256], index: 5, kind: input, shape index: {}]
  %s6 = inlined_call_operand.hbm [shape: f32[1,256], index: 6, kind: input, shape index: {}]
  %s7 = inlined_call_operand.vmem [shape: f32[2,16,256], index: 7, kind: output, shape index: {}]
  %s8 = sld [smem:[#allocation0]]
  $region85: #{demo_net_forward.2} parent=0
    _
  %s10 = ssub.s32 1, %s8
  %s11 = scalar_select 0, %s10, %s8
  $region1: #{demo_net_forward.2} parent=0
    #allocation4 [shape = 'u8[16384]{0}', space=vmem, size = 0x4000, scoped, tag = 'input window, operand 1, single buffered']
    #allocation5 [shape = 's32[2]{0}', space=sflag, size = 0x8, scoped, tag = 'scoped memory for demo_net_forward.2']
    #allocation6 [shape = 'u8[512]{0}', space=vmem, size = 0x400, scoped, tag = 'input window, operand 2, single buffered']
    #allocation7 [shape = 's32[1]{0}', space=sflag, size = 0x4, scoped, tag = 'scoped memory for demo_net_forward.2']
    #allocation8 [shape = 'u8[294912]{0}', space=vmem, size = 0x48000, scoped, tag = 'input window, operand 3, single buffered']
    #allocation9 [shape = 'u8[512]{0}', space=vmem, size = 0x400, scoped, tag = 'input window, operand 4, single buffered']
    #allocation10 [shape = 's32[1]{0}', space=sflag, size = 0x4, scoped, tag = 'scoped memory for demo_net_forward.2']
    #allocation11 [shape = 'u8[1179648]{0}', space=vmem, size = 0x120000, scoped, tag = 'input window, operand 5, single buffered']
    #allocation12 [shape = 'u8[1024]{0}', space=vmem, size = 0x400, scoped, tag = 'input window, operand 6, single buffered']
    #allocation13 [shape = 's32[1]{0}', space=sflag, size = 0x4, scoped, tag = 'scoped memory for demo_net_forward.2']
    %12 = vsyncpa [#allocation5], 0
    %13 = vsyncpa [#allocation7], 0
    %14 = vsyncpa [#allocation10], 0
    %15 = vsyncpa [#allocation13], 0
    loop: start=0, step=1, limit=4
    $region2: #{demo_net_forward.2} parent=1 // loop_pre_header
      _
    $region3: #{demo_net_forward.2} parent=1 // loop_header
      %s17 = sphi 0, %s21
      %p18 = scmp.ge.s32.totalorder %s17, 4
      %s27 = sphi 0, %s29
      %s30 = sphi 0, %s27
      %s31 = sphi 0, %s30
      %s47 = sphi 0, %s31
      %s51 = sphi 0, %s51
      %s53 = sphi 0, %s51
      %s54 = sphi 0, %s53
      %s68 = sphi 0, %s54
      %s72 = sphi 0, %s72
      %s74 = sphi 0, %s72
      %s75 = sphi 0, %s74
      %s89 = sphi 0, %s75
      %s93 = sphi 0, %s93
      %s95 = sphi 0, %s93
      %s96 = sphi 0, %s95
      %s110 = sphi 0, %s96
      %s114 = sphi 0, %s114
      %s116 = sphi 0, %s114
      %s117 = sphi 0, %s116
      %s131 = sphi 0, %s117
      %s135 = sphi 0, %s135
      %s137 = sphi 0, %s135
      %s138 = sphi 0, %s137
      %s152 = sphi 0, %s138
      %s156 = sphi 0, %s156
      %s158 = sphi 0, %s156
      %s159 = sphi 0, %s158
      %s173 = sphi 0, %s159
      %s179 = sphi 0, %s181
      %s182 = sphi 0, %s179
      %s183 = sphi 0, %s182
      %s199 = sphi 0, %s183
    $region4: #{demo_net_forward.2} parent=1 // loop_header_branch
      %20 = sbr.rel (%p18) target = $region8
    $region5: #{demo_net_forward.2} parent=1 // loop_body
      %s22 = ssub.s32 %s17, 1
      %s23 = ssub.s32 %s17, 2
      %s24 = sadd.s32 %s17, 1
      %s25 = ssub.s32 %s17, %s24
      %p26 = scmp.eq.s32.totalorder %s25, 0
      %s28 = sadd.s32 %s27, 1
      %s29 = scalar_select %p26, %s27, %s28
      %p32 = pneg %p26
      %p33 = scmp.eq.s32.totalorder %s17, 1
      %p34 = por %p32, %p33
      %p35 = scmp.ne.s32.totalorder %s27, %s30
      %p36 = scmp.eq.s32.totalorder %s17, 0
      %p37 = por %p35, %p36
      %p38 = scmp.ne.s32.totalorder %s27, %s30
      %p39 = scmp.eq.s32.totalorder %s22, 1
      %p40 = por %p38, %p39
      %p41 = scmp.ne.s32.totalorder %s30, %s31
      %p42 = scmp.eq.s32.totalorder %s22, 0
      %p43 = por %p41, %p42
      %p44 = scmp.ne.s32.totalorder %s30, %s31
      %p45 = scmp.eq.s32.totalorder %s23, 1
      %p46 = por %p44, %p45
      %p48 = scmp.ne.s32.totalorder %s31, %s47
      %p49 = scmp.eq.s32.totalorder %s23, 0
      %p50 = por %p48, %p49
      %s52 = sadd.s32 %s51, 1
      %p55 = scmp.eq.s32.totalorder %s17, 1
      %p56 = scmp.ne.s32.totalorder %s51, %s53
      %p57 = scmp.eq.s32.totalorder %s17, 0
      %p58 = por %p56, %p57
      %p59 = scmp.ne.s32.totalorder %s51, %s53
      %p60 = scmp.eq.s32.totalorder %s22, 1
      %p61 = por %p59, %p60
      %p62 = scmp.ne.s32.totalorder %s53, %s54
      %p63 = scmp.eq.s32.totalorder %s22, 0
      %p64 = por %p62, %p63
      %p65 = scmp.ne.s32.totalorder %s53, %s54
      %p66 = scmp.eq.s32.totalorder %s23, 1
      %p67 = por %p65, %p66
      %p69 = scmp.ne.s32.totalorder %s54, %s68
      %p70 = scmp.eq.s32.totalorder %s23, 0
      %p71 = por %p69, %p70
      %s73 = sadd.s32 %s72, 1
      %p76 = scmp.eq.s32.totalorder %s17, 1
      %p77 = scmp.ne.s32.totalorder %s72, %s74
      %p78 = scmp.eq.s32.totalorder %s17, 0
      %p79 = por %p77, %p78
      %p80 = scmp.ne.s32.totalorder %s72, %s74
      %p81 = scmp.eq.s32.totalorder %s22, 1
      %p82 = por %p80, %p81
      %p83 = scmp.ne.s32.totalorder %s74, %s75
      %p84 = scmp.eq.s32.totalorder %s22, 0
      %p85 = por %p83, %p84
      %p86 = scmp.ne.s32.totalorder %s74, %s75
      %p87 = scmp.eq.s32.totalorder %s23, 1
      %p88 = por %p86, %p87
      %p90 = scmp.ne.s32.totalorder %s75, %s89
      %p91 = scmp.eq.s32.totalorder %s23, 0
      %p92 = por %p90, %p91
      %s94 = sadd.s32 %s93, 1
      %p97 = scmp.eq.s32.totalorder %s17, 1
      %p98 = scmp.ne.s32.totalorder %s93, %s95
      %p99 = scmp.eq.s32.totalorder %s17, 0
      %p100 = por %p98, %p99
      %p101 = scmp.ne.s32.totalorder %s93, %s95
      %p102 = scmp.eq.s32.totalorder %s22, 1
      %p103 = por %p101, %p102
      %p104 = scmp.ne.s32.totalorder %s95, %s96
      %p105 = scmp.eq.s32.totalorder %s22, 0
      %p106 = por %p104, %p105
      %p107 = scmp.ne.s32.totalorder %s95, %s96
      %p108 = scmp.eq.s32.totalorder %s23, 1
      %p109 = por %p107, %p108
      %p111 = scmp.ne.s32.totalorder %s96, %s110
      %p112 = scmp.eq.s32.totalorder %s23, 0
      %p113 = por %p111, %p112
      %s115 = sadd.s32 %s114, 1
      %p118 = scmp.eq.s32.totalorder %s17, 1
      %p119 = scmp.ne.s32.totalorder %s114, %s116
      %p120 = scmp.eq.s32.totalorder %s17, 0
      %p121 = por %p119, %p120
      %p122 = scmp.ne.s32.totalorder %s114, %s116
      %p123 = scmp.eq.s32.totalorder %s22, 1
      %p124 = por %p122, %p123
      %p125 = scmp.ne.s32.totalorder %s116, %s117
      %p126 = scmp.eq.s32.totalorder %s22, 0
      %p127 = por %p125, %p126
      %p128 = scmp.ne.s32.totalorder %s116, %s117
      %p129 = scmp.eq.s32.totalorder %s23, 1
      %p130 = por %p128, %p129
      %p132 = scmp.ne.s32.totalorder %s117, %s131
      %p133 = scmp.eq.s32.totalorder %s23, 0
      %p134 = por %p132, %p133
      %s136 = sadd.s32 %s135, 1
      %p139 = scmp.eq.s32.totalorder %s17, 1
      %p140 = scmp.ne.s32.totalorder %s135, %s137
      %p141 = scmp.eq.s32.totalorder %s17, 0
      %p142 = por %p140, %p141
      %p143 = scmp.ne.s32.totalorder %s135, %s137
      %p144 = scmp.eq.s32.totalorder %s22, 1
      %p145 = por %p143, %p144
      %p146 = scmp.ne.s32.totalorder %s137, %s138
      %p147 = scmp.eq.s32.totalorder %s22, 0
      %p148 = por %p146, %p147
      %p149 = scmp.ne.s32.totalorder %s137, %s138
      %p150 = scmp.eq.s32.totalorder %s23, 1
      %p151 = por %p149, %p150
      %p153 = scmp.ne.s32.totalorder %s138, %s152
      %p154 = scmp.eq.s32.totalorder %s23, 0
      %p155 = por %p153, %p154
      %s157 = sadd.s32 %s156, 1
      %p160 = scmp.eq.s32.totalorder %s17, 1
      %p161 = scmp.ne.s32.totalorder %s156, %s158
      %p162 = scmp.eq.s32.totalorder %s17, 0
      %p163 = por %p161, %p162
      %p164 = scmp.ne.s32.totalorder %s156, %s158
      %p165 = scmp.eq.s32.totalorder %s22, 1
      %p166 = por %p164, %p165
      %p167 = scmp.ne.s32.totalorder %s158, %s159
      %p168 = scmp.eq.s32.totalorder %s22, 0
      %p169 = por %p167, %p168
      %p170 = scmp.ne.s32.totalorder %s158, %s159
      %p171 = scmp.eq.s32.totalorder %s23, 1
      %p172 = por %p170, %p171
      %p174 = scmp.ne.s32.totalorder %s159, %s173
      %p175 = scmp.eq.s32.totalorder %s23, 0
      %p176 = por %p174, %p175
      %s177 = ssub.s32 %s17, %s24
      %p178 = scmp.eq.s32.totalorder %s177, 0
      %s180 = sadd.s32 %s179, 1
      %s181 = scalar_select %p178, %s179, %s180
      %p184 = pneg %p178
      %p185 = scmp.eq.s32.totalorder %s17, 1
      %p186 = por %p184, %p185
      %p187 = scmp.ne.s32.totalorder %s179, %s182
      %p188 = scmp.eq.s32.totalorder %s17, 0
      %p189 = por %p187, %p188
      %p190 = scmp.ne.s32.totalorder %s179, %s182
      %p191 = scmp.eq.s32.totalorder %s22, 1
      %p192 = por %p190, %p191
      %p193 = scmp.ne.s32.totalorder %s182, %s183
      %p194 = scmp.eq.s32.totalorder %s22, 0
      %p195 = por %p193, %p194
      %p196 = scmp.ne.s32.totalorder %s182, %s183
      %p197 = scmp.eq.s32.totalorder %s23, 1
      %p198 = por %p196, %p197
      %p200 = scmp.ne.s32.totalorder %s183, %s199
      %p201 = scmp.eq.s32.totalorder %s23, 0
      %p202 = por %p200, %p201
      %p203 = scmp.le.s32.totalorder 1, %s17
      %p204 = scmp.lt.s32.totalorder %s17, 3
      %p205 = pnand %p203, %p204
      %p206 = pneg %p205
      // Predicated region
      $region9: #{demo_net_forward.2} parent=5 // pred_check
        _
      $region10: #{demo_net_forward.2} parent=5 // pred_check_branch
        %208 = sbr.rel (%p205) target = $region12
      $region11: #{demo_net_forward.2} parent=5 // pred_region
        %s209 = ssub.s32 %s17, 1
        // Predicated region
        $region13: #{demo_net_forward.2} parent=11 // pred_check
          %p210 = pneg %p64
        $region14: #{demo_net_forward.2} parent=11 // pred_check_branch
          %212 = sbr.rel (%p210) target = $region16
        $region15: #{demo_net_forward.2} parent=11 // pred_region
          %s214 = ssub.s32 512, 512
          %215 = vsyncadd [#allocation5], %s214
          %s216 = sshll.u32 [#allocation4], 4
          %s217 = int_to_ptr.vmem [resolvable:$true] %s216
          %222 = dma.hbm_to_vmem [thread:$0]  %s1, 512, %s217, [#allocation5], 128, 128, 8
        $region16: #{demo_net_forward.2} parent=11 // pred_fallthru
          _
        // Predicated region
        $region17: #{demo_net_forward.2} parent=11 // pred_check
          %p223 = pneg %p85
        $region18: #{demo_net_forward.2} parent=11 // pred_check_branch
          %225 = sbr.rel (%p223) target = $region20
        $region19: #{demo_net_forward.2} parent=11 // pred_region
          %s227 = ssub.s32 16, 16
          %228 = vsyncadd [#allocation7], %s227
          %s230 = sshll.u32 [#allocation6], 4
          %s231 = int_to_ptr.vmem [resolvable:$true] %s230
          %233 = dma.hbm_to_vmem [thread:$0]  %s2, 16, %s231, [#allocation7]
        $region20: #{demo_net_forward.2} parent=11 // pred_fallthru
          _
        // Predicated region
        $region21: #{demo_net_forward.2} parent=11 // pred_check
          %p234 = pneg %p106
        $region22: #{demo_net_forward.2} parent=11 // pred_check_branch
          %236 = sbr.rel (%p234) target = $region24
        $region23: #{demo_net_forward.2} parent=11 // pred_region
          %s238 = ssub.s32 9216, 9216
          %239 = vsyncadd [#allocation7], %s238
          %s240 = sshll.u32 [#allocation8], 4
          %s241 = int_to_ptr.vmem [resolvable:$true] %s240
          %246 = dma.hbm_to_vmem [thread:$0]  %s3, 9216, %s241, [#allocation7], 128, 128, 8
        $region24: #{demo_net_forward.2} parent=11 // pred_fallthru
          _
        // Predicated region
        $region25: #{demo_net_forward.2} parent=11 // pred_check
          %p247 = pneg %p127
        $region26: #{demo_net_forward.2} parent=11 // pred_check_branch
          %249 = sbr.rel (%p247) target = $region28
        $region27: #{demo_net_forward.2} parent=11 // pred_region
          %s251 = ssub.s32 16, 16
          %252 = vsyncadd [#allocation10], %s251
          %s254 = sshll.u32 [#allocation9], 4
          %s255 = int_to_ptr.vmem [resolvable:$true] %s254
          %257 = dma.hbm_to_vmem [thread:$0]  %s4, 16, %s255, [#allocation10]
        $region28: #{demo_net_forward.2} parent=11 // pred_fallthru
          _
        // Predicated region
        $region29: #{demo_net_forward.2} parent=11 // pred_check
          %p258 = pneg %p148
        $region30: #{demo_net_forward.2} parent=11 // pred_check_branch
          %260 = sbr.rel (%p258) target = $region32
        $region31: #{demo_net_forward.2} parent=11 // pred_region
          %s262 = ssub.s32 36864, 36864
          %263 = vsyncadd [#allocation10], %s262
          %s264 = sshll.u32 [#allocation11], 4
          %s265 = int_to_ptr.vmem [resolvable:$true] %s264
          %270 = dma.hbm_to_vmem [thread:$0]  %s5, 36864, %s265, [#allocation10], 256, 256, 16
        $region32: #{demo_net_forward.2} parent=11 // pred_fallthru
          _
        // Predicated region
        $region33: #{demo_net_forward.2} parent=11 // pred_check
          %p271 = pneg %p169
        $region34: #{demo_net_forward.2} parent=11 // pred_check_branch
          %273 = sbr.rel (%p271) target = $region36
        $region35: #{demo_net_forward.2} parent=11 // pred_region
          %s275 = ssub.s32 32, 32
          %276 = vsyncadd [#allocation13], %s275
          %s278 = sshll.u32 [#allocation12], 4
          %s279 = int_to_ptr.vmem [resolvable:$true] %s278
          %281 = dma.hbm_to_vmem [thread:$0]  %s6, 32, %s279, [#allocation13]
        $region36: #{demo_net_forward.2} parent=11 // pred_fallthru
          _
      $region12: #{demo_net_forward.2} parent=5 // pred_fallthru
        _
      %p282 = scmp.lt.s32.totalorder %s17, 2
      // Predicated region
      $region37: #{demo_net_forward.2} parent=5 // pred_check
        %p283 = pneg %p282
      $region38: #{demo_net_forward.2} parent=5 // pred_check_branch
        %285 = sbr.rel (%p283) target = $region40
      $region39: #{demo_net_forward.2} parent=5 // pred_region
        // Predicated region
        $region41: #{demo_net_forward.2} parent=39 // pred_check
          %p286 = pneg %p37
        $region42: #{demo_net_forward.2} parent=39 // pred_check_branch
          %288 = sbr.rel (%p286) target = $region44
        $region43: #{demo_net_forward.2} parent=39 // pred_region
          %p289 = scmp.lt.s32.totalorder %s17, 1
          %s290 = scalar_select %p289, %s17, 1
          %s291 = smul.addr %s290, 32
          %s292 = smul.addr %s291, 8
          %s293 = scalar_lea.vmem %s0, %s292
        $region44: #{demo_net_forward.2} parent=39 // pred_fallthru
          _
      $region40: #{demo_net_forward.2} parent=5 // pred_fallthru
        _
      %p294 = scmp.le.s32.totalorder 1, %s17
      %p295 = scmp.lt.s32.totalorder %s17, 3
      %p296 = pnand %p294, %p295
      %p297 = pneg %p296
      // Predicated region
      $region45: #{demo_net_forward.2} parent=5 // pred_check
        _
      $region46: #{demo_net_forward.2} parent=5 // pred_check_branch
        %299 = sbr.rel (%p296) target = $region48
      $region47: #{demo_net_forward.2} parent=5 // pred_region
        %s300 = ssub.s32 %s17, 1
        // Predicated region
        $region49: #{demo_net_forward.2} parent=47 // pred_check
          %p301 = pneg %p64
        $region50: #{demo_net_forward.2} parent=47 // pred_check_branch
          %303 = sbr.rel (%p301) target = $region52
        $region51: #{demo_net_forward.2} parent=47 // pred_region
          %304 = dma.done [#allocation5], 512
        $region52: #{demo_net_forward.2} parent=47 // pred_fallthru
          _
        // Predicated region
        $region53: #{demo_net_forward.2} parent=47 // pred_check
          %p305 = pneg %p85
        $region54: #{demo_net_forward.2} parent=47 // pred_check_branch
          %307 = sbr.rel (%p305) target = $region56
        $region55: #{demo_net_forward.2} parent=47 // pred_region
          %308 = dma.done [#allocation7], 16
        $region56: #{demo_net_forward.2} parent=47 // pred_fallthru
          _
        // Predicated region
        $region57: #{demo_net_forward.2} parent=47 // pred_check
          %p309 = pneg %p106
        $region58: #{demo_net_forward.2} parent=47 // pred_check_branch
          %311 = sbr.rel (%p309) target = $region60
        $region59: #{demo_net_forward.2} parent=47 // pred_region
          %312 = dma.done [#allocation7], 9216
        $region60: #{demo_net_forward.2} parent=47 // pred_fallthru
          _
        // Predicated region
        $region61: #{demo_net_forward.2} parent=47 // pred_check
          %p313 = pneg %p127
        $region62: #{demo_net_forward.2} parent=47 // pred_check_branch
          %315 = sbr.rel (%p313) target = $region64
        $region63: #{demo_net_forward.2} parent=47 // pred_region
          %316 = dma.done [#allocation10], 16
        $region64: #{demo_net_forward.2} parent=47 // pred_fallthru
          _
        // Predicated region
        $region65: #{demo_net_forward.2} parent=47 // pred_check
          %p317 = pneg %p148
        $region66: #{demo_net_forward.2} parent=47 // pred_check_branch
          %319 = sbr.rel (%p317) target = $region68
        $region67: #{demo_net_forward.2} parent=47 // pred_region
          %320 = dma.done [#allocation10], 36864
        $region68: #{demo_net_forward.2} parent=47 // pred_fallthru
          _
        // Predicated region
        $region69: #{demo_net_forward.2} parent=47 // pred_check
          %p321 = pneg %p169
        $region70: #{demo_net_forward.2} parent=47 // pred_check_branch
          %323 = sbr.rel (%p321) target = $region72
        $region71: #{demo_net_forward.2} parent=47 // pred_region
          %324 = dma.done [#allocation13], 32
        $region72: #{demo_net_forward.2} parent=47 // pred_fallthru
          _
        %p325 = scmp.lt.s32.totalorder %s22, 1
        %s326 = scalar_select %p325, %s22, 1
        %s327 = smul.addr %s326, 32
        %s328 = smul.addr %s327, 8
        %s329 = scalar_lea.vmem %s0, %s328
        %p330 = pneg %p43
        %p331 = pneg %p40
        %p332 = pneg %p64
        %p333 = pneg %p61
        %p334 = pneg %p85
        %p335 = pneg %p82
        %p336 = pneg %p106
        %p337 = pneg %p103
        %p338 = pneg %p127
        %p339 = pneg %p124
        %p340 = pneg %p148
        %p341 = pneg %p145
        %p342 = pneg %p169
        %p343 = pneg %p166
        %p344 = pneg %p195
        %p345 = pneg %p192
        %p346 = scmp.lt.s32.totalorder %s22, 1
        %s347 = scalar_select %p346, %s22, 1
        %s348 = smul.addr %s347, 4
        %s349 = smul.addr %s348, 8
        %s350 = scalar_lea.vmem %s7, %s349
        %p351 = scmp.lt.s32.totalorder %s22, 1
        %s352 = scalar_select %p351, %s22, 1
        %s353 = smul.addr %s352, 32
        %s354 = smul.addr %s353, 8
        %s355 = scalar_lea.vmem %s0, %s354
        %p356 = scmp.lt.s32.totalorder %s22, 1
        %s357 = scalar_select %p356, %s22, 1
        %s358 = smul.addr %s357, 4
        %s359 = smul.addr %s358, 8
        %s360 = scalar_lea.vmem %s7, %s359
        %vm361 = vcmask 523264
        %362 = vst.msk [vmem:[#allocation2] sm:$0xff] %vm361, 0.0
        %363 = vst.msk [vmem:[#allocation2 + $0x8] sm:$0xff] %vm361, 0.0
        %vm364 = vcmask 517120
        %365 = vst.msk [vmem:[#allocation2 + $0x10] sm:$0x3] %vm364, 0.0
        %366 = vst.msk [vmem:[#allocation2 + $0x18] sm:$0xff] %vm361, 0.0
        %367 = vst.msk [vmem:[#allocation2 + $0x20] sm:$0xff] %vm361, 0.0
        %368 = vst.msk [vmem:[#allocation2 + $0x28] sm:$0x3] %vm364, 0.0
        %369 = vst.msk [vmem:[#allocation2 + $0x30] sm:$0xff] %vm361, 0.0
        %370 = vst.msk [vmem:[#allocation2 + $0x38] sm:$0xff] %vm361, 0.0
        %371 = vst.msk [vmem:[#allocation2 + $0x40] sm:$0x3] %vm364, 0.0
        %372 = vst.msk [vmem:[#allocation2 + $0x48] sm:$0xff] %vm361, 0.0
        %373 = vst.msk [vmem:[#allocation2 + $0x50] sm:$0xff] %vm361, 0.0
        %374 = vst.msk [vmem:[#allocation2 + $0x58] sm:$0x3] %vm364, 0.0
        %375 = vst.msk [vmem:[#allocation2 + $0x60] sm:$0xff] %vm361, 0.0
        %376 = vst.msk [vmem:[#allocation2 + $0x68] sm:$0xff] %vm361, 0.0
        %377 = vst.msk [vmem:[#allocation2 + $0x70] sm:$0x3] %vm364, 0.0
        %378 = vst.msk [vmem:[#allocation2 + $0x78] sm:$0xff] %vm361, 0.0
        %379 = vst.msk [vmem:[#allocation2 + $0x80] sm:$0xff] %vm361, 0.0
        %380 = vst.msk [vmem:[#allocation2 + $0x88] sm:$0x3] %vm364, 0.0
        %381 = vst.msk [vmem:[#allocation2 + $0x90] sm:$0xff] %vm361, 0.0
        %382 = vst.msk [vmem:[#allocation2 + $0x98] sm:$0xff] %vm361, 0.0
        %383 = vst.msk [vmem:[#allocation2 + $0xa0] sm:$0x3] %vm364, 0.0
        %384 = vst.msk [vmem:[#allocation2 + $0xa8] sm:$0xff] %vm361, 0.0
        %385 = vst.msk [vmem:[#allocation2 + $0xb0] sm:$0xff] %vm361, 0.0
        %386 = vst.msk [vmem:[#allocation2 + $0xb8] sm:$0x3] %vm364, 0.0
        %387 = vst.msk [vmem:[#allocation2 + $0xc0] sm:$0xff] %vm361, 0.0
        %388 = vst.msk [vmem:[#allocation2 + $0xc8] sm:$0xff] %vm361, 0.0
        %389 = vst.msk [vmem:[#allocation2 + $0xd0] sm:$0x3] %vm364, 0.0
        %390 = vst.msk [vmem:[#allocation2 + $0xd8] sm:$0xff] %vm361, 0.0
        %391 = vst.msk [vmem:[#allocation2 + $0xe0] sm:$0xff] %vm361, 0.0
        %392 = vst.msk [vmem:[#allocation2 + $0xe8] sm:$0x3] %vm364, 0.0
        %393 = vst.msk [vmem:[#allocation2 + $0xf0] sm:$0xff] %vm361, 0.0
        %394 = vst.msk [vmem:[#allocation2 + $0xf8] sm:$0xff] %vm361, 0.0
        %395 = vst.msk [vmem:[#allocation2 + $0x100] sm:$0x3] %vm364, 0.0
        %396 = vst.msk [vmem:[#allocation2 + $0x108] sm:$0xff] %vm361, 0.0
        %397 = vst.msk [vmem:[#allocation2 + $0x110] sm:$0xff] %vm361, 0.0
        %398 = vst.msk [vmem:[#allocation2 + $0x118] sm:$0x3] %vm364, 0.0
        %399 = vst.msk [vmem:[#allocation2 + $0x120] sm:$0xff] %vm361, 0.0
        %400 = vst.msk [vmem:[#allocation2 + $0x128] sm:$0xff] %vm361, 0.0
        %401 = vst.msk [vmem:[#allocation2 + $0x130] sm:$0x3] %vm364, 0.0
        %402 = vst.msk [vmem:[#allocation2 + $0x138] sm:$0xff] %vm361, 0.0
        %403 = vst.msk [vmem:[#allocation2 + $0x140] sm:$0xff] %vm361, 0.0
        %404 = vst.msk [vmem:[#allocation2 + $0x148] sm:$0x3] %vm364, 0.0
        %405 = vst.msk [vmem:[#allocation2 + $0x150] sm:$0xff] %vm361, 0.0
        %406 = vst.msk [vmem:[#allocation2 + $0x158] sm:$0xff] %vm361, 0.0
        %407 = vst.msk [vmem:[#allocation2 + $0x160] sm:$0x3] %vm364, 0.0
        %408 = vst.msk [vmem:[#allocation2 + $0x168] sm:$0xff] %vm361, 0.0
        %409 = vst.msk [vmem:[#allocation2 + $0x170] sm:$0xff] %vm361, 0.0
        %410 = vst.msk [vmem:[#allocation2 + $0x178] sm:$0x3] %vm364, 0.0
        %411 = vst.msk [vmem:[#allocation2 + $0x180] sm:$0xff] %vm361, 0.0
        %412 = vst.msk [vmem:[#allocation2 + $0x188] sm:$0xff] %vm361, 0.0
        %413 = vst.msk [vmem:[#allocation2 + $0x190] sm:$0x3] %vm364, 0.0
        %414 = vst.msk [vmem:[#allocation2 + $0x198] sm:$0xff] %vm361, 0.0
        %415 = vst.msk [vmem:[#allocation2 + $0x1a0] sm:$0xff] %vm361, 0.0
        %416 = vst.msk [vmem:[#allocation2 + $0x1a8] sm:$0x3] %vm364, 0.0
        %417 = vst [vmem:[#allocation3] sm:$0xff] 0.0
        %418 = vst [vmem:[#allocation3 + $0x8] sm:$0x3] 0.0
        %419 = vst [vmem:[#allocation3 + $0x10] sm:$0xff] 0.0
        %420 = vst [vmem:[#allocation3 + $0x18] sm:$0x3] 0.0
        %421 = vst [vmem:[#allocation3 + $0x20] sm:$0xff] 0.0
        %422 = vst [vmem:[#allocation3 + $0x28] sm:$0x3] 0.0
        %423 = vst [vmem:[#allocation3 + $0x30] sm:$0xff] 0.0
        %424 = vst [vmem:[#allocation3 + $0x38] sm:$0x3] 0.0
        %425 = vst [vmem:[#allocation3 + $0x40] sm:$0xff] 0.0
        %426 = vst [vmem:[#allocation3 + $0x48] sm:$0x3] 0.0
        %427 = vst [vmem:[#allocation3 + $0x50] sm:$0xff] 0.0
        %428 = vst [vmem:[#allocation3 + $0x58] sm:$0x3] 0.0
        %429 = vst [vmem:[#allocation3 + $0x60] sm:$0xff] 0.0
        %430 = vst [vmem:[#allocation3 + $0x68] sm:$0x3] 0.0
        %431 = vst [vmem:[#allocation3 + $0x70] sm:$0xff] 0.0
        %432 = vst [vmem:[#allocation3 + $0x78] sm:$0x3] 0.0
        %433 = vst [vmem:[#allocation3 + $0x80] sm:$0xff] 0.0
        %434 = vst [vmem:[#allocation3 + $0x88] sm:$0x3] 0.0
        %435 = vst [vmem:[#allocation3 + $0x90] sm:$0xff] 0.0
        %436 = vst [vmem:[#allocation3 + $0x98] sm:$0x3] 0.0
        %v437 = vld [vmem:[%s355] sm:$0xff]
        %v438 = vld [vmem:[%s355 + $0x8] sm:$0xff]
        %v439 = vld [vmem:[%s355 + $0x10] sm:$0xff]
        %v440 = vld [vmem:[%s355 + $0x18] sm:$0xff]
        %v441 = vld [vmem:[%s355 + $0x20] sm:$0xff]
        %v442 = vld [vmem:[%s355 + $0x28] sm:$0xff]
        %v443 = vld [vmem:[%s355 + $0x30] sm:$0xff]
        %v444 = vld [vmem:[%s355 + $0x38] sm:$0xff]
        %v445 = vld [vmem:[%s355 + $0x40] sm:$0xff]
        %v446 = vld [vmem:[%s355 + $0x48] sm:$0xff]
        %v447 = vld [vmem:[%s355 + $0x50] sm:$0xff]
        %v448 = vld [vmem:[%s355 + $0x58] sm:$0xff]
        %v449 = vld [vmem:[%s355 + $0x60] sm:$0xff]
        %v450 = vld [vmem:[%s355 + $0x68] sm:$0xff]
        %v451 = vld [vmem:[%s355 + $0x70] sm:$0xff]
        %v452 = vld [vmem:[%s355 + $0x78] sm:$0xff]
        %v453 = vld [vmem:[%s355 + $0x80] sm:$0xff]
        %v454 = vld [vmem:[%s355 + $0x88] sm:$0xff]
        %v455 = vld [vmem:[%s355 + $0x90] sm:$0xff]
        %v456 = vld [vmem:[%s355 + $0x98] sm:$0xff]
        %v457 = vld [vmem:[%s355 + $0xa0] sm:$0xff]
        %v458 = vld [vmem:[%s355 + $0xa8] sm:$0xff]
        %v459 = vld [vmem:[%s355 + $0xb0] sm:$0xff]
        %v460 = vld [vmem:[%s355 + $0xb8] sm:$0xff]
        %v461 = vld [vmem:[%s355 + $0xc0] sm:$0xff]
        %v462 = vld [vmem:[%s355 + $0xc8] sm:$0xff]
        %v463 = vld [vmem:[%s355 + $0xd0] sm:$0xff]
        %v464 = vld [vmem:[%s355 + $0xd8] sm:$0xff]
        %v465 = vld [vmem:[%s355 + $0xe0] sm:$0xff]
        %v466 = vld [vmem:[%s355 + $0xe8] sm:$0xff]
        %v467 = vld [vmem:[%s355 + $0xf0] sm:$0xff]
        %v468 = vld [vmem:[%s355 + $0xf8] sm:$0xff]
        %v469 = vld [vmem:[#allocation4] sm:$0xff]
        %v470 = vld [vmem:[#allocation4 + $0x8] sm:$0xff]
        %v471 = vld [vmem:[#allocation4 + $0x10] sm:$0xff]
        %v472 = vld [vmem:[#allocation4 + $0x18] sm:$0xff]
        %v473 = vld [vmem:[#allocation6] sm:$0x1]
        %v475 = vlaneseq
        %v476 = vshrl.u32 %v475, 7
        %v477 = vsub.s32 0, %v476
        %v478 = vrot.slane %v473, %v477
        %vm480 = vcmask 261120
        %v482 = vsel %vm480, %v437, 0
        %v485 = vsel %vm480, %v438, 0
        %v488 = vsel %vm480, %v439, 0
        %v491 = vsel %vm480, %v440, 0
        %v494 = vsel %vm480, %v441, 0
        %v497 = vsel %vm480, %v442, 0
        %v500 = vsel %vm480, %v443, 0
        %v503 = vsel %vm480, %v444, 0
        %v506 = vsel %vm480, %v445, 0
        %v509 = vsel %vm480, %v446, 0
        %v512 = vsel %vm480, %v447, 0
        %v515 = vsel %vm480, %v448, 0
        %v518 = vsel %vm480, %v449, 0
        %v521 = vsel %vm480, %v450, 0
        %v524 = vsel %vm480, %v451, 0
        %v527 = vsel %vm480, %v452, 0
        %v530 = vsel %vm480, %v453, 0
        %v533 = vsel %vm480, %v454, 0
        %v536 = vsel %vm480, %v455, 0
        %v539 = vsel %vm480, %v456, 0
        %v542 = vsel %vm480, %v457, 0
        %v545 = vsel %vm480, %v458, 0
        %v548 = vsel %vm480, %v459, 0
        %v551 = vsel %vm480, %v460, 0
        %v554 = vsel %vm480, %v461, 0
        %v557 = vsel %vm480, %v462, 0
        %v560 = vsel %vm480, %v463, 0
        %v563 = vsel %vm480, %v464, 0
        %v566 = vsel %vm480, %v465, 0
        %v569 = vsel %vm480, %v466, 0
        %v572 = vsel %vm480, %v467, 0
        %v575 = vsel %vm480, %v468, 0
        %577 = vmatprep.subr.mxu0 0.0
        %578 = vmatpush1.msra.mxu0 %v469
        %579 = vmatprep.subr.mxu0 0.0
        %580 = vmatpush1.msra.mxu0 %v470
        %581 = vmatprep.subr.mxu0 0.0
        %582 = vmatpush1.msra.mxu0 %v471
        %583 = vmatprep.subr.mxu0 0.0
        %584 = vmatpush1.msra.mxu0 %v472
        %585 = vmatprep.subr.mxu0 0.0
        %586 = vmatpush1.msra.mxu0 0.0
        %587 = vmatprep.subr.mxu0 0.0
        %588 = vmatpush1.msra.mxu0 0.0
        %589 = vmatprep.subr.mxu0 0.0
        %590 = vmatpush1.msra.mxu0 0.0
        %591 = vmatprep.subr.mxu0 0.0
        %592 = vmatpush1.msra.mxu0 0.0
        %593 = vmatprep.subr.mxu0 0.0
        %594 = vmatpush1.msra.mxu0 0.0
        %595 = vmatprep.subr.mxu0 0.0
        %596 = vmatpush1.msra.mxu0 0.0
        %597 = vmatprep.subr.mxu0 0.0
        %598 = vmatpush1.msra.mxu0 0.0
        %599 = vmatprep.subr.mxu0 0.0
        %600 = vmatpush1.msra.mxu0 0.0
        %601 = vmatprep.subr.mxu0 0.0
        %602 = vmatpush1.msra.mxu0 0.0
        %603 = vmatprep.subr.mxu0 0.0
        %604 = vmatpush1.msra.mxu0 0.0
        %605 = vmatprep.subr.mxu0 0.0
        %606 = vmatpush1.msra.mxu0 0.0
        %607 = vmatprep.subr.mxu0 0.0
        %608 = vmatpush1.msra.mxu0 0.0
        %609 = vmatprep.subr.mxu0 0.0
        %610 = vmatpush1.msra.mxu0 0.0
        %611 = vmatprep.subr.mxu0 0.0
        %612 = vmatpush1.msra.mxu0 0.0
        %613 = vmatprep.subr.mxu0 0.0
        %614 = vmatpush1.msra.mxu0 0.0
        %615 = vmatprep.subr.mxu0 0.0
        %616 = vmatpush1.msra.mxu0 0.0
        %617 = vmatprep.subr.mxu0 0.0
        %618 = vmatpush1.msra.mxu0 0.0
        %619 = vmatprep.subr.mxu0 0.0
        %620 = vmatpush1.msra.mxu0 0.0
        %621 = vmatprep.subr.mxu0 0.0
        %622 = vmatpush1.msra.mxu0 0.0
        %623 = vmatprep.subr.mxu0 0.0
        %624 = vmatpush1.msra.mxu0 0.0
        %625 = vmatprep.subr.mxu0 0.0
        %626 = vmatpush1.msra.mxu0 0.0
        %627 = vmatprep.subr.mxu0 0.0
        %628 = vmatpush1.msra.mxu0 0.0
        %629 = vmatprep.subr.mxu0 0.0
        %630 = vmatpush1.msra.mxu0 0.0
        %631 = vmatprep.subr.mxu0 0.0
        %632 = vmatpush1.msra.mxu0 0.0
        %633 = vmatprep.subr.mxu0 0.0
        %634 = vmatpush1.msra.mxu0 0.0
        %635 = vmatprep.subr.mxu0 0.0
        %636 = vmatpush1.msra.mxu0 0.0
        %637 = vmatprep.subr.mxu0 0.0
        %638 = vmatpush1.msra.mxu0 0.0
        %639 = vmatprep.subr.mxu0 0.0
        %640 = vmatpush1.msra.mxu0 0.0
        %641 = vmatprep.mubr.f32.mxu0 0.0
        %642 = vmatmul.mubr.f32.gmra.mrb[0].mxu0 %v482
        %v643 = vpop.f32.mrb[0].mxu0
        %v644 = vadd.f32 %v478, %v643
        %v645 = vpop.f32.mrb[0].mxu0
        %646 = vmatprep.mubr.f32.mxu0 0.0
        %647 = vmatmul.mubr.f32.gmra.mrb[0].mxu0 %v485
        %v648 = vpop.f32.mrb[0].mxu0
        %v649 = vadd.f32 %v478, %v648
        %v650 = vpop.f32.mrb[0].mxu0
        %651 = vmatprep.mubr.f32.mxu0 0.0
        %652 = vmatmul.mubr.f32.gmra.mrb[0].mxu0 %v488
        %v653 = vpop.f32.mrb[0].mxu0
        %v654 = vadd.f32 %v478, %v653
        %v655 = vpop.f32.mrb[0].mxu0
        %656 = vmatprep.mubr.f32.mxu0 0.0
        %657 = vmatmul.mubr.f32.gmra.mrb[0].mxu0 %v491
        %v658 = vpop.f32.mrb[0].mxu0
        %v659 = vadd.f32 %v478, %v658
        %v660 = vpop.f32.mrb[0].mxu0
        %661 = vmatprep.mubr.f32.mxu0 0.0
        %662 = vmatmul.mubr.f32.gmra.mrb[0].mxu0 %v494
        %v663 = vpop.f32.mrb[0].mxu0
        %v664 = vadd.f32 %v478, %v663
        %v665 = vpop.f32.mrb[0].mxu0
        %666 = vmatprep.mubr.f32.mxu0 0.0
        %667 = vmatmul.mubr.f32.gmra.mrb[0].mxu0 %v497
        %v668 = vpop.f32.mrb[0].mxu0
        %v669 = vadd.f32 %v478, %v668
        %v670 = vpop.f32.mrb[0].mxu0
        %671 = vmatprep.mubr.f32.mxu0 0.0
        %672 = vmatmul.mubr.f32.gmra.mrb[0].mxu0 %v500
        %v673 = vpop.f32.mrb[0].mxu0
        %v674 = vadd.f32 %v478, %v673
        %v675 = vpop.f32.mrb[0].mxu0
        %676 = vmatprep.mubr.f32.mxu0 0.0
        %677 = vmatmul.mubr.f32.gmra.mrb[0].mxu0 %v503
        %v678 = vpop.f32.mrb[0].mxu0
        %v679 = vadd.f32 %v478, %v678
        %v680 = vpop.f32.mrb[0].mxu0
        %681 = vmatprep.mubr.f32.mxu0 0.0
        %682 = vmatmul.mubr.f32.gmra.mrb[0].mxu0 %v506
        %v683 = vpop.f32.mrb[0].mxu0
        %v684 = vadd.f32 %v478, %v683
        %v685 = vpop.f32.mrb[0].mxu0
        %686 = vmatprep.mubr.f32.mxu0 0.0
        %687 = vmatmul.mubr.f32.gmra.mrb[0].mxu0 %v509
        %v688 = vpop.f32.mrb[0].mxu0
        %v689 = vadd.f32 %v478, %v688
        %v690 = vpop.f32.mrb[0].mxu0
        %691 = vmatprep.mubr.f32.mxu0 0.0
        %692 = vmatmul.mubr.f32.gmra.mrb[0].mxu0 %v512
        %v693 = vpop.f32.mrb[0].mxu0
        %v694 = vadd.f32 %v478, %v693
        %v695 = vpop.f32.mrb[0].mxu0
        %696 = vmatprep.mubr.f32.mxu0 0.0
        %697 = vmatmul.mubr.f32.gmra.mrb[0].mxu0 %v515
        %v698 = vpop.f32.mrb[0].mxu0
        %v699 = vadd.f32 %v478, %v698
        %v700 = vpop.f32.mrb[0].mxu0
        %701 = vmatprep.mubr.f32.mxu0 0.0
        %702 = vmatmul.mubr.f32.gmra.mrb[0].mxu0 %v518
        %v703 = vpop.f32.mrb[0].mxu0
        %v704 = vadd.f32 %v478, %v703
        %v705 = vpop.f32.mrb[0].mxu0
        %706 = vmatprep.mubr.f32.mxu0 0.0
        %707 = vmatmul.mubr.f32.gmra.mrb[0].mxu0 %v521
        %v708 = vpop.f32.mrb[0].mxu0
        %v709 = vadd.f32 %v478, %v708
        %v710 = vpop.f32.mrb[0].mxu0
        %711 = vmatprep.mubr.f32.mxu0 0.0
        %712 = vmatmul.mubr.f32.gmra.mrb[0].mxu0 %v524
        %v713 = vpop.f32.mrb[0].mxu0
        %v714 = vadd.f32 %v478, %v713
        %v715 = vpop.f32.mrb[0].mxu0
        %716 = vmatprep.mubr.f32.mxu0 0.0
        %717 = vmatmul.mubr.f32.gmra.mrb[0].mxu0 %v527
        %v718 = vpop.f32.mrb[0].mxu0
        %v719 = vadd.f32 %v478, %v718
        %v720 = vpop.f32.mrb[0].mxu0
        %721 = vmatprep.mubr.f32.mxu0 0.0
        %722 = vmatmul.mubr.f32.gmra.mrb[0].mxu0 %v530
        %v723 = vpop.f32.mrb[0].mxu0
        %v724 = vadd.f32 %v478, %v723
        %v725 = vpop.f32.mrb[0].mxu0
        %726 = vmatprep.mubr.f32.mxu0 0.0
        %727 = vmatmul.mubr.f32.gmra.mrb[0].mxu0 %v533
        %v728 = vpop.f32.mrb[0].mxu0
        %v729 = vadd.f32 %v478, %v728
        %v730 = vpop.f32.mrb[0].mxu0
        %731 = vmatprep.mubr.f32.mxu0 0.0
        %732 = vmatmul.mubr.f32.gmra.mrb[0].mxu0 %v536
        %v733 = vpop.f32.mrb[0].mxu0
        %v734 = vadd.f32 %v478, %v733
        %v735 = vpop.f32.mrb[0].mxu0
        %736 = vmatprep.mubr.f32.mxu0 0.0
        %737 = vmatmul.mubr.f32.gmra.mrb[0].mxu0 %v539
        %v738 = vpop.f32.mrb[0].mxu0
        %v739 = vadd.f32 %v478, %v738
        %v740 = vpop.f32.mrb[0].mxu0
        %741 = vmatprep.mubr.f32.mxu0 0.0
        %742 = vmatmul.mubr.f32.gmra.mrb[0].mxu0 %v542
        %v743 = vpop.f32.mrb[0].mxu0
        %v744 = vadd.f32 %v478, %v743
        %v745 = vpop.f32.mrb[0].mxu0
        %746 = vmatprep.mubr.f32.mxu0 0.0
        %747 = vmatmul.mubr.f32.gmra.mrb[0].mxu0 %v545
        %v748 = vpop.f32.mrb[0].mxu0
        %v749 = vadd.f32 %v478, %v748
        %v750 = vpop.f32.mrb[0].mxu0
        %751 = vmatprep.mubr.f32.mxu0 0.0
        %752 = vmatmul.mubr.f32.gmra.mrb[0].mxu0 %v548
        %v753 = vpop.f32.mrb[0].mxu0
        %v754 = vadd.f32 %v478, %v753
        %v755 = vpop.f32.mrb[0].mxu0
        %756 = vmatprep.mubr.f32.mxu0 0.0
        %757 = vmatmul.mubr.f32.gmra.mrb[0].mxu0 %v551
        %v758 = vpop.f32.mrb[0].mxu0
        %v759 = vadd.f32 %v478, %v758
        %v760 = vpop.f32.mrb[0].mxu0
        %761 = vmatprep.mubr.f32.mxu0 0.0
        %762 = vmatmul.mubr.f32.gmra.mrb[0].mxu0 %v554
        %v763 = vpop.f32.mrb[0].mxu0
        %v764 = vadd.f32 %v478, %v763
        %v765 = vpop.f32.mrb[0].mxu0
        %766 = vmatprep.mubr.f32.mxu0 0.0
        %767 = vmatmul.mubr.f32.gmra.mrb[0].mxu0 %v557
        %v768 = vpop.f32.mrb[0].mxu0
        %v769 = vadd.f32 %v478, %v768
        %v770 = vpop.f32.mrb[0].mxu0
        %771 = vmatprep.mubr.f32.mxu0 0.0
        %772 = vmatmul.mubr.f32.gmra.mrb[0].mxu0 %v560
        %v773 = vpop.f32.mrb[0].mxu0
        %v774 = vadd.f32 %v478, %v773
        %v775 = vpop.f32.mrb[0].mxu0
        %776 = vmatprep.mubr.f32.mxu0 0.0
        %777 = vmatmul.mubr.f32.gmra.mrb[0].mxu0 %v563
        %v778 = vpop.f32.mrb[0].mxu0
        %v779 = vadd.f32 %v478, %v778
        %v780 = vpop.f32.mrb[0].mxu0
        %781 = vmatprep.mubr.f32.mxu0 0.0
        %782 = vmatmul.mubr.f32.gmra.mrb[0].mxu0 %v566
        %v783 = vpop.f32.mrb[0].mxu0
        %v784 = vadd.f32 %v478, %v783
        %v785 = vpop.f32.mrb[0].mxu0
        %786 = vmatprep.mubr.f32.mxu0 0.0
        %787 = vmatmul.mubr.f32.gmra.mrb[0].mxu0 %v569
        %v788 = vpop.f32.mrb[0].mxu0
        %v789 = vadd.f32 %v478, %v788
        %v790 = vpop.f32.mrb[0].mxu0
        %791 = vmatprep.mubr.f32.mxu0 0.0
        %792 = vmatmul.mubr.f32.gmra.mrb[0].mxu0 %v572
        %v793 = vpop.f32.mrb[0].mxu0
        %v794 = vadd.f32 %v478, %v793
        %v795 = vpop.f32.mrb[0].mxu0
        %796 = vmatprep.mubr.f32.mxu0 0.0
        %797 = vmatmul.mubr.f32.gmra.mrb[0].mxu0 %v575
        %v798 = vpop.f32.mrb[0].mxu0
        %v799 = vadd.f32 %v478, %v798
        %v800 = vpop.f32.mrb[0].mxu0
        %801 = vdwg.mxu0
        %v802 = vmax.f32 %v644, 0.0
        %v803 = vmax.f32 %v649, 0.0
        %v804 = vmax.f32 %v654, 0.0
        %v805 = vmax.f32 %v659, 0.0
        %v806 = vmax.f32 %v664, 0.0
        %v807 = vmax.f32 %v669, 0.0
        %v808 = vmax.f32 %v674, 0.0
        %v809 = vmax.f32 %v679, 0.0
        %v810 = vmax.f32 %v684, 0.0
        %v811 = vmax.f32 %v689, 0.0
        %v812 = vmax.f32 %v694, 0.0
        %v813 = vmax.f32 %v699, 0.0
        %v814 = vmax.f32 %v704, 0.0
        %v815 = vmax.f32 %v709, 0.0
        %v816 = vmax.f32 %v714, 0.0
        %v817 = vmax.f32 %v719, 0.0
        %v818 = vmax.f32 %v724, 0.0
        %v819 = vmax.f32 %v729, 0.0
        %v820 = vmax.f32 %v734, 0.0
        %v821 = vmax.f32 %v739, 0.0
        %v822 = vmax.f32 %v744, 0.0
        %v823 = vmax.f32 %v749, 0.0
        %v824 = vmax.f32 %v754, 0.0
        %v825 = vmax.f32 %v759, 0.0
        %v826 = vmax.f32 %v764, 0.0
        %v827 = vmax.f32 %v769, 0.0
        %v828 = vmax.f32 %v774, 0.0
        %v829 = vmax.f32 %v779, 0.0
        %v830 = vmax.f32 %v784, 0.0
        %v831 = vmax.f32 %v789, 0.0
        %v832 = vmax.f32 %v794, 0.0
        %v833 = vmax.f32 %v799, 0.0
        %s834 = scalar_lea.vmem [#allocation2], 24
        %835 = vst.msk [vmem:[%s834 + $0x1] sm:$0xff] %vm361, %v802
        %836 = vst.msk [vmem:[%s834 + $0x9] sm:$0xff] %vm361, %v803
        %837 = vst.msk [vmem:[%s834 + $0x19] sm:$0xff] %vm361, %v804
        %838 = vst.msk [vmem:[%s834 + $0x21] sm:$0xff] %vm361, %v805
        %839 = vst.msk [vmem:[%s834 + $0x31] sm:$0xff] %vm361, %v806
        %840 = vst.msk [vmem:[%s834 + $0x39] sm:$0xff] %vm361, %v807
        %841 = vst.msk [vmem:[%s834 + $0x49] sm:$0xff] %vm361, %v808
        %842 = vst.msk [vmem:[%s834 + $0x51] sm:$0xff] %vm361, %v809
        %843 = vst.msk [vmem:[%s834 + $0x61] sm:$0xff] %vm361, %v810
        %844 = vst.msk [vmem:[%s834 + $0x69] sm:$0xff] %vm361, %v811
        %845 = vst.msk [vmem:[%s834 + $0x79] sm:$0xff] %vm361, %v812
        %846 = vst.msk [vmem:[%s834 + $0x81] sm:$0xff] %vm361, %v813
        %847 = vst.msk [vmem:[%s834 + $0x91] sm:$0xff] %vm361, %v814
        %848 = vst.msk [vmem:[%s834 + $0x99] sm:$0xff] %vm361, %v815
        %849 = vst.msk [vmem:[%s834 + $0xa9] sm:$0xff] %vm361, %v816
        %850 = vst.msk [vmem:[%s834 + $0xb1] sm:$0xff] %vm361, %v817
        %851 = vst.msk [vmem:[%s834 + $0xc1] sm:$0xff] %vm361, %v818
        %852 = vst.msk [vmem:[%s834 + $0xc9] sm:$0xff] %vm361, %v819
        %853 = vst.msk [vmem:[%s834 + $0xd9] sm:$0xff] %vm361, %v820
        %854 = vst.msk [vmem:[%s834 + $0xe1] sm:$0xff] %vm361, %v821
        %855 = vst.msk [vmem:[%s834 + $0xf1] sm:$0xff] %vm361, %v822
        %856 = vst.msk [vmem:[%s834 + $0xf9] sm:$0xff] %vm361, %v823
        %857 = vst.msk [vmem:[%s834 + $0x109] sm:$0xff] %vm361, %v824
        %858 = vst.msk [vmem:[%s834 + $0x111] sm:$0xff] %vm361, %v825
        %859 = vst.msk [vmem:[%s834 + $0x121] sm:$0xff] %vm361, %v826
        %860 = vst.msk [vmem:[%s834 + $0x129] sm:$0xff] %vm361, %v827
        %861 = vst.msk [vmem:[%s834 + $0x139] sm:$0xff] %vm361, %v828
        %862 = vst.msk [vmem:[%s834 + $0x141] sm:$0xff] %vm361, %v829
        %863 = vst.msk [vmem:[%s834 + $0x151] sm:$0xff] %vm361, %v830
        %864 = vst.msk [vmem:[%s834 + $0x159] sm:$0xff] %vm361, %v831
        %865 = vst.msk [vmem:[%s834 + $0x169] sm:$0xff] %vm361, %v832
        %866 = vst.msk [vmem:[%s834 + $0x171] sm:$0xff] %vm361, %v833
        %v867 = vld [vmem:[#allocation2] sm:$0xff]
        %v868 = vld [vmem:[#allocation2 + $0x8] sm:$0xff]
        %v869 = vld [vmem:[#allocation2 + $0x18] sm:$0xff]
        %v870 = vld [vmem:[#allocation2 + $0x20] sm:$0xff]
        %v871 = vld [vmem:[#allocation2 + $0x30] sm:$0xff]
        %v872 = vld [vmem:[#allocation2 + $0x38] sm:$0xff]
        %v873 = vld [vmem:[#allocation2 + $0x48] sm:$0xff]
        %v874 = vld [vmem:[#allocation2 + $0x50] sm:$0xff]
        %v875 = vld [vmem:[#allocation2 + $0x1] sm:$0xff]
        %v876 = vld [vmem:[#allocation2 + $0x9] sm:$0xff]
        %v877 = vld [vmem:[#allocation2 + $0x19] sm:$0xff]
        %v878 = vld [vmem:[#allocation2 + $0x21] sm:$0xff]
        %v879 = vld [vmem:[#allocation2 + $0x31] sm:$0xff]
        %v880 = vld [vmem:[#allocation2 + $0x39] sm:$0xff]
        %v881 = vld [vmem:[#allocation2 + $0x49] sm:$0xff]
        %v882 = vld [vmem:[#allocation2 + $0x51] sm:$0xff]
        %v883 = vld [vmem:[#allocation2 + $0x2] sm:$0xff]
        %v884 = vld [vmem:[#allocation2 + $0xa] sm:$0xff]
        %v885 = vld [vmem:[#allocation2 + $0x1a] sm:$0xff]
        %v886 = vld [vmem:[#allocation2 + $0x22] sm:$0xff]
        %v887 = vld [vmem:[#allocation2 + $0x32] sm:$0xff]
        %v888 = vld [vmem:[#allocation2 + $0x3a] sm:$0xff]
        %v889 = vld [vmem:[#allocation2 + $0x4a] sm:$0xff]
        %v890 = vld [vmem:[#allocation2 + $0x52] sm:$0xff]
        %v891 = vld [vmem:[%s834] sm:$0xff]
        %v892 = vld [vmem:[%s834 + $0x8] sm:$0xff]
        %v893 = vld [vmem:[%s834 + $0x18] sm:$0xff]
        %v894 = vld [vmem:[%s834 + $0x20] sm:$0xff]
        %v895 = vld [vmem:[%s834 + $0x30] sm:$0xff]
        %v896 = vld [vmem:[%s834 + $0x38] sm:$0xff]
        %v897 = vld [vmem:[%s834 + $0x48] sm:$0xff]
        %v898 = vld [vmem:[%s834 + $0x50] sm:$0xff]
        %v899 = vld [vmem:[%s834 + $0x1] sm:$0xff]
        %v900 = vld [vmem:[%s834 + $0x9] sm:$0xff]
        %v901 = vld [vmem:[%s834 + $0x19] sm:$0xff]
        %v902 = vld [vmem:[%s834 + $0x21] sm:$0xff]
        %v903 = vld [vmem:[%s834 + $0x31] sm:$0xff]
        %v904 = vld [vmem:[%s834 + $0x39] sm:$0xff]
        %v905 = vld [vmem:[%s834 + $0x49] sm:$0xff]
        %v906 = vld [vmem:[%s834 + $0x51] sm:$0xff]
        %v907 = vld [vmem:[%s834 + $0x2] sm:$0xff]
        %v908 = vld [vmem:[%s834 + $0xa] sm:$0xff]
        %v909 = vld [vmem:[%s834 + $0x1a] sm:$0xff]
        %v910 = vld [vmem:[%s834 + $0x22] sm:$0xff]
        %v911 = vld [vmem:[%s834 + $0x32] sm:$0xff]
        %v912 = vld [vmem:[%s834 + $0x3a] sm:$0xff]
        %v913 = vld [vmem:[%s834 + $0x4a] sm:$0xff]
        %v914 = vld [vmem:[%s834 + $0x52] sm:$0xff]
        %s915 = scalar_lea.vmem [#allocation2], 48
        %v916 = vld [vmem:[%s915] sm:$0xff]
        %v917 = vld [vmem:[%s915 + $0x8] sm:$0xff]
        %v918 = vld [vmem:[%s915 + $0x18] sm:$0xff]
        %v919 = vld [vmem:[%s915 + $0x20] sm:$0xff]
        %v920 = vld [vmem:[%s915 + $0x30] sm:$0xff]
        %v921 = vld [vmem:[%s915 + $0x38] sm:$0xff]
        %v922 = vld [vmem:[%s915 + $0x48] sm:$0xff]
        %v923 = vld [vmem:[%s915 + $0x50] sm:$0xff]
        %v924 = vld [vmem:[%s915 + $0x1] sm:$0xff]
        %v925 = vld [vmem:[%s915 + $0x9] sm:$0xff]
        %v926 = vld [vmem:[%s915 + $0x19] sm:$0xff]
        %v927 = vld [vmem:[%s915 + $0x21] sm:$0xff]
        %v928 = vld [vmem:[%s915 + $0x31] sm:$0xff]
        %v929 = vld [vmem:[%s915 + $0x39] sm:$0xff]
        %v930 = vld [vmem:[%s915 + $0x49] sm:$0xff]
        %v931 = vld [vmem:[%s915 + $0x51] sm:$0xff]
        %v932 = vld [vmem:[%s915 + $0x2] sm:$0xff]
        %v933 = vld [vmem:[%s915 + $0xa] sm:$0xff]
        %v934 = vld [vmem:[%s915 + $0x1a] sm:$0xff]
        %v935 = vld [vmem:[%s915 + $0x22] sm:$0xff]
        %v936 = vld [vmem:[%s915 + $0x32] sm:$0xff]
        %v937 = vld [vmem:[%s915 + $0x3a] sm:$0xff]
        %v938 = vld [vmem:[%s915 + $0x4a] sm:$0xff]
        %v939 = vld [vmem:[%s915 + $0x52] sm:$0xff]
        %948 = vrot.lane.b32.xlu0 %v875, 64
        %v949 = vpop.permute.xlu0 %948
        %950 = vrot.lane.b32.xlu0 %v876, 64
        %v951 = vpop.permute.xlu0 %950
        %952 = vrot.lane.b32.xlu0 %v877, 64
        %v953 = vpop.permute.xlu0 %952
        %954 = vrot.lane.b32.xlu0 %v878, 64
        %v955 = vpop.permute.xlu0 %954
        %956 = vrot.lane.b32.xlu0 %v879, 64
        %v957 = vpop.permute.xlu0 %956
        %958 = vrot.lane.b32.xlu0 %v880, 64
        %v959 = vpop.permute.xlu0 %958
        %960 = vrot.lane.b32.xlu0 %v881, 64
        %v961 = vpop.permute.xlu0 %960
        %962 = vrot.lane.b32.xlu0 %v882, 64
        %v963 = vpop.permute.xlu0 %962
        %980 = vrot.lane.b32.xlu0 %v891, 64
        %v981 = vpop.permute.xlu0 %980
        %982 = vrot.lane.b32.xlu0 %v892, 64
        %v983 = vpop.permute.xlu0 %982
        %984 = vrot.lane.b32.xlu0 %v893, 64
        %v985 = vpop.permute.xlu0 %984
        %986 = vrot.lane.b32.xlu0 %v894, 64
        %v987 = vpop.permute.xlu0 %986
        %988 = vrot.lane.b32.xlu0 %v895, 64
        %v989 = vpop.permute.xlu0 %988
        %990 = vrot.lane.b32.xlu0 %v896, 64
        %v991 = vpop.permute.xlu0 %990
        %992 = vrot.lane.b32.xlu0 %v897, 64
        %v993 = vpop.permute.xlu0 %992
        %994 = vrot.lane.b32.xlu0 %v898, 64
        %v995 = vpop.permute.xlu0 %994
        %1012 = vrot.lane.b32.xlu0 %v907, 64
        %v1013 = vpop.permute.xlu0 %1012
        %1014 = vrot.lane.b32.xlu0 %v908, 64
        %v1015 = vpop.permute.xlu0 %1014
        %1016 = vrot.lane.b32.xlu0 %v909, 64
        %v1017 = vpop.permute.xlu0 %1016
        %1018 = vrot.lane.b32.xlu0 %v910, 64
        %v1019 = vpop.permute.xlu0 %1018
        %1020 = vrot.lane.b32.xlu0 %v911, 64
        %v1021 = vpop.permute.xlu0 %1020
        %1022 = vrot.lane.b32.xlu0 %v912, 64
        %v1023 = vpop.permute.xlu0 %1022
        %1024 = vrot.lane.b32.xlu0 %v913, 64
        %v1025 = vpop.permute.xlu0 %1024
        %1026 = vrot.lane.b32.xlu0 %v914, 64
        %v1027 = vpop.permute.xlu0 %1026
        %1044 = vrot.lane.b32.xlu0 %v924, 64
        %v1045 = vpop.permute.xlu0 %1044
        %1046 = vrot.lane.b32.xlu0 %v925, 64
        %v1047 = vpop.permute.xlu0 %1046
        %1048 = vrot.lane.b32.xlu0 %v926, 64
        %v1049 = vpop.permute.xlu0 %1048
        %1050 = vrot.lane.b32.xlu0 %v927, 64
        %v1051 = vpop.permute.xlu0 %1050
        %1052 = vrot.lane.b32.xlu0 %v928, 64
        %v1053 = vpop.permute.xlu0 %1052
        %1054 = vrot.lane.b32.xlu0 %v929, 64
        %v1055 = vpop.permute.xlu0 %1054
        %1056 = vrot.lane.b32.xlu0 %v930, 64
        %v1057 = vpop.permute.xlu0 %1056
        %1058 = vrot.lane.b32.xlu0 %v931, 64
        %v1059 = vpop.permute.xlu0 %1058
        %v1068 = vsel %vm361, %v867, %v949
        %v1069 = vsel %vm361, %v868, %v951
        %v1070 = vsel %vm361, %v869, %v953
        %v1071 = vsel %vm361, %v870, %v955
        %v1072 = vsel %vm361, %v871, %v957
        %v1073 = vsel %vm361, %v872, %v959
        %v1074 = vsel %vm361, %v873, %v961
        %v1075 = vsel %vm361, %v874, %v963
        %v1076 = vsel %vm361, %v883, %v981
        %v1077 = vsel %vm361, %v884, %v983
        %v1078 = vsel %vm361, %v885, %v985
        %v1079 = vsel %vm361, %v886, %v987
        %v1080 = vsel %vm361, %v887, %v989
        %v1081 = vsel %vm361, %v888, %v991
        %v1082 = vsel %vm361, %v889, %v993
        %v1083 = vsel %vm361, %v890, %v995
        %v1084 = vsel %vm361, %v899, %v1013
        %v1085 = vsel %vm361, %v900, %v1015
        %v1086 = vsel %vm361, %v901, %v1017
        %v1087 = vsel %vm361, %v902, %v1019
        %v1088 = vsel %vm361, %v903, %v1021
        %v1089 = vsel %vm361, %v904, %v1023
        %v1090 = vsel %vm361, %v905, %v1025
        %v1091 = vsel %vm361, %v906, %v1027
        %v1092 = vsel %vm361, %v916, %v1045
        %v1093 = vsel %vm361, %v917, %v1047
        %v1094 = vsel %vm361, %v918, %v1049
        %v1095 = vsel %vm361, %v919, %v1051
        %v1096 = vsel %vm361, %v920, %v1053
        %v1097 = vsel %vm361, %v921, %v1055
        %v1098 = vsel %vm361, %v922, %v1057
        %v1099 = vsel %vm361, %v923, %v1059
        %v1100 = vld [vmem:[#allocation8] sm:$0xff]
        %v1101 = vld [vmem:[#allocation8 + $0x8] sm:$0xff]
        %v1102 = vld [vmem:[#allocation8 + $0x10] sm:$0xff]
        %v1103 = vld [vmem:[#allocation8 + $0x18] sm:$0xff]
        %v1104 = vld [vmem:[#allocation8 + $0x20] sm:$0xff]
        %v1105 = vld [vmem:[#allocation8 + $0x28] sm:$0xff]
        %v1106 = vld [vmem:[#allocation8 + $0x30] sm:$0xff]
        %v1107 = vld [vmem:[#allocation8 + $0x38] sm:$0xff]
        %v1108 = vld [vmem:[#allocation8 + $0x40] sm:$0xff]
        %v1109 = vld [vmem:[#allocation8 + $0x48] sm:$0xff]
        %v1110 = vld [vmem:[#allocation8 + $0x50] sm:$0xff]
        %v1111 = vld [vmem:[#allocation8 + $0x58] sm:$0xff]
        %v1112 = vld [vmem:[#allocation8 + $0x60] sm:$0xff]
        %v1113 = vld [vmem:[#allocation8 + $0x68] sm:$0xff]
        %v1114 = vld [vmem:[#allocation8 + $0x70] sm:$0xff]
        %v1115 = vld [vmem:[#allocation8 + $0x78] sm:$0xff]
        %v1116 = vld [vmem:[#allocation8 + $0x80] sm:$0xff]
        %v1117 = vld [vmem:[#allocation8 + $0x88] sm:$0xff]
        %v1118 = vld [vmem:[#allocation8 + $0x90] sm:$0xff]
        %v1119 = vld [vmem:[#allocation8 + $0x98] sm:$0xff]
        %v1120 = vld [vmem:[#allocation8 + $0xa0] sm:$0xff]
        %v1121 = vld [vmem:[#allocation8 + $0xa8] sm:$0xff]
        %v1122 = vld [vmem:[#allocation8 + $0xb0] sm:$0xff]
        %v1123 = vld [vmem:[#allocation8 + $0xb8] sm:$0xff]
        %v1124 = vld [vmem:[#allocation8 + $0xc0] sm:$0xff]
        %v1125 = vld [vmem:[#allocation8 + $0xc8] sm:$0xff]
        %v1126 = vld [vmem:[#allocation8 + $0xd0] sm:$0xff]
        %v1127 = vld [vmem:[#allocation8 + $0xd8] sm:$0xff]
        %v1128 = vld [vmem:[#allocation8 + $0xe0] sm:$0xff]
        %v1129 = vld [vmem:[#allocation8 + $0xe8] sm:$0xff]
        %v1130 = vld [vmem:[#allocation8 + $0xf0] sm:$0xff]
        %v1131 = vld [vmem:[#allocation8 + $0xf8] sm:$0xff]
        %v1132 = vld [vmem:[#allocation8 + $0x100] sm:$0xff]
        %v1133 = vld [vmem:[#allocation8 + $0x108] sm:$0xff]
        %v1134 = vld [vmem:[#allocation8 + $0x110] sm:$0xff]
        %v1135 = vld [vmem:[#allocation8 + $0x118] sm:$0xff]
        %v1136 = vld [vmem:[#allocation8 + $0x120] sm:$0xff]
        %v1137 = vld [vmem:[#allocation8 + $0x128] sm:$0xff]
        %v1138 = vld [vmem:[#allocation8 + $0x130] sm:$0xff]
        %v1139 = vld [vmem:[#allocation8 + $0x138] sm:$0xff]
        %v1140 = vld [vmem:[#allocation8 + $0x140] sm:$0xff]
        %v1141 = vld [vmem:[#allocation8 + $0x148] sm:$0xff]
        %v1142 = vld [vmem:[#allocation8 + $0x150] sm:$0xff]
        %v1143 = vld [vmem:[#allocation8 + $0x158] sm:$0xff]
        %v1144 = vld [vmem:[#allocation8 + $0x160] sm:$0xff]
        %v1145 = vld [vmem:[#allocation8 + $0x168] sm:$0xff]
        %v1146 = vld [vmem:[#allocation8 + $0x170] sm:$0xff]
        %v1147 = vld [vmem:[#allocation8 + $0x178] sm:$0xff]
        %v1148 = vld [vmem:[#allocation8 + $0x180] sm:$0xff]
        %v1149 = vld [vmem:[#allocation8 + $0x188] sm:$0xff]
        %v1150 = vld [vmem:[#allocation8 + $0x190] sm:$0xff]
        %v1151 = vld [vmem:[#allocation8 + $0x198] sm:$0xff]
        %v1152 = vld [vmem:[#allocation8 + $0x1a0] sm:$0xff]
        %v1153 = vld [vmem:[#allocation8 + $0x1a8] sm:$0xff]
        %v1154 = vld [vmem:[#allocation8 + $0x1b0] sm:$0xff]
        %v1155 = vld [vmem:[#allocation8 + $0x1b8] sm:$0xff]
        %v1156 = vld [vmem:[#allocation8 + $0x1c0] sm:$0xff]
        %v1157 = vld [vmem:[#allocation8 + $0x1c8] sm:$0xff]
        %v1158 = vld [vmem:[#allocation8 + $0x1d0] sm:$0xff]
        %v1159 = vld [vmem:[#allocation8 + $0x1d8] sm:$0xff]
        %v1160 = vld [vmem:[#allocation8 + $0x1e0] sm:$0xff]
        %v1161 = vld [vmem:[#allocation8 + $0x1e8] sm:$0xff]
        %v1162 = vld [vmem:[#allocation8 + $0x1f0] sm:$0xff]
        %v1163 = vld [vmem:[#allocation8 + $0x1f8] sm:$0xff]
        %v1164 = vld [vmem:[#allocation8 + $0x200] sm:$0xff]
        %v1165 = vld [vmem:[#allocation8 + $0x208] sm:$0xff]
        %v1166 = vld [vmem:[#allocation8 + $0x210] sm:$0xff]
        %v1167 = vld [vmem:[#allocation8 + $0x218] sm:$0xff]
        %v1168 = vld [vmem:[#allocation8 + $0x220] sm:$0xff]
        %v1169 = vld [vmem:[#allocation8 + $0x228] sm:$0xff]
        %v1170 = vld [vmem:[#allocation8 + $0x230] sm:$0xff]
        %v1171 = vld [vmem:[#allocation8 + $0x238] sm:$0xff]
        %v1172 = vld [vmem:[#allocation9] sm:$0x1]
        %v1174 = vlaneseq
        %v1175 = vshrl.u32 %v1174, 7
        %v1176 = vsub.s32 0, %v1175
        %v1177 = vrot.slane %v1172, %v1176
        %v1180 = vsel %vm361, %v932, 0
        %v1183 = vsel %vm361, %v933, 0
        %v1186 = vsel %vm361, %v934, 0
        %v1189 = vsel %vm361, %v935, 0
        %v1192 = vsel %vm361, %v936, 0
        %v1195 = vsel %vm361, %v937, 0
        %v1198 = vsel %vm361, %v938, 0
        %v1201 = vsel %vm361, %v939, 0
        %1203 = vmatprep.subr.mxu0 0.0
        %1204 = vmatpush1.msra.mxu0 %v1100
        %1205 = vmatprep.subr.mxu0 0.0
        %1206 = vmatpush1.msra.mxu0 %v1101
        %1207 = vmatprep.subr.mxu0 0.0
        %1208 = vmatpush1.msra.mxu0 %v1102
        %1209 = vmatprep.subr.mxu0 0.0
        %1210 = vmatpush1.msra.mxu0 %v1103
        %1211 = vmatprep.subr.mxu0 0.0
        %1212 = vmatpush1.msra.mxu0 %v1104
        %1213 = vmatprep.subr.mxu0 0.0
        %1214 = vmatpush1.msra.mxu0 %v1105
        %1215 = vmatprep.subr.mxu0 0.0
        %1216 = vmatpush1.msra.mxu0 %v1106
        %1217 = vmatprep.subr.mxu0 0.0
        %1218 = vmatpush1.msra.mxu0 %v1107
        %1219 = vmatprep.subr.mxu0 0.0
        %1220 = vmatpush1.msra.mxu0 %v1108
        %1221 = vmatprep.subr.mxu0 0.0
        %1222 = vmatpush1.msra.mxu0 %v1109
        %1223 = vmatprep.subr.mxu0 0.0
        %1224 = vmatpush1.msra.mxu0 %v1110
        %1225 = vmatprep.subr.mxu0 0.0
        %1226 = vmatpush1.msra.mxu0 %v1111
        %1227 = vmatprep.subr.mxu0 0.0
        %1228 = vmatpush1.msra.mxu0 %v1112
        %1229 = vmatprep.subr.mxu0 0.0
        %1230 = vmatpush1.msra.mxu0 %v1113
        %1231 = vmatprep.subr.mxu0 0.0
        %1232 = vmatpush1.msra.mxu0 %v1114
        %1233 = vmatprep.subr.mxu0 0.0
        %1234 = vmatpush1.msra.mxu0 %v1115
        %1235 = vmatprep.subr.mxu0 0.0
        %1236 = vmatpush1.msra.mxu0 %v1116
        %1237 = vmatprep.subr.mxu0 0.0
        %1238 = vmatpush1.msra.mxu0 %v1117
        %1239 = vmatprep.subr.mxu0 0.0
        %1240 = vmatpush1.msra.mxu0 %v1118
        %1241 = vmatprep.subr.mxu0 0.0
        %1242 = vmatpush1.msra.mxu0 %v1119
        %1243 = vmatprep.subr.mxu0 0.0
        %1244 = vmatpush1.msra.mxu0 %v1120
        %1245 = vmatprep.subr.mxu0 0.0
        %1246 = vmatpush1.msra.mxu0 %v1121
        %1247 = vmatprep.subr.mxu0 0.0
        %1248 = vmatpush1.msra.mxu0 %v1122
        %1249 = vmatprep.subr.mxu0 0.0
        %1250 = vmatpush1.msra.mxu0 %v1123
        %1251 = vmatprep.subr.mxu0 0.0
        %1252 = vmatpush1.msra.mxu0 %v1124
        %1253 = vmatprep.subr.mxu0 0.0
        %1254 = vmatpush1.msra.mxu0 %v1125
        %1255 = vmatprep.subr.mxu0 0.0
        %1256 = vmatpush1.msra.mxu0 %v1126
        %1257 = vmatprep.subr.mxu0 0.0
        %1258 = vmatpush1.msra.mxu0 %v1127
        %1259 = vmatprep.subr.mxu0 0.0
        %1260 = vmatpush1.msra.mxu0 %v1128
        %1261 = vmatprep.subr.mxu0 0.0
        %1262 = vmatpush1.msra.mxu0 %v1129
        %1263 = vmatprep.subr.mxu0 0.0
        %1264 = vmatpush1.msra.mxu0 %v1130
        %1265 = vmatprep.subr.mxu0 0.0
        %1266 = vmatpush1.msra.mxu0 %v1131
        %1267 = vmatprep.mubr.f32.mxu0 %v1076
        %1268 = vmatmul.mubr.f32.gmra.mrb[0].mxu0 %v1068
        %v1269 = vpop.f32.mrb[0].mxu0
        %v1270 = vadd.f32 %v1177, %v1269
        %v1271 = vpop.f32.mrb[0].mxu0
        %1272 = vmatprep.mubr.f32.mxu0 %v1077
        %1273 = vmatmul.mubr.f32.gmra.mrb[0].mxu0 %v1069
        %v1274 = vpop.f32.mrb[0].mxu0
        %v1275 = vadd.f32 %v1177, %v1274
        %v1276 = vpop.f32.mrb[0].mxu0
        %1277 = vmatprep.mubr.f32.mxu0 %v1078
        %1278 = vmatmul.mubr.f32.gmra.mrb[0].mxu0 %v1070
        %v1279 = vpop.f32.mrb[0].mxu0
        %v1280 = vadd.f32 %v1177, %v1279
        %v1281 = vpop.f32.mrb[0].mxu0
        %1282 = vmatprep.mubr.f32.mxu0 %v1079
        %1283 = vmatmul.mubr.f32.gmra.mrb[0].mxu0 %v1071
        %v1284 = vpop.f32.mrb[0].mxu0
        %v1285 = vadd.f32 %v1177, %v1284
        %v1286 = vpop.f32.mrb[0].mxu0
        %1287 = vmatprep.mubr.f32.mxu0 %v1080
        %1288 = vmatmul.mubr.f32.gmra.mrb[0].mxu0 %v1072
        %v1289 = vpop.f32.mrb[0].mxu0
        %v1290 = vadd.f32 %v1177, %v1289
        %v1291 = vpop.f32.mrb[0].mxu0
        %1292 = vmatprep.mubr.f32.mxu0 %v1081
        %1293 = vmatmul.mubr.f32.gmra.mrb[0].mxu0 %v1073
        %v1294 = vpop.f32.mrb[0].mxu0
        %v1295 = vadd.f32 %v1177, %v1294
        %v1296 = vpop.f32.mrb[0].mxu0
        %1297 = vmatprep.mubr.f32.mxu0 %v1082
        %1298 = vmatmul.mubr.f32.gmra.mrb[0].mxu0 %v1074
        %v1299 = vpop.f32.mrb[0].mxu0
        %v1300 = vadd.f32 %v1177, %v1299
        %v1301 = vpop.f32.mrb[0].mxu0
        %1302 = vmatprep.mubr.f32.mxu0 %v1083
        %1303 = vmatmul.mubr.f32.gmra.mrb[0].mxu0 %v1075
        %v1304 = vpop.f32.mrb[0].mxu0
        %v1305 = vadd.f32 %v1177, %v1304
        %v1306 = vpop.f32.mrb[0].mxu0
        %1307 = vdwg.mxu0
        %1308 = vmatprep.subr.mxu0 0.0
        %1309 = vmatpush1.msra.mxu0 %v1132
        %1310 = vmatprep.subr.mxu0 0.0
        %1311 = vmatpush1.msra.mxu0 %v1133
        %1312 = vmatprep.subr.mxu0 0.0
        %1313 = vmatpush1.msra.mxu0 %v1134
        %1314 = vmatprep.subr.mxu0 0.0
        %1315 = vmatpush1.msra.mxu0 %v1135
        %1316 = vmatprep.subr.mxu0 0.0
        %1317 = vmatpush1.msra.mxu0 %v1136
        %1318 = vmatprep.subr.mxu0 0.0
        %1319 = vmatpush1.msra.mxu0 %v1137
        %1320 = vmatprep.subr.mxu0 0.0
        %1321 = vmatpush1.msra.mxu0 %v1138
        %1322 = vmatprep.subr.mxu0 0.0
        %1323 = vmatpush1.msra.mxu0 %v1139
        %1324 = vmatprep.subr.mxu0 0.0
        %1325 = vmatpush1.msra.mxu0 %v1140
        %1326 = vmatprep.subr.mxu0 0.0
        %1327 = vmatpush1.msra.mxu0 %v1141
        %1328 = vmatprep.subr.mxu0 0.0
        %1329 = vmatpush1.msra.mxu0 %v1142
        %1330 = vmatprep.subr.mxu0 0.0
        %1331 = vmatpush1.msra.mxu0 %v1143
        %1332 = vmatprep.subr.mxu0 0.0
        %1333 = vmatpush1.msra.mxu0 %v1144
        %1334 = vmatprep.subr.mxu0 0.0
        %1335 = vmatpush1.msra.mxu0 %v1145
        %1336 = vmatprep.subr.mxu0 0.0
        %1337 = vmatpush1.msra.mxu0 %v1146
        %1338 = vmatprep.subr.mxu0 0.0
        %1339 = vmatpush1.msra.mxu0 %v1147
        %1340 = vmatprep.subr.mxu0 0.0
        %1341 = vmatpush1.msra.mxu0 %v1148
        %1342 = vmatprep.subr.mxu0 0.0
        %1343 = vmatpush1.msra.mxu0 %v1149
        %1344 = vmatprep.subr.mxu0 0.0
        %1345 = vmatpush1.msra.mxu0 %v1150
        %1346 = vmatprep.subr.mxu0 0.0
        %1347 = vmatpush1.msra.mxu0 %v1151
        %1348 = vmatprep.subr.mxu0 0.0
        %1349 = vmatpush1.msra.mxu0 %v1152
        %1350 = vmatprep.subr.mxu0 0.0
        %1351 = vmatpush1.msra.mxu0 %v1153
        %1352 = vmatprep.subr.mxu0 0.0
        %1353 = vmatpush1.msra.mxu0 %v1154
        %1354 = vmatprep.subr.mxu0 0.0
        %1355 = vmatpush1.msra.mxu0 %v1155
        %1356 = vmatprep.subr.mxu0 0.0
        %1357 = vmatpush1.msra.mxu0 %v1156
        %1358 = vmatprep.subr.mxu0 0.0
        %1359 = vmatpush1.msra.mxu0 %v1157
        %1360 = vmatprep.subr.mxu0 0.0
        %1361 = vmatpush1.msra.mxu0 %v1158
        %1362 = vmatprep.subr.mxu0 0.0
        %1363 = vmatpush1.msra.mxu0 %v1159
        %1364 = vmatprep.subr.mxu0 0.0
        %1365 = vmatpush1.msra.mxu0 %v1160
        %1366 = vmatprep.subr.mxu0 0.0
        %1367 = vmatpush1.msra.mxu0 %v1161
        %1368 = vmatprep.subr.mxu0 0.0
        %1369 = vmatpush1.msra.mxu0 %v1162
        %1370 = vmatprep.subr.mxu0 0.0
        %1371 = vmatpush1.msra.mxu0 %v1163
        %1372 = vmatprep.mubr.f32.mxu0 %v1092
        %1373 = vmatmul.mubr.f32.gmra.mrb[0].mxu0 %v1084
        %v1374 = vpop.f32.mrb[0].mxu0
        %v1375 = vadd.f32 %v1270, %v1374
        %v1376 = vpop.f32.mrb[0].mxu0
        %1377 = vmatprep.mubr.f32.mxu0 %v1093
        %1378 = vmatmul.mubr.f32.gmra.mrb[0].mxu0 %v1085
        %v1379 = vpop.f32.mrb[0].mxu0
        %v1380 = vadd.f32 %v1275, %v1379
        %v1381 = vpop.f32.mrb[0].mxu0
        %1382 = vmatprep.mubr.f32.mxu0 %v1094
        %1383 = vmatmul.mubr.f32.gmra.mrb[0].mxu0 %v1086
        %v1384 = vpop.f32.mrb[0].mxu0
        %v1385 = vadd.f32 %v1280, %v1384
        %v1386 = vpop.f32.mrb[0].mxu0
        %1387 = vmatprep.mubr.f32.mxu0 %v1095
        %1388 = vmatmul.mubr.f32.gmra.mrb[0].mxu0 %v1087
        %v1389 = vpop.f32.mrb[0].mxu0
        %v1390 = vadd.f32 %v1285, %v1389
        %v1391 = vpop.f32.mrb[0].mxu0
        %1392 = vmatprep.mubr.f32.mxu0 %v1096
        %1393 = vmatmul.mubr.f32.gmra.mrb[0].mxu0 %v1088
        %v1394 = vpop.f32.mrb[0].mxu0
        %v1395 = vadd.f32 %v1290, %v1394
        %v1396 = vpop.f32.mrb[0].mxu0
        %1397 = vmatprep.mubr.f32.mxu0 %v1097
        %1398 = vmatmul.mubr.f32.gmra.mrb[0].mxu0 %v1089
        %v1399 = vpop.f32.mrb[0].mxu0
        %v1400 = vadd.f32 %v1295, %v1399
        %v1401 = vpop.f32.mrb[0].mxu0
        %1402 = vmatprep.mubr.f32.mxu0 %v1098
        %1403 = vmatmul.mubr.f32.gmra.mrb[0].mxu0 %v1090
        %v1404 = vpop.f32.mrb[0].mxu0
        %v1405 = vadd.f32 %v1300, %v1404
        %v1406 = vpop.f32.mrb[0].mxu0
        %1407 = vmatprep.mubr.f32.mxu0 %v1099
        %1408 = vmatmul.mubr.f32.gmra.mrb[0].mxu0 %v1091
        %v1409 = vpop.f32.mrb[0].mxu0
        %v1410 = vadd.f32 %v1305, %v1409
        %v1411 = vpop.f32.mrb[0].mxu0
        %1412 = vdwg.mxu0
        %1413 = vmatprep.subr.mxu0 0.0
        %1414 = vmatpush1.msra.mxu0 %v1164
        %1415 = vmatprep.subr.mxu0 0.0
        %1416 = vmatpush1.msra.mxu0 %v1165
        %1417 = vmatprep.subr.mxu0 0.0
        %1418 = vmatpush1.msra.mxu0 %v1166
        %1419 = vmatprep.subr.mxu0 0.0
        %1420 = vmatpush1.msra.mxu0 %v1167
        %1421 = vmatprep.subr.mxu0 0.0
        %1422 = vmatpush1.msra.mxu0 %v1168
        %1423 = vmatprep.subr.mxu0 0.0
        %1424 = vmatpush1.msra.mxu0 %v1169
        %1425 = vmatprep.subr.mxu0 0.0
        %1426 = vmatpush1.msra.mxu0 %v1170
        %1427 = vmatprep.subr.mxu0 0.0
        %1428 = vmatpush1.msra.mxu0 %v1171
        %1429 = vmatprep.subr.mxu0 0.0
        %1430 = vmatpush1.msra.mxu0 0.0
        %1431 = vmatprep.subr.mxu0 0.0
        %1432 = vmatpush1.msra.mxu0 0.0
        %1433 = vmatprep.subr.mxu0 0.0
        %1434 = vmatpush1.msra.mxu0 0.0
        %1435 = vmatprep.subr.mxu0 0.0
        %1436 = vmatpush1.msra.mxu0 0.0
        %1437 = vmatprep.subr.mxu0 0.0
        %1438 = vmatpush1.msra.mxu0 0.0
        %1439 = vmatprep.subr.mxu0 0.0
        %1440 = vmatpush1.msra.mxu0 0.0
        %1441 = vmatprep.subr.mxu0 0.0
        %1442 = vmatpush1.msra.mxu0 0.0
        %1443 = vmatprep.subr.mxu0 0.0
        %1444 = vmatpush1.msra.mxu0 0.0
        %1445 = vmatprep.subr.mxu0 0.0
        %1446 = vmatpush1.msra.mxu0 0.0
        %1447 = vmatprep.subr.mxu0 0.0
        %1448 = vmatpush1.msra.mxu0 0.0
        %1449 = vmatprep.subr.mxu0 0.0
        %1450 = vmatpush1.msra.mxu0 0.0
        %1451 = vmatprep.subr.mxu0 0.0
        %1452 = vmatpush1.msra.mxu0 0.0
        %1453 = vmatprep.subr.mxu0 0.0
        %1454 = vmatpush1.msra.mxu0 0.0
        %1455 = vmatprep.subr.mxu0 0.0
        %1456 = vmatpush1.msra.mxu0 0.0
        %1457 = vmatprep.subr.mxu0 0.0
        %1458 = vmatpush1.msra.mxu0 0.0
        %1459 = vmatprep.subr.mxu0 0.0
        %1460 = vmatpush1.msra.mxu0 0.0
        %1461 = vmatprep.subr.mxu0 0.0
        %1462 = vmatpush1.msra.mxu0 0.0
        %1463 = vmatprep.subr.mxu0 0.0
        %1464 = vmatpush1.msra.mxu0 0.0
        %1465 = vmatprep.subr.mxu0 0.0
        %1466 = vmatpush1.msra.mxu0 0.0
        %1467 = vmatprep.subr.mxu0 0.0
        %1468 = vmatpush1.msra.mxu0 0.0
        %1469 = vmatprep.subr.mxu0 0.0
        %1470 = vmatpush1.msra.mxu0 0.0
        %1471 = vmatprep.subr.mxu0 0.0
        %1472 = vmatpush1.msra.mxu0 0.0
        %1473 = vmatprep.subr.mxu0 0.0
        %1474 = vmatpush1.msra.mxu0 0.0
        %1475 = vmatprep.subr.mxu0 0.0
        %1476 = vmatpush1.msra.mxu0 0.0
        %1477 = vmatprep.mubr.f32.mxu0 0.0
        %1478 = vmatmul.mubr.f32.gmra.mrb[0].mxu0 %v1180
        %v1479 = vpop.f32.mrb[0].mxu0
        %v1480 = vadd.f32 %v1375, %v1479
        %v1481 = vpop.f32.mrb[0].mxu0
        %1482 = vmatprep.mubr.f32.mxu0 0.0
        %1483 = vmatmul.mubr.f32.gmra.mrb[0].mxu0 %v1183
        %v1484 = vpop.f32.mrb[0].mxu0
        %v1485 = vadd.f32 %v1380, %v1484
        %v1486 = vpop.f32.mrb[0].mxu0
        %1487 = vmatprep.mubr.f32.mxu0 0.0
        %1488 = vmatmul.mubr.f32.gmra.mrb[0].mxu0 %v1186
        %v1489 = vpop.f32.mrb[0].mxu0
        %v1490 = vadd.f32 %v1385, %v1489
        %v1491 = vpop.f32.mrb[0].mxu0
        %1492 = vmatprep.mubr.f32.mxu0 0.0
        %1493 = vmatmul.mubr.f32.gmra.mrb[0].mxu0 %v1189
        %v1494 = vpop.f32.mrb[0].mxu0
        %v1495 = vadd.f32 %v1390, %v1494
        %v1496 = vpop.f32.mrb[0].mxu0
        %1497 = vmatprep.mubr.f32.mxu0 0.0
        %1498 = vmatmul.mubr.f32.gmra.mrb[0].mxu0 %v1192
        %v1499 = vpop.f32.mrb[0].mxu0
        %v1500 = vadd.f32 %v1395, %v1499
        %v1501 = vpop.f32.mrb[0].mxu0
        %1502 = vmatprep.mubr.f32.mxu0 0.0
        %1503 = vmatmul.mubr.f32.gmra.mrb[0].mxu0 %v1195
        %v1504 = vpop.f32.mrb[0].mxu0
        %v1505 = vadd.f32 %v1400, %v1504
        %v1506 = vpop.f32.mrb[0].mxu0
        %1507 = vmatprep.mubr.f32.mxu0 0.0
        %1508 = vmatmul.mubr.f32.gmra.mrb[0].mxu0 %v1198
        %v1509 = vpop.f32.mrb[0].mxu0
        %v1510 = vadd.f32 %v1405, %v1509
        %v1511 = vpop.f32.mrb[0].mxu0
        %1512 = vmatprep.mubr.f32.mxu0 0.0
        %1513 = vmatmul.mubr.f32.gmra.mrb[0].mxu0 %v1201
        %v1514 = vpop.f32.mrb[0].mxu0
        %v1515 = vadd.f32 %v1410, %v1514
        %v1516 = vpop.f32.mrb[0].mxu0
        %1517 = vdwg.mxu0
        %v1518 = vmax.f32 %v1480, 0.0
        %v1519 = vmax.f32 %v1485, 0.0
        %v1520 = vmax.f32 %v1490, 0.0
        %v1521 = vmax.f32 %v1495, 0.0
        %v1522 = vmax.f32 %v1500, 0.0
        %v1523 = vmax.f32 %v1505, 0.0
        %v1524 = vmax.f32 %v1510, 0.0
        %v1525 = vmax.f32 %v1515, 0.0
        %v1526 = vmax.f32 %v1518, %v1520
        %v1527 = vmax.f32 %v1519, %v1521
        %v1530 = vcombine.high %v1526, %v1526
        %v1532 = vunpack.c.l.s4 1983009808
        %v1533 = vunpack.c.0.s8 %v1532
        %v1534 = vlaneseq
        %v1535 = vshrl.u32 %v1534, 7
        %v1536 = vsub.s32 %v1533, %v1535
        %v1537 = vrot.slane %v1526, %v1536
        %v1539 = vunpack.c.l.s4 1983009808
        %v1540 = vunpack.c.0.s8 %v1539
        %v1541 = vlaneseq
        %v1542 = vshrl.u32 %v1541, 7
        %v1543 = vsub.s32 %v1540, %v1542
        %v1544 = vrot.slane %v1530, %v1543
        %v1545 = vcombine.high %v1537, %v1537
        %v1546 = vcombine.high %v1544, %v1544
        %v1547 = vcombine.high %v1527, %v1527
        %v1549 = vunpack.c.l.s4 1983009808
        %v1550 = vunpack.c.0.s8 %v1549
        %v1551 = vlaneseq
        %v1552 = vshrl.u32 %v1551, 7
        %v1553 = vsub.s32 %v1550, %v1552
        %v1554 = vrot.slane %v1527, %v1553
        %v1556 = vunpack.c.l.s4 1983009808
        %v1557 = vunpack.c.0.s8 %v1556
        %v1558 = vlaneseq
        %v1559 = vshrl.u32 %v1558, 7
        %v1560 = vsub.s32 %v1557, %v1559
        %v1561 = vrot.slane %v1547, %v1560
        %v1562 = vcombine.high %v1554, %v1554
        %v1563 = vcombine.high %v1561, %v1561
        %vm1572 = vcmask 1041408
        %v1573 = vsel %vm1572, %v1537, -inf
        %v1574 = vrot.slane %v1573, 4
        %v1575 = vmax.f32 %v1573, %v1574
        %v1576 = vrot.slane %v1575, 2
        %v1577 = vmax.f32 %v1575, %v1576
        %v1578 = vrot.slane %v1577, 1
        %v1579 = vmax.f32 %v1577, %v1578
        %v1580 = vsel %vm1572, %v1545, -inf
        %v1581 = vrot.slane %v1580, 4
        %v1582 = vmax.f32 %v1580, %v1581
        %v1583 = vrot.slane %v1582, 2
        %v1584 = vmax.f32 %v1582, %v1583
        %v1585 = vrot.slane %v1584, 1
        %v1586 = vmax.f32 %v1584, %v1585
        %v1587 = vsel %vm1572, %v1544, -inf
        %v1588 = vrot.slane %v1587, 4
        %v1589 = vmax.f32 %v1587, %v1588
        %v1590 = vrot.slane %v1589, 2
        %v1591 = vmax.f32 %v1589, %v1590
        %v1592 = vrot.slane %v1591, 1
        %v1593 = vmax.f32 %v1591, %v1592
        %v1594 = vsel %vm1572, %v1546, -inf
        %v1595 = vrot.slane %v1594, 4
        %v1596 = vmax.f32 %v1594, %v1595
        %v1597 = vrot.slane %v1596, 2
        %v1598 = vmax.f32 %v1596, %v1597
        %v1599 = vrot.slane %v1598, 1
        %v1600 = vmax.f32 %v1598, %v1599
        %v1601 = vsel %vm1572, %v1554, -inf
        %v1602 = vrot.slane %v1601, 4
        %v1603 = vmax.f32 %v1601, %v1602
        %v1604 = vrot.slane %v1603, 2
        %v1605 = vmax.f32 %v1603, %v1604
        %v1606 = vrot.slane %v1605, 1
        %v1607 = vmax.f32 %v1605, %v1606
        %v1608 = vsel %vm1572, %v1562, -inf
        %v1609 = vrot.slane %v1608, 4
        %v1610 = vmax.f32 %v1608, %v1609
        %v1611 = vrot.slane %v1610, 2
        %v1612 = vmax.f32 %v1610, %v1611
        %v1613 = vrot.slane %v1612, 1
        %v1614 = vmax.f32 %v1612, %v1613
        %v1615 = vsel %vm1572, %v1561, -inf
        %v1616 = vrot.slane %v1615, 4
        %v1617 = vmax.f32 %v1615, %v1616
        %v1618 = vrot.slane %v1617, 2
        %v1619 = vmax.f32 %v1617, %v1618
        %v1620 = vrot.slane %v1619, 1
        %v1621 = vmax.f32 %v1619, %v1620
        %v1622 = vsel %vm1572, %v1563, -inf
        %v1623 = vrot.slane %v1622, 4
        %v1624 = vmax.f32 %v1622, %v1623
        %v1625 = vrot.slane %v1624, 2
        %v1626 = vmax.f32 %v1624, %v1625
        %v1627 = vrot.slane %v1626, 1
        %v1628 = vmax.f32 %v1626, %v1627
        %vm1637 = vcmask 1041409
        %v1638 = vsel %vm1637, %v1586, %v1579
        %vm1639 = vcmask 1042434
        %v1640 = vsel %vm1639, %v1593, %v1638
        %vm1641 = vcmask 1043459
        %v1642 = vsel %vm1641, %v1600, %v1640
        %vm1643 = vcmask 1044484
        %v1644 = vsel %vm1643, %v1607, %v1642
        %vm1645 = vcmask 1045509
        %v1646 = vsel %vm1645, %v1614, %v1644
        %vm1647 = vcmask 1046534
        %v1648 = vsel %vm1647, %v1621, %v1646
        %vm1649 = vcmask 1047559
        %v1650 = vsel %vm1649, %v1628, %v1648
        %s1652 = scalar_lea.vmem [#allocation3], 16
        %1653 = vst [vmem:[%s1652 + $0x1] sm:$0xff] %v1650
        %v1654 = vmax.f32 %v1522, %v1524
        %v1655 = vmax.f32 %v1523, %v1525
        %v1658 = vcombine.high %v1654, %v1654
        %v1660 = vunpack.c.l.s4 1983009808
        %v1661 = vunpack.c.0.s8 %v1660
        %v1662 = vlaneseq
        %v1663 = vshrl.u32 %v1662, 7
        %v1664 = vsub.s32 %v1661, %v1663
        %v1665 = vrot.slane %v1654, %v1664
        %v1667 = vunpack.c.l.s4 1983009808
        %v1668 = vunpack.c.0.s8 %v1667
        %v1669 = vlaneseq
        %v1670 = vshrl.u32 %v1669, 7
        %v1671 = vsub.s32 %v1668, %v1670
        %v1672 = vrot.slane %v1658, %v1671
        %v1673 = vcombine.high %v1665, %v1665
        %v1674 = vcombine.high %v1672, %v1672
        %v1675 = vcombine.high %v1655, %v1655
        %v1677 = vunpack.c.l.s4 1983009808
        %v1678 = vunpack.c.0.s8 %v1677
        %v1679 = vlaneseq
        %v1680 = vshrl.u32 %v1679, 7
        %v1681 = vsub.s32 %v1678, %v1680
        %v1682 = vrot.slane %v1655, %v1681
        %v1684 = vunpack.c.l.s4 1983009808
        %v1685 = vunpack.c.0.s8 %v1684
        %v1686 = vlaneseq
        %v1687 = vshrl.u32 %v1686, 7
        %v1688 = vsub.s32 %v1685, %v1687
        %v1689 = vrot.slane %v1675, %v1688
        %v1690 = vcombine.high %v1682, %v1682
        %v1691 = vcombine.high %v1689, %v1689
        %v1700 = vsel %vm1572, %v1665, -inf
        %v1701 = vrot.slane %v1700, 4
        %v1702 = vmax.f32 %v1700, %v1701
        %v1703 = vrot.slane %v1702, 2
        %v1704 = vmax.f32 %v1702, %v1703
        %v1705 = vrot.slane %v1704, 1
        %v1706 = vmax.f32 %v1704, %v1705
        %v1707 = vsel %vm1572, %v1673, -inf
        %v1708 = vrot.slane %v1707, 4
        %v1709 = vmax.f32 %v1707, %v1708
        %v1710 = vrot.slane %v1709, 2
        %v1711 = vmax.f32 %v1709, %v1710
        %v1712 = vrot.slane %v1711, 1
        %v1713 = vmax.f32 %v1711, %v1712
        %v1714 = vsel %vm1572, %v1672, -inf
        %v1715 = vrot.slane %v1714, 4
        %v1716 = vmax.f32 %v1714, %v1715
        %v1717 = vrot.slane %v1716, 2
        %v1718 = vmax.f32 %v1716, %v1717
        %v1719 = vrot.slane %v1718, 1
        %v1720 = vmax.f32 %v1718, %v1719
        %v1721 = vsel %vm1572, %v1674, -inf
        %v1722 = vrot.slane %v1721, 4
        %v1723 = vmax.f32 %v1721, %v1722
        %v1724 = vrot.slane %v1723, 2
        %v1725 = vmax.f32 %v1723, %v1724
        %v1726 = vrot.slane %v1725, 1
        %v1727 = vmax.f32 %v1725, %v1726
        %v1728 = vsel %vm1572, %v1682, -inf
        %v1729 = vrot.slane %v1728, 4
        %v1730 = vmax.f32 %v1728, %v1729
        %v1731 = vrot.slane %v1730, 2
        %v1732 = vmax.f32 %v1730, %v1731
        %v1733 = vrot.slane %v1732, 1
        %v1734 = vmax.f32 %v1732, %v1733
        %v1735 = vsel %vm1572, %v1690, -inf
        %v1736 = vrot.slane %v1735, 4
        %v1737 = vmax.f32 %v1735, %v1736
        %v1738 = vrot.slane %v1737, 2
        %v1739 = vmax.f32 %v1737, %v1738
        %v1740 = vrot.slane %v1739, 1
        %v1741 = vmax.f32 %v1739, %v1740
        %v1742 = vsel %vm1572, %v1689, -inf
        %v1743 = vrot.slane %v1742, 4
        %v1744 = vmax.f32 %v1742, %v1743
        %v1745 = vrot.slane %v1744, 2
        %v1746 = vmax.f32 %v1744, %v1745
        %v1747 = vrot.slane %v1746, 1
        %v1748 = vmax.f32 %v1746, %v1747
        %v1749 = vsel %vm1572, %v1691, -inf
        %v1750 = vrot.slane %v1749, 4
        %v1751 = vmax.f32 %v1749, %v1750
        %v1752 = vrot.slane %v1751, 2
        %v1753 = vmax.f32 %v1751, %v1752
        %v1754 = vrot.slane %v1753, 1
        %v1755 = vmax.f32 %v1753, %v1754
        %v1764 = vsel %vm1637, %v1713, %v1706
        %v1765 = vsel %vm1639, %v1720, %v1764
        %v1766 = vsel %vm1641, %v1727, %v1765
        %v1767 = vsel %vm1643, %v1734, %v1766
        %v1768 = vsel %vm1645, %v1741, %v1767
        %v1769 = vsel %vm1647, %v1748, %v1768
        %v1770 = vsel %vm1649, %v1755, %v1769
        %s1772 = scalar_lea.vmem [#allocation3], 32
        %1773 = vst [vmem:[%s1772 + $0x1] sm:$0xff] %v1770
        %s1774 = scalar_lea.vmem [#allocation2], 96
        %v1775 = vld [vmem:[%s1774] sm:$0xff]
        %v1776 = vld [vmem:[%s1774 + $0x8] sm:$0xff]
        %v1777 = vld [vmem:[%s1774 + $0x18] sm:$0xff]
        %v1778 = vld [vmem:[%s1774 + $0x20] sm:$0xff]
        %v1779 = vld [vmem:[%s1774 + $0x30] sm:$0xff]
        %v1780 = vld [vmem:[%s1774 + $0x38] sm:$0xff]
        %v1781 = vld [vmem:[%s1774 + $0x48] sm:$0xff]
        %v1782 = vld [vmem:[%s1774 + $0x50] sm:$0xff]
        %v1783 = vld [vmem:[%s1774 + $0x1] sm:$0xff]
        %v1784 = vld [vmem:[%s1774 + $0x9] sm:$0xff]
        %v1785 = vld [vmem:[%s1774 + $0x19] sm:$0xff]
        %v1786 = vld [vmem:[%s1774 + $0x21] sm:$0xff]
        %v1787 = vld [vmem:[%s1774 + $0x31] sm:$0xff]
        %v1788 = vld [vmem:[%s1774 + $0x39] sm:$0xff]
        %v1789 = vld [vmem:[%s1774 + $0x49] sm:$0xff]
        %v1790 = vld [vmem:[%s1774 + $0x51] sm:$0xff]
        %v1791 = vld [vmem:[%s1774 + $0x2] sm:$0xff]
        %v1792 = vld [vmem:[%s1774 + $0xa] sm:$0xff]
        %v1793 = vld [vmem:[%s1774 + $0x1a] sm:$0xff]
        %v1794 = vld [vmem:[%s1774 + $0x22] sm:$0xff]
        %v1795 = vld [vmem:[%s1774 + $0x32] sm:$0xff]
        %v1796 = vld [vmem:[%s1774 + $0x3a] sm:$0xff]
        %v1797 = vld [vmem:[%s1774 + $0x4a] sm:$0xff]
        %v1798 = vld [vmem:[%s1774 + $0x52] sm:$0xff]
        %s1799 = scalar_lea.vmem [#allocation2], 120
        %v1800 = vld [vmem:[%s1799] sm:$0xff]
        %v1801 = vld [vmem:[%s1799 + $0x8] sm:$0xff]
        %v1802 = vld [vmem:[%s1799 + $0x18] sm:$0xff]
        %v1803 = vld [vmem:[%s1799 + $0x20] sm:$0xff]
        %v1804 = vld [vmem:[%s1799 + $0x30] sm:$0xff]
        %v1805 = vld [vmem:[%s1799 + $0x38] sm:$0xff]
        %v1806 = vld [vmem:[%s1799 + $0x48] sm:$0xff]
        %v1807 = vld [vmem:[%s1799 + $0x50] sm:$0xff]
        %v1808 = vld [vmem:[%s1799 + $0x1] sm:$0xff]
        %v1809 = vld [vmem:[%s1799 + $0x9] sm:$0xff]
        %v1810 = vld [vmem:[%s1799 + $0x19] sm:$0xff]
        %v1811 = vld [vmem:[%s1799 + $0x21] sm:$0xff]
        %v1812 = vld [vmem:[%s1799 + $0x31] sm:$0xff]
        %v1813 = vld [vmem:[%s1799 + $0x39] sm:$0xff]
        %v1814 = vld [vmem:[%s1799 + $0x49] sm:$0xff]
        %v1815 = vld [vmem:[%s1799 + $0x51] sm:$0xff]
        %v1816 = vld [vmem:[%s1799 + $0x2] sm:$0xff]
        %v1817 = vld [vmem:[%s1799 + $0xa] sm:$0xff]
        %v1818 = vld [vmem:[%s1799 + $0x1a] sm:$0xff]
        %v1819 = vld [vmem:[%s1799 + $0x22] sm:$0xff]
        %v1820 = vld [vmem:[%s1799 + $0x32] sm:$0xff]
        %v1821 = vld [vmem:[%s1799 + $0x3a] sm:$0xff]
        %v1822 = vld [vmem:[%s1799 + $0x4a] sm:$0xff]
        %v1823 = vld [vmem:[%s1799 + $0x52] sm:$0xff]
        %s1824 = scalar_lea.vmem [#allocation2], 144
        %v1825 = vld [vmem:[%s1824] sm:$0xff]
        %v1826 = vld [vmem:[%s1824 + $0x8] sm:$0xff]
        %v1827 = vld [vmem:[%s1824 + $0x18] sm:$0xff]
        %v1828 = vld [vmem:[%s1824 + $0x20] sm:$0xff]
        %v1829 = vld [vmem:[%s1824 + $0x30] sm:$0xff]
        %v1830 = vld [vmem:[%s1824 + $0x38] sm:$0xff]
        %v1831 = vld [vmem:[%s1824 + $0x48] sm:$0xff]
        %v1832 = vld [vmem:[%s1824 + $0x50] sm:$0xff]
        %v1833 = vld [vmem:[%s1824 + $0x1] sm:$0xff]
        %v1834 = vld [vmem:[%s1824 + $0x9] sm:$0xff]
        %v1835 = vld [vmem:[%s1824 + $0x19] sm:$0xff]
        %v1836 = vld [vmem:[%s1824 + $0x21] sm:$0xff]
        %v1837 = vld [vmem:[%s1824 + $0x31] sm:$0xff]
        %v1838 = vld [vmem:[%s1824 + $0x39] sm:$0xff]
        %v1839 = vld [vmem:[%s1824 + $0x49] sm:$0xff]
        %v1840 = vld [vmem:[%s1824 + $0x51] sm:$0xff]
        %v1841 = vld [vmem:[%s1824 + $0x2] sm:$0xff]
        %v1842 = vld [vmem:[%s1824 + $0xa] sm:$0xff]
        %v1843 = vld [vmem:[%s1824 + $0x1a] sm:$0xff]
        %v1844 = vld [vmem:[%s1824 + $0x22] sm:$0xff]
        %v1845 = vld [vmem:[%s1824 + $0x32] sm:$0xff]
        %v1846 = vld [vmem:[%s1824 + $0x3a] sm:$0xff]
        %v1847 = vld [vmem:[%s1824 + $0x4a] sm:$0xff]
        %v1848 = vld [vmem:[%s1824 + $0x52] sm:$0xff]
        %1857 = vrot.lane.b32.xlu0 %v1783, 64
        %v1858 = vpop.permute.xlu0 %1857
        %1859 = vrot.lane.b32.xlu0 %v1784, 64
        %v1860 = vpop.permute.xlu0 %1859
        %1861 = vrot.lane.b32.xlu0 %v1785, 64
        %v1862 = vpop.permute.xlu0 %1861
        %1863 = vrot.lane.b32.xlu0 %v1786, 64
        %v1864 = vpop.permute.xlu0 %1863
        %1865 = vrot.lane.b32.xlu0 %v1787, 64
        %v1866 = vpop.permute.xlu0 %1865
        %1867 = vrot.lane.b32.xlu0 %v1788, 64
        %v1868 = vpop.permute.xlu0 %1867
        %1869 = vrot.lane.b32.xlu0 %v1789, 64
        %v1870 = vpop.permute.xlu0 %1869
        %1871 = vrot.lane.b32.xlu0 %v1790, 64
        %v1872 = vpop.permute.xlu0 %1871
        %1889 = vrot.lane.b32.xlu0 %v1800, 64
        %v1890 = vpop.permute.xlu0 %1889
        %1891 = vrot.lane.b32.xlu0 %v1801, 64
        %v1892 = vpop.permute.xlu0 %1891
        %1893 = vrot.lane.b32.xlu0 %v1802, 64
        %v1894 = vpop.permute.xlu0 %1893
        %1895 = vrot.lane.b32.xlu0 %v1803, 64
        %v1896 = vpop.permute.xlu0 %1895
        %1897 = vrot.lane.b32.xlu0 %v1804, 64
        %v1898 = vpop.permute.xlu0 %1897
        %1899 = vrot.lane.b32.xlu0 %v1805, 64
        %v1900 = vpop.permute.xlu0 %1899
        %1901 = vrot.lane.b32.xlu0 %v1806, 64
        %v1902 = vpop.permute.xlu0 %1901
        %1903 = vrot.lane.b32.xlu0 %v1807, 64
        %v1904 = vpop.permute.xlu0 %1903
        %1921 = vrot.lane.b32.xlu0 %v1816, 64
        %v1922 = vpop.permute.xlu0 %1921
        %1923 = vrot.lane.b32.xlu0 %v1817, 64
        %v1924 = vpop.permute.xlu0 %1923
        %1925 = vrot.lane.b32.xlu0 %v1818, 64
        %v1926 = vpop.permute.xlu0 %1925
        %1927 = vrot.lane.b32.xlu0 %v1819, 64
        %v1928 = vpop.permute.xlu0 %1927
        %1929 = vrot.lane.b32.xlu0 %v1820, 64
        %v1930 = vpop.permute.xlu0 %1929
        %1931 = vrot.lane.b32.xlu0 %v1821, 64
        %v1932 = vpop.permute.xlu0 %1931
        %1933 = vrot.lane.b32.xlu0 %v1822, 64
        %v1934 = vpop.permute.xlu0 %1933
        %1935 = vrot.lane.b32.xlu0 %v1823, 64
        %v1936 = vpop.permute.xlu0 %1935
        %1953 = vrot.lane.b32.xlu0 %v1833, 64
        %v1954 = vpop.permute.xlu0 %1953
        %1955 = vrot.lane.b32.xlu0 %v1834, 64
        %v1956 = vpop.permute.xlu0 %1955
        %1957 = vrot.lane.b32.xlu0 %v1835, 64
        %v1958 = vpop.permute.xlu0 %1957
        %1959 = vrot.lane.b32.xlu0 %v1836, 64
        %v1960 = vpop.permute.xlu0 %1959
        %1961 = vrot.lane.b32.xlu0 %v1837, 64
        %v1962 = vpop.permute.xlu0 %1961
        %1963 = vrot.lane.b32.xlu0 %v1838, 64
        %v1964 = vpop.permute.xlu0 %1963
        %1965 = vrot.lane.b32.xlu0 %v1839, 64
        %v1966 = vpop.permute.xlu0 %1965
        %1967 = vrot.lane.b32.xlu0 %v1840, 64
        %v1968 = vpop.permute.xlu0 %1967
        %v1977 = vsel %vm361, %v1775, %v1858
        %v1978 = vsel %vm361, %v1776, %v1860
        %v1979 = vsel %vm361, %v1777, %v1862
        %v1980 = vsel %vm361, %v1778, %v1864
        %v1981 = vsel %vm361, %v1779, %v1866
        %v1982 = vsel %vm361, %v1780, %v1868
        %v1983 = vsel %vm361, %v1781, %v1870
        %v1984 = vsel %vm361, %v1782, %v1872
        %v1985 = vsel %vm361, %v1791, %v1890
        %v1986 = vsel %vm361, %v1792, %v1892
        %v1987 = vsel %vm361, %v1793, %v1894
        %v1988 = vsel %vm361, %v1794, %v1896
        %v1989 = vsel %vm361, %v1795, %v1898
        %v1990 = vsel %vm361, %v1796, %v1900
        %v1991 = vsel %vm361, %v1797, %v1902
        %v1992 = vsel %vm361, %v1798, %v1904
        %v1993 = vsel %vm361, %v1808, %v1922
        %v1994 = vsel %vm361, %v1809, %v1924
        %v1995 = vsel %vm361, %v1810, %v1926
        %v1996 = vsel %vm361, %v1811, %v1928
        %v1997 = vsel %vm361, %v1812, %v1930
        %v1998 = vsel %vm361, %v1813, %v1932
        %v1999 = vsel %vm361, %v1814, %v1934
        %v2000 = vsel %vm361, %v1815, %v1936
        %v2001 = vsel %vm361, %v1825, %v1954
        %v2002 = vsel %vm361, %v1826, %v1956
        %v2003 = vsel %vm361, %v1827, %v1958
        %v2004 = vsel %vm361, %v1828, %v1960
        %v2005 = vsel %vm361, %v1829, %v1962
        %v2006 = vsel %vm361, %v1830, %v1964
        %v2007 = vsel %vm361, %v1831, %v1966
        %v2008 = vsel %vm361, %v1832, %v1968
        %v2009 = vld [vmem:[#allocation8] sm:$0xff]
        %v2010 = vld [vmem:[#allocation8 + $0x8] sm:$0xff]
        %v2011 = vld [vmem:[#allocation8 + $0x10] sm:$0xff]
        %v2012 = vld [vmem:[#allocation8 + $0x18] sm:$0xff]
        %v2013 = vld [vmem:[#allocation8 + $0x20] sm:$0xff]
        %v2014 = vld [vmem:[#allocation8 + $0x28] sm:$0xff]
        %v2015 = vld [vmem:[#allocation8 + $0x30] sm:$0xff]
        %v2016 = vld [vmem:[#allocation8 + $0x38] sm:$0xff]
        %v2017 = vld [vmem:[#allocation8 + $0x40] sm:$0xff]
        %v2018 = vld [vmem:[#allocation8 + $0x48] sm:$0xff]
        %v2019 = vld [vmem:[#allocation8 + $0x50] sm:$0xff]
        %v2020 = vld [vmem:[#allocation8 + $0x58] sm:$0xff]
        %v2021 = vld [vmem:[#allocation8 + $0x60] sm:$0xff]
        %v2022 = vld [vmem:[#allocation8 + $0x68] sm:$0xff]
        %v2023 = vld [vmem:[#allocation8 + $0x70] sm:$0xff]
        %v2024 = vld [vmem:[#allocation8 + $0x78] sm:$0xff]
        %v2025 = vld [vmem:[#allocation8 + $0x80] sm:$0xff]
        %v2026 = vld [vmem:[#allocation8 + $0x88] sm:$0xff]
        %v2027 = vld [vmem:[#allocation8 + $0x90] sm:$0xff]
        %v2028 = vld [vmem:[#allocation8 + $0x98] sm:$0xff]
        %v2029 = vld [vmem:[#allocation8 + $0xa0] sm:$0xff]
        %v2030 = vld [vmem:[#allocation8 + $0xa8] sm:$0xff]
        %v2031 = vld [vmem:[#allocation8 + $0xb0] sm:$0xff]
        %v2032 = vld [vmem:[#allocation8 + $0xb8] sm:$0xff]
        %v2033 = vld [vmem:[#allocation8 + $0xc0] sm:$0xff]
        %v2034 = vld [vmem:[#allocation8 + $0xc8] sm:$0xff]
        %v2035 = vld [vmem:[#allocation8 + $0xd0] sm:$0xff]
        %v2036 = vld [vmem:[#allocation8 + $0xd8] sm:$0xff]
        %v2037 = vld [vmem:[#allocation8 + $0xe0] sm:$0xff]
        %v2038 = vld [vmem:[#allocation8 + $0xe8] sm:$0xff]
        %v2039 = vld [vmem:[#allocation8 + $0xf0] sm:$0xff]
        %v2040 = vld [vmem:[#allocation8 + $0xf8] sm:$0xff]
        %v2041 = vld [vmem:[#allocation8 + $0x100] sm:$0xff]
        %v2042 = vld [vmem:[#allocation8 + $0x108] sm:$0xff]
        %v2043 = vld [vmem:[#allocation8 + $0x110] sm:$0xff]
        %v2044 = vld [vmem:[#allocation8 + $0x118] sm:$0xff]
        %v2045 = vld [vmem:[#allocation8 + $0x120] sm:$0xff]
        %v2046 = vld [vmem:[#allocation8 + $0x128] sm:$0xff]
        %v2047 = vld [vmem:[#allocation8 + $0x130] sm:$0xff]
        %v2048 = vld [vmem:[#allocation8 + $0x138] sm:$0xff]
        %v2049 = vld [vmem:[#allocation8 + $0x140] sm:$0xff]
        %v2050 = vld [vmem:[#allocation8 + $0x148] sm:$0xff]
        %v2051 = vld [vmem:[#allocation8 + $0x150] sm:$0xff]
        %v2052 = vld [vmem:[#allocation8 + $0x158] sm:$0xff]
        %v2053 = vld [vmem:[#allocation8 + $0x160] sm:$0xff]
        %v2054 = vld [vmem:[#allocation8 + $0x168] sm:$0xff]
        %v2055 = vld [vmem:[#allocation8 + $0x170] sm:$0xff]
        %v2056 = vld [vmem:[#allocation8 + $0x178] sm:$0xff]
        %v2057 = vld [vmem:[#allocation8 + $0x180] sm:$0xff]
        %v2058 = vld [vmem:[#allocation8 + $0x188] sm:$0xff]
        %v2059 = vld [vmem:[#allocation8 + $0x190] sm:$0xff]
        %v2060 = vld [vmem:[#allocation8 + $0x198] sm:$0xff]
        %v2061 = vld [vmem:[#allocation8 + $0x1a0] sm:$0xff]
        %v2062 = vld [vmem:[#allocation8 + $0x1a8] sm:$0xff]
        %v2063 = vld [vmem:[#allocation8 + $0x1b0] sm:$0xff]
        %v2064 = vld [vmem:[#allocation8 + $0x1b8] sm:$0xff]
        %v2065 = vld [vmem:[#allocation8 + $0x1c0] sm:$0xff]
        %v2066 = vld [vmem:[#allocation8 + $0x1c8] sm:$0xff]
        %v2067 = vld [vmem:[#allocation8 + $0x1d0] sm:$0xff]
        %v2068 = vld [vmem:[#allocation8 + $0x1d8] sm:$0xff]
        %v2069 = vld [vmem:[#allocation8 + $0x1e0] sm:$0xff]
        %v2070 = vld [vmem:[#allocation8 + $0x1e8] sm:$0xff]
        %v2071 = vld [vmem:[#allocation8 + $0x1f0] sm:$0xff]
        %v2072 = vld [vmem:[#allocation8 + $0x1f8] sm:$0xff]
        %v2073 = vld [vmem:[#allocation8 + $0x200] sm:$0xff]
        %v2074 = vld [vmem:[#allocation8 + $0x208] sm:$0xff]
        %v2075 = vld [vmem:[#allocation8 + $0x210] sm:$0xff]
        %v2076 = vld [vmem:[#allocation8 + $0x218] sm:$0xff]
        %v2077 = vld [vmem:[#allocation8 + $0x220] sm:$0xff]
        %v2078 = vld [vmem:[#allocation8 + $0x228] sm:$0xff]
        %v2079 = vld [vmem:[#allocation8 + $0x230] sm:$0xff]
        %v2080 = vld [vmem:[#allocation8 + $0x238] sm:$0xff]
        %v2081 = vld [vmem:[#allocation9] sm:$0x1]
        %v2083 = vlaneseq
        %v2084 = vshrl.u32 %v2083, 7
        %v2085 = vsub.s32 0, %v2084
        %v2086 = vrot.slane %v2081, %v2085
        %v2089 = vsel %vm361, %v1841, 0
        %v2092 = vsel %vm361, %v1842, 0
        %v2095 = vsel %vm361, %v1843, 0
        %v2098 = vsel %vm361, %v1844, 0
        %v2101 = vsel %vm361, %v1845, 0
        %v2104 = vsel %vm361, %v1846, 0
        %v2107 = vsel %vm361, %v1847, 0
        %v2110 = vsel %vm361, %v1848, 0
        %2112 = vmatprep.subr.mxu0 0.0
        %2113 = vmatpush1.msra.mxu0 %v2009
        %2114 = vmatprep.subr.mxu0 0.0
        %2115 = vmatpush1.msra.mxu0 %v2010
        %2116 = vmatprep.subr.mxu0 0.0
        %2117 = vmatpush1.msra.mxu0 %v2011
        %2118 = vmatprep.subr.mxu0 0.0
        %2119 = vmatpush1.msra.mxu0 %v2012
        %2120 = vmatprep.subr.mxu0 0.0
        %2121 = vmatpush1.msra.mxu0 %v2013
        %2122 = vmatprep.subr.mxu0 0.0
        %2123 = vmatpush1.msra.mxu0 %v2014
        %2124 = vmatprep.subr.mxu0 0.0
        %2125 = vmatpush1.msra.mxu0 %v2015
        %2126 = vmatprep.subr.mxu0 0.0
        %2127 = vmatpush1.msra.mxu0 %v2016
        %2128 = vmatprep.subr.mxu0 0.0
        %2129 = vmatpush1.msra.mxu0 %v2017
        %2130 = vmatprep.subr.mxu0 0.0
        %2131 = vmatpush1.msra.mxu0 %v2018
        %2132 = vmatprep.subr.mxu0 0.0
        %2133 = vmatpush1.msra.mxu0 %v2019
        %2134 = vmatprep.subr.mxu0 0.0
        %2135 = vmatpush1.msra.mxu0 %v2020
        %2136 = vmatprep.subr.mxu0 0.0
        %2137 = vmatpush1.msra.mxu0 %v2021
        %2138 = vmatprep.subr.mxu0 0.0
        %2139 = vmatpush1.msra.mxu0 %v2022
        %2140 = vmatprep.subr.mxu0 0.0
        %2141 = vmatpush1.msra.mxu0 %v2023
        %2142 = vmatprep.subr.mxu0 0.0
        %2143 = vmatpush1.msra.mxu0 %v2024
        %2144 = vmatprep.subr.mxu0 0.0
        %2145 = vmatpush1.msra.mxu0 %v2025
        %2146 = vmatprep.subr.mxu0 0.0
        %2147 = vmatpush1.msra.mxu0 %v2026
        %2148 = vmatprep.subr.mxu0 0.0
        %2149 = vmatpush1.msra.mxu0 %v2027
        %2150 = vmatprep.subr.mxu0 0.0
        %2151 = vmatpush1.msra.mxu0 %v2028
        %2152 = vmatprep.subr.mxu0 0.0
        %2153 = vmatpush1.msra.mxu0 %v2029
        %2154 = vmatprep.subr.mxu0 0.0
        %2155 = vmatpush1.msra.mxu0 %v2030
        %2156 = vmatprep.subr.mxu0 0.0
        %2157 = vmatpush1.msra.mxu0 %v2031
        %2158 = vmatprep.subr.mxu0 0.0
        %2159 = vmatpush1.msra.mxu0 %v2032
        %2160 = vmatprep.subr.mxu0 0.0
        %2161 = vmatpush1.msra.mxu0 %v2033
        %2162 = vmatprep.subr.mxu0 0.0
        %2163 = vmatpush1.msra.mxu0 %v2034
        %2164 = vmatprep.subr.mxu0 0.0
        %2165 = vmatpush1.msra.mxu0 %v2035
        %2166 = vmatprep.subr.mxu0 0.0
        %2167 = vmatpush1.msra.mxu0 %v2036
        %2168 = vmatprep.subr.mxu0 0.0
        %2169 = vmatpush1.msra.mxu0 %v2037
        %2170 = vmatprep.subr.mxu0 0.0
        %2171 = vmatpush1.msra.mxu0 %v2038
        %2172 = vmatprep.subr.mxu0 0.0
        %2173 = vmatpush1.msra.mxu0 %v2039
        %2174 = vmatprep.subr.mxu0 0.0
        %2175 = vmatpush1.msra.mxu0 %v2040
        %2176 = vmatprep.mubr.f32.mxu0 %v1985
        %2177 = vmatmul.mubr.f32.gmra.mrb[0].mxu0 %v1977
        %v2178 = vpop.f32.mrb[0].mxu0
        %v2179 = vadd.f32 %v2086, %v2178
        %v2180 = vpop.f32.mrb[0].mxu0
        %2181 = vmatprep.mubr.f32.mxu0 %v1986
        %2182 = vmatmul.mubr.f32.gmra.mrb[0].mxu0 %v1978
        %v2183 = vpop.f32.mrb[0].mxu0
        %v2184 = vadd.f32 %v2086, %v2183
        %v2185 = vpop.f32.mrb[0].mxu0
        %2186 = vmatprep.mubr.f32.mxu0 %v1987
        %2187 = vmatmul.mubr.f32.gmra.mrb[0].mxu0 %v1979
        %v2188 = vpop.f32.mrb[0].mxu0
        %v2189 = vadd.f32 %v2086, %v2188
        %v2190 = vpop.f32.mrb[0].mxu0
        %2191 = vmatprep.mubr.f32.mxu0 %v1988
        %2192 = vmatmul.mubr.f32.gmra.mrb[0].mxu0 %v1980
        %v2193 = vpop.f32.mrb[0].mxu0
        %v2194 = vadd.f32 %v2086, %v2193
        %v2195 = vpop.f32.mrb[0].mxu0
        %2196 = vmatprep.mubr.f32.mxu0 %v1989
        %2197 = vmatmul.mubr.f32.gmra.mrb[0].mxu0 %v1981
        %v2198 = vpop.f32.mrb[0].mxu0
        %v2199 = vadd.f32 %v2086, %v2198
        %v2200 = vpop.f32.mrb[0].mxu0
        %2201 = vmatprep.mubr.f32.mxu0 %v1990
        %2202 = vmatmul.mubr.f32.gmra.mrb[0].mxu0 %v1982
        %v2203 = vpop.f32.mrb[0].mxu0
        %v2204 = vadd.f32 %v2086, %v2203
        %v2205 = vpop.f32.mrb[0].mxu0
        %2206 = vmatprep.mubr.f32.mxu0 %v1991
        %2207 = vmatmul.mubr.f32.gmra.mrb[0].mxu0 %v1983
        %v2208 = vpop.f32.mrb[0].mxu0
        %v2209 = vadd.f32 %v2086, %v2208
        %v2210 = vpop.f32.mrb[0].mxu0
        %2211 = vmatprep.mubr.f32.mxu0 %v1992
        %2212 = vmatmul.mubr.f32.gmra.mrb[0].mxu0 %v1984
        %v2213 = vpop.f32.mrb[0].mxu0
        %v2214 = vadd.f32 %v2086, %v2213
        %v2215 = vpop.f32.mrb[0].mxu0
        %2216 = vdwg.mxu0
        %2217 = vmatprep.subr.mxu0 0.0
        %2218 = vmatpush1.msra.mxu0 %v2041
        %2219 = vmatprep.subr.mxu0 0.0
        %2220 = vmatpush1.msra.mxu0 %v2042
        %2221 = vmatprep.subr.mxu0 0.0
        %2222 = vmatpush1.msra.mxu0 %v2043
        %2223 = vmatprep.subr.mxu0 0.0
        %2224 = vmatpush1.msra.mxu0 %v2044
        %2225 = vmatprep.subr.mxu0 0.0
        %2226 = vmatpush1.msra.mxu0 %v2045
        %2227 = vmatprep.subr.mxu0 0.0
        %2228 = vmatpush1.msra.mxu0 %v2046
        %2229 = vmatprep.subr.mxu0 0.0
        %2230 = vmatpush1.msra.mxu0 %v2047
        %2231 = vmatprep.subr.mxu0 0.0
        %2232 = vmatpush1.msra.mxu0 %v2048
        %2233 = vmatprep.subr.mxu0 0.0
        %2234 = vmatpush1.msra.mxu0 %v2049
        %2235 = vmatprep.subr.mxu0 0.0
        %2236 = vmatpush1.msra.mxu0 %v2050
        %2237 = vmatprep.subr.mxu0 0.0
        %2238 = vmatpush1.msra.mxu0 %v2051
        %2239 = vmatprep.subr.mxu0 0.0
        %2240 = vmatpush1.msra.mxu0 %v2052
        %2241 = vmatprep.subr.mxu0 0.0
        %2242 = vmatpush1.msra.mxu0 %v2053
        %2243 = vmatprep.subr.mxu0 0.0
        %2244 = vmatpush1.msra.mxu0 %v2054
        %2245 = vmatprep.subr.mxu0 0.0
        %2246 = vmatpush1.msra.mxu0 %v2055
        %2247 = vmatprep.subr.mxu0 0.0
        %2248 = vmatpush1.msra.mxu0 %v2056
        %2249 = vmatprep.subr.mxu0 0.0
        %2250 = vmatpush1.msra.mxu0 %v2057
        %2251 = vmatprep.subr.mxu0 0.0
        %2252 = vmatpush1.msra.mxu0 %v2058
        %2253 = vmatprep.subr.mxu0 0.0
        %2254 = vmatpush1.msra.mxu0 %v2059
        %2255 = vmatprep.subr.mxu0 0.0
        %2256 = vmatpush1.msra.mxu0 %v2060
        %2257 = vmatprep.subr.mxu0 0.0
        %2258 = vmatpush1.msra.mxu0 %v2061
        %2259 = vmatprep.subr.mxu0 0.0
        %2260 = vmatpush1.msra.mxu0 %v2062
        %2261 = vmatprep.subr.mxu0 0.0
        %2262 = vmatpush1.msra.mxu0 %v2063
        %2263 = vmatprep.subr.mxu0 0.0
        %2264 = vmatpush1.msra.mxu0 %v2064
        %2265 = vmatprep.subr.mxu0 0.0
        %2266 = vmatpush1.msra.mxu0 %v2065
        %2267 = vmatprep.subr.mxu0 0.0
        %2268 = vmatpush1.msra.mxu0 %v2066
        %2269 = vmatprep.subr.mxu0 0.0
        %2270 = vmatpush1.msra.mxu0 %v2067
        %2271 = vmatprep.subr.mxu0 0.0
        %2272 = vmatpush1.msra.mxu0 %v2068
        %2273 = vmatprep.subr.mxu0 0.0
        %2274 = vmatpush1.msra.mxu0 %v2069
        %2275 = vmatprep.subr.mxu0 0.0
        %2276 = vmatpush1.msra.mxu0 %v2070
        %2277 = vmatprep.subr.mxu0 0.0
        %2278 = vmatpush1.msra.mxu0 %v2071
        %2279 = vmatprep.subr.mxu0 0.0
        %2280 = vmatpush1.msra.mxu0 %v2072
        %2281 = vmatprep.mubr.f32.mxu0 %v2001
        %2282 = vmatmul.mubr.f32.gmra.mrb[0].mxu0 %v1993
        %v2283 = vpop.f32.mrb[0].mxu0
        %v2284 = vadd.f32 %v2179, %v2283
        %v2285 = vpop.f32.mrb[0].mxu0
        %2286 = vmatprep.mubr.f32.mxu0 %v2002
        %2287 = vmatmul.mubr.f32.gmra.mrb[0].mxu0 %v1994
        %v2288 = vpop.f32.mrb[0].mxu0
        %v2289 = vadd.f32 %v2184, %v2288
        %v2290 = vpop.f32.mrb[0].mxu0
        %2291 = vmatprep.mubr.f32.mxu0 %v2003
        %2292 = vmatmul.mubr.f32.gmra.mrb[0].mxu0 %v1995
        %v2293 = vpop.f32.mrb[0].mxu0
        %v2294 = vadd.f32 %v2189, %v2293
        %v2295 = vpop.f32.mrb[0].mxu0
        %2296 = vmatprep.mubr.f32.mxu0 %v2004
        %2297 = vmatmul.mubr.f32.gmra.mrb[0].mxu0 %v1996
        %v2298 = vpop.f32.mrb[0].mxu0
        %v2299 = vadd.f32 %v2194, %v2298
        %v2300 = vpop.f32.mrb[0].mxu0
        %2301 = vmatprep.mubr.f32.mxu0 %v2005
        %2302 = vmatmul.mubr.f32.gmra.mrb[0].mxu0 %v1997
        %v2303 = vpop.f32.mrb[0].mxu0
        %v2304 = vadd.f32 %v2199, %v2303
        %v2305 = vpop.f32.mrb[0].mxu0
        %2306 = vmatprep.mubr.f32.mxu0 %v2006
        %2307 = vmatmul.mubr.f32.gmra.mrb[0].mxu0 %v1998
        %v2308 = vpop.f32.mrb[0].mxu0
        %v2309 = vadd.f32 %v2204, %v2308
        %v2310 = vpop.f32.mrb[0].mxu0
        %2311 = vmatprep.mubr.f32.mxu0 %v2007
        %2312 = vmatmul.mubr.f32.gmra.mrb[0].mxu0 %v1999
        %v2313 = vpop.f32.mrb[0].mxu0
        %v2314 = vadd.f32 %v2209, %v2313
        %v2315 = vpop.f32.mrb[0].mxu0
        %2316 = vmatprep.mubr.f32.mxu0 %v2008
        %2317 = vmatmul.mubr.f32.gmra.mrb[0].mxu0 %v2000
        %v2318 = vpop.f32.mrb[0].mxu0
        %v2319 = vadd.f32 %v2214, %v2318
        %v2320 = vpop.f32.mrb[0].mxu0
        %2321 = vdwg.mxu0
        %2322 = vmatprep.subr.mxu0 0.0
        %2323 = vmatpush1.msra.mxu0 %v2073
        %2324 = vmatprep.subr.mxu0 0.0
        %2325 = vmatpush1.msra.mxu0 %v2074
        %2326 = vmatprep.subr.mxu0 0.0
        %2327 = vmatpush1.msra.mxu0 %v2075
        %2328 = vmatprep.subr.mxu0 0.0
        %2329 = vmatpush1.msra.mxu0 %v2076
        %2330 = vmatprep.subr.mxu0 0.0
        %2331 = vmatpush1.msra.mxu0 %v2077
        %2332 = vmatprep.subr.mxu0 0.0
        %2333 = vmatpush1.msra.mxu0 %v2078
        %2334 = vmatprep.subr.mxu0 0.0
        %2335 = vmatpush1.msra.mxu0 %v2079
        %2336 = vmatprep.subr.mxu0 0.0
        %2337 = vmatpush1.msra.mxu0 %v2080
        %2338 = vmatprep.subr.mxu0 0.0
        %2339 = vmatpush1.msra.mxu0 0.0
        %2340 = vmatprep.subr.mxu0 0.0
        %2341 = vmatpush1.msra.mxu0 0.0
        %2342 = vmatprep.subr.mxu0 0.0
        %2343 = vmatpush1.msra.mxu0 0.0
        %2344 = vmatprep.subr.mxu0 0.0
        %2345 = vmatpush1.msra.mxu0 0.0
        %2346 = vmatprep.subr.mxu0 0.0
        %2347 = vmatpush1.msra.mxu0 0.0
        %2348 = vmatprep.subr.mxu0 0.0
        %2349 = vmatpush1.msra.mxu0 0.0
        %2350 = vmatprep.subr.mxu0 0.0
        %2351 = vmatpush1.msra.mxu0 0.0
        %2352 = vmatprep.subr.mxu0 0.0
        %2353 = vmatpush1.msra.mxu0 0.0
        %2354 = vmatprep.subr.mxu0 0.0
        %2355 = vmatpush1.msra.mxu0 0.0
        %2356 = vmatprep.subr.mxu0 0.0
        %2357 = vmatpush1.msra.mxu0 0.0
        %2358 = vmatprep.subr.mxu0 0.0
        %2359 = vmatpush1.msra.mxu0 0.0
        %2360 = vmatprep.subr.mxu0 0.0
        %2361 = vmatpush1.msra.mxu0 0.0
        %2362 = vmatprep.subr.mxu0 0.0
        %2363 = vmatpush1.msra.mxu0 0.0
        %2364 = vmatprep.subr.mxu0 0.0
        %2365 = vmatpush1.msra.mxu0 0.0
        %2366 = vmatprep.subr.mxu0 0.0
        %2367 = vmatpush1.msra.mxu0 0.0
        %2368 = vmatprep.subr.mxu0 0.0
        %2369 = vmatpush1.msra.mxu0 0.0
        %2370 = vmatprep.subr.mxu0 0.0
        %2371 = vmatpush1.msra.mxu0 0.0
        %2372 = vmatprep.subr.mxu0 0.0
        %2373 = vmatpush1.msra.mxu0 0.0
        %2374 = vmatprep.subr.mxu0 0.0
        %2375 = vmatpush1.msra.mxu0 0.0
        %2376 = vmatprep.subr.mxu0 0.0
        %2377 = vmatpush1.msra.mxu0 0.0
        %2378 = vmatprep.subr.mxu0 0.0
        %2379 = vmatpush1.msra.mxu0 0.0
        %2380 = vmatprep.subr.mxu0 0.0
        %2381 = vmatpush1.msra.mxu0 0.0
        %2382 = vmatprep.subr.mxu0 0.0
        %2383 = vmatpush1.msra.mxu0 0.0
        %2384 = vmatprep.subr.mxu0 0.0
        %2385 = vmatpush1.msra.mxu0 0.0
        %2386 = vmatprep.mubr.f32.mxu0 0.0
        %2387 = vmatmul.mubr.f32.gmra.mrb[0].mxu0 %v2089
        %v2388 = vpop.f32.mrb[0].mxu0
        %v2389 = vadd.f32 %v2284, %v2388
        %v2390 = vpop.f32.mrb[0].mxu0
        %2391 = vmatprep.mubr.f32.mxu0 0.0
        %2392 = vmatmul.mubr.f32.gmra.mrb[0].mxu0 %v2092
        %v2393 = vpop.f32.mrb[0].mxu0
        %v2394 = vadd.f32 %v2289, %v2393
        %v2395 = vpop.f32.mrb[0].mxu0
        %2396 = vmatprep.mubr.f32.mxu0 0.0
        %2397 = vmatmul.mubr.f32.gmra.mrb[0].mxu0 %v2095
        %v2398 = vpop.f32.mrb[0].mxu0
        %v2399 = vadd.f32 %v2294, %v2398
        %v2400 = vpop.f32.mrb[0].mxu0
        %2401 = vmatprep.mubr.f32.mxu0 0.0
        %2402 = vmatmul.mubr.f32.gmra.mrb[0].mxu0 %v2098
        %v2403 = vpop.f32.mrb[0].mxu0
        %v2404 = vadd.f32 %v2299, %v2403
        %v2405 = vpop.f32.mrb[0].mxu0
        %2406 = vmatprep.mubr.f32.mxu0 0.0
        %2407 = vmatmul.mubr.f32.gmra.mrb[0].mxu0 %v2101
        %v2408 = vpop.f32.mrb[0].mxu0
        %v2409 = vadd.f32 %v2304, %v2408
        %v2410 = vpop.f32.mrb[0].mxu0
        %2411 = vmatprep.mubr.f32.mxu0 0.0
        %2412 = vmatmul.mubr.f32.gmra.mrb[0].mxu0 %v2104
        %v2413 = vpop.f32.mrb[0].mxu0
        %v2414 = vadd.f32 %v2309, %v2413
        %v2415 = vpop.f32.mrb[0].mxu0
        %2416 = vmatprep.mubr.f32.mxu0 0.0
        %2417 = vmatmul.mubr.f32.gmra.mrb[0].mxu0 %v2107
        %v2418 = vpop.f32.mrb[0].mxu0
        %v2419 = vadd.f32 %v2314, %v2418
        %v2420 = vpop.f32.mrb[0].mxu0
        %2421 = vmatprep.mubr.f32.mxu0 0.0
        %2422 = vmatmul.mubr.f32.gmra.mrb[0].mxu0 %v2110
        %v2423 = vpop.f32.mrb[0].mxu0
        %v2424 = vadd.f32 %v2319, %v2423
        %v2425 = vpop.f32.mrb[0].mxu0
        %2426 = vdwg.mxu0
        %v2427 = vmax.f32 %v2389, 0.0
        %v2428 = vmax.f32 %v2394, 0.0
        %v2429 = vmax.f32 %v2399, 0.0
        %v2430 = vmax.f32 %v2404, 0.0
        %v2431 = vmax.f32 %v2409, 0.0
        %v2432 = vmax.f32 %v2414, 0.0
        %v2433 = vmax.f32 %v2419, 0.0
        %v2434 = vmax.f32 %v2424, 0.0
        %v2435 = vmax.f32 %v2427, %v2429
        %v2436 = vmax.f32 %v2428, %v2430
        %v2439 = vcombine.high %v2435, %v2435
        %v2441 = vunpack.c.l.s4 1983009808
        %v2442 = vunpack.c.0.s8 %v2441
        %v2443 = vlaneseq
        %v2444 = vshrl.u32 %v2443, 7
        %v2445 = vsub.s32 %v2442, %v2444
        %v2446 = vrot.slane %v2435, %v2445
        %v2448 = vunpack.c.l.s4 1983009808
        %v2449 = vunpack.c.0.s8 %v2448
        %v2450 = vlaneseq
        %v2451 = vshrl.u32 %v2450, 7
        %v2452 = vsub.s32 %v2449, %v2451
        %v2453 = vrot.slane %v2439, %v2452
        %v2454 = vcombine.high %v2446, %v2446
        %v2455 = vcombine.high %v2453, %v2453
        %v2456 = vcombine.high %v2436, %v2436
        %v2458 = vunpack.c.l.s4 1983009808
        %v2459 = vunpack.c.0.s8 %v2458
        %v2460 = vlaneseq
        %v2461 = vshrl.u32 %v2460, 7
        %v2462 = vsub.s32 %v2459, %v2461
        %v2463 = vrot.slane %v2436, %v2462
        %v2465 = vunpack.c.l.s4 1983009808
        %v2466 = vunpack.c.0.s8 %v2465
        %v2467 = vlaneseq
        %v2468 = vshrl.u32 %v2467, 7
        %v2469 = vsub.s32 %v2466, %v2468
        %v2470 = vrot.slane %v2456, %v2469
        %v2471 = vcombine.high %v2463, %v2463
        %v2472 = vcombine.high %v2470, %v2470
        %v2481 = vsel %vm1572, %v2446, -inf
        %v2482 = vrot.slane %v2481, 4
        %v2483 = vmax.f32 %v2481, %v2482
        %v2484 = vrot.slane %v2483, 2
        %v2485 = vmax.f32 %v2483, %v2484
        %v2486 = vrot.slane %v2485, 1
        %v2487 = vmax.f32 %v2485, %v2486
        %v2488 = vsel %vm1572, %v2454, -inf
        %v2489 = vrot.slane %v2488, 4
        %v2490 = vmax.f32 %v2488, %v2489
        %v2491 = vrot.slane %v2490, 2
        %v2492 = vmax.f32 %v2490, %v2491
        %v2493 = vrot.slane %v2492, 1
        %v2494 = vmax.f32 %v2492, %v2493
        %v2495 = vsel %vm1572, %v2453, -inf
        %v2496 = vrot.slane %v2495, 4
        %v2497 = vmax.f32 %v2495, %v2496
        %v2498 = vrot.slane %v2497, 2
        %v2499 = vmax.f32 %v2497, %v2498
        %v2500 = vrot.slane %v2499, 1
        %v2501 = vmax.f32 %v2499, %v2500
        %v2502 = vsel %vm1572, %v2455, -inf
        %v2503 = vrot.slane %v2502, 4
        %v2504 = vmax.f32 %v2502, %v2503
        %v2505 = vrot.slane %v2504, 2
        %v2506 = vmax.f32 %v2504, %v2505
        %v2507 = vrot.slane %v2506, 1
        %v2508 = vmax.f32 %v2506, %v2507
        %v2509 = vsel %vm1572, %v2463, -inf
        %v2510 = vrot.slane %v2509, 4
        %v2511 = vmax.f32 %v2509, %v2510
        %v2512 = vrot.slane %v2511, 2
        %v2513 = vmax.f32 %v2511, %v2512
        %v2514 = vrot.slane %v2513, 1
        %v2515 = vmax.f32 %v2513, %v2514
        %v2516 = vsel %vm1572, %v2471, -inf
        %v2517 = vrot.slane %v2516, 4
        %v2518 = vmax.f32 %v2516, %v2517
        %v2519 = vrot.slane %v2518, 2
        %v2520 = vmax.f32 %v2518, %v2519
        %v2521 = vrot.slane %v2520, 1
        %v2522 = vmax.f32 %v2520, %v2521
        %v2523 = vsel %vm1572, %v2470, -inf
        %v2524 = vrot.slane %v2523, 4
        %v2525 = vmax.f32 %v2523, %v2524
        %v2526 = vrot.slane %v2525, 2
        %v2527 = vmax.f32 %v2525, %v2526
        %v2528 = vrot.slane %v2527, 1
        %v2529 = vmax.f32 %v2527, %v2528
        %v2530 = vsel %vm1572, %v2472, -inf
        %v2531 = vrot.slane %v2530, 4
        %v2532 = vmax.f32 %v2530, %v2531
        %v2533 = vrot.slane %v2532, 2
        %v2534 = vmax.f32 %v2532, %v2533
        %v2535 = vrot.slane %v2534, 1
        %v2536 = vmax.f32 %v2534, %v2535
        %v2545 = vsel %vm1637, %v2494, %v2487
        %v2546 = vsel %vm1639, %v2501, %v2545
        %v2547 = vsel %vm1641, %v2508, %v2546
        %v2548 = vsel %vm1643, %v2515, %v2547
        %v2549 = vsel %vm1645, %v2522, %v2548
        %v2550 = vsel %vm1647, %v2529, %v2549
        %v2551 = vsel %vm1649, %v2536, %v2550
        %s2553 = scalar_lea.vmem [#allocation3], 48
        %2554 = vst [vmem:[%s2553 + $0x1] sm:$0xff] %v2551
        %v2555 = vmax.f32 %v2431, %v2433
        %v2556 = vmax.f32 %v2432, %v2434
        %v2559 = vcombine.high %v2555, %v2555
        %v2561 = vunpack.c.l.s4 1983009808
        %v2562 = vunpack.c.0.s8 %v2561
        %v2563 = vlaneseq
        %v2564 = vshrl.u32 %v2563, 7
        %v2565 = vsub.s32 %v2562, %v2564
        %v2566 = vrot.slane %v2555, %v2565
        %v2568 = vunpack.c.l.s4 1983009808
        %v2569 = vunpack.c.0.s8 %v2568
        %v2570 = vlaneseq
        %v2571 = vshrl.u32 %v2570, 7
        %v2572 = vsub.s32 %v2569, %v2571
        %v2573 = vrot.slane %v2559, %v2572
        %v2574 = vcombine.high %v2566, %v2566
        %v2575 = vcombine.high %v2573, %v2573
        %v2576 = vcombine.high %v2556, %v2556
        %v2578 = vunpack.c.l.s4 1983009808
        %v2579 = vunpack.c.0.s8 %v2578
        %v2580 = vlaneseq
        %v2581 = vshrl.u32 %v2580, 7
        %v2582 = vsub.s32 %v2579, %v2581
        %v2583 = vrot.slane %v2556, %v2582
        %v2585 = vunpack.c.l.s4 1983009808
        %v2586 = vunpack.c.0.s8 %v2585
        %v2587 = vlaneseq
        %v2588 = vshrl.u32 %v2587, 7
        %v2589 = vsub.s32 %v2586, %v2588
        %v2590 = vrot.slane %v2576, %v2589
        %v2591 = vcombine.high %v2583, %v2583
        %v2592 = vcombine.high %v2590, %v2590
        %v2601 = vsel %vm1572, %v2566, -inf
        %v2602 = vrot.slane %v2601, 4
        %v2603 = vmax.f32 %v2601, %v2602
        %v2604 = vrot.slane %v2603, 2
        %v2605 = vmax.f32 %v2603, %v2604
        %v2606 = vrot.slane %v2605, 1
        %v2607 = vmax.f32 %v2605, %v2606
        %v2608 = vsel %vm1572, %v2574, -inf
        %v2609 = vrot.slane %v2608, 4
        %v2610 = vmax.f32 %v2608, %v2609
        %v2611 = vrot.slane %v2610, 2
        %v2612 = vmax.f32 %v2610, %v2611
        %v2613 = vrot.slane %v2612, 1
        %v2614 = vmax.f32 %v2612, %v2613
        %v2615 = vsel %vm1572, %v2573, -inf
        %v2616 = vrot.slane %v2615, 4
        %v2617 = vmax.f32 %v2615, %v2616
        %v2618 = vrot.slane %v2617, 2
        %v2619 = vmax.f32 %v2617, %v2618
        %v2620 = vrot.slane %v2619, 1
        %v2621 = vmax.f32 %v2619, %v2620
        %v2622 = vsel %vm1572, %v2575, -inf
        %v2623 = vrot.slane %v2622, 4
        %v2624 = vmax.f32 %v2622, %v2623
        %v2625 = vrot.slane %v2624, 2
        %v2626 = vmax.f32 %v2624, %v2625
        %v2627 = vrot.slane %v2626, 1
        %v2628 = vmax.f32 %v2626, %v2627
        %v2629 = vsel %vm1572, %v2583, -inf
        %v2630 = vrot.slane %v2629, 4
        %v2631 = vmax.f32 %v2629, %v2630
        %v2632 = vrot.slane %v2631, 2
        %v2633 = vmax.f32 %v2631, %v2632
        %v2634 = vrot.slane %v2633, 1
        %v2635 = vmax.f32 %v2633, %v2634
        %v2636 = vsel %vm1572, %v2591, -inf
        %v2637 = vrot.slane %v2636, 4
        %v2638 = vmax.f32 %v2636, %v2637
        %v2639 = vrot.slane %v2638, 2
        %v2640 = vmax.f32 %v2638, %v2639
        %v2641 = vrot.slane %v2640, 1
        %v2642 = vmax.f32 %v2640, %v2641
        %v2643 = vsel %vm1572, %v2590, -inf
        %v2644 = vrot.slane %v2643, 4
        %v2645 = vmax.f32 %v2643, %v2644
        %v2646 = vrot.slane %v2645, 2
        %v2647 = vmax.f32 %v2645, %v2646
        %v2648 = vrot.slane %v2647, 1
        %v2649 = vmax.f32 %v2647, %v2648
        %v2650 = vsel %vm1572, %v2592, -inf
        %v2651 = vrot.slane %v2650, 4
        %v2652 = vmax.f32 %v2650, %v2651
        %v2653 = vrot.slane %v2652, 2
        %v2654 = vmax.f32 %v2652, %v2653
        %v2655 = vrot.slane %v2654, 1
        %v2656 = vmax.f32 %v2654, %v2655
        %v2665 = vsel %vm1637, %v2614, %v2607
        %v2666 = vsel %vm1639, %v2621, %v2665
        %v2667 = vsel %vm1641, %v2628, %v2666
        %v2668 = vsel %vm1643, %v2635, %v2667
        %v2669 = vsel %vm1645, %v2642, %v2668
        %v2670 = vsel %vm1647, %v2649, %v2669
        %v2671 = vsel %vm1649, %v2656, %v2670
        %s2673 = scalar_lea.vmem [#allocation3], 64
        %2674 = vst [vmem:[%s2673 + $0x1] sm:$0xff] %v2671
        %s2675 = scalar_lea.vmem [#allocation2], 192
        %v2676 = vld [vmem:[%s2675] sm:$0xff]
        %v2677 = vld [vmem:[%s2675 + $0x8] sm:$0xff]
        %v2678 = vld [vmem:[%s2675 + $0x18] sm:$0xff]
        %v2679 = vld [vmem:[%s2675 + $0x20] sm:$0xff]
        %v2680 = vld [vmem:[%s2675 + $0x30] sm:$0xff]
        %v2681 = vld [vmem:[%s2675 + $0x38] sm:$0xff]
        %v2682 = vld [vmem:[%s2675 + $0x48] sm:$0xff]
        %v2683 = vld [vmem:[%s2675 + $0x50] sm:$0xff]
        %v2684 = vld [vmem:[%s2675 + $0x1] sm:$0xff]
        %v2685 = vld [vmem:[%s2675 + $0x9] sm:$0xff]
        %v2686 = vld [vmem:[%s2675 + $0x19] sm:$0xff]
        %v2687 = vld [vmem:[%s2675 + $0x21] sm:$0xff]
        %v2688 = vld [vmem:[%s2675 + $0x31] sm:$0xff]
        %v2689 = vld [vmem:[%s2675 + $0x39] sm:$0xff]
        %v2690 = vld [vmem:[%s2675 + $0x49] sm:$0xff]
        %v2691 = vld [vmem:[%s2675 + $0x51] sm:$0xff]
        %v2692 = vld [vmem:[%s2675 + $0x2] sm:$0xff]
        %v2693 = vld [vmem:[%s2675 + $0xa] sm:$0xff]
        %v2694 = vld [vmem:[%s2675 + $0x1a] sm:$0xff]
        %v2695 = vld [vmem:[%s2675 + $0x22] sm:$0xff]
        %v2696 = vld [vmem:[%s2675 + $0x32] sm:$0xff]
        %v2697 = vld [vmem:[%s2675 + $0x3a] sm:$0xff]
        %v2698 = vld [vmem:[%s2675 + $0x4a] sm:$0xff]
        %v2699 = vld [vmem:[%s2675 + $0x52] sm:$0xff]
        %s2700 = scalar_lea.vmem [#allocation2], 216
        %v2701 = vld [vmem:[%s2700] sm:$0xff]
        %v2702 = vld [vmem:[%s2700 + $0x8] sm:$0xff]
        %v2703 = vld [vmem:[%s2700 + $0x18] sm:$0xff]
        %v2704 = vld [vmem:[%s2700 + $0x20] sm:$0xff]
        %v2705 = vld [vmem:[%s2700 + $0x30] sm:$0xff]
        %v2706 = vld [vmem:[%s2700 + $0x38] sm:$0xff]
        %v2707 = vld [vmem:[%s2700 + $0x48] sm:$0xff]
        %v2708 = vld [vmem:[%s2700 + $0x50] sm:$0xff]
        %v2709 = vld [vmem:[%s2700 + $0x1] sm:$0xff]
        %v2710 = vld [vmem:[%s2700 + $0x9] sm:$0xff]
        %v2711 = vld [vmem:[%s2700 + $0x19] sm:$0xff]
        %v2712 = vld [vmem:[%s2700 + $0x21] sm:$0xff]
        %v2713 = vld [vmem:[%s2700 + $0x31] sm:$0xff]
        %v2714 = vld [vmem:[%s2700 + $0x39] sm:$0xff]
        %v2715 = vld [vmem:[%s2700 + $0x49] sm:$0xff]
        %v2716 = vld [vmem:[%s2700 + $0x51] sm:$0xff]
        %v2717 = vld [vmem:[%s2700 + $0x2] sm:$0xff]
        %v2718 = vld [vmem:[%s2700 + $0xa] sm:$0xff]
        %v2719 = vld [vmem:[%s2700 + $0x1a] sm:$0xff]
        %v2720 = vld [vmem:[%s2700 + $0x22] sm:$0xff]
        %v2721 = vld [vmem:[%s2700 + $0x32] sm:$0xff]
        %v2722 = vld [vmem:[%s2700 + $0x3a] sm:$0xff]
        %v2723 = vld [vmem:[%s2700 + $0x4a] sm:$0xff]
        %v2724 = vld [vmem:[%s2700 + $0x52] sm:$0xff]
        %s2725 = scalar_lea.vmem [#allocation2], 240
        %v2726 = vld [vmem:[%s2725] sm:$0xff]
        %v2727 = vld [vmem:[%s2725 + $0x8] sm:$0xff]
        %v2728 = vld [vmem:[%s2725 + $0x18] sm:$0xff]
        %v2729 = vld [vmem:[%s2725 + $0x20] sm:$0xff]
        %v2730 = vld [vmem:[%s2725 + $0x30] sm:$0xff]
        %v2731 = vld [vmem:[%s2725 + $0x38] sm:$0xff]
        %v2732 = vld [vmem:[%s2725 + $0x48] sm:$0xff]
        %v2733 = vld [vmem:[%s2725 + $0x50] sm:$0xff]
        %v2734 = vld [vmem:[%s2725 + $0x1] sm:$0xff]
        %v2735 = vld [vmem:[%s2725 + $0x9] sm:$0xff]
        %v2736 = vld [vmem:[%s2725 + $0x19] sm:$0xff]
        %v2737 = vld [vmem:[%s2725 + $0x21] sm:$0xff]
        %v2738 = vld [vmem:[%s2725 + $0x31] sm:$0xff]
        %v2739 = vld [vmem:[%s2725 + $0x39] sm:$0xff]
        %v2740 = vld [vmem:[%s2725 + $0x49] sm:$0xff]
        %v2741 = vld [vmem:[%s2725 + $0x51] sm:$0xff]
        %v2742 = vld [vmem:[%s2725 + $0x2] sm:$0xff]
        %v2743 = vld [vmem:[%s2725 + $0xa] sm:$0xff]
        %v2744 = vld [vmem:[%s2725 + $0x1a] sm:$0xff]
        %v2745 = vld [vmem:[%s2725 + $0x22] sm:$0xff]
        %v2746 = vld [vmem:[%s2725 + $0x32] sm:$0xff]
        %v2747 = vld [vmem:[%s2725 + $0x3a] sm:$0xff]
        %v2748 = vld [vmem:[%s2725 + $0x4a] sm:$0xff]
        %v2749 = vld [vmem:[%s2725 + $0x52] sm:$0xff]
        %2758 = vrot.lane.b32.xlu0 %v2684, 64
        %v2759 = vpop.permute.xlu0 %2758
        %2760 = vrot.lane.b32.xlu0 %v2685, 64
        %v2761 = vpop.permute.xlu0 %2760
        %2762 = vrot.lane.b32.xlu0 %v2686, 64
        %v2763 = vpop.permute.xlu0 %2762
        %2764 = vrot.lane.b32.xlu0 %v2687, 64
        %v2765 = vpop.permute.xlu0 %2764
        %2766 = vrot.lane.b32.xlu0 %v2688, 64
        %v2767 = vpop.permute.xlu0 %2766
        %2768 = vrot.lane.b32.xlu0 %v2689, 64
        %v2769 = vpop.permute.xlu0 %2768
        %2770 = vrot.lane.b32.xlu0 %v2690, 64
        %v2771 = vpop.permute.xlu0 %2770
        %2772 = vrot.lane.b32.xlu0 %v2691, 64
        %v2773 = vpop.permute.xlu0 %2772
        %2790 = vrot.lane.b32.xlu0 %v2701, 64
        %v2791 = vpop.permute.xlu0 %2790
        %2792 = vrot.lane.b32.xlu0 %v2702, 64
        %v2793 = vpop.permute.xlu0 %2792
        %2794 = vrot.lane.b32.xlu0 %v2703, 64
        %v2795 = vpop.permute.xlu0 %2794
        %2796 = vrot.lane.b32.xlu0 %v2704, 64
        %v2797 = vpop.permute.xlu0 %2796
        %2798 = vrot.lane.b32.xlu0 %v2705, 64
        %v2799 = vpop.permute.xlu0 %2798
        %2800 = vrot.lane.b32.xlu0 %v2706, 64
        %v2801 = vpop.permute.xlu0 %2800
        %2802 = vrot.lane.b32.xlu0 %v2707, 64
        %v2803 = vpop.permute.xlu0 %2802
        %2804 = vrot.lane.b32.xlu0 %v2708, 64
        %v2805 = vpop.permute.xlu0 %2804
        %2822 = vrot.lane.b32.xlu0 %v2717, 64
        %v2823 = vpop.permute.xlu0 %2822
        %2824 = vrot.lane.b32.xlu0 %v2718, 64
        %v2825 = vpop.permute.xlu0 %2824
        %2826 = vrot.lane.b32.xlu0 %v2719, 64
        %v2827 = vpop.permute.xlu0 %2826
        %2828 = vrot.lane.b32.xlu0 %v2720, 64
        %v2829 = vpop.permute.xlu0 %2828
        %2830 = vrot.lane.b32.xlu0 %v2721, 64
        %v2831 = vpop.permute.xlu0 %2830
        %2832 = vrot.lane.b32.xlu0 %v2722, 64
        %v2833 = vpop.permute.xlu0 %2832
        %2834 = vrot.lane.b32.xlu0 %v2723, 64
        %v2835 = vpop.permute.xlu0 %2834
        %2836 = vrot.lane.b32.xlu0 %v2724, 64
        %v2837 = vpop.permute.xlu0 %2836
        %2854 = vrot.lane.b32.xlu0 %v2734, 64
        %v2855 = vpop.permute.xlu0 %2854
        %2856 = vrot.lane.b32.xlu0 %v2735, 64
        %v2857 = vpop.permute.xlu0 %2856
        %2858 = vrot.lane.b32.xlu0 %v2736, 64
        %v2859 = vpop.permute.xlu0 %2858
        %2860 = vrot.lane.b32.xlu0 %v2737, 64
        %v2861 = vpop.permute.xlu0 %2860
        %2862 = vrot.lane.b32.xlu0 %v2738, 64
        %v2863 = vpop.permute.xlu0 %2862
        %2864 = vrot.lane.b32.xlu0 %v2739, 64
        %v2865 = vpop.permute.xlu0 %2864
        %2866 = vrot.lane.b32.xlu0 %v2740, 64
        %v2867 = vpop.permute.xlu0 %2866
        %2868 = vrot.lane.b32.xlu0 %v2741, 64
        %v2869 = vpop.permute.xlu0 %2868
        %v2878 = vsel %vm361, %v2676, %v2759
        %v2879 = vsel %vm361, %v2677, %v2761
        %v2880 = vsel %vm361, %v2678, %v2763
        %v2881 = vsel %vm361, %v2679, %v2765
        %v2882 = vsel %vm361, %v2680, %v2767
        %v2883 = vsel %vm361, %v2681, %v2769
        %v2884 = vsel %vm361, %v2682, %v2771
        %v2885 = vsel %vm361, %v2683, %v2773
        %v2886 = vsel %vm361, %v2692, %v2791
        %v2887 = vsel %vm361, %v2693, %v2793
        %v2888 = vsel %vm361, %v2694, %v2795
        %v2889 = vsel %vm361, %v2695, %v2797
        %v2890 = vsel %vm361, %v2696, %v2799
        %v2891 = vsel %vm361, %v2697, %v2801
        %v2892 = vsel %vm361, %v2698, %v2803
        %v2893 = vsel %vm361, %v2699, %v2805
        %v2894 = vsel %vm361, %v2709, %v2823
        %v2895 = vsel %vm361, %v2710, %v2825
        %v2896 = vsel %vm361, %v2711, %v2827
        %v2897 = vsel %vm361, %v2712, %v2829
        %v2898 = vsel %vm361, %v2713, %v2831
        %v2899 = vsel %vm361, %v2714, %v2833
        %v2900 = vsel %vm361, %v2715, %v2835
        %v2901 = vsel %vm361, %v2716, %v2837
        %v2902 = vsel %vm361, %v2726, %v2855
        %v2903 = vsel %vm361, %v2727, %v2857
        %v2904 = vsel %vm361, %v2728, %v2859
        %v2905 = vsel %vm361, %v2729, %v2861
        %v2906 = vsel %vm361, %v2730, %v2863
        %v2907 = vsel %vm361, %v2731, %v2865
        %v2908 = vsel %vm361, %v2732, %v2867
        %v2909 = vsel %vm361, %v2733, %v2869
        %v2910 = vld [vmem:[#allocation8] sm:$0xff]
        %v2911 = vld [vmem:[#allocation8 + $0x8] sm:$0xff]
        %v2912 = vld [vmem:[#allocation8 + $0x10] sm:$0xff]
        %v2913 = vld [vmem:[#allocation8 + $0x18] sm:$0xff]
        %v2914 = vld [vmem:[#allocation8 + $0x20] sm:$0xff]
        %v2915 = vld [vmem:[#allocation8 + $0x28] sm:$0xff]
        %v2916 = vld [vmem:[#allocation8 + $0x30] sm:$0xff]
        %v2917 = vld [vmem:[#allocation8 + $0x38] sm:$0xff]
        %v2918 = vld [vmem:[#allocation8 + $0x40] sm:$0xff]
        %v2919 = vld [vmem:[#allocation8 + $0x48] sm:$0xff]
        %v2920 = vld [vmem:[#allocation8 + $0x50] sm:$0xff]
        %v2921 = vld [vmem:[#allocation8 + $0x58] sm:$0xff]
        %v2922 = vld [vmem:[#allocation8 + $0x60] sm:$0xff]
        %v2923 = vld [vmem:[#allocation8 + $0x68] sm:$0xff]
        %v2924 = vld [vmem:[#allocation8 + $0x70] sm:$0xff]
        %v2925 = vld [vmem:[#allocation8 + $0x78] sm:$0xff]
        %v2926 = vld [vmem:[#allocation8 + $0x80] sm:$0xff]
        %v2927 = vld [vmem:[#allocation8 + $0x88] sm:$0xff]
        %v2928 = vld [vmem:[#allocation8 + $0x90] sm:$0xff]
        %v2929 = vld [vmem:[#allocation8 + $0x98] sm:$0xff]
        %v2930 = vld [vmem:[#allocation8 + $0xa0] sm:$0xff]
        %v2931 = vld [vmem:[#allocation8 + $0xa8] sm:$0xff]
        %v2932 = vld [vmem:[#allocation8 + $0xb0] sm:$0xff]
        %v2933 = vld [vmem:[#allocation8 + $0xb8] sm:$0xff]
        %v2934 = vld [vmem:[#allocation8 + $0xc0] sm:$0xff]
        %v2935 = vld [vmem:[#allocation8 + $0xc8] sm:$0xff]
        %v2936 = vld [vmem:[#allocation8 + $0xd0] sm:$0xff]
        %v2937 = vld [vmem:[#allocation8 + $0xd8] sm:$0xff]
        %v2938 = vld [vmem:[#allocation8 + $0xe0] sm:$0xff]
        %v2939 = vld [vmem:[#allocation8 + $0xe8] sm:$0xff]
        %v2940 = vld [vmem:[#allocation8 + $0xf0] sm:$0xff]
        %v2941 = vld [vmem:[#allocation8 + $0xf8] sm:$0xff]
        %v2942 = vld [vmem:[#allocation8 + $0x100] sm:$0xff]
        %v2943 = vld [vmem:[#allocation8 + $0x108] sm:$0xff]
        %v2944 = vld [vmem:[#allocation8 + $0x110] sm:$0xff]
        %v2945 = vld [vmem:[#allocation8 + $0x118] sm:$0xff]
        %v2946 = vld [vmem:[#allocation8 + $0x120] sm:$0xff]
        %v2947 = vld [vmem:[#allocation8 + $0x128] sm:$0xff]
        %v2948 = vld [vmem:[#allocation8 + $0x130] sm:$0xff]
        %v2949 = vld [vmem:[#allocation8 + $0x138] sm:$0xff]
        %v2950 = vld [vmem:[#allocation8 + $0x140] sm:$0xff]
        %v2951 = vld [vmem:[#allocation8 + $0x148] sm:$0xff]
        %v2952 = vld [vmem:[#allocation8 + $0x150] sm:$0xff]
        %v2953 = vld [vmem:[#allocation8 + $0x158] sm:$0xff]
        %v2954 = vld [vmem:[#allocation8 + $0x160] sm:$0xff]
        %v2955 = vld [vmem:[#allocation8 + $0x168] sm:$0xff]
        %v2956 = vld [vmem:[#allocation8 + $0x170] sm:$0xff]
        %v2957 = vld [vmem:[#allocation8 + $0x178] sm:$0xff]
        %v2958 = vld [vmem:[#allocation8 + $0x180] sm:$0xff]
        %v2959 = vld [vmem:[#allocation8 + $0x188] sm:$0xff]
        %v2960 = vld [vmem:[#allocation8 + $0x190] sm:$0xff]
        %v2961 = vld [vmem:[#allocation8 + $0x198] sm:$0xff]
        %v2962 = vld [vmem:[#allocation8 + $0x1a0] sm:$0xff]
        %v2963 = vld [vmem:[#allocation8 + $0x1a8] sm:$0xff]
        %v2964 = vld [vmem:[#allocation8 + $0x1b0] sm:$0xff]
        %v2965 = vld [vmem:[#allocation8 + $0x1b8] sm:$0xff]
        %v2966 = vld [vmem:[#allocation8 + $0x1c0] sm:$0xff]
        %v2967 = vld [vmem:[#allocation8 + $0x1c8] sm:$0xff]
        %v2968 = vld [vmem:[#allocation8 + $0x1d0] sm:$0xff]
        %v2969 = vld [vmem:[#allocation8 + $0x1d8] sm:$0xff]
        %v2970 = vld [vmem:[#allocation8 + $0x1e0] sm:$0xff]
        %v2971 = vld [vmem:[#allocation8 + $0x1e8] sm:$0xff]
        %v2972 = vld [vmem:[#allocation8 + $0x1f0] sm:$0xff]
        %v2973 = vld [vmem:[#allocation8 + $0x1f8] sm:$0xff]
        %v2974 = vld [vmem:[#allocation8 + $0x200] sm:$0xff]
        %v2975 = vld [vmem:[#allocation8 + $0x208] sm:$0xff]
        %v2976 = vld [vmem:[#allocation8 + $0x210] sm:$0xff]
        %v2977 = vld [vmem:[#allocation8 + $0x218] sm:$0xff]
        %v2978 = vld [vmem:[#allocation8 + $0x220] sm:$0xff]
        %v2979 = vld [vmem:[#allocation8 + $0x228] sm:$0xff]
        %v2980 = vld [vmem:[#allocation8 + $0x230] sm:$0xff]
        %v2981 = vld [vmem:[#allocation8 + $0x238] sm:$0xff]
        %v2982 = vld [vmem:[#allocation9] sm:$0x1]
        %v2984 = vlaneseq
        %v2985 = vshrl.u32 %v2984, 7
        %v2986 = vsub.s32 0, %v2985
        %v2987 = vrot.slane %v2982, %v2986
        %v2990 = vsel %vm361, %v2742, 0
        %v2993 = vsel %vm361, %v2743, 0
        %v2996 = vsel %vm361, %v2744, 0
        %v2999 = vsel %vm361, %v2745, 0
        %v3002 = vsel %vm361, %v2746, 0
        %v3005 = vsel %vm361, %v2747, 0
        %v3008 = vsel %vm361, %v2748, 0
        %v3011 = vsel %vm361, %v2749, 0
        %3013 = vmatprep.subr.mxu0 0.0
        %3014 = vmatpush1.msra.mxu0 %v2910
        %3015 = vmatprep.subr.mxu0 0.0
        %3016 = vmatpush1.msra.mxu0 %v2911
        %3017 = vmatprep.subr.mxu0 0.0
        %3018 = vmatpush1.msra.mxu0 %v2912
        %3019 = vmatprep.subr.mxu0 0.0
        %3020 = vmatpush1.msra.mxu0 %v2913
        %3021 = vmatprep.subr.mxu0 0.0
        %3022 = vmatpush1.msra.mxu0 %v2914
        %3023 = vmatprep.subr.mxu0 0.0
        %3024 = vmatpush1.msra.mxu0 %v2915
        %3025 = vmatprep.subr.mxu0 0.0
        %3026 = vmatpush1.msra.mxu0 %v2916
        %3027 = vmatprep.subr.mxu0 0.0
        %3028 = vmatpush1.msra.mxu0 %v2917
        %3029 = vmatprep.subr.mxu0 0.0
        %3030 = vmatpush1.msra.mxu0 %v2918
        %3031 = vmatprep.subr.mxu0 0.0
        %3032 = vmatpush1.msra.mxu0 %v2919
        %3033 = vmatprep.subr.mxu0 0.0
        %3034 = vmatpush1.msra.mxu0 %v2920
        %3035 = vmatprep.subr.mxu0 0.0
        %3036 = vmatpush1.msra.mxu0 %v2921
        %3037 = vmatprep.subr.mxu0 0.0
        %3038 = vmatpush1.msra.mxu0 %v2922
        %3039 = vmatprep.subr.mxu0 0.0
        %3040 = vmatpush1.msra.mxu0 %v2923
        %3041 = vmatprep.subr.mxu0 0.0
        %3042 = vmatpush1.msra.mxu0 %v2924
        %3043 = vmatprep.subr.mxu0 0.0
        %3044 = vmatpush1.msra.mxu0 %v2925
        %3045 = vmatprep.subr.mxu0 0.0
        %3046 = vmatpush1.msra.mxu0 %v2926
        %3047 = vmatprep.subr.mxu0 0.0
        %3048 = vmatpush1.msra.mxu0 %v2927
        %3049 = vmatprep.subr.mxu0 0.0
        %3050 = vmatpush1.msra.mxu0 %v2928
        %3051 = vmatprep.subr.mxu0 0.0
        %3052 = vmatpush1.msra.mxu0 %v2929
        %3053 = vmatprep.subr.mxu0 0.0
        %3054 = vmatpush1.msra.mxu0 %v2930
        %3055 = vmatprep.subr.mxu0 0.0
        %3056 = vmatpush1.msra.mxu0 %v2931
        %3057 = vmatprep.subr.mxu0 0.0
        %3058 = vmatpush1.msra.mxu0 %v2932
        %3059 = vmatprep.subr.mxu0 0.0
        %3060 = vmatpush1.msra.mxu0 %v2933
        %3061 = vmatprep.subr.mxu0 0.0
        %3062 = vmatpush1.msra.mxu0 %v2934
        %3063 = vmatprep.subr.mxu0 0.0
        %3064 = vmatpush1.msra.mxu0 %v2935
        %3065 = vmatprep.subr.mxu0 0.0
        %3066 = vmatpush1.msra.mxu0 %v2936
        %3067 = vmatprep.subr.mxu0 0.0
        %3068 = vmatpush1.msra.mxu0 %v2937
        %3069 = vmatprep.subr.mxu0 0.0
        %3070 = vmatpush1.msra.mxu0 %v2938
        %3071 = vmatprep.subr.mxu0 0.0
        %3072 = vmatpush1.msra.mxu0 %v2939
        %3073 = vmatprep.subr.mxu0 0.0
        %3074 = vmatpush1.msra.mxu0 %v2940
        %3075 = vmatprep.subr.mxu0 0.0
        %3076 = vmatpush1.msra.mxu0 %v2941
        %3077 = vmatprep.mubr.f32.mxu0 %v2886
        %3078 = vmatmul.mubr.f32.gmra.mrb[0].mxu0 %v2878
        %v3079 = vpop.f32.mrb[0].mxu0
        %v3080 = vadd.f32 %v2987, %v3079
        %v3081 = vpop.f32.mrb[0].mxu0
        %3082 = vmatprep.mubr.f32.mxu0 %v2887
        %3083 = vmatmul.mubr.f32.gmra.mrb[0].mxu0 %v2879
        %v3084 = vpop.f32.mrb[0].mxu0
        %v3085 = vadd.f32 %v2987, %v3084
        %v3086 = vpop.f32.mrb[0].mxu0
        %3087 = vmatprep.mubr.f32.mxu0 %v2888
        %3088 = vmatmul.mubr.f32.gmra.mrb[0].mxu0 %v2880
        %v3089 = vpop.f32.mrb[0].mxu0
        %v3090 = vadd.f32 %v2987, %v3089
        %v3091 = vpop.f32.mrb[0].mxu0
        %3092 = vmatprep.mubr.f32.mxu0 %v2889
        %3093 = vmatmul.mubr.f32.gmra.mrb[0].mxu0 %v2881
        %v3094 = vpop.f32.mrb[0].mxu0
        %v3095 = vadd.f32 %v2987, %v3094
        %v3096 = vpop.f32.mrb[0].mxu0
        %3097 = vmatprep.mubr.f32.mxu0 %v2890
        %3098 = vmatmul.mubr.f32.gmra.mrb[0].mxu0 %v2882
        %v3099 = vpop.f32.mrb[0].mxu0
        %v3100 = vadd.f32 %v2987, %v3099
        %v3101 = vpop.f32.mrb[0].mxu0
        %3102 = vmatprep.mubr.f32.mxu0 %v2891
        %3103 = vmatmul.mubr.f32.gmra.mrb[0].mxu0 %v2883
        %v3104 = vpop.f32.mrb[0].mxu0
        %v3105 = vadd.f32 %v2987, %v3104
        %v3106 = vpop.f32.mrb[0].mxu0
        %3107 = vmatprep.mubr.f32.mxu0 %v2892
        %3108 = vmatmul.mubr.f32.gmra.mrb[0].mxu0 %v2884
        %v3109 = vpop.f32.mrb[0].mxu0
        %v3110 = vadd.f32 %v2987, %v3109
        %v3111 = vpop.f32.mrb[0].mxu0
        %3112 = vmatprep.mubr.f32.mxu0 %v2893
        %3113 = vmatmul.mubr.f32.gmra.mrb[0].mxu0 %v2885
        %v3114 = vpop.f32.mrb[0].mxu0
        %v3115 = vadd.f32 %v2987, %v3114
        %v3116 = vpop.f32.mrb[0].mxu0
        %3117 = vdwg.mxu0
        %3118 = vmatprep.subr.mxu0 0.0
        %3119 = vmatpush1.msra.mxu0 %v2942
        %3120 = vmatprep.subr.mxu0 0.0
        %3121 = vmatpush1.msra.mxu0 %v2943
        %3122 = vmatprep.subr.mxu0 0.0
        %3123 = vmatpush1.msra.mxu0 %v2944
        %3124 = vmatprep.subr.mxu0 0.0
        %3125 = vmatpush1.msra.mxu0 %v2945
        %3126 = vmatprep.subr.mxu0 0.0
        %3127 = vmatpush1.msra.mxu0 %v2946
        %3128 = vmatprep.subr.mxu0 0.0
        %3129 = vmatpush1.msra.mxu0 %v2947
        %3130 = vmatprep.subr.mxu0 0.0
        %3131 = vmatpush1.msra.mxu0 %v2948
        %3132 = vmatprep.subr.mxu0 0.0
        %3133 = vmatpush1.msra.mxu0 %v2949
        %3134 = vmatprep.subr.mxu0 0.0
        %3135 = vmatpush1.msra.mxu0 %v2950
        %3136 = vmatprep.subr.mxu0 0.0
        %3137 = vmatpush1.msra.mxu0 %v2951
        %3138 = vmatprep.subr.mxu0 0.0
        %3139 = vmatpush1.msra.mxu0 %v2952
        %3140 = vmatprep.subr.mxu0 0.0
        %3141 = vmatpush1.msra.mxu0 %v2953
        %3142 = vmatprep.subr.mxu0 0.0
        %3143 = vmatpush1.msra.mxu0 %v2954
        %3144 = vmatprep.subr.mxu0 0.0
        %3145 = vmatpush1.msra.mxu0 %v2955
        %3146 = vmatprep.subr.mxu0 0.0
        %3147 = vmatpush1.msra.mxu0 %v2956
        %3148 = vmatprep.subr.mxu0 0.0
        %3149 = vmatpush1.msra.mxu0 %v2957
        %3150 = vmatprep.subr.mxu0 0.0
        %3151 = vmatpush1.msra.mxu0 %v2958
        %3152 = vmatprep.subr.mxu0 0.0
        %3153 = vmatpush1.msra.mxu0 %v2959
        %3154 = vmatprep.subr.mxu0 0.0
        %3155 = vmatpush1.msra.mxu0 %v2960
        %3156 = vmatprep.subr.mxu0 0.0
        %3157 = vmatpush1.msra.mxu0 %v2961
        %3158 = vmatprep.subr.mxu0 0.0
        %3159 = vmatpush1.msra.mxu0 %v2962
        %3160 = vmatprep.subr.mxu0 0.0
        %3161 = vmatpush1.msra.mxu0 %v2963
        %3162 = vmatprep.subr.mxu0 0.0
        %3163 = vmatpush1.msra.mxu0 %v2964
        %3164 = vmatprep.subr.mxu0 0.0
        %3165 = vmatpush1.msra.mxu0 %v2965
        %3166 = vmatprep.subr.mxu0 0.0
        %3167 = vmatpush1.msra.mxu0 %v2966
        %3168 = vmatprep.subr.mxu0 0.0
        %3169 = vmatpush1.msra.mxu0 %v2967
        %3170 = vmatprep.subr.mxu0 0.0
        %3171 = vmatpush1.msra.mxu0 %v2968
        %3172 = vmatprep.subr.mxu0 0.0
        %3173 = vmatpush1.msra.mxu0 %v2969
        %3174 = vmatprep.subr.mxu0 0.0
        %3175 = vmatpush1.msra.mxu0 %v2970
        %3176 = vmatprep.subr.mxu0 0.0
        %3177 = vmatpush1.msra.mxu0 %v2971
        %3178 = vmatprep.subr.mxu0 0.0
        %3179 = vmatpush1.msra.mxu0 %v2972
        %3180 = vmatprep.subr.mxu0 0.0
        %3181 = vmatpush1.msra.mxu0 %v2973
        %3182 = vmatprep.mubr.f32.mxu0 %v2902
        %3183 = vmatmul.mubr.f32.gmra.mrb[0].mxu0 %v2894
        %v3184 = vpop.f32.mrb[0].mxu0
        %v3185 = vadd.f32 %v3080, %v3184
        %v3186 = vpop.f32.mrb[0].mxu0
        %3187 = vmatprep.mubr.f32.mxu0 %v2903
        %3188 = vmatmul.mubr.f32.gmra.mrb[0].mxu0 %v2895
        %v3189 = vpop.f32.mrb[0].mxu0
        %v3190 = vadd.f32 %v3085, %v3189
        %v3191 = vpop.f32.mrb[0].mxu0
        %3192 = vmatprep.mubr.f32.mxu0 %v2904
        %3193 = vmatmul.mubr.f32.gmra.mrb[0].mxu0 %v2896
        %v3194 = vpop.f32.mrb[0].mxu0
        %v3195 = vadd.f32 %v3090, %v3194
        %v3196 = vpop.f32.mrb[0].mxu0
        %3197 = vmatprep.mubr.f32.mxu0 %v2905
        %3198 = vmatmul.mubr.f32.gmra.mrb[0].mxu0 %v2897
        %v3199 = vpop.f32.mrb[0].mxu0
        %v3200 = vadd.f32 %v3095, %v3199
        %v3201 = vpop.f32.mrb[0].mxu0
        %3202 = vmatprep.mubr.f32.mxu0 %v2906
        %3203 = vmatmul.mubr.f32.gmra.mrb[0].mxu0 %v2898
        %v3204 = vpop.f32.mrb[0].mxu0
        %v3205 = vadd.f32 %v3100, %v3204
        %v3206 = vpop.f32.mrb[0].mxu0
        %3207 = vmatprep.mubr.f32.mxu0 %v2907
        %3208 = vmatmul.mubr.f32.gmra.mrb[0].mxu0 %v2899
        %v3209 = vpop.f32.mrb[0].mxu0
        %v3210 = vadd.f32 %v3105, %v3209
        %v3211 = vpop.f32.mrb[0].mxu0
        %3212 = vmatprep.mubr.f32.mxu0 %v2908
        %3213 = vmatmul.mubr.f32.gmra.mrb[0].mxu0 %v2900
        %v3214 = vpop.f32.mrb[0].mxu0
        %v3215 = vadd.f32 %v3110, %v3214
        %v3216 = vpop.f32.mrb[0].mxu0
        %3217 = vmatprep.mubr.f32.mxu0 %v2909
        %3218 = vmatmul.mubr.f32.gmra.mrb[0].mxu0 %v2901
        %v3219 = vpop.f32.mrb[0].mxu0
        %v3220 = vadd.f32 %v3115, %v3219
        %v3221 = vpop.f32.mrb[0].mxu0
        %3222 = vdwg.mxu0
        %3223 = vmatprep.subr.mxu0 0.0
        %3224 = vmatpush1.msra.mxu0 %v2974
        %3225 = vmatprep.subr.mxu0 0.0
        %3226 = vmatpush1.msra.mxu0 %v2975
        %3227 = vmatprep.subr.mxu0 0.0
        %3228 = vmatpush1.msra.mxu0 %v2976
        %3229 = vmatprep.subr.mxu0 0.0
        %3230 = vmatpush1.msra.mxu0 %v2977
        %3231 = vmatprep.subr.mxu0 0.0
        %3232 = vmatpush1.msra.mxu0 %v2978
        %3233 = vmatprep.subr.mxu0 0.0
        %3234 = vmatpush1.msra.mxu0 %v2979
        %3235 = vmatprep.subr.mxu0 0.0
        %3236 = vmatpush1.msra.mxu0 %v2980
        %3237 = vmatprep.subr.mxu0 0.0
        %3238 = vmatpush1.msra.mxu0 %v2981
        %3239 = vmatprep.subr.mxu0 0.0
        %3240 = vmatpush1.msra.mxu0 0.0
        %3241 = vmatprep.subr.mxu0 0.0
        %3242 = vmatpush1.msra.mxu0 0.0
        %3243 = vmatprep.subr.mxu0 0.0
        %3244 = vmatpush1.msra.mxu0 0.0
        %3245 = vmatprep.subr.mxu0 0.0
        %3246 = vmatpush1.msra.mxu0 0.0
        %3247 = vmatprep.subr.mxu0 0.0
        %3248 = vmatpush1.msra.mxu0 0.0
        %3249 = vmatprep.subr.mxu0 0.0
        %3250 = vmatpush1.msra.mxu0 0.0
        %3251 = vmatprep.subr.mxu0 0.0
        %3252 = vmatpush1.msra.mxu0 0.0
        %3253 = vmatprep.subr.mxu0 0.0
        %3254 = vmatpush1.msra.mxu0 0.0
        %3255 = vmatprep.subr.mxu0 0.0
        %3256 = vmatpush1.msra.mxu0 0.0
        %3257 = vmatprep.subr.mxu0 0.0
        %3258 = vmatpush1.msra.mxu0 0.0
        %3259 = vmatprep.subr.mxu0 0.0
        %3260 = vmatpush1.msra.mxu0 0.0
        %3261 = vmatprep.subr.mxu0 0.0
        %3262 = vmatpush1.msra.mxu0 0.0
        %3263 = vmatprep.subr.mxu0 0.0
        %3264 = vmatpush1.msra.mxu0 0.0
        %3265 = vmatprep.subr.mxu0 0.0
        %3266 = vmatpush1.msra.mxu0 0.0
        %3267 = vmatprep.subr.mxu0 0.0
        %3268 = vmatpush1.msra.mxu0 0.0
        %3269 = vmatprep.subr.mxu0 0.0
        %3270 = vmatpush1.msra.mxu0 0.0
        %3271 = vmatprep.subr.mxu0 0.0
        %3272 = vmatpush1.msra.mxu0 0.0
        %3273 = vmatprep.subr.mxu0 0.0
        %3274 = vmatpush1.msra.mxu0 0.0
        %3275 = vmatprep.subr.mxu0 0.0
        %3276 = vmatpush1.msra.mxu0 0.0
        %3277 = vmatprep.subr.mxu0 0.0
        %3278 = vmatpush1.msra.mxu0 0.0
        %3279 = vmatprep.subr.mxu0 0.0
        %3280 = vmatpush1.msra.mxu0 0.0
        %3281 = vmatprep.subr.mxu0 0.0
        %3282 = vmatpush1.msra.mxu0 0.0
        %3283 = vmatprep.subr.mxu0 0.0
        %3284 = vmatpush1.msra.mxu0 0.0
        %3285 = vmatprep.subr.mxu0 0.0
        %3286 = vmatpush1.msra.mxu0 0.0
        %3287 = vmatprep.mubr.f32.mxu0 0.0
        %3288 = vmatmul.mubr.f32.gmra.mrb[0].mxu0 %v2990
        %v3289 = vpop.f32.mrb[0].mxu0
        %v3290 = vadd.f32 %v3185, %v3289
        %v3291 = vpop.f32.mrb[0].mxu0
        %3292 = vmatprep.mubr.f32.mxu0 0.0
        %3293 = vmatmul.mubr.f32.gmra.mrb[0].mxu0 %v2993
        %v3294 = vpop.f32.mrb[0].mxu0
        %v3295 = vadd.f32 %v3190, %v3294
        %v3296 = vpop.f32.mrb[0].mxu0
        %3297 = vmatprep.mubr.f32.mxu0 0.0
        %3298 = vmatmul.mubr.f32.gmra.mrb[0].mxu0 %v2996
        %v3299 = vpop.f32.mrb[0].mxu0
        %v3300 = vadd.f32 %v3195, %v3299
        %v3301 = vpop.f32.mrb[0].mxu0
        %3302 = vmatprep.mubr.f32.mxu0 0.0
        %3303 = vmatmul.mubr.f32.gmra.mrb[0].mxu0 %v2999
        %v3304 = vpop.f32.mrb[0].mxu0
        %v3305 = vadd.f32 %v3200, %v3304
        %v3306 = vpop.f32.mrb[0].mxu0
        %3307 = vmatprep.mubr.f32.mxu0 0.0
        %3308 = vmatmul.mubr.f32.gmra.mrb[0].mxu0 %v3002
        %v3309 = vpop.f32.mrb[0].mxu0
        %v3310 = vadd.f32 %v3205, %v3309
        %v3311 = vpop.f32.mrb[0].mxu0
        %3312 = vmatprep.mubr.f32.mxu0 0.0
        %3313 = vmatmul.mubr.f32.gmra.mrb[0].mxu0 %v3005
        %v3314 = vpop.f32.mrb[0].mxu0
        %v3315 = vadd.f32 %v3210, %v3314
        %v3316 = vpop.f32.mrb[0].mxu0
        %3317 = vmatprep.mubr.f32.mxu0 0.0
        %3318 = vmatmul.mubr.f32.gmra.mrb[0].mxu0 %v3008
        %v3319 = vpop.f32.mrb[0].mxu0
        %v3320 = vadd.f32 %v3215, %v3319
        %v3321 = vpop.f32.mrb[0].mxu0
        %3322 = vmatprep.mubr.f32.mxu0 0.0
        %3323 = vmatmul.mubr.f32.gmra.mrb[0].mxu0 %v3011
        %v3324 = vpop.f32.mrb[0].mxu0
        %v3325 = vadd.f32 %v3220, %v3324
        %v3326 = vpop.f32.mrb[0].mxu0
        %3327 = vdwg.mxu0
        %v3328 = vmax.f32 %v3290, 0.0
        %v3329 = vmax.f32 %v3295, 0.0
        %v3330 = vmax.f32 %v3300, 0.0
        %v3331 = vmax.f32 %v3305, 0.0
        %v3332 = vmax.f32 %v3310, 0.0
        %v3333 = vmax.f32 %v3315, 0.0
        %v3334 = vmax.f32 %v3320, 0.0
        %v3335 = vmax.f32 %v3325, 0.0
        %v3336 = vmax.f32 %v3328, %v3330
        %v3337 = vmax.f32 %v3329, %v3331
        %v3340 = vcombine.high %v3336, %v3336
        %v3342 = vunpack.c.l.s4 1983009808
        %v3343 = vunpack.c.0.s8 %v3342
        %v3344 = vlaneseq
        %v3345 = vshrl.u32 %v3344, 7
        %v3346 = vsub.s32 %v3343, %v3345
        %v3347 = vrot.slane %v3336, %v3346
        %v3349 = vunpack.c.l.s4 1983009808
        %v3350 = vunpack.c.0.s8 %v3349
        %v3351 = vlaneseq
        %v3352 = vshrl.u32 %v3351, 7
        %v3353 = vsub.s32 %v3350, %v3352
        %v3354 = vrot.slane %v3340, %v3353
        %v3355 = vcombine.high %v3347, %v3347
        %v3356 = vcombine.high %v3354, %v3354
        %v3357 = vcombine.high %v3337, %v3337
        %v3359 = vunpack.c.l.s4 1983009808
        %v3360 = vunpack.c.0.s8 %v3359
        %v3361 = vlaneseq
        %v3362 = vshrl.u32 %v3361, 7
        %v3363 = vsub.s32 %v3360, %v3362
        %v3364 = vrot.slane %v3337, %v3363
        %v3366 = vunpack.c.l.s4 1983009808
        %v3367 = vunpack.c.0.s8 %v3366
        %v3368 = vlaneseq
        %v3369 = vshrl.u32 %v3368, 7
        %v3370 = vsub.s32 %v3367, %v3369
        %v3371 = vrot.slane %v3357, %v3370
        %v3372 = vcombine.high %v3364, %v3364
        %v3373 = vcombine.high %v3371, %v3371
        %v3382 = vsel %vm1572, %v3347, -inf
        %v3383 = vrot.slane %v3382, 4
        %v3384 = vmax.f32 %v3382, %v3383
        %v3385 = vrot.slane %v3384, 2
        %v3386 = vmax.f32 %v3384, %v3385
        %v3387 = vrot.slane %v3386, 1
        %v3388 = vmax.f32 %v3386, %v3387
        %v3389 = vsel %vm1572, %v3355, -inf
        %v3390 = vrot.slane %v3389, 4
        %v3391 = vmax.f32 %v3389, %v3390
        %v3392 = vrot.slane %v3391, 2
        %v3393 = vmax.f32 %v3391, %v3392
        %v3394 = vrot.slane %v3393, 1
        %v3395 = vmax.f32 %v3393, %v3394
        %v3396 = vsel %vm1572, %v3354, -inf
        %v3397 = vrot.slane %v3396, 4
        %v3398 = vmax.f32 %v3396, %v3397
        %v3399 = vrot.slane %v3398, 2
        %v3400 = vmax.f32 %v3398, %v3399
        %v3401 = vrot.slane %v3400, 1
        %v3402 = vmax.f32 %v3400, %v3401
        %v3403 = vsel %vm1572, %v3356, -inf
        %v3404 = vrot.slane %v3403, 4
        %v3405 = vmax.f32 %v3403, %v3404
        %v3406 = vrot.slane %v3405, 2
        %v3407 = vmax.f32 %v3405, %v3406
        %v3408 = vrot.slane %v3407, 1
        %v3409 = vmax.f32 %v3407, %v3408
        %v3410 = vsel %vm1572, %v3364, -inf
        %v3411 = vrot.slane %v3410, 4
        %v3412 = vmax.f32 %v3410, %v3411
        %v3413 = vrot.slane %v3412, 2
        %v3414 = vmax.f32 %v3412, %v3413
        %v3415 = vrot.slane %v3414, 1
        %v3416 = vmax.f32 %v3414, %v3415
        %v3417 = vsel %vm1572, %v3372, -inf
        %v3418 = vrot.slane %v3417, 4
        %v3419 = vmax.f32 %v3417, %v3418
        %v3420 = vrot.slane %v3419, 2
        %v3421 = vmax.f32 %v3419, %v3420
        %v3422 = vrot.slane %v3421, 1
        %v3423 = vmax.f32 %v3421, %v3422
        %v3424 = vsel %vm1572, %v3371, -inf
        %v3425 = vrot.slane %v3424, 4
        %v3426 = vmax.f32 %v3424, %v3425
        %v3427 = vrot.slane %v3426, 2
        %v3428 = vmax.f32 %v3426, %v3427
        %v3429 = vrot.slane %v3428, 1
        %v3430 = vmax.f32 %v3428, %v3429
        %v3431 = vsel %vm1572, %v3373, -inf
        %v3432 = vrot.slane %v3431, 4
        %v3433 = vmax.f32 %v3431, %v3432
        %v3434 = vrot.slane %v3433, 2
        %v3435 = vmax.f32 %v3433, %v3434
        %v3436 = vrot.slane %v3435, 1
        %v3437 = vmax.f32 %v3435, %v3436
        %v3446 = vsel %vm1637, %v3395, %v3388
        %v3447 = vsel %vm1639, %v3402, %v3446
        %v3448 = vsel %vm1641, %v3409, %v3447
        %v3449 = vsel %vm1643, %v3416, %v3448
        %v3450 = vsel %vm1645, %v3423, %v3449
        %v3451 = vsel %vm1647, %v3430, %v3450
        %v3452 = vsel %vm1649, %v3437, %v3451
        %s3454 = scalar_lea.vmem [#allocation3], 80
        %3455 = vst [vmem:[%s3454 + $0x1] sm:$0xff] %v3452
        %v3456 = vmax.f32 %v3332, %v3334
        %v3457 = vmax.f32 %v3333, %v3335
        %v3460 = vcombine.high %v3456, %v3456
        %v3462 = vunpack.c.l.s4 1983009808
        %v3463 = vunpack.c.0.s8 %v3462
        %v3464 = vlaneseq
        %v3465 = vshrl.u32 %v3464, 7
        %v3466 = vsub.s32 %v3463, %v3465
        %v3467 = vrot.slane %v3456, %v3466
        %v3469 = vunpack.c.l.s4 1983009808
        %v3470 = vunpack.c.0.s8 %v3469
        %v3471 = vlaneseq
        %v3472 = vshrl.u32 %v3471, 7
        %v3473 = vsub.s32 %v3470, %v3472
        %v3474 = vrot.slane %v3460, %v3473
        %v3475 = vcombine.high %v3467, %v3467
        %v3476 = vcombine.high %v3474, %v3474
        %v3477 = vcombine.high %v3457, %v3457
        %v3479 = vunpack.c.l.s4 1983009808
        %v3480 = vunpack.c.0.s8 %v3479
        %v3481 = vlaneseq
        %v3482 = vshrl.u32 %v3481, 7
        %v3483 = vsub.s32 %v3480, %v3482
        %v3484 = vrot.slane %v3457, %v3483
        %v3486 = vunpack.c.l.s4 1983009808
        %v3487 = vunpack.c.0.s8 %v3486
        %v3488 = vlaneseq
        %v3489 = vshrl.u32 %v3488, 7
        %v3490 = vsub.s32 %v3487, %v3489
        %v3491 = vrot.slane %v3477, %v3490
        %v3492 = vcombine.high %v3484, %v3484
        %v3493 = vcombine.high %v3491, %v3491
        %v3502 = vsel %vm1572, %v3467, -inf
        %v3503 = vrot.slane %v3502, 4
        %v3504 = vmax.f32 %v3502, %v3503
        %v3505 = vrot.slane %v3504, 2
        %v3506 = vmax.f32 %v3504, %v3505
        %v3507 = vrot.slane %v3506, 1
        %v3508 = vmax.f32 %v3506, %v3507
        %v3509 = vsel %vm1572, %v3475, -inf
        %v3510 = vrot.slane %v3509, 4
        %v3511 = vmax.f32 %v3509, %v3510
        %v3512 = vrot.slane %v3511, 2
        %v3513 = vmax.f32 %v3511, %v3512
        %v3514 = vrot.slane %v3513, 1
        %v3515 = vmax.f32 %v3513, %v3514
        %v3516 = vsel %vm1572, %v3474, -inf
        %v3517 = vrot.slane %v3516, 4
        %v3518 = vmax.f32 %v3516, %v3517
        %v3519 = vrot.slane %v3518, 2
        %v3520 = vmax.f32 %v3518, %v3519
        %v3521 = vrot.slane %v3520, 1
        %v3522 = vmax.f32 %v3520, %v3521
        %v3523 = vsel %vm1572, %v3476, -inf
        %v3524 = vrot.slane %v3523, 4
        %v3525 = vmax.f32 %v3523, %v3524
        %v3526 = vrot.slane %v3525, 2
        %v3527 = vmax.f32 %v3525, %v3526
        %v3528 = vrot.slane %v3527, 1
        %v3529 = vmax.f32 %v3527, %v3528
        %v3530 = vsel %vm1572, %v3484, -inf
        %v3531 = vrot.slane %v3530, 4
        %v3532 = vmax.f32 %v3530, %v3531
        %v3533 = vrot.slane %v3532, 2
        %v3534 = vmax.f32 %v3532, %v3533
        %v3535 = vrot.slane %v3534, 1
        %v3536 = vmax.f32 %v3534, %v3535
        %v3537 = vsel %vm1572, %v3492, -inf
        %v3538 = vrot.slane %v3537, 4
        %v3539 = vmax.f32 %v3537, %v3538
        %v3540 = vrot.slane %v3539, 2
        %v3541 = vmax.f32 %v3539, %v3540
        %v3542 = vrot.slane %v3541, 1
        %v3543 = vmax.f32 %v3541, %v3542
        %v3544 = vsel %vm1572, %v3491, -inf
        %v3545 = vrot.slane %v3544, 4
        %v3546 = vmax.f32 %v3544, %v3545
        %v3547 = vrot.slane %v3546, 2
        %v3548 = vmax.f32 %v3546, %v3547
        %v3549 = vrot.slane %v3548, 1
        %v3550 = vmax.f32 %v3548, %v3549
        %v3551 = vsel %vm1572, %v3493, -inf
        %v3552 = vrot.slane %v3551, 4
        %v3553 = vmax.f32 %v3551, %v3552
        %v3554 = vrot.slane %v3553, 2
        %v3555 = vmax.f32 %v3553, %v3554
        %v3556 = vrot.slane %v3555, 1
        %v3557 = vmax.f32 %v3555, %v3556
        %v3566 = vsel %vm1637, %v3515, %v3508
        %v3567 = vsel %vm1639, %v3522, %v3566
        %v3568 = vsel %vm1641, %v3529, %v3567
        %v3569 = vsel %vm1643, %v3536, %v3568
        %v3570 = vsel %vm1645, %v3543, %v3569
        %v3571 = vsel %vm1647, %v3550, %v3570
        %v3572 = vsel %vm1649, %v3557, %v3571
        %s3574 = scalar_lea.vmem [#allocation3], 96
        %3575 = vst [vmem:[%s3574 + $0x1] sm:$0xff] %v3572
        %s3576 = scalar_lea.vmem [#allocation2], 288
        %v3577 = vld [vmem:[%s3576] sm:$0xff]
        %v3578 = vld [vmem:[%s3576 + $0x8] sm:$0xff]
        %v3579 = vld [vmem:[%s3576 + $0x18] sm:$0xff]
        %v3580 = vld [vmem:[%s3576 + $0x20] sm:$0xff]
        %v3581 = vld [vmem:[%s3576 + $0x30] sm:$0xff]
        %v3582 = vld [vmem:[%s3576 + $0x38] sm:$0xff]
        %v3583 = vld [vmem:[%s3576 + $0x48] sm:$0xff]
        %v3584 = vld [vmem:[%s3576 + $0x50] sm:$0xff]
        %v3585 = vld [vmem:[%s3576 + $0x1] sm:$0xff]
        %v3586 = vld [vmem:[%s3576 + $0x9] sm:$0xff]
        %v3587 = vld [vmem:[%s3576 + $0x19] sm:$0xff]
        %v3588 = vld [vmem:[%s3576 + $0x21] sm:$0xff]
        %v3589 = vld [vmem:[%s3576 + $0x31] sm:$0xff]
        %v3590 = vld [vmem:[%s3576 + $0x39] sm:$0xff]
        %v3591 = vld [vmem:[%s3576 + $0x49] sm:$0xff]
        %v3592 = vld [vmem:[%s3576 + $0x51] sm:$0xff]
        %v3593 = vld [vmem:[%s3576 + $0x2] sm:$0xff]
        %v3594 = vld [vmem:[%s3576 + $0xa] sm:$0xff]
        %v3595 = vld [vmem:[%s3576 + $0x1a] sm:$0xff]
        %v3596 = vld [vmem:[%s3576 + $0x22] sm:$0xff]
        %v3597 = vld [vmem:[%s3576 + $0x32] sm:$0xff]
        %v3598 = vld [vmem:[%s3576 + $0x3a] sm:$0xff]
        %v3599 = vld [vmem:[%s3576 + $0x4a] sm:$0xff]
        %v3600 = vld [vmem:[%s3576 + $0x52] sm:$0xff]
        %s3601 = scalar_lea.vmem [#allocation2], 312
        %v3602 = vld [vmem:[%s3601] sm:$0xff]
        %v3603 = vld [vmem:[%s3601 + $0x8] sm:$0xff]
        %v3604 = vld [vmem:[%s3601 + $0x18] sm:$0xff]
        %v3605 = vld [vmem:[%s3601 + $0x20] sm:$0xff]
        %v3606 = vld [vmem:[%s3601 + $0x30] sm:$0xff]
        %v3607 = vld [vmem:[%s3601 + $0x38] sm:$0xff]
        %v3608 = vld [vmem:[%s3601 + $0x48] sm:$0xff]
        %v3609 = vld [vmem:[%s3601 + $0x50] sm:$0xff]
        %v3610 = vld [vmem:[%s3601 + $0x1] sm:$0xff]
        %v3611 = vld [vmem:[%s3601 + $0x9] sm:$0xff]
        %v3612 = vld [vmem:[%s3601 + $0x19] sm:$0xff]
        %v3613 = vld [vmem:[%s3601 + $0x21] sm:$0xff]
        %v3614 = vld [vmem:[%s3601 + $0x31] sm:$0xff]
        %v3615 = vld [vmem:[%s3601 + $0x39] sm:$0xff]
        %v3616 = vld [vmem:[%s3601 + $0x49] sm:$0xff]
        %v3617 = vld [vmem:[%s3601 + $0x51] sm:$0xff]
        %v3618 = vld [vmem:[%s3601 + $0x2] sm:$0xff]
        %v3619 = vld [vmem:[%s3601 + $0xa] sm:$0xff]
        %v3620 = vld [vmem:[%s3601 + $0x1a] sm:$0xff]
        %v3621 = vld [vmem:[%s3601 + $0x22] sm:$0xff]
        %v3622 = vld [vmem:[%s3601 + $0x32] sm:$0xff]
        %v3623 = vld [vmem:[%s3601 + $0x3a] sm:$0xff]
        %v3624 = vld [vmem:[%s3601 + $0x4a] sm:$0xff]
        %v3625 = vld [vmem:[%s3601 + $0x52] sm:$0xff]
        %s3626 = scalar_lea.vmem [#allocation2], 336
        %v3627 = vld [vmem:[%s3626] sm:$0xff]
        %v3628 = vld [vmem:[%s3626 + $0x8] sm:$0xff]
        %v3629 = vld [vmem:[%s3626 + $0x18] sm:$0xff]
        %v3630 = vld [vmem:[%s3626 + $0x20] sm:$0xff]
        %v3631 = vld [vmem:[%s3626 + $0x30] sm:$0xff]
        %v3632 = vld [vmem:[%s3626 + $0x38] sm:$0xff]
        %v3633 = vld [vmem:[%s3626 + $0x48] sm:$0xff]
        %v3634 = vld [vmem:[%s3626 + $0x50] sm:$0xff]
        %v3635 = vld [vmem:[%s3626 + $0x1] sm:$0xff]
        %v3636 = vld [vmem:[%s3626 + $0x9] sm:$0xff]
        %v3637 = vld [vmem:[%s3626 + $0x19] sm:$0xff]
        %v3638 = vld [vmem:[%s3626 + $0x21] sm:$0xff]
        %v3639 = vld [vmem:[%s3626 + $0x31] sm:$0xff]
        %v3640 = vld [vmem:[%s3626 + $0x39] sm:$0xff]
        %v3641 = vld [vmem:[%s3626 + $0x49] sm:$0xff]
        %v3642 = vld [vmem:[%s3626 + $0x51] sm:$0xff]
        %v3643 = vld [vmem:[%s3626 + $0x2] sm:$0xff]
        %v3644 = vld [vmem:[%s3626 + $0xa] sm:$0xff]
        %v3645 = vld [vmem:[%s3626 + $0x1a] sm:$0xff]
        %v3646 = vld [vmem:[%s3626 + $0x22] sm:$0xff]
        %v3647 = vld [vmem:[%s3626 + $0x32] sm:$0xff]
        %v3648 = vld [vmem:[%s3626 + $0x3a] sm:$0xff]
        %v3649 = vld [vmem:[%s3626 + $0x4a] sm:$0xff]
        %v3650 = vld [vmem:[%s3626 + $0x52] sm:$0xff]
        %3659 = vrot.lane.b32.xlu0 %v3585, 64
        %v3660 = vpop.permute.xlu0 %3659
        %3661 = vrot.lane.b32.xlu0 %v3586, 64
        %v3662 = vpop.permute.xlu0 %3661
        %3663 = vrot.lane.b32.xlu0 %v3587, 64
        %v3664 = vpop.permute.xlu0 %3663
        %3665 = vrot.lane.b32.xlu0 %v3588, 64
        %v3666 = vpop.permute.xlu0 %3665
        %3667 = vrot.lane.b32.xlu0 %v3589, 64
        %v3668 = vpop.permute.xlu0 %3667
        %3669 = vrot.lane.b32.xlu0 %v3590, 64
        %v3670 = vpop.permute.xlu0 %3669
        %3671 = vrot.lane.b32.xlu0 %v3591, 64
        %v3672 = vpop.permute.xlu0 %3671
        %3673 = vrot.lane.b32.xlu0 %v3592, 64
        %v3674 = vpop.permute.xlu0 %3673
        %3691 = vrot.lane.b32.xlu0 %v3602, 64
        %v3692 = vpop.permute.xlu0 %3691
        %3693 = vrot.lane.b32.xlu0 %v3603, 64
        %v3694 = vpop.permute.xlu0 %3693
        %3695 = vrot.lane.b32.xlu0 %v3604, 64
        %v3696 = vpop.permute.xlu0 %3695
        %3697 = vrot.lane.b32.xlu0 %v3605, 64
        %v3698 = vpop.permute.xlu0 %3697
        %3699 = vrot.lane.b32.xlu0 %v3606, 64
        %v3700 = vpop.permute.xlu0 %3699
        %3701 = vrot.lane.b32.xlu0 %v3607, 64
        %v3702 = vpop.permute.xlu0 %3701
        %3703 = vrot.lane.b32.xlu0 %v3608, 64
        %v3704 = vpop.permute.xlu0 %3703
        %3705 = vrot.lane.b32.xlu0 %v3609, 64
        %v3706 = vpop.permute.xlu0 %3705
        %3723 = vrot.lane.b32.xlu0 %v3618, 64
        %v3724 = vpop.permute.xlu0 %3723
        %3725 = vrot.lane.b32.xlu0 %v3619, 64
        %v3726 = vpop.permute.xlu0 %3725
        %3727 = vrot.lane.b32.xlu0 %v3620, 64
        %v3728 = vpop.permute.xlu0 %3727
        %3729 = vrot.lane.b32.xlu0 %v3621, 64
        %v3730 = vpop.permute.xlu0 %3729
        %3731 = vrot.lane.b32.xlu0 %v3622, 64
        %v3732 = vpop.permute.xlu0 %3731
        %3733 = vrot.lane.b32.xlu0 %v3623, 64
        %v3734 = vpop.permute.xlu0 %3733
        %3735 = vrot.lane.b32.xlu0 %v3624, 64
        %v3736 = vpop.permute.xlu0 %3735
        %3737 = vrot.lane.b32.xlu0 %v3625, 64
        %v3738 = vpop.permute.xlu0 %3737
        %3755 = vrot.lane.b32.xlu0 %v3635, 64
        %v3756 = vpop.permute.xlu0 %3755
        %3757 = vrot.lane.b32.xlu0 %v3636, 64
        %v3758 = vpop.permute.xlu0 %3757
        %3759 = vrot.lane.b32.xlu0 %v3637, 64
        %v3760 = vpop.permute.xlu0 %3759
        %3761 = vrot.lane.b32.xlu0 %v3638, 64
        %v3762 = vpop.permute.xlu0 %3761
        %3763 = vrot.lane.b32.xlu0 %v3639, 64
        %v3764 = vpop.permute.xlu0 %3763
        %3765 = vrot.lane.b32.xlu0 %v3640, 64
        %v3766 = vpop.permute.xlu0 %3765
        %3767 = vrot.lane.b32.xlu0 %v3641, 64
        %v3768 = vpop.permute.xlu0 %3767
        %3769 = vrot.lane.b32.xlu0 %v3642, 64
        %v3770 = vpop.permute.xlu0 %3769
        %v3779 = vsel %vm361, %v3577, %v3660
        %v3780 = vsel %vm361, %v3578, %v3662
        %v3781 = vsel %vm361, %v3579, %v3664
        %v3782 = vsel %vm361, %v3580, %v3666
        %v3783 = vsel %vm361, %v3581, %v3668
        %v3784 = vsel %vm361, %v3582, %v3670
        %v3785 = vsel %vm361, %v3583, %v3672
        %v3786 = vsel %vm361, %v3584, %v3674
        %v3787 = vsel %vm361, %v3593, %v3692
        %v3788 = vsel %vm361, %v3594, %v3694
        %v3789 = vsel %vm361, %v3595, %v3696
        %v3790 = vsel %vm361, %v3596, %v3698
        %v3791 = vsel %vm361, %v3597, %v3700
        %v3792 = vsel %vm361, %v3598, %v3702
        %v3793 = vsel %vm361, %v3599, %v3704
        %v3794 = vsel %vm361, %v3600, %v3706
        %v3795 = vsel %vm361, %v3610, %v3724
        %v3796 = vsel %vm361, %v3611, %v3726
        %v3797 = vsel %vm361, %v3612, %v3728
        %v3798 = vsel %vm361, %v3613, %v3730
        %v3799 = vsel %vm361, %v3614, %v3732
        %v3800 = vsel %vm361, %v3615, %v3734
        %v3801 = vsel %vm361, %v3616, %v3736
        %v3802 = vsel %vm361, %v3617, %v3738
        %v3803 = vsel %vm361, %v3627, %v3756
        %v3804 = vsel %vm361, %v3628, %v3758
        %v3805 = vsel %vm361, %v3629, %v3760
        %v3806 = vsel %vm361, %v3630, %v3762
        %v3807 = vsel %vm361, %v3631, %v3764
        %v3808 = vsel %vm361, %v3632, %v3766
        %v3809 = vsel %vm361, %v3633, %v3768
        %v3810 = vsel %vm361, %v3634, %v3770
        %v3811 = vld [vmem:[#allocation8] sm:$0xff]
        %v3812 = vld [vmem:[#allocation8 + $0x8] sm:$0xff]
        %v3813 = vld [vmem:[#allocation8 + $0x10] sm:$0xff]
        %v3814 = vld [vmem:[#allocation8 + $0x18] sm:$0xff]
        %v3815 = vld [vmem:[#allocation8 + $0x20] sm:$0xff]
        %v3816 = vld [vmem:[#allocation8 + $0x28] sm:$0xff]
        %v3817 = vld [vmem:[#allocation8 + $0x30] sm:$0xff]
        %v3818 = vld [vmem:[#allocation8 + $0x38] sm:$0xff]
        %v3819 = vld [vmem:[#allocation8 + $0x40] sm:$0xff]
        %v3820 = vld [vmem:[#allocation8 + $0x48] sm:$0xff]
        %v3821 = vld [vmem:[#allocation8 + $0x50] sm:$0xff]
        %v3822 = vld [vmem:[#allocation8 + $0x58] sm:$0xff]
        %v3823 = vld [vmem:[#allocation8 + $0x60] sm:$0xff]
        %v3824 = vld [vmem:[#allocation8 + $0x68] sm:$0xff]
        %v3825 = vld [vmem:[#allocation8 + $0x70] sm:$0xff]
        %v3826 = vld [vmem:[#allocation8 + $0x78] sm:$0xff]
        %v3827 = vld [vmem:[#allocation8 + $0x80] sm:$0xff]
        %v3828 = vld [vmem:[#allocation8 + $0x88] sm:$0xff]
        %v3829 = vld [vmem:[#allocation8 + $0x90] sm:$0xff]
        %v3830 = vld [vmem:[#allocation8 + $0x98] sm:$0xff]
        %v3831 = vld [vmem:[#allocation8 + $0xa0] sm:$0xff]
        %v3832 = vld [vmem:[#allocation8 + $0xa8] sm:$0xff]
        %v3833 = vld [vmem:[#allocation8 + $0xb0] sm:$0xff]
        %v3834 = vld [vmem:[#allocation8 + $0xb8] sm:$0xff]
        %v3835 = vld [vmem:[#allocation8 + $0xc0] sm:$0xff]
        %v3836 = vld [vmem:[#allocation8 + $0xc8] sm:$0xff]
        %v3837 = vld [vmem:[#allocation8 + $0xd0] sm:$0xff]
        %v3838 = vld [vmem:[#allocation8 + $0xd8] sm:$0xff]
        %v3839 = vld [vmem:[#allocation8 + $0xe0] sm:$0xff]
        %v3840 = vld [vmem:[#allocation8 + $0xe8] sm:$0xff]
        %v3841 = vld [vmem:[#allocation8 + $0xf0] sm:$0xff]
        %v3842 = vld [vmem:[#allocation8 + $0xf8] sm:$0xff]
        %v3843 = vld [vmem:[#allocation8 + $0x100] sm:$0xff]
        %v3844 = vld [vmem:[#allocation8 + $0x108] sm:$0xff]
        %v3845 = vld [vmem:[#allocation8 + $0x110] sm:$0xff]
        %v3846 = vld [vmem:[#allocation8 + $0x118] sm:$0xff]
        %v3847 = vld [vmem:[#allocation8 + $0x120] sm:$0xff]
        %v3848 = vld [vmem:[#allocation8 + $0x128] sm:$0xff]
        %v3849 = vld [vmem:[#allocation8 + $0x130] sm:$0xff]
        %v3850 = vld [vmem:[#allocation8 + $0x138] sm:$0xff]
        %v3851 = vld [vmem:[#allocation8 + $0x140] sm:$0xff]
        %v3852 = vld [vmem:[#allocation8 + $0x148] sm:$0xff]
        %v3853 = vld [vmem:[#allocation8 + $0x150] sm:$0xff]
        %v3854 = vld [vmem:[#allocation8 + $0x158] sm:$0xff]
        %v3855 = vld [vmem:[#allocation8 + $0x160] sm:$0xff]
        %v3856 = vld [vmem:[#allocation8 + $0x168] sm:$0xff]
        %v3857 = vld [vmem:[#allocation8 + $0x170] sm:$0xff]
        %v3858 = vld [vmem:[#allocation8 + $0x178] sm:$0xff]
        %v3859 = vld [vmem:[#allocation8 + $0x180] sm:$0xff]
        %v3860 = vld [vmem:[#allocation8 + $0x188] sm:$0xff]
        %v3861 = vld [vmem:[#allocation8 + $0x190] sm:$0xff]
        %v3862 = vld [vmem:[#allocation8 + $0x198] sm:$0xff]
        %v3863 = vld [vmem:[#allocation8 + $0x1a0] sm:$0xff]
        %v3864 = vld [vmem:[#allocation8 + $0x1a8] sm:$0xff]
        %v3865 = vld [vmem:[#allocation8 + $0x1b0] sm:$0xff]
        %v3866 = vld [vmem:[#allocation8 + $0x1b8] sm:$0xff]
        %v3867 = vld [vmem:[#allocation8 + $0x1c0] sm:$0xff]
        %v3868 = vld [vmem:[#allocation8 + $0x1c8] sm:$0xff]
        %v3869 = vld [vmem:[#allocation8 + $0x1d0] sm:$0xff]
        %v3870 = vld [vmem:[#allocation8 + $0x1d8] sm:$0xff]
        %v3871 = vld [vmem:[#allocation8 + $0x1e0] sm:$0xff]
        %v3872 = vld [vmem:[#allocation8 + $0x1e8] sm:$0xff]
        %v3873 = vld [vmem:[#allocation8 + $0x1f0] sm:$0xff]
        %v3874 = vld [vmem:[#allocation8 + $0x1f8] sm:$0xff]
        %v3875 = vld [vmem:[#allocation8 + $0x200] sm:$0xff]
        %v3876 = vld [vmem:[#allocation8 + $0x208] sm:$0xff]
        %v3877 = vld [vmem:[#allocation8 + $0x210] sm:$0xff]
        %v3878 = vld [vmem:[#allocation8 + $0x218] sm:$0xff]
        %v3879 = vld [vmem:[#allocation8 + $0x220] sm:$0xff]
        %v3880 = vld [vmem:[#allocation8 + $0x228] sm:$0xff]
        %v3881 = vld [vmem:[#allocation8 + $0x230] sm:$0xff]
        %v3882 = vld [vmem:[#allocation8 + $0x238] sm:$0xff]
        %v3883 = vld [vmem:[#allocation9] sm:$0x1]
        %v3885 = vlaneseq
        %v3886 = vshrl.u32 %v3885, 7
        %v3887 = vsub.s32 0, %v3886
        %v3888 = vrot.slane %v3883, %v3887
        %v3891 = vsel %vm361, %v3643, 0
        %v3894 = vsel %vm361, %v3644, 0
        %v3897 = vsel %vm361, %v3645, 0
        %v3900 = vsel %vm361, %v3646, 0
        %v3903 = vsel %vm361, %v3647, 0
        %v3906 = vsel %vm361, %v3648, 0
        %v3909 = vsel %vm361, %v3649, 0
        %v3912 = vsel %vm361, %v3650, 0
        %3914 = vmatprep.subr.mxu0 0.0
        %3915 = vmatpush1.msra.mxu0 %v3811
        %3916 = vmatprep.subr.mxu0 0.0
        %3917 = vmatpush1.msra.mxu0 %v3812
        %3918 = vmatprep.subr.mxu0 0.0
        %3919 = vmatpush1.msra.mxu0 %v3813
        %3920 = vmatprep.subr.mxu0 0.0
        %3921 = vmatpush1.msra.mxu0 %v3814
        %3922 = vmatprep.subr.mxu0 0.0
        %3923 = vmatpush1.msra.mxu0 %v3815
        %3924 = vmatprep.subr.mxu0 0.0
        %3925 = vmatpush1.msra.mxu0 %v3816
        %3926 = vmatprep.subr.mxu0 0.0
        %3927 = vmatpush1.msra.mxu0 %v3817
        %3928 = vmatprep.subr.mxu0 0.0
        %3929 = vmatpush1.msra.mxu0 %v3818
        %3930 = vmatprep.subr.mxu0 0.0
        %3931 = vmatpush1.msra.mxu0 %v3819
        %3932 = vmatprep.subr.mxu0 0.0
        %3933 = vmatpush1.msra.mxu0 %v3820
        %3934 = vmatprep.subr.mxu0 0.0
        %3935 = vmatpush1.msra.mxu0 %v3821
        %3936 = vmatprep.subr.mxu0 0.0
        %3937 = vmatpush1.msra.mxu0 %v3822
        %3938 = vmatprep.subr.mxu0 0.0
        %3939 = vmatpush1.msra.mxu0 %v3823
        %3940 = vmatprep.subr.mxu0 0.0
        %3941 = vmatpush1.msra.mxu0 %v3824
        %3942 = vmatprep.subr.mxu0 0.0
        %3943 = vmatpush1.msra.mxu0 %v3825
        %3944 = vmatprep.subr.mxu0 0.0
        %3945 = vmatpush1.msra.mxu0 %v3826
        %3946 = vmatprep.subr.mxu0 0.0
        %3947 = vmatpush1.msra.mxu0 %v3827
        %3948 = vmatprep.subr.mxu0 0.0
        %3949 = vmatpush1.msra.mxu0 %v3828
        %3950 = vmatprep.subr.mxu0 0.0
        %3951 = vmatpush1.msra.mxu0 %v3829
        %3952 = vmatprep.subr.mxu0 0.0
        %3953 = vmatpush1.msra.mxu0 %v3830
        %3954 = vmatprep.subr.mxu0 0.0
        %3955 = vmatpush1.msra.mxu0 %v3831
        %3956 = vmatprep.subr.mxu0 0.0
        %3957 = vmatpush1.msra.mxu0 %v3832
        %3958 = vmatprep.subr.mxu0 0.0
        %3959 = vmatpush1.msra.mxu0 %v3833
        %3960 = vmatprep.subr.mxu0 0.0
        %3961 = vmatpush1.msra.mxu0 %v3834
        %3962 = vmatprep.subr.mxu0 0.0
        %3963 = vmatpush1.msra.mxu0 %v3835
        %3964 = vmatprep.subr.mxu0 0.0
        %3965 = vmatpush1.msra.mxu0 %v3836
        %3966 = vmatprep.subr.mxu0 0.0
        %3967 = vmatpush1.msra.mxu0 %v3837
        %3968 = vmatprep.subr.mxu0 0.0
        %3969 = vmatpush1.msra.mxu0 %v3838
        %3970 = vmatprep.subr.mxu0 0.0
        %3971 = vmatpush1.msra.mxu0 %v3839
        %3972 = vmatprep.subr.mxu0 0.0
        %3973 = vmatpush1.msra.mxu0 %v3840
        %3974 = vmatprep.subr.mxu0 0.0
        %3975 = vmatpush1.msra.mxu0 %v3841
        %3976 = vmatprep.subr.mxu0 0.0
        %3977 = vmatpush1.msra.mxu0 %v3842
        %3978 = vmatprep.mubr.f32.mxu0 %v3787
        %3979 = vmatmul.mubr.f32.gmra.mrb[0].mxu0 %v3779
        %v3980 = vpop.f32.mrb[0].mxu0
        %v3981 = vadd.f32 %v3888, %v3980
        %v3982 = vpop.f32.mrb[0].mxu0
        %3983 = vmatprep.mubr.f32.mxu0 %v3788
        %3984 = vmatmul.mubr.f32.gmra.mrb[0].mxu0 %v3780
        %v3985 = vpop.f32.mrb[0].mxu0
        %v3986 = vadd.f32 %v3888, %v3985
        %v3987 = vpop.f32.mrb[0].mxu0
        %3988 = vmatprep.mubr.f32.mxu0 %v3789
        %3989 = vmatmul.mubr.f32.gmra.mrb[0].mxu0 %v3781
        %v3990 = vpop.f32.mrb[0].mxu0
        %v3991 = vadd.f32 %v3888, %v3990
        %v3992 = vpop.f32.mrb[0].mxu0
        %3993 = vmatprep.mubr.f32.mxu0 %v3790
        %3994 = vmatmul.mubr.f32.gmra.mrb[0].mxu0 %v3782
        %v3995 = vpop.f32.mrb[0].mxu0
        %v3996 = vadd.f32 %v3888, %v3995
        %v3997 = vpop.f32.mrb[0].mxu0
        %3998 = vmatprep.mubr.f32.mxu0 %v3791
        %3999 = vmatmul.mubr.f32.gmra.mrb[0].mxu0 %v3783
        %v4000 = vpop.f32.mrb[0].mxu0
        %v4001 = vadd.f32 %v3888, %v4000
        %v4002 = vpop.f32.mrb[0].mxu0
        %4003 = vmatprep.mubr.f32.mxu0 %v3792
        %4004 = vmatmul.mubr.f32.gmra.mrb[0].mxu0 %v3784
        %v4005 = vpop.f32.mrb[0].mxu0
        %v4006 = vadd.f32 %v3888, %v4005
        %v4007 = vpop.f32.mrb[0].mxu0
        %4008 = vmatprep.mubr.f32.mxu0 %v3793
        %4009 = vmatmul.mubr.f32.gmra.mrb[0].mxu0 %v3785
        %v4010 = vpop.f32.mrb[0].mxu0
        %v4011 = vadd.f32 %v3888, %v4010
        %v4012 = vpop.f32.mrb[0].mxu0
        %4013 = vmatprep.mubr.f32.mxu0 %v3794
        %4014 = vmatmul.mubr.f32.gmra.mrb[0].mxu0 %v3786
        %v4015 = vpop.f32.mrb[0].mxu0
        %v4016 = vadd.f32 %v3888, %v4015
        %v4017 = vpop.f32.mrb[0].mxu0
        %4018 = vdwg.mxu0
        %4019 = vmatprep.subr.mxu0 0.0
        %4020 = vmatpush1.msra.mxu0 %v3843
        %4021 = vmatprep.subr.mxu0 0.0
        %4022 = vmatpush1.msra.mxu0 %v3844
        %4023 = vmatprep.subr.mxu0 0.0
        %4024 = vmatpush1.msra.mxu0 %v3845
        %4025 = vmatprep.subr.mxu0 0.0
        %4026 = vmatpush1.msra.mxu0 %v3846
        %4027 = vmatprep.subr.mxu0 0.0
        %4028 = vmatpush1.msra.mxu0 %v3847
        %4029 = vmatprep.subr.mxu0 0.0
        %4030 = vmatpush1.msra.mxu0 %v3848
        %4031 = vmatprep.subr.mxu0 0.0
        %4032 = vmatpush1.msra.mxu0 %v3849
        %4033 = vmatprep.subr.mxu0 0.0
        %4034 = vmatpush1.msra.mxu0 %v3850
        %4035 = vmatprep.subr.mxu0 0.0
        %4036 = vmatpush1.msra.mxu0 %v3851
        %4037 = vmatprep.subr.mxu0 0.0
        %4038 = vmatpush1.msra.mxu0 %v3852
        %4039 = vmatprep.subr.mxu0 0.0
        %4040 = vmatpush1.msra.mxu0 %v3853
        %4041 = vmatprep.subr.mxu0 0.0
        %4042 = vmatpush1.msra.mxu0 %v3854
        %4043 = vmatprep.subr.mxu0 0.0
        %4044 = vmatpush1.msra.mxu0 %v3855
        %4045 = vmatprep.subr.mxu0 0.0
        %4046 = vmatpush1.msra.mxu0 %v3856
        %4047 = vmatprep.subr.mxu0 0.0
        %4048 = vmatpush1.msra.mxu0 %v3857
        %4049 = vmatprep.subr.mxu0 0.0
        %4050 = vmatpush1.msra.mxu0 %v3858
        %4051 = vmatprep.subr.mxu0 0.0
        %4052 = vmatpush1.msra.mxu0 %v3859
        %4053 = vmatprep.subr.mxu0 0.0
        %4054 = vmatpush1.msra.mxu0 %v3860
        %4055 = vmatprep.subr.mxu0 0.0
        %4056 = vmatpush1.msra.mxu0 %v3861
        %4057 = vmatprep.subr.mxu0 0.0
        %4058 = vmatpush1.msra.mxu0 %v3862
        %4059 = vmatprep.subr.mxu0 0.0
        %4060 = vmatpush1.msra.mxu0 %v3863
        %4061 = vmatprep.subr.mxu0 0.0
        %4062 = vmatpush1.msra.mxu0 %v3864
        %4063 = vmatprep.subr.mxu0 0.0
        %4064 = vmatpush1.msra.mxu0 %v3865
        %4065 = vmatprep.subr.mxu0 0.0
        %4066 = vmatpush1.msra.mxu0 %v3866
        %4067 = vmatprep.subr.mxu0 0.0
        %4068 = vmatpush1.msra.mxu0 %v3867
        %4069 = vmatprep.subr.mxu0 0.0
        %4070 = vmatpush1.msra.mxu0 %v3868
        %4071 = vmatprep.subr.mxu0 0.0
        %4072 = vmatpush1.msra.mxu0 %v3869
        %4073 = vmatprep.subr.mxu0 0.0
        %4074 = vmatpush1.msra.mxu0 %v3870
        %4075 = vmatprep.subr.mxu0 0.0
        %4076 = vmatpush1.msra.mxu0 %v3871
        %4077 = vmatprep.subr.mxu0 0.0
        %4078 = vmatpush1.msra.mxu0 %v3872
        %4079 = vmatprep.subr.mxu0 0.0
        %4080 = vmatpush1.msra.mxu0 %v3873
        %4081 = vmatprep.subr.mxu0 0.0
        %4082 = vmatpush1.msra.mxu0 %v3874
        %4083 = vmatprep.mubr.f32.mxu0 %v3803
        %4084 = vmatmul.mubr.f32.gmra.mrb[0].mxu0 %v3795
        %v4085 = vpop.f32.mrb[0].mxu0
        %v4086 = vadd.f32 %v3981, %v4085
        %v4087 = vpop.f32.mrb[0].mxu0
        %4088 = vmatprep.mubr.f32.mxu0 %v3804
        %4089 = vmatmul.mubr.f32.gmra.mrb[0].mxu0 %v3796
        %v4090 = vpop.f32.mrb[0].mxu0
        %v4091 = vadd.f32 %v3986, %v4090
        %v4092 = vpop.f32.mrb[0].mxu0
        %4093 = vmatprep.mubr.f32.mxu0 %v3805
        %4094 = vmatmul.mubr.f32.gmra.mrb[0].mxu0 %v3797
        %v4095 = vpop.f32.mrb[0].mxu0
        %v4096 = vadd.f32 %v3991, %v4095
        %v4097 = vpop.f32.mrb[0].mxu0
        %4098 = vmatprep.mubr.f32.mxu0 %v3806
        %4099 = vmatmul.mubr.f32.gmra.mrb[0].mxu0 %v3798
        %v4100 = vpop.f32.mrb[0].mxu0
        %v4101 = vadd.f32 %v3996, %v4100
        %v4102 = vpop.f32.mrb[0].mxu0
        %4103 = vmatprep.mubr.f32.mxu0 %v3807
        %4104 = vmatmul.mubr.f32.gmra.mrb[0].mxu0 %v3799
        %v4105 = vpop.f32.mrb[0].mxu0
        %v4106 = vadd.f32 %v4001, %v4105
        %v4107 = vpop.f32.mrb[0].mxu0
        %4108 = vmatprep.mubr.f32.mxu0 %v3808
        %4109 = vmatmul.mubr.f32.gmra.mrb[0].mxu0 %v3800
        %v4110 = vpop.f32.mrb[0].mxu0
        %v4111 = vadd.f32 %v4006, %v4110
        %v4112 = vpop.f32.mrb[0].mxu0
        %4113 = vmatprep.mubr.f32.mxu0 %v3809
        %4114 = vmatmul.mubr.f32.gmra.mrb[0].mxu0 %v3801
        %v4115 = vpop.f32.mrb[0].mxu0
        %v4116 = vadd.f32 %v4011, %v4115
        %v4117 = vpop.f32.mrb[0].mxu0
        %4118 = vmatprep.mubr.f32.mxu0 %v3810
        %4119 = vmatmul.mubr.f32.gmra.mrb[0].mxu0 %v3802
        %v4120 = vpop.f32.mrb[0].mxu0
        %v4121 = vadd.f32 %v4016, %v4120
        %v4122 = vpop.f32.mrb[0].mxu0
        %4123 = vdwg.mxu0
        %4124 = vmatprep.subr.mxu0 0.0
        %4125 = vmatpush1.msra.mxu0 %v3875
        %4126 = vmatprep.subr.mxu0 0.0
        %4127 = vmatpush1.msra.mxu0 %v3876
        %4128 = vmatprep.subr.mxu0 0.0
        %4129 = vmatpush1.msra.mxu0 %v3877
        %4130 = vmatprep.subr.mxu0 0.0
        %4131 = vmatpush1.msra.mxu0 %v3878
        %4132 = vmatprep.subr.mxu0 0.0
        %4133 = vmatpush1.msra.mxu0 %v3879
        %4134 = vmatprep.subr.mxu0 0.0
        %4135 = vmatpush1.msra.mxu0 %v3880
        %4136 = vmatprep.subr.mxu0 0.0
        %4137 = vmatpush1.msra.mxu0 %v3881
        %4138 = vmatprep.subr.mxu0 0.0
        %4139 = vmatpush1.msra.mxu0 %v3882
        %4140 = vmatprep.subr.mxu0 0.0
        %4141 = vmatpush1.msra.mxu0 0.0
        %4142 = vmatprep.subr.mxu0 0.0
        %4143 = vmatpush1.msra.mxu0 0.0
        %4144 = vmatprep.subr.mxu0 0.0
        %4145 = vmatpush1.msra.mxu0 0.0
        %4146 = vmatprep.subr.mxu0 0.0
        %4147 = vmatpush1.msra.mxu0 0.0
        %4148 = vmatprep.subr.mxu0 0.0
        %4149 = vmatpush1.msra.mxu0 0.0
        %4150 = vmatprep.subr.mxu0 0.0
        %4151 = vmatpush1.msra.mxu0 0.0
        %4152 = vmatprep.subr.mxu0 0.0
        %4153 = vmatpush1.msra.mxu0 0.0
        %4154 = vmatprep.subr.mxu0 0.0
        %4155 = vmatpush1.msra.mxu0 0.0
        %4156 = vmatprep.subr.mxu0 0.0
        %4157 = vmatpush1.msra.mxu0 0.0
        %4158 = vmatprep.subr.mxu0 0.0
        %4159 = vmatpush1.msra.mxu0 0.0
        %4160 = vmatprep.subr.mxu0 0.0
        %4161 = vmatpush1.msra.mxu0 0.0
        %4162 = vmatprep.subr.mxu0 0.0
        %4163 = vmatpush1.msra.mxu0 0.0
        %4164 = vmatprep.subr.mxu0 0.0
        %4165 = vmatpush1.msra.mxu0 0.0
        %4166 = vmatprep.subr.mxu0 0.0
        %4167 = vmatpush1.msra.mxu0 0.0
        %4168 = vmatprep.subr.mxu0 0.0
        %4169 = vmatpush1.msra.mxu0 0.0
        %4170 = vmatprep.subr.mxu0 0.0
        %4171 = vmatpush1.msra.mxu0 0.0
        %4172 = vmatprep.subr.mxu0 0.0
        %4173 = vmatpush1.msra.mxu0 0.0
        %4174 = vmatprep.subr.mxu0 0.0
        %4175 = vmatpush1.msra.mxu0 0.0
        %4176 = vmatprep.subr.mxu0 0.0
        %4177 = vmatpush1.msra.mxu0 0.0
        %4178 = vmatprep.subr.mxu0 0.0
        %4179 = vmatpush1.msra.mxu0 0.0
        %4180 = vmatprep.subr.mxu0 0.0
        %4181 = vmatpush1.msra.mxu0 0.0
        %4182 = vmatprep.subr.mxu0 0.0
        %4183 = vmatpush1.msra.mxu0 0.0
        %4184 = vmatprep.subr.mxu0 0.0
        %4185 = vmatpush1.msra.mxu0 0.0
        %4186 = vmatprep.subr.mxu0 0.0
        %4187 = vmatpush1.msra.mxu0 0.0
        %4188 = vmatprep.mubr.f32.mxu0 0.0
        %4189 = vmatmul.mubr.f32.gmra.mrb[0].mxu0 %v3891
        %v4190 = vpop.f32.mrb[0].mxu0
        %v4191 = vadd.f32 %v4086, %v4190
        %v4192 = vpop.f32.mrb[0].mxu0
        %4193 = vmatprep.mubr.f32.mxu0 0.0
        %4194 = vmatmul.mubr.f32.gmra.mrb[0].mxu0 %v3894
        %v4195 = vpop.f32.mrb[0].mxu0
        %v4196 = vadd.f32 %v4091, %v4195
        %v4197 = vpop.f32.mrb[0].mxu0
        %4198 = vmatprep.mubr.f32.mxu0 0.0
        %4199 = vmatmul.mubr.f32.gmra.mrb[0].mxu0 %v3897
        %v4200 = vpop.f32.mrb[0].mxu0
        %v4201 = vadd.f32 %v4096, %v4200
        %v4202 = vpop.f32.mrb[0].mxu0
        %4203 = vmatprep.mubr.f32.mxu0 0.0
        %4204 = vmatmul.mubr.f32.gmra.mrb[0].mxu0 %v3900
        %v4205 = vpop.f32.mrb[0].mxu0
        %v4206 = vadd.f32 %v4101, %v4205
        %v4207 = vpop.f32.mrb[0].mxu0
        %4208 = vmatprep.mubr.f32.mxu0 0.0
        %4209 = vmatmul.mubr.f32.gmra.mrb[0].mxu0 %v3903
        %v4210 = vpop.f32.mrb[0].mxu0
        %v4211 = vadd.f32 %v4106, %v4210
        %v4212 = vpop.f32.mrb[0].mxu0
        %4213 = vmatprep.mubr.f32.mxu0 0.0
        %4214 = vmatmul.mubr.f32.gmra.mrb[0].mxu0 %v3906
        %v4215 = vpop.f32.mrb[0].mxu0
        %v4216 = vadd.f32 %v4111, %v4215
        %v4217 = vpop.f32.mrb[0].mxu0
        %4218 = vmatprep.mubr.f32.mxu0 0.0
        %4219 = vmatmul.mubr.f32.gmra.mrb[0].mxu0 %v3909
        %v4220 = vpop.f32.mrb[0].mxu0
        %v4221 = vadd.f32 %v4116, %v4220
        %v4222 = vpop.f32.mrb[0].mxu0
        %4223 = vmatprep.mubr.f32.mxu0 0.0
        %4224 = vmatmul.mubr.f32.gmra.mrb[0].mxu0 %v3912
        %v4225 = vpop.f32.mrb[0].mxu0
        %v4226 = vadd.f32 %v4121, %v4225
        %v4227 = vpop.f32.mrb[0].mxu0
        %4228 = vdwg.mxu0
        %v4229 = vmax.f32 %v4191, 0.0
        %v4230 = vmax.f32 %v4196, 0.0
        %v4231 = vmax.f32 %v4201, 0.0
        %v4232 = vmax.f32 %v4206, 0.0
        %v4233 = vmax.f32 %v4211, 0.0
        %v4234 = vmax.f32 %v4216, 0.0
        %v4235 = vmax.f32 %v4221, 0.0
        %v4236 = vmax.f32 %v4226, 0.0
        %v4237 = vmax.f32 %v4229, %v4231
        %v4238 = vmax.f32 %v4230, %v4232
        %v4241 = vcombine.high %v4237, %v4237
        %v4243 = vunpack.c.l.s4 1983009808
        %v4244 = vunpack.c.0.s8 %v4243
        %v4245 = vlaneseq
        %v4246 = vshrl.u32 %v4245, 7
        %v4247 = vsub.s32 %v4244, %v4246
        %v4248 = vrot.slane %v4237, %v4247
        %v4250 = vunpack.c.l.s4 1983009808
        %v4251 = vunpack.c.0.s8 %v4250
        %v4252 = vlaneseq
        %v4253 = vshrl.u32 %v4252, 7
        %v4254 = vsub.s32 %v4251, %v4253
        %v4255 = vrot.slane %v4241, %v4254
        %v4256 = vcombine.high %v4248, %v4248
        %v4257 = vcombine.high %v4255, %v4255
        %v4258 = vcombine.high %v4238, %v4238
        %v4260 = vunpack.c.l.s4 1983009808
        %v4261 = vunpack.c.0.s8 %v4260
        %v4262 = vlaneseq
        %v4263 = vshrl.u32 %v4262, 7
        %v4264 = vsub.s32 %v4261, %v4263
        %v4265 = vrot.slane %v4238, %v4264
        %v4267 = vunpack.c.l.s4 1983009808
        %v4268 = vunpack.c.0.s8 %v4267
        %v4269 = vlaneseq
        %v4270 = vshrl.u32 %v4269, 7
        %v4271 = vsub.s32 %v4268, %v4270
        %v4272 = vrot.slane %v4258, %v4271
        %v4273 = vcombine.high %v4265, %v4265
        %v4274 = vcombine.high %v4272, %v4272
        %v4283 = vsel %vm1572, %v4248, -inf
        %v4284 = vrot.slane %v4283, 4
        %v4285 = vmax.f32 %v4283, %v4284
        %v4286 = vrot.slane %v4285, 2
        %v4287 = vmax.f32 %v4285, %v4286
        %v4288 = vrot.slane %v4287, 1
        %v4289 = vmax.f32 %v4287, %v4288
        %v4290 = vsel %vm1572, %v4256, -inf
        %v4291 = vrot.slane %v4290, 4
        %v4292 = vmax.f32 %v4290, %v4291
        %v4293 = vrot.slane %v4292, 2
        %v4294 = vmax.f32 %v4292, %v4293
        %v4295 = vrot.slane %v4294, 1
        %v4296 = vmax.f32 %v4294, %v4295
        %v4297 = vsel %vm1572, %v4255, -inf
        %v4298 = vrot.slane %v4297, 4
        %v4299 = vmax.f32 %v4297, %v4298
        %v4300 = vrot.slane %v4299, 2
        %v4301 = vmax.f32 %v4299, %v4300
        %v4302 = vrot.slane %v4301, 1
        %v4303 = vmax.f32 %v4301, %v4302
        %v4304 = vsel %vm1572, %v4257, -inf
        %v4305 = vrot.slane %v4304, 4
        %v4306 = vmax.f32 %v4304, %v4305
        %v4307 = vrot.slane %v4306, 2
        %v4308 = vmax.f32 %v4306, %v4307
        %v4309 = vrot.slane %v4308, 1
        %v4310 = vmax.f32 %v4308, %v4309
        %v4311 = vsel %vm1572, %v4265, -inf
        %v4312 = vrot.slane %v4311, 4
        %v4313 = vmax.f32 %v4311, %v4312
        %v4314 = vrot.slane %v4313, 2
        %v4315 = vmax.f32 %v4313, %v4314
        %v4316 = vrot.slane %v4315, 1
        %v4317 = vmax.f32 %v4315, %v4316
        %v4318 = vsel %vm1572, %v4273, -inf
        %v4319 = vrot.slane %v4318, 4
        %v4320 = vmax.f32 %v4318, %v4319
        %v4321 = vrot.slane %v4320, 2
        %v4322 = vmax.f32 %v4320, %v4321
        %v4323 = vrot.slane %v4322, 1
        %v4324 = vmax.f32 %v4322, %v4323
        %v4325 = vsel %vm1572, %v4272, -inf
        %v4326 = vrot.slane %v4325, 4
        %v4327 = vmax.f32 %v4325, %v4326
        %v4328 = vrot.slane %v4327, 2
        %v4329 = vmax.f32 %v4327, %v4328
        %v4330 = vrot.slane %v4329, 1
        %v4331 = vmax.f32 %v4329, %v4330
        %v4332 = vsel %vm1572, %v4274, -inf
        %v4333 = vrot.slane %v4332, 4
        %v4334 = vmax.f32 %v4332, %v4333
        %v4335 = vrot.slane %v4334, 2
        %v4336 = vmax.f32 %v4334, %v4335
        %v4337 = vrot.slane %v4336, 1
        %v4338 = vmax.f32 %v4336, %v4337
        %v4347 = vsel %vm1637, %v4296, %v4289
        %v4348 = vsel %vm1639, %v4303, %v4347
        %v4349 = vsel %vm1641, %v4310, %v4348
        %v4350 = vsel %vm1643, %v4317, %v4349
        %v4351 = vsel %vm1645, %v4324, %v4350
        %v4352 = vsel %vm1647, %v4331, %v4351
        %v4353 = vsel %vm1649, %v4338, %v4352
        %s4355 = scalar_lea.vmem [#allocation3], 112
        %4356 = vst [vmem:[%s4355 + $0x1] sm:$0xff] %v4353
        %v4357 = vmax.f32 %v4233, %v4235
        %v4358 = vmax.f32 %v4234, %v4236
        %v4361 = vcombine.high %v4357, %v4357
        %v4363 = vunpack.c.l.s4 1983009808
        %v4364 = vunpack.c.0.s8 %v4363
        %v4365 = vlaneseq
        %v4366 = vshrl.u32 %v4365, 7
        %v4367 = vsub.s32 %v4364, %v4366
        %v4368 = vrot.slane %v4357, %v4367
        %v4370 = vunpack.c.l.s4 1983009808
        %v4371 = vunpack.c.0.s8 %v4370
        %v4372 = vlaneseq
        %v4373 = vshrl.u32 %v4372, 7
        %v4374 = vsub.s32 %v4371, %v4373
        %v4375 = vrot.slane %v4361, %v4374
        %v4376 = vcombine.high %v4368, %v4368
        %v4377 = vcombine.high %v4375, %v4375
        %v4378 = vcombine.high %v4358, %v4358
        %v4380 = vunpack.c.l.s4 1983009808
        %v4381 = vunpack.c.0.s8 %v4380
        %v4382 = vlaneseq
        %v4383 = vshrl.u32 %v4382, 7
        %v4384 = vsub.s32 %v4381, %v4383
        %v4385 = vrot.slane %v4358, %v4384
        %v4387 = vunpack.c.l.s4 1983009808
        %v4388 = vunpack.c.0.s8 %v4387
        %v4389 = vlaneseq
        %v4390 = vshrl.u32 %v4389, 7
        %v4391 = vsub.s32 %v4388, %v4390
        %v4392 = vrot.slane %v4378, %v4391
        %v4393 = vcombine.high %v4385, %v4385
        %v4394 = vcombine.high %v4392, %v4392
        %v4403 = vsel %vm1572, %v4368, -inf
        %v4404 = vrot.slane %v4403, 4
        %v4405 = vmax.f32 %v4403, %v4404
        %v4406 = vrot.slane %v4405, 2
        %v4407 = vmax.f32 %v4405, %v4406
        %v4408 = vrot.slane %v4407, 1
        %v4409 = vmax.f32 %v4407, %v4408
        %v4410 = vsel %vm1572, %v4376, -inf
        %v4411 = vrot.slane %v4410, 4
        %v4412 = vmax.f32 %v4410, %v4411
        %v4413 = vrot.slane %v4412, 2
        %v4414 = vmax.f32 %v4412, %v4413
        %v4415 = vrot.slane %v4414, 1
        %v4416 = vmax.f32 %v4414, %v4415
        %v4417 = vsel %vm1572, %v4375, -inf
        %v4418 = vrot.slane %v4417, 4
        %v4419 = vmax.f32 %v4417, %v4418
        %v4420 = vrot.slane %v4419, 2
        %v4421 = vmax.f32 %v4419, %v4420
        %v4422 = vrot.slane %v4421, 1
        %v4423 = vmax.f32 %v4421, %v4422
        %v4424 = vsel %vm1572, %v4377, -inf
        %v4425 = vrot.slane %v4424, 4
        %v4426 = vmax.f32 %v4424, %v4425
        %v4427 = vrot.slane %v4426, 2
        %v4428 = vmax.f32 %v4426, %v4427
        %v4429 = vrot.slane %v4428, 1
        %v4430 = vmax.f32 %v4428, %v4429
        %v4431 = vsel %vm1572, %v4385, -inf
        %v4432 = vrot.slane %v4431, 4
        %v4433 = vmax.f32 %v4431, %v4432
        %v4434 = vrot.slane %v4433, 2
        %v4435 = vmax.f32 %v4433, %v4434
        %v4436 = vrot.slane %v4435, 1
        %v4437 = vmax.f32 %v4435, %v4436
        %v4438 = vsel %vm1572, %v4393, -inf
        %v4439 = vrot.slane %v4438, 4
        %v4440 = vmax.f32 %v4438, %v4439
        %v4441 = vrot.slane %v4440, 2
        %v4442 = vmax.f32 %v4440, %v4441
        %v4443 = vrot.slane %v4442, 1
        %v4444 = vmax.f32 %v4442, %v4443
        %v4445 = vsel %vm1572, %v4392, -inf
        %v4446 = vrot.slane %v4445, 4
        %v4447 = vmax.f32 %v4445, %v4446
        %v4448 = vrot.slane %v4447, 2
        %v4449 = vmax.f32 %v4447, %v4448
        %v4450 = vrot.slane %v4449, 1
        %v4451 = vmax.f32 %v4449, %v4450
        %v4452 = vsel %vm1572, %v4394, -inf
        %v4453 = vrot.slane %v4452, 4
        %v4454 = vmax.f32 %v4452, %v4453
        %v4455 = vrot.slane %v4454, 2
        %v4456 = vmax.f32 %v4454, %v4455
        %v4457 = vrot.slane %v4456, 1
        %v4458 = vmax.f32 %v4456, %v4457
        %v4467 = vsel %vm1637, %v4416, %v4409
        %v4468 = vsel %vm1639, %v4423, %v4467
        %v4469 = vsel %vm1641, %v4430, %v4468
        %v4470 = vsel %vm1643, %v4437, %v4469
        %v4471 = vsel %vm1645, %v4444, %v4470
        %v4472 = vsel %vm1647, %v4451, %v4471
        %v4473 = vsel %vm1649, %v4458, %v4472
        %s4475 = scalar_lea.vmem [#allocation3], 128
        %4476 = vst [vmem:[%s4475 + $0x1] sm:$0xff] %v4473
        %v4477 = vld [vmem:[#allocation3] sm:$0xff]
        %v4478 = vld [vmem:[#allocation3 + $0x10] sm:$0xff]
        %v4479 = vld [vmem:[#allocation3 + $0x20] sm:$0xff]
        %v4480 = vld [vmem:[#allocation3 + $0x30] sm:$0xff]
        %v4481 = vld [vmem:[#allocation3 + $0x1] sm:$0xff]
        %v4482 = vld [vmem:[#allocation3 + $0x11] sm:$0xff]
        %v4483 = vld [vmem:[#allocation3 + $0x21] sm:$0xff]
        %v4484 = vld [vmem:[#allocation3 + $0x31] sm:$0xff]
        %v4485 = vld [vmem:[#allocation3 + $0x2] sm:$0xff]
        %v4486 = vld [vmem:[#allocation3 + $0x12] sm:$0xff]
        %v4487 = vld [vmem:[#allocation3 + $0x22] sm:$0xff]
        %v4488 = vld [vmem:[#allocation3 + $0x32] sm:$0xff]
        %v4489 = vld [vmem:[%s1652] sm:$0xff]
        %v4490 = vld [vmem:[%s1652 + $0x10] sm:$0xff]
        %v4491 = vld [vmem:[%s1652 + $0x20] sm:$0xff]
        %v4492 = vld [vmem:[%s1652 + $0x30] sm:$0xff]
        %v4493 = vld [vmem:[%s1652 + $0x1] sm:$0xff]
        %v4494 = vld [vmem:[%s1652 + $0x11] sm:$0xff]
        %v4495 = vld [vmem:[%s1652 + $0x21] sm:$0xff]
        %v4496 = vld [vmem:[%s1652 + $0x31] sm:$0xff]
        %v4497 = vld [vmem:[%s1652 + $0x2] sm:$0xff]
        %v4498 = vld [vmem:[%s1652 + $0x12] sm:$0xff]
        %v4499 = vld [vmem:[%s1652 + $0x22] sm:$0xff]
        %v4500 = vld [vmem:[%s1652 + $0x32] sm:$0xff]
        %v4501 = vld [vmem:[%s1772] sm:$0xff]
        %v4502 = vld [vmem:[%s1772 + $0x10] sm:$0xff]
        %v4503 = vld [vmem:[%s1772 + $0x20] sm:$0xff]
        %v4504 = vld [vmem:[%s1772 + $0x30] sm:$0xff]
        %v4505 = vld [vmem:[%s1772 + $0x1] sm:$0xff]
        %v4506 = vld [vmem:[%s1772 + $0x11] sm:$0xff]
        %v4507 = vld [vmem:[%s1772 + $0x21] sm:$0xff]
        %v4508 = vld [vmem:[%s1772 + $0x31] sm:$0xff]
        %v4509 = vld [vmem:[%s1772 + $0x2] sm:$0xff]
        %v4510 = vld [vmem:[%s1772 + $0x12] sm:$0xff]
        %v4511 = vld [vmem:[%s1772 + $0x22] sm:$0xff]
        %v4512 = vld [vmem:[%s1772 + $0x32] sm:$0xff]
        %v4513 = vld [vmem:[#allocation11] sm:$0xff]
        %v4514 = vld [vmem:[#allocation11 + $0x8] sm:$0xff]
        %v4515 = vld [vmem:[#allocation11 + $0x10] sm:$0xff]
        %v4516 = vld [vmem:[#allocation11 + $0x18] sm:$0xff]
        %v4517 = vld [vmem:[#allocation11 + $0x20] sm:$0xff]
        %v4518 = vld [vmem:[#allocation11 + $0x28] sm:$0xff]
        %v4519 = vld [vmem:[#allocation11 + $0x30] sm:$0xff]
        %v4520 = vld [vmem:[#allocation11 + $0x38] sm:$0xff]
        %v4521 = vld [vmem:[#allocation11 + $0x40] sm:$0xff]
        %v4522 = vld [vmem:[#allocation11 + $0x48] sm:$0xff]
        %v4523 = vld [vmem:[#allocation11 + $0x50] sm:$0xff]
        %v4524 = vld [vmem:[#allocation11 + $0x58] sm:$0xff]
        %v4525 = vld [vmem:[#allocation11 + $0x60] sm:$0xff]
        %v4526 = vld [vmem:[#allocation11 + $0x68] sm:$0xff]
        %v4527 = vld [vmem:[#allocation11 + $0x70] sm:$0xff]
        %v4528 = vld [vmem:[#allocation11 + $0x78] sm:$0xff]
        %v4529 = vld [vmem:[#allocation11 + $0x80] sm:$0xff]
        %v4530 = vld [vmem:[#allocation11 + $0x88] sm:$0xff]
        %v4531 = vld [vmem:[#allocation11 + $0x90] sm:$0xff]
        %v4532 = vld [vmem:[#allocation11 + $0x98] sm:$0xff]
        %v4533 = vld [vmem:[#allocation11 + $0xa0] sm:$0xff]
        %v4534 = vld [vmem:[#allocation11 + $0xa8] sm:$0xff]
        %v4535 = vld [vmem:[#allocation11 + $0xb0] sm:$0xff]
        %v4536 = vld [vmem:[#allocation11 + $0xb8] sm:$0xff]
        %v4537 = vld [vmem:[#allocation11 + $0xc0] sm:$0xff]
        %v4538 = vld [vmem:[#allocation11 + $0xc8] sm:$0xff]
        %v4539 = vld [vmem:[#allocation11 + $0xd0] sm:$0xff]
        %v4540 = vld [vmem:[#allocation11 + $0xd8] sm:$0xff]
        %v4541 = vld [vmem:[#allocation11 + $0xe0] sm:$0xff]
        %v4542 = vld [vmem:[#allocation11 + $0xe8] sm:$0xff]
        %v4543 = vld [vmem:[#allocation11 + $0xf0] sm:$0xff]
        %v4544 = vld [vmem:[#allocation11 + $0xf8] sm:$0xff]
        %v4545 = vld [vmem:[#allocation11 + $0x100] sm:$0xff]
        %v4546 = vld [vmem:[#allocation11 + $0x108] sm:$0xff]
        %v4547 = vld [vmem:[#allocation11 + $0x110] sm:$0xff]
        %v4548 = vld [vmem:[#allocation11 + $0x118] sm:$0xff]
        %v4549 = vld [vmem:[#allocation11 + $0x120] sm:$0xff]
        %v4550 = vld [vmem:[#allocation11 + $0x128] sm:$0xff]
        %v4551 = vld [vmem:[#allocation11 + $0x130] sm:$0xff]
        %v4552 = vld [vmem:[#allocation11 + $0x138] sm:$0xff]
        %v4553 = vld [vmem:[#allocation11 + $0x140] sm:$0xff]
        %v4554 = vld [vmem:[#allocation11 + $0x148] sm:$0xff]
        %v4555 = vld [vmem:[#allocation11 + $0x150] sm:$0xff]
        %v4556 = vld [vmem:[#allocation11 + $0x158] sm:$0xff]
        %v4557 = vld [vmem:[#allocation11 + $0x160] sm:$0xff]
        %v4558 = vld [vmem:[#allocation11 + $0x168] sm:$0xff]
        %v4559 = vld [vmem:[#allocation11 + $0x170] sm:$0xff]
        %v4560 = vld [vmem:[#allocation11 + $0x178] sm:$0xff]
        %v4561 = vld [vmem:[#allocation11 + $0x180] sm:$0xff]
        %v4562 = vld [vmem:[#allocation11 + $0x188] sm:$0xff]
        %v4563 = vld [vmem:[#allocation11 + $0x190] sm:$0xff]
        %v4564 = vld [vmem:[#allocation11 + $0x198] sm:$0xff]
        %v4565 = vld [vmem:[#allocation11 + $0x1a0] sm:$0xff]
        %v4566 = vld [vmem:[#allocation11 + $0x1a8] sm:$0xff]
        %v4567 = vld [vmem:[#allocation11 + $0x1b0] sm:$0xff]
        %v4568 = vld [vmem:[#allocation11 + $0x1b8] sm:$0xff]
        %v4569 = vld [vmem:[#allocation11 + $0x1c0] sm:$0xff]
        %v4570 = vld [vmem:[#allocation11 + $0x1c8] sm:$0xff]
        %v4571 = vld [vmem:[#allocation11 + $0x1d0] sm:$0xff]
        %v4572 = vld [vmem:[#allocation11 + $0x1d8] sm:$0xff]
        %v4573 = vld [vmem:[#allocation11 + $0x1e0] sm:$0xff]
        %v4574 = vld [vmem:[#allocation11 + $0x1e8] sm:$0xff]
        %v4575 = vld [vmem:[#allocation11 + $0x1f0] sm:$0xff]
        %v4576 = vld [vmem:[#allocation11 + $0x1f8] sm:$0xff]
        %v4577 = vld [vmem:[#allocation11 + $0x200] sm:$0xff]
        %v4578 = vld [vmem:[#allocation11 + $0x208] sm:$0xff]
        %v4579 = vld [vmem:[#allocation11 + $0x210] sm:$0xff]
        %v4580 = vld [vmem:[#allocation11 + $0x218] sm:$0xff]
        %v4581 = vld [vmem:[#allocation11 + $0x220] sm:$0xff]
        %v4582 = vld [vmem:[#allocation11 + $0x228] sm:$0xff]
        %v4583 = vld [vmem:[#allocation11 + $0x230] sm:$0xff]
        %v4584 = vld [vmem:[#allocation11 + $0x238] sm:$0xff]
        %v4585 = vld [vmem:[#allocation11 + $0x240] sm:$0xff]
        %v4586 = vld [vmem:[#allocation11 + $0x248] sm:$0xff]
        %v4587 = vld [vmem:[#allocation11 + $0x250] sm:$0xff]
        %v4588 = vld [vmem:[#allocation11 + $0x258] sm:$0xff]
        %v4589 = vld [vmem:[#allocation11 + $0x260] sm:$0xff]
        %v4590 = vld [vmem:[#allocation11 + $0x268] sm:$0xff]
        %v4591 = vld [vmem:[#allocation11 + $0x270] sm:$0xff]
        %v4592 = vld [vmem:[#allocation11 + $0x278] sm:$0xff]
        %v4593 = vld [vmem:[#allocation11 + $0x280] sm:$0xff]
        %v4594 = vld [vmem:[#allocation11 + $0x288] sm:$0xff]
        %v4595 = vld [vmem:[#allocation11 + $0x290] sm:$0xff]
        %v4596 = vld [vmem:[#allocation11 + $0x298] sm:$0xff]
        %v4597 = vld [vmem:[#allocation11 + $0x2a0] sm:$0xff]
        %v4598 = vld [vmem:[#allocation11 + $0x2a8] sm:$0xff]
        %v4599 = vld [vmem:[#allocation11 + $0x2b0] sm:$0xff]
        %v4600 = vld [vmem:[#allocation11 + $0x2b8] sm:$0xff]
        %v4601 = vld [vmem:[#allocation11 + $0x2c0] sm:$0xff]
        %v4602 = vld [vmem:[#allocation11 + $0x2c8] sm:$0xff]
        %v4603 = vld [vmem:[#allocation11 + $0x2d0] sm:$0xff]
        %v4604 = vld [vmem:[#allocation11 + $0x2d8] sm:$0xff]
        %v4605 = vld [vmem:[#allocation11 + $0x2e0] sm:$0xff]
        %v4606 = vld [vmem:[#allocation11 + $0x2e8] sm:$0xff]
        %v4607 = vld [vmem:[#allocation11 + $0x2f0] sm:$0xff]
        %v4608 = vld [vmem:[#allocation11 + $0x2f8] sm:$0xff]
        %v4609 = vld [vmem:[#allocation11 + $0x300] sm:$0xff]
        %v4610 = vld [vmem:[#allocation11 + $0x308] sm:$0xff]
        %v4611 = vld [vmem:[#allocation11 + $0x310] sm:$0xff]
        %v4612 = vld [vmem:[#allocation11 + $0x318] sm:$0xff]
        %v4613 = vld [vmem:[#allocation11 + $0x320] sm:$0xff]
        %v4614 = vld [vmem:[#allocation11 + $0x328] sm:$0xff]
        %v4615 = vld [vmem:[#allocation11 + $0x330] sm:$0xff]
        %v4616 = vld [vmem:[#allocation11 + $0x338] sm:$0xff]
        %v4617 = vld [vmem:[#allocation11 + $0x340] sm:$0xff]
        %v4618 = vld [vmem:[#allocation11 + $0x348] sm:$0xff]
        %v4619 = vld [vmem:[#allocation11 + $0x350] sm:$0xff]
        %v4620 = vld [vmem:[#allocation11 + $0x358] sm:$0xff]
        %v4621 = vld [vmem:[#allocation11 + $0x360] sm:$0xff]
        %v4622 = vld [vmem:[#allocation11 + $0x368] sm:$0xff]
        %v4623 = vld [vmem:[#allocation11 + $0x370] sm:$0xff]
        %v4624 = vld [vmem:[#allocation11 + $0x378] sm:$0xff]
        %v4625 = vld [vmem:[#allocation11 + $0x380] sm:$0xff]
        %v4626 = vld [vmem:[#allocation11 + $0x388] sm:$0xff]
        %v4627 = vld [vmem:[#allocation11 + $0x390] sm:$0xff]
        %v4628 = vld [vmem:[#allocation11 + $0x398] sm:$0xff]
        %v4629 = vld [vmem:[#allocation11 + $0x3a0] sm:$0xff]
        %v4630 = vld [vmem:[#allocation11 + $0x3a8] sm:$0xff]
        %v4631 = vld [vmem:[#allocation11 + $0x3b0] sm:$0xff]
        %v4632 = vld [vmem:[#allocation11 + $0x3b8] sm:$0xff]
        %v4633 = vld [vmem:[#allocation11 + $0x3c0] sm:$0xff]
        %v4634 = vld [vmem:[#allocation11 + $0x3c8] sm:$0xff]
        %v4635 = vld [vmem:[#allocation11 + $0x3d0] sm:$0xff]
        %v4636 = vld [vmem:[#allocation11 + $0x3d8] sm:$0xff]
        %v4637 = vld [vmem:[#allocation11 + $0x3e0] sm:$0xff]
        %v4638 = vld [vmem:[#allocation11 + $0x3e8] sm:$0xff]
        %v4639 = vld [vmem:[#allocation11 + $0x3f0] sm:$0xff]
        %v4640 = vld [vmem:[#allocation11 + $0x3f8] sm:$0xff]
        %v4641 = vld [vmem:[#allocation11 + $0x400] sm:$0xff]
        %v4642 = vld [vmem:[#allocation11 + $0x408] sm:$0xff]
        %v4643 = vld [vmem:[#allocation11 + $0x410] sm:$0xff]
        %v4644 = vld [vmem:[#allocation11 + $0x418] sm:$0xff]
        %v4645 = vld [vmem:[#allocation11 + $0x420] sm:$0xff]
        %v4646 = vld [vmem:[#allocation11 + $0x428] sm:$0xff]
        %v4647 = vld [vmem:[#allocation11 + $0x430] sm:$0xff]
        %v4648 = vld [vmem:[#allocation11 + $0x438] sm:$0xff]
        %v4649 = vld [vmem:[#allocation11 + $0x440] sm:$0xff]
        %v4650 = vld [vmem:[#allocation11 + $0x448] sm:$0xff]
        %v4651 = vld [vmem:[#allocation11 + $0x450] sm:$0xff]
        %v4652 = vld [vmem:[#allocation11 + $0x458] sm:$0xff]
        %v4653 = vld [vmem:[#allocation11 + $0x460] sm:$0xff]
        %v4654 = vld [vmem:[#allocation11 + $0x468] sm:$0xff]
        %v4655 = vld [vmem:[#allocation11 + $0x470] sm:$0xff]
        %v4656 = vld [vmem:[#allocation11 + $0x478] sm:$0xff]
        %v4657 = vld [vmem:[#allocation11 + $0x480] sm:$0xff]
        %v4658 = vld [vmem:[#allocation11 + $0x488] sm:$0xff]
        %v4659 = vld [vmem:[#allocation11 + $0x490] sm:$0xff]
        %v4660 = vld [vmem:[#allocation11 + $0x498] sm:$0xff]
        %v4661 = vld [vmem:[#allocation11 + $0x4a0] sm:$0xff]
        %v4662 = vld [vmem:[#allocation11 + $0x4a8] sm:$0xff]
        %v4663 = vld [vmem:[#allocation11 + $0x4b0] sm:$0xff]
        %v4664 = vld [vmem:[#allocation11 + $0x4b8] sm:$0xff]
        %v4665 = vld [vmem:[#allocation11 + $0x4c0] sm:$0xff]
        %v4666 = vld [vmem:[#allocation11 + $0x4c8] sm:$0xff]
        %v4667 = vld [vmem:[#allocation11 + $0x4d0] sm:$0xff]
        %v4668 = vld [vmem:[#allocation11 + $0x4d8] sm:$0xff]
        %v4669 = vld [vmem:[#allocation11 + $0x4e0] sm:$0xff]
        %v4670 = vld [vmem:[#allocation11 + $0x4e8] sm:$0xff]
        %v4671 = vld [vmem:[#allocation11 + $0x4f0] sm:$0xff]
        %v4672 = vld [vmem:[#allocation11 + $0x4f8] sm:$0xff]
        %v4673 = vld [vmem:[#allocation11 + $0x500] sm:$0xff]
        %v4674 = vld [vmem:[#allocation11 + $0x508] sm:$0xff]
        %v4675 = vld [vmem:[#allocation11 + $0x510] sm:$0xff]
        %v4676 = vld [vmem:[#allocation11 + $0x518] sm:$0xff]
        %v4677 = vld [vmem:[#allocation11 + $0x520] sm:$0xff]
        %v4678 = vld [vmem:[#allocation11 + $0x528] sm:$0xff]
        %v4679 = vld [vmem:[#allocation11 + $0x530] sm:$0xff]
        %v4680 = vld [vmem:[#allocation11 + $0x538] sm:$0xff]
        %v4681 = vld [vmem:[#allocation11 + $0x540] sm:$0xff]
        %v4682 = vld [vmem:[#allocation11 + $0x548] sm:$0xff]
        %v4683 = vld [vmem:[#allocation11 + $0x550] sm:$0xff]
        %v4684 = vld [vmem:[#allocation11 + $0x558] sm:$0xff]
        %v4685 = vld [vmem:[#allocation11 + $0x560] sm:$0xff]
        %v4686 = vld [vmem:[#allocation11 + $0x568] sm:$0xff]
        %v4687 = vld [vmem:[#allocation11 + $0x570] sm:$0xff]
        %v4688 = vld [vmem:[#allocation11 + $0x578] sm:$0xff]
        %v4689 = vld [vmem:[#allocation11 + $0x580] sm:$0xff]
        %v4690 = vld [vmem:[#allocation11 + $0x588] sm:$0xff]
        %v4691 = vld [vmem:[#allocation11 + $0x590] sm:$0xff]
        %v4692 = vld [vmem:[#allocation11 + $0x598] sm:$0xff]
        %v4693 = vld [vmem:[#allocation11 + $0x5a0] sm:$0xff]
        %v4694 = vld [vmem:[#allocation11 + $0x5a8] sm:$0xff]
        %v4695 = vld [vmem:[#allocation11 + $0x5b0] sm:$0xff]
        %v4696 = vld [vmem:[#allocation11 + $0x5b8] sm:$0xff]
        %v4697 = vld [vmem:[#allocation11 + $0x5c0] sm:$0xff]
        %v4698 = vld [vmem:[#allocation11 + $0x5c8] sm:$0xff]
        %v4699 = vld [vmem:[#allocation11 + $0x5d0] sm:$0xff]
        %v4700 = vld [vmem:[#allocation11 + $0x5d8] sm:$0xff]
        %v4701 = vld [vmem:[#allocation11 + $0x5e0] sm:$0xff]
        %v4702 = vld [vmem:[#allocation11 + $0x5e8] sm:$0xff]
        %v4703 = vld [vmem:[#allocation11 + $0x5f0] sm:$0xff]
        %v4704 = vld [vmem:[#allocation11 + $0x5f8] sm:$0xff]
        %v4705 = vld [vmem:[#allocation11 + $0x600] sm:$0xff]
        %v4706 = vld [vmem:[#allocation11 + $0x608] sm:$0xff]
        %v4707 = vld [vmem:[#allocation11 + $0x610] sm:$0xff]
        %v4708 = vld [vmem:[#allocation11 + $0x618] sm:$0xff]
        %v4709 = vld [vmem:[#allocation11 + $0x620] sm:$0xff]
        %v4710 = vld [vmem:[#allocation11 + $0x628] sm:$0xff]
        %v4711 = vld [vmem:[#allocation11 + $0x630] sm:$0xff]
        %v4712 = vld [vmem:[#allocation11 + $0x638] sm:$0xff]
        %v4713 = vld [vmem:[#allocation11 + $0x640] sm:$0xff]
        %v4714 = vld [vmem:[#allocation11 + $0x648] sm:$0xff]
        %v4715 = vld [vmem:[#allocation11 + $0x650] sm:$0xff]
        %v4716 = vld [vmem:[#allocation11 + $0x658] sm:$0xff]
        %v4717 = vld [vmem:[#allocation11 + $0x660] sm:$0xff]
        %v4718 = vld [vmem:[#allocation11 + $0x668] sm:$0xff]
        %v4719 = vld [vmem:[#allocation11 + $0x670] sm:$0xff]
        %v4720 = vld [vmem:[#allocation11 + $0x678] sm:$0xff]
        %v4721 = vld [vmem:[#allocation11 + $0x680] sm:$0xff]
        %v4722 = vld [vmem:[#allocation11 + $0x688] sm:$0xff]
        %v4723 = vld [vmem:[#allocation11 + $0x690] sm:$0xff]
        %v4724 = vld [vmem:[#allocation11 + $0x698] sm:$0xff]
        %v4725 = vld [vmem:[#allocation11 + $0x6a0] sm:$0xff]
        %v4726 = vld [vmem:[#allocation11 + $0x6a8] sm:$0xff]
        %v4727 = vld [vmem:[#allocation11 + $0x6b0] sm:$0xff]
        %v4728 = vld [vmem:[#allocation11 + $0x6b8] sm:$0xff]
        %v4729 = vld [vmem:[#allocation11 + $0x6c0] sm:$0xff]
        %v4730 = vld [vmem:[#allocation11 + $0x6c8] sm:$0xff]
        %v4731 = vld [vmem:[#allocation11 + $0x6d0] sm:$0xff]
        %v4732 = vld [vmem:[#allocation11 + $0x6d8] sm:$0xff]
        %v4733 = vld [vmem:[#allocation11 + $0x6e0] sm:$0xff]
        %v4734 = vld [vmem:[#allocation11 + $0x6e8] sm:$0xff]
        %v4735 = vld [vmem:[#allocation11 + $0x6f0] sm:$0xff]
        %v4736 = vld [vmem:[#allocation11 + $0x6f8] sm:$0xff]
        %v4737 = vld [vmem:[#allocation11 + $0x700] sm:$0xff]
        %v4738 = vld [vmem:[#allocation11 + $0x708] sm:$0xff]
        %v4739 = vld [vmem:[#allocation11 + $0x710] sm:$0xff]
        %v4740 = vld [vmem:[#allocation11 + $0x718] sm:$0xff]
        %v4741 = vld [vmem:[#allocation11 + $0x720] sm:$0xff]
        %v4742 = vld [vmem:[#allocation11 + $0x728] sm:$0xff]
        %v4743 = vld [vmem:[#allocation11 + $0x730] sm:$0xff]
        %v4744 = vld [vmem:[#allocation11 + $0x738] sm:$0xff]
        %v4745 = vld [vmem:[#allocation11 + $0x740] sm:$0xff]
        %v4746 = vld [vmem:[#allocation11 + $0x748] sm:$0xff]
        %v4747 = vld [vmem:[#allocation11 + $0x750] sm:$0xff]
        %v4748 = vld [vmem:[#allocation11 + $0x758] sm:$0xff]
        %v4749 = vld [vmem:[#allocation11 + $0x760] sm:$0xff]
        %v4750 = vld [vmem:[#allocation11 + $0x768] sm:$0xff]
        %v4751 = vld [vmem:[#allocation11 + $0x770] sm:$0xff]
        %v4752 = vld [vmem:[#allocation11 + $0x778] sm:$0xff]
        %v4753 = vld [vmem:[#allocation11 + $0x780] sm:$0xff]
        %v4754 = vld [vmem:[#allocation11 + $0x788] sm:$0xff]
        %v4755 = vld [vmem:[#allocation11 + $0x790] sm:$0xff]
        %v4756 = vld [vmem:[#allocation11 + $0x798] sm:$0xff]
        %v4757 = vld [vmem:[#allocation11 + $0x7a0] sm:$0xff]
        %v4758 = vld [vmem:[#allocation11 + $0x7a8] sm:$0xff]
        %v4759 = vld [vmem:[#allocation11 + $0x7b0] sm:$0xff]
        %v4760 = vld [vmem:[#allocation11 + $0x7b8] sm:$0xff]
        %v4761 = vld [vmem:[#allocation11 + $0x7c0] sm:$0xff]
        %v4762 = vld [vmem:[#allocation11 + $0x7c8] sm:$0xff]
        %v4763 = vld [vmem:[#allocation11 + $0x7d0] sm:$0xff]
        %v4764 = vld [vmem:[#allocation11 + $0x7d8] sm:$0xff]
        %v4765 = vld [vmem:[#allocation11 + $0x7e0] sm:$0xff]
        %v4766 = vld [vmem:[#allocation11 + $0x7e8] sm:$0xff]
        %v4767 = vld [vmem:[#allocation11 + $0x7f0] sm:$0xff]
        %v4768 = vld [vmem:[#allocation11 + $0x7f8] sm:$0xff]
        %v4769 = vld [vmem:[#allocation11 + $0x800] sm:$0xff]
        %v4770 = vld [vmem:[#allocation11 + $0x808] sm:$0xff]
        %v4771 = vld [vmem:[#allocation11 + $0x810] sm:$0xff]
        %v4772 = vld [vmem:[#allocation11 + $0x818] sm:$0xff]
        %v4773 = vld [vmem:[#allocation11 + $0x820] sm:$0xff]
        %v4774 = vld [vmem:[#allocation11 + $0x828] sm:$0xff]
        %v4775 = vld [vmem:[#allocation11 + $0x830] sm:$0xff]
        %v4776 = vld [vmem:[#allocation11 + $0x838] sm:$0xff]
        %v4777 = vld [vmem:[#allocation11 + $0x840] sm:$0xff]
        %v4778 = vld [vmem:[#allocation11 + $0x848] sm:$0xff]
        %v4779 = vld [vmem:[#allocation11 + $0x850] sm:$0xff]
        %v4780 = vld [vmem:[#allocation11 + $0x858] sm:$0xff]
        %v4781 = vld [vmem:[#allocation11 + $0x860] sm:$0xff]
        %v4782 = vld [vmem:[#allocation11 + $0x868] sm:$0xff]
        %v4783 = vld [vmem:[#allocation11 + $0x870] sm:$0xff]
        %v4784 = vld [vmem:[#allocation11 + $0x878] sm:$0xff]
        %v4785 = vld [vmem:[#allocation11 + $0x880] sm:$0xff]
        %v4786 = vld [vmem:[#allocation11 + $0x888] sm:$0xff]
        %v4787 = vld [vmem:[#allocation11 + $0x890] sm:$0xff]
        %v4788 = vld [vmem:[#allocation11 + $0x898] sm:$0xff]
        %v4789 = vld [vmem:[#allocation11 + $0x8a0] sm:$0xff]
        %v4790 = vld [vmem:[#allocation11 + $0x8a8] sm:$0xff]
        %v4791 = vld [vmem:[#allocation11 + $0x8b0] sm:$0xff]
        %v4792 = vld [vmem:[#allocation11 + $0x8b8] sm:$0xff]
        %v4793 = vld [vmem:[#allocation11 + $0x8c0] sm:$0xff]
        %v4794 = vld [vmem:[#allocation11 + $0x8c8] sm:$0xff]
        %v4795 = vld [vmem:[#allocation11 + $0x8d0] sm:$0xff]
        %v4796 = vld [vmem:[#allocation11 + $0x8d8] sm:$0xff]
        %v4797 = vld [vmem:[#allocation11 + $0x8e0] sm:$0xff]
        %v4798 = vld [vmem:[#allocation11 + $0x8e8] sm:$0xff]
        %v4799 = vld [vmem:[#allocation11 + $0x8f0] sm:$0xff]
        %v4800 = vld [vmem:[#allocation11 + $0x8f8] sm:$0xff]
        %v4801 = vld [vmem:[#allocation12] sm:$0x3]
        %v4803 = vlaneseq
        %v4804 = vshrl.u32 %v4803, 7
        %v4805 = vsub.s32 0, %v4804
        %v4806 = vrot.slane %v4801, %v4805
        %v4807 = vlaneseq
        %v4808 = vshrl.u32 %v4807, 7
        %v4809 = vsub.s32 1, %v4808
        %v4810 = vrot.slane %v4801, %v4809
        %4813 = vmatprep.subr.mxu0 %v4514
        %4814 = vmatpush1.msra.mxu0 %v4513
        %4815 = vmatprep.subr.mxu0 %v4516
        %4816 = vmatpush1.msra.mxu0 %v4515
        %4817 = vmatprep.subr.mxu0 %v4518
        %4818 = vmatpush1.msra.mxu0 %v4517
        %4819 = vmatprep.subr.mxu0 %v4520
        %4820 = vmatpush1.msra.mxu0 %v4519
        %4821 = vmatprep.subr.mxu0 %v4522
        %4822 = vmatpush1.msra.mxu0 %v4521
        %4823 = vmatprep.subr.mxu0 %v4524
        %4824 = vmatpush1.msra.mxu0 %v4523
        %4825 = vmatprep.subr.mxu0 %v4526
        %4826 = vmatpush1.msra.mxu0 %v4525
        %4827 = vmatprep.subr.mxu0 %v4528
        %4828 = vmatpush1.msra.mxu0 %v4527
        %4829 = vmatprep.subr.mxu0 %v4530
        %4830 = vmatpush1.msra.mxu0 %v4529
        %4831 = vmatprep.subr.mxu0 %v4532
        %4832 = vmatpush1.msra.mxu0 %v4531
        %4833 = vmatprep.subr.mxu0 %v4534
        %4834 = vmatpush1.msra.mxu0 %v4533
        %4835 = vmatprep.subr.mxu0 %v4536
        %4836 = vmatpush1.msra.mxu0 %v4535
        %4837 = vmatprep.subr.mxu0 %v4538
        %4838 = vmatpush1.msra.mxu0 %v4537
        %4839 = vmatprep.subr.mxu0 %v4540
        %4840 = vmatpush1.msra.mxu0 %v4539
        %4841 = vmatprep.subr.mxu0 %v4542
        %4842 = vmatpush1.msra.mxu0 %v4541
        %4843 = vmatprep.subr.mxu0 %v4544
        %4844 = vmatpush1.msra.mxu0 %v4543
        %4845 = vmatprep.subr.mxu0 %v4546
        %4846 = vmatpush1.msra.mxu0 %v4545
        %4847 = vmatprep.subr.mxu0 %v4548
        %4848 = vmatpush1.msra.mxu0 %v4547
        %4849 = vmatprep.subr.mxu0 %v4550
        %4850 = vmatpush1.msra.mxu0 %v4549
        %4851 = vmatprep.subr.mxu0 %v4552
        %4852 = vmatpush1.msra.mxu0 %v4551
        %4853 = vmatprep.subr.mxu0 %v4554
        %4854 = vmatpush1.msra.mxu0 %v4553
        %4855 = vmatprep.subr.mxu0 %v4556
        %4856 = vmatpush1.msra.mxu0 %v4555
        %4857 = vmatprep.subr.mxu0 %v4558
        %4858 = vmatpush1.msra.mxu0 %v4557
        %4859 = vmatprep.subr.mxu0 %v4560
        %4860 = vmatpush1.msra.mxu0 %v4559
        %4861 = vmatprep.subr.mxu0 %v4562
        %4862 = vmatpush1.msra.mxu0 %v4561
        %4863 = vmatprep.subr.mxu0 %v4564
        %4864 = vmatpush1.msra.mxu0 %v4563
        %4865 = vmatprep.subr.mxu0 %v4566
        %4866 = vmatpush1.msra.mxu0 %v4565
        %4867 = vmatprep.subr.mxu0 %v4568
        %4868 = vmatpush1.msra.mxu0 %v4567
        %4869 = vmatprep.subr.mxu0 %v4570
        %4870 = vmatpush1.msra.mxu0 %v4569
        %4871 = vmatprep.subr.mxu0 %v4572
        %4872 = vmatpush1.msra.mxu0 %v4571
        %4873 = vmatprep.subr.mxu0 %v4574
        %4874 = vmatpush1.msra.mxu0 %v4573
        %4875 = vmatprep.subr.mxu0 %v4576
        %4876 = vmatpush1.msra.mxu0 %v4575
        %4877 = vmatprep.mubr.f32.mxu0 %v4481
        %4878 = vmatmul.mubr.f32.gmra.mrb[0].mxu0 %v4477
        %v4879 = vpop.f32.mrb[0].mxu0
        %v4880 = vadd.f32 %v4806, %v4879
        %v4881 = vpop.f32.mrb[0].mxu0
        %v4882 = vadd.f32 %v4810, %v4881
        %4883 = vmatprep.mubr.f32.mxu0 %v4482
        %4884 = vmatmul.mubr.f32.gmra.mrb[0].mxu0 %v4478
        %v4885 = vpop.f32.mrb[0].mxu0
        %v4886 = vadd.f32 %v4806, %v4885
        %v4887 = vpop.f32.mrb[0].mxu0
        %v4888 = vadd.f32 %v4810, %v4887
        %4889 = vmatprep.mubr.f32.mxu0 %v4483
        %4890 = vmatmul.mubr.f32.gmra.mrb[0].mxu0 %v4479
        %v4891 = vpop.f32.mrb[0].mxu0
        %v4892 = vadd.f32 %v4806, %v4891
        %v4893 = vpop.f32.mrb[0].mxu0
        %v4894 = vadd.f32 %v4810, %v4893
        %4895 = vmatprep.mubr.f32.mxu0 %v4484
        %4896 = vmatmul.mubr.f32.gmra.mrb[0].mxu0 %v4480
        %v4897 = vpop.f32.mrb[0].mxu0
        %v4898 = vadd.f32 %v4806, %v4897
        %v4899 = vpop.f32.mrb[0].mxu0
        %v4900 = vadd.f32 %v4810, %v4899
        %4901 = vdwg.mxu0
        %4902 = vmatprep.subr.mxu0 %v4578
        %4903 = vmatpush1.msra.mxu0 %v4577
        %4904 = vmatprep.subr.mxu0 %v4580
        %4905 = vmatpush1.msra.mxu0 %v4579
        %4906 = vmatprep.subr.mxu0 %v4582
        %4907 = vmatpush1.msra.mxu0 %v4581
        %4908 = vmatprep.subr.mxu0 %v4584
        %4909 = vmatpush1.msra.mxu0 %v4583
        %4910 = vmatprep.subr.mxu0 %v4586
        %4911 = vmatpush1.msra.mxu0 %v4585
        %4912 = vmatprep.subr.mxu0 %v4588
        %4913 = vmatpush1.msra.mxu0 %v4587
        %4914 = vmatprep.subr.mxu0 %v4590
        %4915 = vmatpush1.msra.mxu0 %v4589
        %4916 = vmatprep.subr.mxu0 %v4592
        %4917 = vmatpush1.msra.mxu0 %v4591
        %4918 = vmatprep.subr.mxu0 %v4594
        %4919 = vmatpush1.msra.mxu0 %v4593
        %4920 = vmatprep.subr.mxu0 %v4596
        %4921 = vmatpush1.msra.mxu0 %v4595
        %4922 = vmatprep.subr.mxu0 %v4598
        %4923 = vmatpush1.msra.mxu0 %v4597
        %4924 = vmatprep.subr.mxu0 %v4600
        %4925 = vmatpush1.msra.mxu0 %v4599
        %4926 = vmatprep.subr.mxu0 %v4602
        %4927 = vmatpush1.msra.mxu0 %v4601
        %4928 = vmatprep.subr.mxu0 %v4604
        %4929 = vmatpush1.msra.mxu0 %v4603
        %4930 = vmatprep.subr.mxu0 %v4606
        %4931 = vmatpush1.msra.mxu0 %v4605
        %4932 = vmatprep.subr.mxu0 %v4608
        %4933 = vmatpush1.msra.mxu0 %v4607
        %4934 = vmatprep.subr.mxu0 %v4610
        %4935 = vmatpush1.msra.mxu0 %v4609
        %4936 = vmatprep.subr.mxu0 %v4612
        %4937 = vmatpush1.msra.mxu0 %v4611
        %4938 = vmatprep.subr.mxu0 %v4614
        %4939 = vmatpush1.msra.mxu0 %v4613
        %4940 = vmatprep.subr.mxu0 %v4616
        %4941 = vmatpush1.msra.mxu0 %v4615
        %4942 = vmatprep.subr.mxu0 %v4618
        %4943 = vmatpush1.msra.mxu0 %v4617
        %4944 = vmatprep.subr.mxu0 %v4620
        %4945 = vmatpush1.msra.mxu0 %v4619
        %4946 = vmatprep.subr.mxu0 %v4622
        %4947 = vmatpush1.msra.mxu0 %v4621
        %4948 = vmatprep.subr.mxu0 %v4624
        %4949 = vmatpush1.msra.mxu0 %v4623
        %4950 = vmatprep.subr.mxu0 %v4626
        %4951 = vmatpush1.msra.mxu0 %v4625
        %4952 = vmatprep.subr.mxu0 %v4628
        %4953 = vmatpush1.msra.mxu0 %v4627
        %4954 = vmatprep.subr.mxu0 %v4630
        %4955 = vmatpush1.msra.mxu0 %v4629
        %4956 = vmatprep.subr.mxu0 %v4632
        %4957 = vmatpush1.msra.mxu0 %v4631
        %4958 = vmatprep.subr.mxu0 %v4634
        %4959 = vmatpush1.msra.mxu0 %v4633
        %4960 = vmatprep.subr.mxu0 %v4636
        %4961 = vmatpush1.msra.mxu0 %v4635
        %4962 = vmatprep.subr.mxu0 %v4638
        %4963 = vmatpush1.msra.mxu0 %v4637
        %4964 = vmatprep.subr.mxu0 %v4640
        %4965 = vmatpush1.msra.mxu0 %v4639
        %4966 = vmatprep.mubr.f32.mxu0 %v4489
        %4967 = vmatmul.mubr.f32.gmra.mrb[0].mxu0 %v4485
        %v4968 = vpop.f32.mrb[0].mxu0
        %v4969 = vadd.f32 %v4880, %v4968
        %v4970 = vpop.f32.mrb[0].mxu0
        %v4971 = vadd.f32 %v4882, %v4970
        %4972 = vmatprep.mubr.f32.mxu0 %v4490
        %4973 = vmatmul.mubr.f32.gmra.mrb[0].mxu0 %v4486
        %v4974 = vpop.f32.mrb[0].mxu0
        %v4975 = vadd.f32 %v4886, %v4974
        %v4976 = vpop.f32.mrb[0].mxu0
        %v4977 = vadd.f32 %v4888, %v4976
        %4978 = vmatprep.mubr.f32.mxu0 %v4491
        %4979 = vmatmul.mubr.f32.gmra.mrb[0].mxu0 %v4487
        %v4980 = vpop.f32.mrb[0].mxu0
        %v4981 = vadd.f32 %v4892, %v4980
        %v4982 = vpop.f32.mrb[0].mxu0
        %v4983 = vadd.f32 %v4894, %v4982
        %4984 = vmatprep.mubr.f32.mxu0 %v4492
        %4985 = vmatmul.mubr.f32.gmra.mrb[0].mxu0 %v4488
        %v4986 = vpop.f32.mrb[0].mxu0
        %v4987 = vadd.f32 %v4898, %v4986
        %v4988 = vpop.f32.mrb[0].mxu0
        %v4989 = vadd.f32 %v4900, %v4988
        %4990 = vdwg.mxu0
        %4991 = vmatprep.subr.mxu0 %v4642
        %4992 = vmatpush1.msra.mxu0 %v4641
        %4993 = vmatprep.subr.mxu0 %v4644
        %4994 = vmatpush1.msra.mxu0 %v4643
        %4995 = vmatprep.subr.mxu0 %v4646
        %4996 = vmatpush1.msra.mxu0 %v4645
        %4997 = vmatprep.subr.mxu0 %v4648
        %4998 = vmatpush1.msra.mxu0 %v4647
        %4999 = vmatprep.subr.mxu0 %v4650
        %5000 = vmatpush1.msra.mxu0 %v4649
        %5001 = vmatprep.subr.mxu0 %v4652
        %5002 = vmatpush1.msra.mxu0 %v4651
        %5003 = vmatprep.subr.mxu0 %v4654
        %5004 = vmatpush1.msra.mxu0 %v4653
        %5005 = vmatprep.subr.mxu0 %v4656
        %5006 = vmatpush1.msra.mxu0 %v4655
        %5007 = vmatprep.subr.mxu0 %v4658
        %5008 = vmatpush1.msra.mxu0 %v4657
        %5009 = vmatprep.subr.mxu0 %v4660
        %5010 = vmatpush1.msra.mxu0 %v4659
        %5011 = vmatprep.subr.mxu0 %v4662
        %5012 = vmatpush1.msra.mxu0 %v4661
        %5013 = vmatprep.subr.mxu0 %v4664
        %5014 = vmatpush1.msra.mxu0 %v4663
        %5015 = vmatprep.subr.mxu0 %v4666
        %5016 = vmatpush1.msra.mxu0 %v4665
        %5017 = vmatprep.subr.mxu0 %v4668
        %5018 = vmatpush1.msra.mxu0 %v4667
        %5019 = vmatprep.subr.mxu0 %v4670
        %5020 = vmatpush1.msra.mxu0 %v4669
        %5021 = vmatprep.subr.mxu0 %v4672
        %5022 = vmatpush1.msra.mxu0 %v4671
        %5023 = vmatprep.subr.mxu0 %v4674
        %5024 = vmatpush1.msra.mxu0 %v4673
        %5025 = vmatprep.subr.mxu0 %v4676
        %5026 = vmatpush1.msra.mxu0 %v4675
        %5027 = vmatprep.subr.mxu0 %v4678
        %5028 = vmatpush1.msra.mxu0 %v4677
        %5029 = vmatprep.subr.mxu0 %v4680
        %5030 = vmatpush1.msra.mxu0 %v4679
        %5031 = vmatprep.subr.mxu0 %v4682
        %5032 = vmatpush1.msra.mxu0 %v4681
        %5033 = vmatprep.subr.mxu0 %v4684
        %5034 = vmatpush1.msra.mxu0 %v4683
        %5035 = vmatprep.subr.mxu0 %v4686
        %5036 = vmatpush1.msra.mxu0 %v4685
        %5037 = vmatprep.subr.mxu0 %v4688
        %5038 = vmatpush1.msra.mxu0 %v4687
        %5039 = vmatprep.subr.mxu0 %v4690
        %5040 = vmatpush1.msra.mxu0 %v4689
        %5041 = vmatprep.subr.mxu0 %v4692
        %5042 = vmatpush1.msra.mxu0 %v4691
        %5043 = vmatprep.subr.mxu0 %v4694
        %5044 = vmatpush1.msra.mxu0 %v4693
        %5045 = vmatprep.subr.mxu0 %v4696
        %5046 = vmatpush1.msra.mxu0 %v4695
        %5047 = vmatprep.subr.mxu0 %v4698
        %5048 = vmatpush1.msra.mxu0 %v4697
        %5049 = vmatprep.subr.mxu0 %v4700
        %5050 = vmatpush1.msra.mxu0 %v4699
        %5051 = vmatprep.subr.mxu0 %v4702
        %5052 = vmatpush1.msra.mxu0 %v4701
        %5053 = vmatprep.subr.mxu0 %v4704
        %5054 = vmatpush1.msra.mxu0 %v4703
        %5055 = vmatprep.mubr.f32.mxu0 %v4497
        %5056 = vmatmul.mubr.f32.gmra.mrb[0].mxu0 %v4493
        %v5057 = vpop.f32.mrb[0].mxu0
        %v5058 = vadd.f32 %v4969, %v5057
        %v5059 = vpop.f32.mrb[0].mxu0
        %v5060 = vadd.f32 %v4971, %v5059
        %5061 = vmatprep.mubr.f32.mxu0 %v4498
        %5062 = vmatmul.mubr.f32.gmra.mrb[0].mxu0 %v4494
        %v5063 = vpop.f32.mrb[0].mxu0
        %v5064 = vadd.f32 %v4975, %v5063
        %v5065 = vpop.f32.mrb[0].mxu0
        %v5066 = vadd.f32 %v4977, %v5065
        %5067 = vmatprep.mubr.f32.mxu0 %v4499
        %5068 = vmatmul.mubr.f32.gmra.mrb[0].mxu0 %v4495
        %v5069 = vpop.f32.mrb[0].mxu0
        %v5070 = vadd.f32 %v4981, %v5069
        %v5071 = vpop.f32.mrb[0].mxu0
        %v5072 = vadd.f32 %v4983, %v5071
        %5073 = vmatprep.mubr.f32.mxu0 %v4500
        %5074 = vmatmul.mubr.f32.gmra.mrb[0].mxu0 %v4496
        %v5075 = vpop.f32.mrb[0].mxu0
        %v5076 = vadd.f32 %v4987, %v5075
        %v5077 = vpop.f32.mrb[0].mxu0
        %v5078 = vadd.f32 %v4989, %v5077
        %5079 = vdwg.mxu0
        %5080 = vmatprep.subr.mxu0 %v4706
        %5081 = vmatpush1.msra.mxu0 %v4705
        %5082 = vmatprep.subr.mxu0 %v4708
        %5083 = vmatpush1.msra.mxu0 %v4707
        %5084 = vmatprep.subr.mxu0 %v4710
        %5085 = vmatpush1.msra.mxu0 %v4709
        %5086 = vmatprep.subr.mxu0 %v4712
        %5087 = vmatpush1.msra.mxu0 %v4711
        %5088 = vmatprep.subr.mxu0 %v4714
        %5089 = vmatpush1.msra.mxu0 %v4713
        %5090 = vmatprep.subr.mxu0 %v4716
        %5091 = vmatpush1.msra.mxu0 %v4715
        %5092 = vmatprep.subr.mxu0 %v4718
        %5093 = vmatpush1.msra.mxu0 %v4717
        %5094 = vmatprep.subr.mxu0 %v4720
        %5095 = vmatpush1.msra.mxu0 %v4719
        %5096 = vmatprep.subr.mxu0 %v4722
        %5097 = vmatpush1.msra.mxu0 %v4721
        %5098 = vmatprep.subr.mxu0 %v4724
        %5099 = vmatpush1.msra.mxu0 %v4723
        %5100 = vmatprep.subr.mxu0 %v4726
        %5101 = vmatpush1.msra.mxu0 %v4725
        %5102 = vmatprep.subr.mxu0 %v4728
        %5103 = vmatpush1.msra.mxu0 %v4727
        %5104 = vmatprep.subr.mxu0 %v4730
        %5105 = vmatpush1.msra.mxu0 %v4729
        %5106 = vmatprep.subr.mxu0 %v4732
        %5107 = vmatpush1.msra.mxu0 %v4731
        %5108 = vmatprep.subr.mxu0 %v4734
        %5109 = vmatpush1.msra.mxu0 %v4733
        %5110 = vmatprep.subr.mxu0 %v4736
        %5111 = vmatpush1.msra.mxu0 %v4735
        %5112 = vmatprep.subr.mxu0 %v4738
        %5113 = vmatpush1.msra.mxu0 %v4737
        %5114 = vmatprep.subr.mxu0 %v4740
        %5115 = vmatpush1.msra.mxu0 %v4739
        %5116 = vmatprep.subr.mxu0 %v4742
        %5117 = vmatpush1.msra.mxu0 %v4741
        %5118 = vmatprep.subr.mxu0 %v4744
        %5119 = vmatpush1.msra.mxu0 %v4743
        %5120 = vmatprep.subr.mxu0 %v4746
        %5121 = vmatpush1.msra.mxu0 %v4745
        %5122 = vmatprep.subr.mxu0 %v4748
        %5123 = vmatpush1.msra.mxu0 %v4747
        %5124 = vmatprep.subr.mxu0 %v4750
        %5125 = vmatpush1.msra.mxu0 %v4749
        %5126 = vmatprep.subr.mxu0 %v4752
        %5127 = vmatpush1.msra.mxu0 %v4751
        %5128 = vmatprep.subr.mxu0 %v4754
        %5129 = vmatpush1.msra.mxu0 %v4753
        %5130 = vmatprep.subr.mxu0 %v4756
        %5131 = vmatpush1.msra.mxu0 %v4755
        %5132 = vmatprep.subr.mxu0 %v4758
        %5133 = vmatpush1.msra.mxu0 %v4757
        %5134 = vmatprep.subr.mxu0 %v4760
        %5135 = vmatpush1.msra.mxu0 %v4759
        %5136 = vmatprep.subr.mxu0 %v4762
        %5137 = vmatpush1.msra.mxu0 %v4761
        %5138 = vmatprep.subr.mxu0 %v4764
        %5139 = vmatpush1.msra.mxu0 %v4763
        %5140 = vmatprep.subr.mxu0 %v4766
        %5141 = vmatpush1.msra.mxu0 %v4765
        %5142 = vmatprep.subr.mxu0 %v4768
        %5143 = vmatpush1.msra.mxu0 %v4767
        %5144 = vmatprep.mubr.f32.mxu0 %v4505
        %5145 = vmatmul.mubr.f32.gmra.mrb[0].mxu0 %v4501
        %v5146 = vpop.f32.mrb[0].mxu0
        %v5147 = vadd.f32 %v5058, %v5146
        %v5148 = vpop.f32.mrb[0].mxu0
        %v5149 = vadd.f32 %v5060, %v5148
        %5150 = vmatprep.mubr.f32.mxu0 %v4506
        %5151 = vmatmul.mubr.f32.gmra.mrb[0].mxu0 %v4502
        %v5152 = vpop.f32.mrb[0].mxu0
        %v5153 = vadd.f32 %v5064, %v5152
        %v5154 = vpop.f32.mrb[0].mxu0
        %v5155 = vadd.f32 %v5066, %v5154
        %5156 = vmatprep.mubr.f32.mxu0 %v4507
        %5157 = vmatmul.mubr.f32.gmra.mrb[0].mxu0 %v4503
        %v5158 = vpop.f32.mrb[0].mxu0
        %v5159 = vadd.f32 %v5070, %v5158
        %v5160 = vpop.f32.mrb[0].mxu0
        %v5161 = vadd.f32 %v5072, %v5160
        %5162 = vmatprep.mubr.f32.mxu0 %v4508
        %5163 = vmatmul.mubr.f32.gmra.mrb[0].mxu0 %v4504
        %v5164 = vpop.f32.mrb[0].mxu0
        %v5165 = vadd.f32 %v5076, %v5164
        %v5166 = vpop.f32.mrb[0].mxu0
        %v5167 = vadd.f32 %v5078, %v5166
        %5168 = vdwg.mxu0
        %5169 = vmatprep.subr.mxu0 %v4770
        %5170 = vmatpush1.msra.mxu0 %v4769
        %5171 = vmatprep.subr.mxu0 %v4772
        %5172 = vmatpush1.msra.mxu0 %v4771
        %5173 = vmatprep.subr.mxu0 %v4774
        %5174 = vmatpush1.msra.mxu0 %v4773
        %5175 = vmatprep.subr.mxu0 %v4776
        %5176 = vmatpush1.msra.mxu0 %v4775
        %5177 = vmatprep.subr.mxu0 %v4778
        %5178 = vmatpush1.msra.mxu0 %v4777
        %5179 = vmatprep.subr.mxu0 %v4780
        %5180 = vmatpush1.msra.mxu0 %v4779
        %5181 = vmatprep.subr.mxu0 %v4782
        %5182 = vmatpush1.msra.mxu0 %v4781
        %5183 = vmatprep.subr.mxu0 %v4784
        %5184 = vmatpush1.msra.mxu0 %v4783
        %5185 = vmatprep.subr.mxu0 %v4786
        %5186 = vmatpush1.msra.mxu0 %v4785
        %5187 = vmatprep.subr.mxu0 %v4788
        %5188 = vmatpush1.msra.mxu0 %v4787
        %5189 = vmatprep.subr.mxu0 %v4790
        %5190 = vmatpush1.msra.mxu0 %v4789
        %5191 = vmatprep.subr.mxu0 %v4792
        %5192 = vmatpush1.msra.mxu0 %v4791
        %5193 = vmatprep.subr.mxu0 %v4794
        %5194 = vmatpush1.msra.mxu0 %v4793
        %5195 = vmatprep.subr.mxu0 %v4796
        %5196 = vmatpush1.msra.mxu0 %v4795
        %5197 = vmatprep.subr.mxu0 %v4798
        %5198 = vmatpush1.msra.mxu0 %v4797
        %5199 = vmatprep.subr.mxu0 %v4800
        %5200 = vmatpush1.msra.mxu0 %v4799
        %5201 = vmatprep.subr.mxu0 0.0
        %5202 = vmatpush1.msra.mxu0 0.0
        %5203 = vmatprep.subr.mxu0 0.0
        %5204 = vmatpush1.msra.mxu0 0.0
        %5205 = vmatprep.subr.mxu0 0.0
        %5206 = vmatpush1.msra.mxu0 0.0
        %5207 = vmatprep.subr.mxu0 0.0
        %5208 = vmatpush1.msra.mxu0 0.0
        %5209 = vmatprep.subr.mxu0 0.0
        %5210 = vmatpush1.msra.mxu0 0.0
        %5211 = vmatprep.subr.mxu0 0.0
        %5212 = vmatpush1.msra.mxu0 0.0
        %5213 = vmatprep.subr.mxu0 0.0
        %5214 = vmatpush1.msra.mxu0 0.0
        %5215 = vmatprep.subr.mxu0 0.0
        %5216 = vmatpush1.msra.mxu0 0.0
        %5217 = vmatprep.subr.mxu0 0.0
        %5218 = vmatpush1.msra.mxu0 0.0
        %5219 = vmatprep.subr.mxu0 0.0
        %5220 = vmatpush1.msra.mxu0 0.0
        %5221 = vmatprep.subr.mxu0 0.0
        %5222 = vmatpush1.msra.mxu0 0.0
        %5223 = vmatprep.subr.mxu0 0.0
        %5224 = vmatpush1.msra.mxu0 0.0
        %5225 = vmatprep.subr.mxu0 0.0
        %5226 = vmatpush1.msra.mxu0 0.0
        %5227 = vmatprep.subr.mxu0 0.0
        %5228 = vmatpush1.msra.mxu0 0.0
        %5229 = vmatprep.subr.mxu0 0.0
        %5230 = vmatpush1.msra.mxu0 0.0
        %5231 = vmatprep.subr.mxu0 0.0
        %5232 = vmatpush1.msra.mxu0 0.0
        %5233 = vmatprep.mubr.f32.mxu0 0.0
        %5234 = vmatmul.mubr.f32.gmra.mrb[0].mxu0 %v4509
        %v5235 = vpop.f32.mrb[0].mxu0
        %v5236 = vadd.f32 %v5147, %v5235
        %v5237 = vpop.f32.mrb[0].mxu0
        %v5238 = vadd.f32 %v5149, %v5237
        %5239 = vmatprep.mubr.f32.mxu0 0.0
        %5240 = vmatmul.mubr.f32.gmra.mrb[0].mxu0 %v4510
        %v5241 = vpop.f32.mrb[0].mxu0
        %v5242 = vadd.f32 %v5153, %v5241
        %v5243 = vpop.f32.mrb[0].mxu0
        %v5244 = vadd.f32 %v5155, %v5243
        %5245 = vmatprep.mubr.f32.mxu0 0.0
        %5246 = vmatmul.mubr.f32.gmra.mrb[0].mxu0 %v4511
        %v5247 = vpop.f32.mrb[0].mxu0
        %v5248 = vadd.f32 %v5159, %v5247
        %v5249 = vpop.f32.mrb[0].mxu0
        %v5250 = vadd.f32 %v5161, %v5249
        %5251 = vmatprep.mubr.f32.mxu0 0.0
        %5252 = vmatmul.mubr.f32.gmra.mrb[0].mxu0 %v4512
        %v5253 = vpop.f32.mrb[0].mxu0
        %v5254 = vadd.f32 %v5165, %v5253
        %v5255 = vpop.f32.mrb[0].mxu0
        %v5256 = vadd.f32 %v5167, %v5255
        %5257 = vdwg.mxu0
        %v5258 = vmax.f32 %v5236, 0.0
        %v5259 = vmax.f32 %v5238, 0.0
        %v5260 = vmax.f32 %v5242, 0.0
        %v5261 = vmax.f32 %v5244, 0.0
        %v5262 = vmax.f32 %v5248, 0.0
        %v5263 = vmax.f32 %v5250, 0.0
        %v5264 = vmax.f32 %v5254, 0.0
        %v5265 = vmax.f32 %v5256, 0.0
        %v5266 = vadd.f32 %v5258, %v5260
        %v5267 = vadd.f32 %v5259, %v5261
        %v5270 = vcombine.low %v5266, %v5267
        %v5271 = vcombine.high %v5266, %v5267
        %v5273 = vunpack.c.l.s4 1983009808
        %v5274 = vunpack.c.0.s8 %v5273
        %v5275 = vlaneseq
        %v5276 = vshrl.u32 %v5275, 7
        %v5277 = vsub.s32 %v5274, %v5276
        %v5278 = vrot.slane %v5270, %v5277
        %v5280 = vunpack.c.l.s4 1983009808
        %v5281 = vunpack.c.0.s8 %v5280
        %v5282 = vlaneseq
        %v5283 = vshrl.u32 %v5282, 7
        %v5284 = vsub.s32 %v5281, %v5283
        %v5285 = vrot.slane %v5271, %v5284
        %v5286 = vcombine.high %v5278, %v5278
        %v5287 = vcombine.high %v5285, %v5285
        %v5289 = vunpack.c.l.s4 1983009808
        %v5290 = vunpack.c.0.s8 %v5289
        %v5291 = vlaneseq
        %v5292 = vshrl.u32 %v5291, 7
        %v5293 = vsub.s32 %v5290, %v5292
        %v5294 = vrot.slane %v5278, %v5293
        %v5295 = vcombine.high %v5294, %v5294
        %v5297 = vunpack.c.l.s4 1983009808
        %v5298 = vunpack.c.0.s8 %v5297
        %v5299 = vlaneseq
        %v5300 = vshrl.u32 %v5299, 7
        %v5301 = vsub.s32 %v5298, %v5300
        %v5302 = vrot.slane %v5286, %v5301
        %v5303 = vcombine.high %v5302, %v5302
        %v5305 = vunpack.c.l.s4 1983009808
        %v5306 = vunpack.c.0.s8 %v5305
        %v5307 = vlaneseq
        %v5308 = vshrl.u32 %v5307, 7
        %v5309 = vsub.s32 %v5306, %v5308
        %v5310 = vrot.slane %v5285, %v5309
        %v5311 = vcombine.high %v5310, %v5310
        %v5313 = vunpack.c.l.s4 1983009808
        %v5314 = vunpack.c.0.s8 %v5313
        %v5315 = vlaneseq
        %v5316 = vshrl.u32 %v5315, 7
        %v5317 = vsub.s32 %v5314, %v5316
        %v5318 = vrot.slane %v5287, %v5317
        %v5319 = vcombine.high %v5318, %v5318
        %v5328 = vsel %vm1572, %v5294, 0.0
        %v5329 = vrot.slane %v5328, 4
        %v5330 = vadd.f32 %v5328, %v5329
        %v5331 = vrot.slane %v5330, 2
        %v5332 = vadd.f32 %v5330, %v5331
        %v5333 = vrot.slane %v5332, 1
        %v5334 = vadd.f32 %v5332, %v5333
        %v5335 = vsel %vm1572, %v5295, 0.0
        %v5336 = vrot.slane %v5335, 4
        %v5337 = vadd.f32 %v5335, %v5336
        %v5338 = vrot.slane %v5337, 2
        %v5339 = vadd.f32 %v5337, %v5338
        %v5340 = vrot.slane %v5339, 1
        %v5341 = vadd.f32 %v5339, %v5340
        %v5342 = vsel %vm1572, %v5302, 0.0
        %v5343 = vrot.slane %v5342, 4
        %v5344 = vadd.f32 %v5342, %v5343
        %v5345 = vrot.slane %v5344, 2
        %v5346 = vadd.f32 %v5344, %v5345
        %v5347 = vrot.slane %v5346, 1
        %v5348 = vadd.f32 %v5346, %v5347
        %v5349 = vsel %vm1572, %v5303, 0.0
        %v5350 = vrot.slane %v5349, 4
        %v5351 = vadd.f32 %v5349, %v5350
        %v5352 = vrot.slane %v5351, 2
        %v5353 = vadd.f32 %v5351, %v5352
        %v5354 = vrot.slane %v5353, 1
        %v5355 = vadd.f32 %v5353, %v5354
        %v5356 = vsel %vm1572, %v5310, 0.0
        %v5357 = vrot.slane %v5356, 4
        %v5358 = vadd.f32 %v5356, %v5357
        %v5359 = vrot.slane %v5358, 2
        %v5360 = vadd.f32 %v5358, %v5359
        %v5361 = vrot.slane %v5360, 1
        %v5362 = vadd.f32 %v5360, %v5361
        %v5363 = vsel %vm1572, %v5311, 0.0
        %v5364 = vrot.slane %v5363, 4
        %v5365 = vadd.f32 %v5363, %v5364
        %v5366 = vrot.slane %v5365, 2
        %v5367 = vadd.f32 %v5365, %v5366
        %v5368 = vrot.slane %v5367, 1
        %v5369 = vadd.f32 %v5367, %v5368
        %v5370 = vsel %vm1572, %v5318, 0.0
        %v5371 = vrot.slane %v5370, 4
        %v5372 = vadd.f32 %v5370, %v5371
        %v5373 = vrot.slane %v5372, 2
        %v5374 = vadd.f32 %v5372, %v5373
        %v5375 = vrot.slane %v5374, 1
        %v5376 = vadd.f32 %v5374, %v5375
        %v5377 = vsel %vm1572, %v5319, 0.0
        %v5378 = vrot.slane %v5377, 4
        %v5379 = vadd.f32 %v5377, %v5378
        %v5380 = vrot.slane %v5379, 2
        %v5381 = vadd.f32 %v5379, %v5380
        %v5382 = vrot.slane %v5381, 1
        %v5383 = vadd.f32 %v5381, %v5382
        %v5384 = vmul.f32 %v5334, 0.25
        %v5385 = vmul.f32 %v5341, 0.25
        %v5386 = vmul.f32 %v5348, 0.25
        %v5387 = vmul.f32 %v5355, 0.25
        %v5388 = vmul.f32 %v5362, 0.25
        %v5389 = vmul.f32 %v5369, 0.25
        %v5390 = vmul.f32 %v5376, 0.25
        %v5391 = vmul.f32 %v5383, 0.25
        %v5400 = vsel %vm1637, %v5386, %v5384
        %v5401 = vsel %vm1639, %v5388, %v5400
        %v5402 = vsel %vm1641, %v5390, %v5401
        %v5403 = vsel %vm1637, %v5387, %v5385
        %v5404 = vsel %vm1639, %v5389, %v5403
        %v5405 = vsel %vm1641, %v5391, %v5404
        %5408 = vst [vmem:[%s360] sm:$0xf] %v5402
        %5409 = vst [vmem:[%s360 + $0x8] sm:$0xf] %v5405
        %v5410 = vadd.f32 %v5262, %v5264
        %v5411 = vadd.f32 %v5263, %v5265
        %v5414 = vcombine.low %v5410, %v5411
        %v5415 = vcombine.high %v5410, %v5411
        %v5417 = vunpack.c.l.s4 1983009808
        %v5418 = vunpack.c.0.s8 %v5417
        %v5419 = vlaneseq
        %v5420 = vshrl.u32 %v5419, 7
        %v5421 = vsub.s32 %v5418, %v5420
        %v5422 = vrot.slane %v5414, %v5421
        %v5424 = vunpack.c.l.s4 1983009808
        %v5425 = vunpack.c.0.s8 %v5424
        %v5426 = vlaneseq
        %v5427 = vshrl.u32 %v5426, 7
        %v5428 = vsub.s32 %v5425, %v5427
        %v5429 = vrot.slane %v5415, %v5428
        %v5430 = vcombine.high %v5422, %v5422
        %v5431 = vcombine.high %v5429, %v5429
        %v5433 = vunpack.c.l.s4 1983009808
        %v5434 = vunpack.c.0.s8 %v5433
        %v5435 = vlaneseq
        %v5436 = vshrl.u32 %v5435, 7
        %v5437 = vsub.s32 %v5434, %v5436
        %v5438 = vrot.slane %v5422, %v5437
        %v5439 = vcombine.high %v5438, %v5438
        %v5441 = vunpack.c.l.s4 1983009808
        %v5442 = vunpack.c.0.s8 %v5441
        %v5443 = vlaneseq
        %v5444 = vshrl.u32 %v5443, 7
        %v5445 = vsub.s32 %v5442, %v5444
        %v5446 = vrot.slane %v5430, %v5445
        %v5447 = vcombine.high %v5446, %v5446
        %v5449 = vunpack.c.l.s4 1983009808
        %v5450 = vunpack.c.0.s8 %v5449
        %v5451 = vlaneseq
        %v5452 = vshrl.u32 %v5451, 7
        %v5453 = vsub.s32 %v5450, %v5452
        %v5454 = vrot.slane %v5429, %v5453
        %v5455 = vcombine.high %v5454, %v5454
        %v5457 = vunpack.c.l.s4 1983009808
        %v5458 = vunpack.c.0.s8 %v5457
        %v5459 = vlaneseq
        %v5460 = vshrl.u32 %v5459, 7
        %v5461 = vsub.s32 %v5458, %v5460
        %v5462 = vrot.slane %v5431, %v5461
        %v5463 = vcombine.high %v5462, %v5462
        %v5472 = vsel %vm1572, %v5438, 0.0
        %v5473 = vrot.slane %v5472, 4
        %v5474 = vadd.f32 %v5472, %v5473
        %v5475 = vrot.slane %v5474, 2
        %v5476 = vadd.f32 %v5474, %v5475
        %v5477 = vrot.slane %v5476, 1
        %v5478 = vadd.f32 %v5476, %v5477
        %v5479 = vsel %vm1572, %v5439, 0.0
        %v5480 = vrot.slane %v5479, 4
        %v5481 = vadd.f32 %v5479, %v5480
        %v5482 = vrot.slane %v5481, 2
        %v5483 = vadd.f32 %v5481, %v5482
        %v5484 = vrot.slane %v5483, 1
        %v5485 = vadd.f32 %v5483, %v5484
        %v5486 = vsel %vm1572, %v5446, 0.0
        %v5487 = vrot.slane %v5486, 4
        %v5488 = vadd.f32 %v5486, %v5487
        %v5489 = vrot.slane %v5488, 2
        %v5490 = vadd.f32 %v5488, %v5489
        %v5491 = vrot.slane %v5490, 1
        %v5492 = vadd.f32 %v5490, %v5491
        %v5493 = vsel %vm1572, %v5447, 0.0
        %v5494 = vrot.slane %v5493, 4
        %v5495 = vadd.f32 %v5493, %v5494
        %v5496 = vrot.slane %v5495, 2
        %v5497 = vadd.f32 %v5495, %v5496
        %v5498 = vrot.slane %v5497, 1
        %v5499 = vadd.f32 %v5497, %v5498
        %v5500 = vsel %vm1572, %v5454, 0.0
        %v5501 = vrot.slane %v5500, 4
        %v5502 = vadd.f32 %v5500, %v5501
        %v5503 = vrot.slane %v5502, 2
        %v5504 = vadd.f32 %v5502, %v5503
        %v5505 = vrot.slane %v5504, 1
        %v5506 = vadd.f32 %v5504, %v5505
        %v5507 = vsel %vm1572, %v5455, 0.0
        %v5508 = vrot.slane %v5507, 4
        %v5509 = vadd.f32 %v5507, %v5508
        %v5510 = vrot.slane %v5509, 2
        %v5511 = vadd.f32 %v5509, %v5510
        %v5512 = vrot.slane %v5511, 1
        %v5513 = vadd.f32 %v5511, %v5512
        %v5514 = vsel %vm1572, %v5462, 0.0
        %v5515 = vrot.slane %v5514, 4
        %v5516 = vadd.f32 %v5514, %v5515
        %v5517 = vrot.slane %v5516, 2
        %v5518 = vadd.f32 %v5516, %v5517
        %v5519 = vrot.slane %v5518, 1
        %v5520 = vadd.f32 %v5518, %v5519
        %v5521 = vsel %vm1572, %v5463, 0.0
        %v5522 = vrot.slane %v5521, 4
        %v5523 = vadd.f32 %v5521, %v5522
        %v5524 = vrot.slane %v5523, 2
        %v5525 = vadd.f32 %v5523, %v5524
        %v5526 = vrot.slane %v5525, 1
        %v5527 = vadd.f32 %v5525, %v5526
        %v5528 = vmul.f32 %v5478, 0.25
        %v5529 = vmul.f32 %v5485, 0.25
        %v5530 = vmul.f32 %v5492, 0.25
        %v5531 = vmul.f32 %v5499, 0.25
        %v5532 = vmul.f32 %v5506, 0.25
        %v5533 = vmul.f32 %v5513, 0.25
        %v5534 = vmul.f32 %v5520, 0.25
        %v5535 = vmul.f32 %v5527, 0.25
        %v5544 = vsel %vm1645, %v5530, %v5528
        %v5545 = vsel %vm1647, %v5532, %v5544
        %v5546 = vsel %vm1649, %v5534, %v5545
        %v5547 = vsel %vm1645, %v5531, %v5529
        %v5548 = vsel %vm1647, %v5533, %v5547
        %v5549 = vsel %vm1649, %v5535, %v5548
        %5552 = vst [vmem:[%s360] sm:$0xf0] %v5546
        %5553 = vst [vmem:[%s360 + $0x8] sm:$0xf0] %v5549
        %v5554 = vld [vmem:[%s2673] sm:$0xff]
        %v5555 = vld [vmem:[%s2673 + $0x10] sm:$0xff]
        %v5556 = vld [vmem:[%s2673 + $0x20] sm:$0xff]
        %v5557 = vld [vmem:[%s2673 + $0x30] sm:$0xff]
        %v5558 = vld [vmem:[%s2673 + $0x1] sm:$0xff]
        %v5559 = vld [vmem:[%s2673 + $0x11] sm:$0xff]
        %v5560 = vld [vmem:[%s2673 + $0x21] sm:$0xff]
        %v5561 = vld [vmem:[%s2673 + $0x31] sm:$0xff]
        %v5562 = vld [vmem:[%s2673 + $0x2] sm:$0xff]
        %v5563 = vld [vmem:[%s2673 + $0x12] sm:$0xff]
        %v5564 = vld [vmem:[%s2673 + $0x22] sm:$0xff]
        %v5565 = vld [vmem:[%s2673 + $0x32] sm:$0xff]
        %v5566 = vld [vmem:[%s3454] sm:$0xff]
        %v5567 = vld [vmem:[%s3454 + $0x10] sm:$0xff]
        %v5568 = vld [vmem:[%s3454 + $0x20] sm:$0xff]
        %v5569 = vld [vmem:[%s3454 + $0x30] sm:$0xff]
        %v5570 = vld [vmem:[%s3454 + $0x1] sm:$0xff]
        %v5571 = vld [vmem:[%s3454 + $0x11] sm:$0xff]
        %v5572 = vld [vmem:[%s3454 + $0x21] sm:$0xff]
        %v5573 = vld [vmem:[%s3454 + $0x31] sm:$0xff]
        %v5574 = vld [vmem:[%s3454 + $0x2] sm:$0xff]
        %v5575 = vld [vmem:[%s3454 + $0x12] sm:$0xff]
        %v5576 = vld [vmem:[%s3454 + $0x22] sm:$0xff]
        %v5577 = vld [vmem:[%s3454 + $0x32] sm:$0xff]
        %v5578 = vld [vmem:[%s3574] sm:$0xff]
        %v5579 = vld [vmem:[%s3574 + $0x10] sm:$0xff]
        %v5580 = vld [vmem:[%s3574 + $0x20] sm:$0xff]
        %v5581 = vld [vmem:[%s3574 + $0x30] sm:$0xff]
        %v5582 = vld [vmem:[%s3574 + $0x1] sm:$0xff]
        %v5583 = vld [vmem:[%s3574 + $0x11] sm:$0xff]
        %v5584 = vld [vmem:[%s3574 + $0x21] sm:$0xff]
        %v5585 = vld [vmem:[%s3574 + $0x31] sm:$0xff]
        %v5586 = vld [vmem:[%s3574 + $0x2] sm:$0xff]
        %v5587 = vld [vmem:[%s3574 + $0x12] sm:$0xff]
        %v5588 = vld [vmem:[%s3574 + $0x22] sm:$0xff]
        %v5589 = vld [vmem:[%s3574 + $0x32] sm:$0xff]
        %v5590 = vld [vmem:[#allocation11] sm:$0xff]
        %v5591 = vld [vmem:[#allocation11 + $0x8] sm:$0xff]
        %v5592 = vld [vmem:[#allocation11 + $0x10] sm:$0xff]
        %v5593 = vld [vmem:[#allocation11 + $0x18] sm:$0xff]
        %v5594 = vld [vmem:[#allocation11 + $0x20] sm:$0xff]
        %v5595 = vld [vmem:[#allocation11 + $0x28] sm:$0xff]
        %v5596 = vld [vmem:[#allocation11 + $0x30] sm:$0xff]
        %v5597 = vld [vmem:[#allocation11 + $0x38] sm:$0xff]
        %v5598 = vld [vmem:[#allocation11 + $0x40] sm:$0xff]
        %v5599 = vld [vmem:[#allocation11 + $0x48] sm:$0xff]
        %v5600 = vld [vmem:[#allocation11 + $0x50] sm:$0xff]
        %v5601 = vld [vmem:[#allocation11 + $0x58] sm:$0xff]
        %v5602 = vld [vmem:[#allocation11 + $0x60] sm:$0xff]
        %v5603 = vld [vmem:[#allocation11 + $0x68] sm:$0xff]
        %v5604 = vld [vmem:[#allocation11 + $0x70] sm:$0xff]
        %v5605 = vld [vmem:[#allocation11 + $0x78] sm:$0xff]
        %v5606 = vld [vmem:[#allocation11 + $0x80] sm:$0xff]
        %v5607 = vld [vmem:[#allocation11 + $0x88] sm:$0xff]
        %v5608 = vld [vmem:[#allocation11 + $0x90] sm:$0xff]
        %v5609 = vld [vmem:[#allocation11 + $0x98] sm:$0xff]
        %v5610 = vld [vmem:[#allocation11 + $0xa0] sm:$0xff]
        %v5611 = vld [vmem:[#allocation11 + $0xa8] sm:$0xff]
        %v5612 = vld [vmem:[#allocation11 + $0xb0] sm:$0xff]
        %v5613 = vld [vmem:[#allocation11 + $0xb8] sm:$0xff]
        %v5614 = vld [vmem:[#allocation11 + $0xc0] sm:$0xff]
        %v5615 = vld [vmem:[#allocation11 + $0xc8] sm:$0xff]
        %v5616 = vld [vmem:[#allocation11 + $0xd0] sm:$0xff]
        %v5617 = vld [vmem:[#allocation11 + $0xd8] sm:$0xff]
        %v5618 = vld [vmem:[#allocation11 + $0xe0] sm:$0xff]
        %v5619 = vld [vmem:[#allocation11 + $0xe8] sm:$0xff]
        %v5620 = vld [vmem:[#allocation11 + $0xf0] sm:$0xff]
        %v5621 = vld [vmem:[#allocation11 + $0xf8] sm:$0xff]
        %v5622 = vld [vmem:[#allocation11 + $0x100] sm:$0xff]
        %v5623 = vld [vmem:[#allocation11 + $0x108] sm:$0xff]
        %v5624 = vld [vmem:[#allocation11 + $0x110] sm:$0xff]
        %v5625 = vld [vmem:[#allocation11 + $0x118] sm:$0xff]
        %v5626 = vld [vmem:[#allocation11 + $0x120] sm:$0xff]
        %v5627 = vld [vmem:[#allocation11 + $0x128] sm:$0xff]
        %v5628 = vld [vmem:[#allocation11 + $0x130] sm:$0xff]
        %v5629 = vld [vmem:[#allocation11 + $0x138] sm:$0xff]
        %v5630 = vld [vmem:[#allocation11 + $0x140] sm:$0xff]
        %v5631 = vld [vmem:[#allocation11 + $0x148] sm:$0xff]
        %v5632 = vld [vmem:[#allocation11 + $0x150] sm:$0xff]
        %v5633 = vld [vmem:[#allocation11 + $0x158] sm:$0xff]
        %v5634 = vld [vmem:[#allocation11 + $0x160] sm:$0xff]
        %v5635 = vld [vmem:[#allocation11 + $0x168] sm:$0xff]
        %v5636 = vld [vmem:[#allocation11 + $0x170] sm:$0xff]
        %v5637 = vld [vmem:[#allocation11 + $0x178] sm:$0xff]
        %v5638 = vld [vmem:[#allocation11 + $0x180] sm:$0xff]
        %v5639 = vld [vmem:[#allocation11 + $0x188] sm:$0xff]
        %v5640 = vld [vmem:[#allocation11 + $0x190] sm:$0xff]
        %v5641 = vld [vmem:[#allocation11 + $0x198] sm:$0xff]
        %v5642 = vld [vmem:[#allocation11 + $0x1a0] sm:$0xff]
        %v5643 = vld [vmem:[#allocation11 + $0x1a8] sm:$0xff]
        %v5644 = vld [vmem:[#allocation11 + $0x1b0] sm:$0xff]
        %v5645 = vld [vmem:[#allocation11 + $0x1b8] sm:$0xff]
        %v5646 = vld [vmem:[#allocation11 + $0x1c0] sm:$0xff]
        %v5647 = vld [vmem:[#allocation11 + $0x1c8] sm:$0xff]
        %v5648 = vld [vmem:[#allocation11 + $0x1d0] sm:$0xff]
        %v5649 = vld [vmem:[#allocation11 + $0x1d8] sm:$0xff]
        %v5650 = vld [vmem:[#allocation11 + $0x1e0] sm:$0xff]
        %v5651 = vld [vmem:[#allocation11 + $0x1e8] sm:$0xff]
        %v5652 = vld [vmem:[#allocation11 + $0x1f0] sm:$0xff]
        %v5653 = vld [vmem:[#allocation11 + $0x1f8] sm:$0xff]
        %v5654 = vld [vmem:[#allocation11 + $0x200] sm:$0xff]
        %v5655 = vld [vmem:[#allocation11 + $0x208] sm:$0xff]
        %v5656 = vld [vmem:[#allocation11 + $0x210] sm:$0xff]
        %v5657 = vld [vmem:[#allocation11 + $0x218] sm:$0xff]
        %v5658 = vld [vmem:[#allocation11 + $0x220] sm:$0xff]
        %v5659 = vld [vmem:[#allocation11 + $0x228] sm:$0xff]
        %v5660 = vld [vmem:[#allocation11 + $0x230] sm:$0xff]
        %v5661 = vld [vmem:[#allocation11 + $0x238] sm:$0xff]
        %v5662 = vld [vmem:[#allocation11 + $0x240] sm:$0xff]
        %v5663 = vld [vmem:[#allocation11 + $0x248] sm:$0xff]
        %v5664 = vld [vmem:[#allocation11 + $0x250] sm:$0xff]
        %v5665 = vld [vmem:[#allocation11 + $0x258] sm:$0xff]
        %v5666 = vld [vmem:[#allocation11 + $0x260] sm:$0xff]
        %v5667 = vld [vmem:[#allocation11 + $0x268] sm:$0xff]
        %v5668 = vld [vmem:[#allocation11 + $0x270] sm:$0xff]
        %v5669 = vld [vmem:[#allocation11 + $0x278] sm:$0xff]
        %v5670 = vld [vmem:[#allocation11 + $0x280] sm:$0xff]
        %v5671 = vld [vmem:[#allocation11 + $0x288] sm:$0xff]
        %v5672 = vld [vmem:[#allocation11 + $0x290] sm:$0xff]
        %v5673 = vld [vmem:[#allocation11 + $0x298] sm:$0xff]
        %v5674 = vld [vmem:[#allocation11 + $0x2a0] sm:$0xff]
        %v5675 = vld [vmem:[#allocation11 + $0x2a8] sm:$0xff]
        %v5676 = vld [vmem:[#allocation11 + $0x2b0] sm:$0xff]
        %v5677 = vld [vmem:[#allocation11 + $0x2b8] sm:$0xff]
        %v5678 = vld [vmem:[#allocation11 + $0x2c0] sm:$0xff]
        %v5679 = vld [vmem:[#allocation11 + $0x2c8] sm:$0xff]
        %v5680 = vld [vmem:[#allocation11 + $0x2d0] sm:$0xff]
        %v5681 = vld [vmem:[#allocation11 + $0x2d8] sm:$0xff]
        %v5682 = vld [vmem:[#allocation11 + $0x2e0] sm:$0xff]
        %v5683 = vld [vmem:[#allocation11 + $0x2e8] sm:$0xff]
        %v5684 = vld [vmem:[#allocation11 + $0x2f0] sm:$0xff]
        %v5685 = vld [vmem:[#allocation11 + $0x2f8] sm:$0xff]
        %v5686 = vld [vmem:[#allocation11 + $0x300] sm:$0xff]
        %v5687 = vld [vmem:[#allocation11 + $0x308] sm:$0xff]
        %v5688 = vld [vmem:[#allocation11 + $0x310] sm:$0xff]
        %v5689 = vld [vmem:[#allocation11 + $0x318] sm:$0xff]
        %v5690 = vld [vmem:[#allocation11 + $0x320] sm:$0xff]
        %v5691 = vld [vmem:[#allocation11 + $0x328] sm:$0xff]
        %v5692 = vld [vmem:[#allocation11 + $0x330] sm:$0xff]
        %v5693 = vld [vmem:[#allocation11 + $0x338] sm:$0xff]
        %v5694 = vld [vmem:[#allocation11 + $0x340] sm:$0xff]
        %v5695 = vld [vmem:[#allocation11 + $0x348] sm:$0xff]
        %v5696 = vld [vmem:[#allocation11 + $0x350] sm:$0xff]
        %v5697 = vld [vmem:[#allocation11 + $0x358] sm:$0xff]
        %v5698 = vld [vmem:[#allocation11 + $0x360] sm:$0xff]
        %v5699 = vld [vmem:[#allocation11 + $0x368] sm:$0xff]
        %v5700 = vld [vmem:[#allocation11 + $0x370] sm:$0xff]
        %v5701 = vld [vmem:[#allocation11 + $0x378] sm:$0xff]
        %v5702 = vld [vmem:[#allocation11 + $0x380] sm:$0xff]
        %v5703 = vld [vmem:[#allocation11 + $0x388] sm:$0xff]
        %v5704 = vld [vmem:[#allocation11 + $0x390] sm:$0xff]
        %v5705 = vld [vmem:[#allocation11 + $0x398] sm:$0xff]
        %v5706 = vld [vmem:[#allocation11 + $0x3a0] sm:$0xff]
        %v5707 = vld [vmem:[#allocation11 + $0x3a8] sm:$0xff]
        %v5708 = vld [vmem:[#allocation11 + $0x3b0] sm:$0xff]
        %v5709 = vld [vmem:[#allocation11 + $0x3b8] sm:$0xff]
        %v5710 = vld [vmem:[#allocation11 + $0x3c0] sm:$0xff]
        %v5711 = vld [vmem:[#allocation11 + $0x3c8] sm:$0xff]
        %v5712 = vld [vmem:[#allocation11 + $0x3d0] sm:$0xff]
        %v5713 = vld [vmem:[#allocation11 + $0x3d8] sm:$0xff]
        %v5714 = vld [vmem:[#allocation11 + $0x3e0] sm:$0xff]
        %v5715 = vld [vmem:[#allocation11 + $0x3e8] sm:$0xff]
        %v5716 = vld [vmem:[#allocation11 + $0x3f0] sm:$0xff]
        %v5717 = vld [vmem:[#allocation11 + $0x3f8] sm:$0xff]
        %v5718 = vld [vmem:[#allocation11 + $0x400] sm:$0xff]
        %v5719 = vld [vmem:[#allocation11 + $0x408] sm:$0xff]
        %v5720 = vld [vmem:[#allocation11 + $0x410] sm:$0xff]
        %v5721 = vld [vmem:[#allocation11 + $0x418] sm:$0xff]
        %v5722 = vld [vmem:[#allocation11 + $0x420] sm:$0xff]
        %v5723 = vld [vmem:[#allocation11 + $0x428] sm:$0xff]
        %v5724 = vld [vmem:[#allocation11 + $0x430] sm:$0xff]
        %v5725 = vld [vmem:[#allocation11 + $0x438] sm:$0xff]
        %v5726 = vld [vmem:[#allocation11 + $0x440] sm:$0xff]
        %v5727 = vld [vmem:[#allocation11 + $0x448] sm:$0xff]
        %v5728 = vld [vmem:[#allocation11 + $0x450] sm:$0xff]
        %v5729 = vld [vmem:[#allocation11 + $0x458] sm:$0xff]
        %v5730 = vld [vmem:[#allocation11 + $0x460] sm:$0xff]
        %v5731 = vld [vmem:[#allocation11 + $0x468] sm:$0xff]
        %v5732 = vld [vmem:[#allocation11 + $0x470] sm:$0xff]
        %v5733 = vld [vmem:[#allocation11 + $0x478] sm:$0xff]
        %v5734 = vld [vmem:[#allocation11 + $0x480] sm:$0xff]
        %v5735 = vld [vmem:[#allocation11 + $0x488] sm:$0xff]
        %v5736 = vld [vmem:[#allocation11 + $0x490] sm:$0xff]
        %v5737 = vld [vmem:[#allocation11 + $0x498] sm:$0xff]
        %v5738 = vld [vmem:[#allocation11 + $0x4a0] sm:$0xff]
        %v5739 = vld [vmem:[#allocation11 + $0x4a8] sm:$0xff]
        %v5740 = vld [vmem:[#allocation11 + $0x4b0] sm:$0xff]
        %v5741 = vld [vmem:[#allocation11 + $0x4b8] sm:$0xff]
        %v5742 = vld [vmem:[#allocation11 + $0x4c0] sm:$0xff]
        %v5743 = vld [vmem:[#allocation11 + $0x4c8] sm:$0xff]
        %v5744 = vld [vmem:[#allocation11 + $0x4d0] sm:$0xff]
        %v5745 = vld [vmem:[#allocation11 + $0x4d8] sm:$0xff]
        %v5746 = vld [vmem:[#allocation11 + $0x4e0] sm:$0xff]
        %v5747 = vld [vmem:[#allocation11 + $0x4e8] sm:$0xff]
        %v5748 = vld [vmem:[#allocation11 + $0x4f0] sm:$0xff]
        %v5749 = vld [vmem:[#allocation11 + $0x4f8] sm:$0xff]
        %v5750 = vld [vmem:[#allocation11 + $0x500] sm:$0xff]
        %v5751 = vld [vmem:[#allocation11 + $0x508] sm:$0xff]
        %v5752 = vld [vmem:[#allocation11 + $0x510] sm:$0xff]
        %v5753 = vld [vmem:[#allocation11 + $0x518] sm:$0xff]
        %v5754 = vld [vmem:[#allocation11 + $0x520] sm:$0xff]
        %v5755 = vld [vmem:[#allocation11 + $0x528] sm:$0xff]
        %v5756 = vld [vmem:[#allocation11 + $0x530] sm:$0xff]
        %v5757 = vld [vmem:[#allocation11 + $0x538] sm:$0xff]
        %v5758 = vld [vmem:[#allocation11 + $0x540] sm:$0xff]
        %v5759 = vld [vmem:[#allocation11 + $0x548] sm:$0xff]
        %v5760 = vld [vmem:[#allocation11 + $0x550] sm:$0xff]
        %v5761 = vld [vmem:[#allocation11 + $0x558] sm:$0xff]
        %v5762 = vld [vmem:[#allocation11 + $0x560] sm:$0xff]
        %v5763 = vld [vmem:[#allocation11 + $0x568] sm:$0xff]
        %v5764 = vld [vmem:[#allocation11 + $0x570] sm:$0xff]
        %v5765 = vld [vmem:[#allocation11 + $0x578] sm:$0xff]
        %v5766 = vld [vmem:[#allocation11 + $0x580] sm:$0xff]
        %v5767 = vld [vmem:[#allocation11 + $0x588] sm:$0xff]
        %v5768 = vld [vmem:[#allocation11 + $0x590] sm:$0xff]
        %v5769 = vld [vmem:[#allocation11 + $0x598] sm:$0xff]
        %v5770 = vld [vmem:[#allocation11 + $0x5a0] sm:$0xff]
        %v5771 = vld [vmem:[#allocation11 + $0x5a8] sm:$0xff]
        %v5772 = vld [vmem:[#allocation11 + $0x5b0] sm:$0xff]
        %v5773 = vld [vmem:[#allocation11 + $0x5b8] sm:$0xff]
        %v5774 = vld [vmem:[#allocation11 + $0x5c0] sm:$0xff]
        %v5775 = vld [vmem:[#allocation11 + $0x5c8] sm:$0xff]
        %v5776 = vld [vmem:[#allocation11 + $0x5d0] sm:$0xff]
        %v5777 = vld [vmem:[#allocation11 + $0x5d8] sm:$0xff]
        %v5778 = vld [vmem:[#allocation11 + $0x5e0] sm:$0xff]
        %v5779 = vld [vmem:[#allocation11 + $0x5e8] sm:$0xff]
        %v5780 = vld [vmem:[#allocation11 + $0x5f0] sm:$0xff]
        %v5781 = vld [vmem:[#allocation11 + $0x5f8] sm:$0xff]
        %v5782 = vld [vmem:[#allocation11 + $0x600] sm:$0xff]
        %v5783 = vld [vmem:[#allocation11 + $0x608] sm:$0xff]
        %v5784 = vld [vmem:[#allocation11 + $0x610] sm:$0xff]
        %v5785 = vld [vmem:[#allocation11 + $0x618] sm:$0xff]
        %v5786 = vld [vmem:[#allocation11 + $0x620] sm:$0xff]
        %v5787 = vld [vmem:[#allocation11 + $0x628] sm:$0xff]
        %v5788 = vld [vmem:[#allocation11 + $0x630] sm:$0xff]
        %v5789 = vld [vmem:[#allocation11 + $0x638] sm:$0xff]
        %v5790 = vld [vmem:[#allocation11 + $0x640] sm:$0xff]
        %v5791 = vld [vmem:[#allocation11 + $0x648] sm:$0xff]
        %v5792 = vld [vmem:[#allocation11 + $0x650] sm:$0xff]
        %v5793 = vld [vmem:[#allocation11 + $0x658] sm:$0xff]
        %v5794 = vld [vmem:[#allocation11 + $0x660] sm:$0xff]
        %v5795 = vld [vmem:[#allocation11 + $0x668] sm:$0xff]
        %v5796 = vld [vmem:[#allocation11 + $0x670] sm:$0xff]
        %v5797 = vld [vmem:[#allocation11 + $0x678] sm:$0xff]
        %v5798 = vld [vmem:[#allocation11 + $0x680] sm:$0xff]
        %v5799 = vld [vmem:[#allocation11 + $0x688] sm:$0xff]
        %v5800 = vld [vmem:[#allocation11 + $0x690] sm:$0xff]
        %v5801 = vld [vmem:[#allocation11 + $0x698] sm:$0xff]
        %v5802 = vld [vmem:[#allocation11 + $0x6a0] sm:$0xff]
        %v5803 = vld [vmem:[#allocation11 + $0x6a8] sm:$0xff]
        %v5804 = vld [vmem:[#allocation11 + $0x6b0] sm:$0xff]
        %v5805 = vld [vmem:[#allocation11 + $0x6b8] sm:$0xff]
        %v5806 = vld [vmem:[#allocation11 + $0x6c0] sm:$0xff]
        %v5807 = vld [vmem:[#allocation11 + $0x6c8] sm:$0xff]
        %v5808 = vld [vmem:[#allocation11 + $0x6d0] sm:$0xff]
        %v5809 = vld [vmem:[#allocation11 + $0x6d8] sm:$0xff]
        %v5810 = vld [vmem:[#allocation11 + $0x6e0] sm:$0xff]
        %v5811 = vld [vmem:[#allocation11 + $0x6e8] sm:$0xff]
        %v5812 = vld [vmem:[#allocation11 + $0x6f0] sm:$0xff]
        %v5813 = vld [vmem:[#allocation11 + $0x6f8] sm:$0xff]
        %v5814 = vld [vmem:[#allocation11 + $0x700] sm:$0xff]
        %v5815 = vld [vmem:[#allocation11 + $0x708] sm:$0xff]
        %v5816 = vld [vmem:[#allocation11 + $0x710] sm:$0xff]
        %v5817 = vld [vmem:[#allocation11 + $0x718] sm:$0xff]
        %v5818 = vld [vmem:[#allocation11 + $0x720] sm:$0xff]
        %v5819 = vld [vmem:[#allocation11 + $0x728] sm:$0xff]
        %v5820 = vld [vmem:[#allocation11 + $0x730] sm:$0xff]
        %v5821 = vld [vmem:[#allocation11 + $0x738] sm:$0xff]
        %v5822 = vld [vmem:[#allocation11 + $0x740] sm:$0xff]
        %v5823 = vld [vmem:[#allocation11 + $0x748] sm:$0xff]
        %v5824 = vld [vmem:[#allocation11 + $0x750] sm:$0xff]
        %v5825 = vld [vmem:[#allocation11 + $0x758] sm:$0xff]
        %v5826 = vld [vmem:[#allocation11 + $0x760] sm:$0xff]
        %v5827 = vld [vmem:[#allocation11 + $0x768] sm:$0xff]
        %v5828 = vld [vmem:[#allocation11 + $0x770] sm:$0xff]
        %v5829 = vld [vmem:[#allocation11 + $0x778] sm:$0xff]
        %v5830 = vld [vmem:[#allocation11 + $0x780] sm:$0xff]
        %v5831 = vld [vmem:[#allocation11 + $0x788] sm:$0xff]
        %v5832 = vld [vmem:[#allocation11 + $0x790] sm:$0xff]
        %v5833 = vld [vmem:[#allocation11 + $0x798] sm:$0xff]
        %v5834 = vld [vmem:[#allocation11 + $0x7a0] sm:$0xff]
        %v5835 = vld [vmem:[#allocation11 + $0x7a8] sm:$0xff]
        %v5836 = vld [vmem:[#allocation11 + $0x7b0] sm:$0xff]
        %v5837 = vld [vmem:[#allocation11 + $0x7b8] sm:$0xff]
        %v5838 = vld [vmem:[#allocation11 + $0x7c0] sm:$0xff]
        %v5839 = vld [vmem:[#allocation11 + $0x7c8] sm:$0xff]
        %v5840 = vld [vmem:[#allocation11 + $0x7d0] sm:$0xff]
        %v5841 = vld [vmem:[#allocation11 + $0x7d8] sm:$0xff]
        %v5842 = vld [vmem:[#allocation11 + $0x7e0] sm:$0xff]
        %v5843 = vld [vmem:[#allocation11 + $0x7e8] sm:$0xff]
        %v5844 = vld [vmem:[#allocation11 + $0x7f0] sm:$0xff]
        %v5845 = vld [vmem:[#allocation11 + $0x7f8] sm:$0xff]
        %v5846 = vld [vmem:[#allocation11 + $0x800] sm:$0xff]
        %v5847 = vld [vmem:[#allocation11 + $0x808] sm:$0xff]
        %v5848 = vld [vmem:[#allocation11 + $0x810] sm:$0xff]
        %v5849 = vld [vmem:[#allocation11 + $0x818] sm:$0xff]
        %v5850 = vld [vmem:[#allocation11 + $0x820] sm:$0xff]
        %v5851 = vld [vmem:[#allocation11 + $0x828] sm:$0xff]
        %v5852 = vld [vmem:[#allocation11 + $0x830] sm:$0xff]
        %v5853 = vld [vmem:[#allocation11 + $0x838] sm:$0xff]
        %v5854 = vld [vmem:[#allocation11 + $0x840] sm:$0xff]
        %v5855 = vld [vmem:[#allocation11 + $0x848] sm:$0xff]
        %v5856 = vld [vmem:[#allocation11 + $0x850] sm:$0xff]
        %v5857 = vld [vmem:[#allocation11 + $0x858] sm:$0xff]
        %v5858 = vld [vmem:[#allocation11 + $0x860] sm:$0xff]
        %v5859 = vld [vmem:[#allocation11 + $0x868] sm:$0xff]
        %v5860 = vld [vmem:[#allocation11 + $0x870] sm:$0xff]
        %v5861 = vld [vmem:[#allocation11 + $0x878] sm:$0xff]
        %v5862 = vld [vmem:[#allocation11 + $0x880] sm:$0xff]
        %v5863 = vld [vmem:[#allocation11 + $0x888] sm:$0xff]
        %v5864 = vld [vmem:[#allocation11 + $0x890] sm:$0xff]
        %v5865 = vld [vmem:[#allocation11 + $0x898] sm:$0xff]
        %v5866 = vld [vmem:[#allocation11 + $0x8a0] sm:$0xff]
        %v5867 = vld [vmem:[#allocation11 + $0x8a8] sm:$0xff]
        %v5868 = vld [vmem:[#allocation11 + $0x8b0] sm:$0xff]
        %v5869 = vld [vmem:[#allocation11 + $0x8b8] sm:$0xff]
        %v5870 = vld [vmem:[#allocation11 + $0x8c0] sm:$0xff]
        %v5871 = vld [vmem:[#allocation11 + $0x8c8] sm:$0xff]
        %v5872 = vld [vmem:[#allocation11 + $0x8d0] sm:$0xff]
        %v5873 = vld [vmem:[#allocation11 + $0x8d8] sm:$0xff]
        %v5874 = vld [vmem:[#allocation11 + $0x8e0] sm:$0xff]
        %v5875 = vld [vmem:[#allocation11 + $0x8e8] sm:$0xff]
        %v5876 = vld [vmem:[#allocation11 + $0x8f0] sm:$0xff]
        %v5877 = vld [vmem:[#allocation11 + $0x8f8] sm:$0xff]
        %v5878 = vld [vmem:[#allocation12] sm:$0x3]
        %v5880 = vlaneseq
        %v5881 = vshrl.u32 %v5880, 7
        %v5882 = vsub.s32 0, %v5881
        %v5883 = vrot.slane %v5878, %v5882
        %v5884 = vlaneseq
        %v5885 = vshrl.u32 %v5884, 7
        %v5886 = vsub.s32 1, %v5885
        %v5887 = vrot.slane %v5878, %v5886
        %5890 = vmatprep.subr.mxu0 %v5591
        %5891 = vmatpush1.msra.mxu0 %v5590
        %5892 = vmatprep.subr.mxu0 %v5593
        %5893 = vmatpush1.msra.mxu0 %v5592
        %5894 = vmatprep.subr.mxu0 %v5595
        %5895 = vmatpush1.msra.mxu0 %v5594
        %5896 = vmatprep.subr.mxu0 %v5597
        %5897 = vmatpush1.msra.mxu0 %v5596
        %5898 = vmatprep.subr.mxu0 %v5599
        %5899 = vmatpush1.msra.mxu0 %v5598
        %5900 = vmatprep.subr.mxu0 %v5601
        %5901 = vmatpush1.msra.mxu0 %v5600
        %5902 = vmatprep.subr.mxu0 %v5603
        %5903 = vmatpush1.msra.mxu0 %v5602
        %5904 = vmatprep.subr.mxu0 %v5605
        %5905 = vmatpush1.msra.mxu0 %v5604
        %5906 = vmatprep.subr.mxu0 %v5607
        %5907 = vmatpush1.msra.mxu0 %v5606
        %5908 = vmatprep.subr.mxu0 %v5609
        %5909 = vmatpush1.msra.mxu0 %v5608
        %5910 = vmatprep.subr.mxu0 %v5611
        %5911 = vmatpush1.msra.mxu0 %v5610
        %5912 = vmatprep.subr.mxu0 %v5613
        %5913 = vmatpush1.msra.mxu0 %v5612
        %5914 = vmatprep.subr.mxu0 %v5615
        %5915 = vmatpush1.msra.mxu0 %v5614
        %5916 = vmatprep.subr.mxu0 %v5617
        %5917 = vmatpush1.msra.mxu0 %v5616
        %5918 = vmatprep.subr.mxu0 %v5619
        %5919 = vmatpush1.msra.mxu0 %v5618
        %5920 = vmatprep.subr.mxu0 %v5621
        %5921 = vmatpush1.msra.mxu0 %v5620
        %5922 = vmatprep.subr.mxu0 %v5623
        %5923 = vmatpush1.msra.mxu0 %v5622
        %5924 = vmatprep.subr.mxu0 %v5625
        %5925 = vmatpush1.msra.mxu0 %v5624
        %5926 = vmatprep.subr.mxu0 %v5627
        %5927 = vmatpush1.msra.mxu0 %v5626
        %5928 = vmatprep.subr.mxu0 %v5629
        %5929 = vmatpush1.msra.mxu0 %v5628
        %5930 = vmatprep.subr.mxu0 %v5631
        %5931 = vmatpush1.msra.mxu0 %v5630
        %5932 = vmatprep.subr.mxu0 %v5633
        %5933 = vmatpush1.msra.mxu0 %v5632
        %5934 = vmatprep.subr.mxu0 %v5635
        %5935 = vmatpush1.msra.mxu0 %v5634
        %5936 = vmatprep.subr.mxu0 %v5637
        %5937 = vmatpush1.msra.mxu0 %v5636
        %5938 = vmatprep.subr.mxu0 %v5639
        %5939 = vmatpush1.msra.mxu0 %v5638
        %5940 = vmatprep.subr.mxu0 %v5641
        %5941 = vmatpush1.msra.mxu0 %v5640
        %5942 = vmatprep.subr.mxu0 %v5643
        %5943 = vmatpush1.msra.mxu0 %v5642
        %5944 = vmatprep.subr.mxu0 %v5645
        %5945 = vmatpush1.msra.mxu0 %v5644
        %5946 = vmatprep.subr.mxu0 %v5647
        %5947 = vmatpush1.msra.mxu0 %v5646
        %5948 = vmatprep.subr.mxu0 %v5649
        %5949 = vmatpush1.msra.mxu0 %v5648
        %5950 = vmatprep.subr.mxu0 %v5651
        %5951 = vmatpush1.msra.mxu0 %v5650
        %5952 = vmatprep.subr.mxu0 %v5653
        %5953 = vmatpush1.msra.mxu0 %v5652
        %5954 = vmatprep.mubr.f32.mxu0 %v5558
        %5955 = vmatmul.mubr.f32.gmra.mrb[0].mxu0 %v5554
        %v5956 = vpop.f32.mrb[0].mxu0
        %v5957 = vadd.f32 %v5883, %v5956
        %v5958 = vpop.f32.mrb[0].mxu0
        %v5959 = vadd.f32 %v5887, %v5958
        %5960 = vmatprep.mubr.f32.mxu0 %v5559
        %5961 = vmatmul.mubr.f32.gmra.mrb[0].mxu0 %v5555
        %v5962 = vpop.f32.mrb[0].mxu0
        %v5963 = vadd.f32 %v5883, %v5962
        %v5964 = vpop.f32.mrb[0].mxu0
        %v5965 = vadd.f32 %v5887, %v5964
        %5966 = vmatprep.mubr.f32.mxu0 %v5560
        %5967 = vmatmul.mubr.f32.gmra.mrb[0].mxu0 %v5556
        %v5968 = vpop.f32.mrb[0].mxu0
        %v5969 = vadd.f32 %v5883, %v5968
        %v5970 = vpop.f32.mrb[0].mxu0
        %v5971 = vadd.f32 %v5887, %v5970
        %5972 = vmatprep.mubr.f32.mxu0 %v5561
        %5973 = vmatmul.mubr.f32.gmra.mrb[0].mxu0 %v5557
        %v5974 = vpop.f32.mrb[0].mxu0
        %v5975 = vadd.f32 %v5883, %v5974
        %v5976 = vpop.f32.mrb[0].mxu0
        %v5977 = vadd.f32 %v5887, %v5976
        %5978 = vdwg.mxu0
        %5979 = vmatprep.subr.mxu0 %v5655
        %5980 = vmatpush1.msra.mxu0 %v5654
        %5981 = vmatprep.subr.mxu0 %v5657
        %5982 = vmatpush1.msra.mxu0 %v5656
        %5983 = vmatprep.subr.mxu0 %v5659
        %5984 = vmatpush1.msra.mxu0 %v5658
        %5985 = vmatprep.subr.mxu0 %v5661
        %5986 = vmatpush1.msra.mxu0 %v5660
        %5987 = vmatprep.subr.mxu0 %v5663
        %5988 = vmatpush1.msra.mxu0 %v5662
        %5989 = vmatprep.subr.mxu0 %v5665
        %5990 = vmatpush1.msra.mxu0 %v5664
        %5991 = vmatprep.subr.mxu0 %v5667
        %5992 = vmatpush1.msra.mxu0 %v5666
        %5993 = vmatprep.subr.mxu0 %v5669
        %5994 = vmatpush1.msra.mxu0 %v5668
        %5995 = vmatprep.subr.mxu0 %v5671
        %5996 = vmatpush1.msra.mxu0 %v5670
        %5997 = vmatprep.subr.mxu0 %v5673
        %5998 = vmatpush1.msra.mxu0 %v5672
        %5999 = vmatprep.subr.mxu0 %v5675
        %6000 = vmatpush1.msra.mxu0 %v5674
        %6001 = vmatprep.subr.mxu0 %v5677
        %6002 = vmatpush1.msra.mxu0 %v5676
        %6003 = vmatprep.subr.mxu0 %v5679
        %6004 = vmatpush1.msra.mxu0 %v5678
        %6005 = vmatprep.subr.mxu0 %v5681
        %6006 = vmatpush1.msra.mxu0 %v5680
        %6007 = vmatprep.subr.mxu0 %v5683
        %6008 = vmatpush1.msra.mxu0 %v5682
        %6009 = vmatprep.subr.mxu0 %v5685
        %6010 = vmatpush1.msra.mxu0 %v5684
        %6011 = vmatprep.subr.mxu0 %v5687
        %6012 = vmatpush1.msra.mxu0 %v5686
        %6013 = vmatprep.subr.mxu0 %v5689
        %6014 = vmatpush1.msra.mxu0 %v5688
        %6015 = vmatprep.subr.mxu0 %v5691
        %6016 = vmatpush1.msra.mxu0 %v5690
        %6017 = vmatprep.subr.mxu0 %v5693
        %6018 = vmatpush1.msra.mxu0 %v5692
        %6019 = vmatprep.subr.mxu0 %v5695
        %6020 = vmatpush1.msra.mxu0 %v5694
        %6021 = vmatprep.subr.mxu0 %v5697
        %6022 = vmatpush1.msra.mxu0 %v5696
        %6023 = vmatprep.subr.mxu0 %v5699
        %6024 = vmatpush1.msra.mxu0 %v5698
        %6025 = vmatprep.subr.mxu0 %v5701
        %6026 = vmatpush1.msra.mxu0 %v5700
        %6027 = vmatprep.subr.mxu0 %v5703
        %6028 = vmatpush1.msra.mxu0 %v5702
        %6029 = vmatprep.subr.mxu0 %v5705
        %6030 = vmatpush1.msra.mxu0 %v5704
        %6031 = vmatprep.subr.mxu0 %v5707
        %6032 = vmatpush1.msra.mxu0 %v5706
        %6033 = vmatprep.subr.mxu0 %v5709
        %6034 = vmatpush1.msra.mxu0 %v5708
        %6035 = vmatprep.subr.mxu0 %v5711
        %6036 = vmatpush1.msra.mxu0 %v5710
        %6037 = vmatprep.subr.mxu0 %v5713
        %6038 = vmatpush1.msra.mxu0 %v5712
        %6039 = vmatprep.subr.mxu0 %v5715
        %6040 = vmatpush1.msra.mxu0 %v5714
        %6041 = vmatprep.subr.mxu0 %v5717
        %6042 = vmatpush1.msra.mxu0 %v5716
        %6043 = vmatprep.mubr.f32.mxu0 %v5566
        %6044 = vmatmul.mubr.f32.gmra.mrb[0].mxu0 %v5562
        %v6045 = vpop.f32.mrb[0].mxu0
        %v6046 = vadd.f32 %v5957, %v6045
        %v6047 = vpop.f32.mrb[0].mxu0
        %v6048 = vadd.f32 %v5959, %v6047
        %6049 = vmatprep.mubr.f32.mxu0 %v5567
        %6050 = vmatmul.mubr.f32.gmra.mrb[0].mxu0 %v5563
        %v6051 = vpop.f32.mrb[0].mxu0
        %v6052 = vadd.f32 %v5963, %v6051
        %v6053 = vpop.f32.mrb[0].mxu0
        %v6054 = vadd.f32 %v5965, %v6053
        %6055 = vmatprep.mubr.f32.mxu0 %v5568
        %6056 = vmatmul.mubr.f32.gmra.mrb[0].mxu0 %v5564
        %v6057 = vpop.f32.mrb[0].mxu0
        %v6058 = vadd.f32 %v5969, %v6057
        %v6059 = vpop.f32.mrb[0].mxu0
        %v6060 = vadd.f32 %v5971, %v6059
        %6061 = vmatprep.mubr.f32.mxu0 %v5569
        %6062 = vmatmul.mubr.f32.gmra.mrb[0].mxu0 %v5565
        %v6063 = vpop.f32.mrb[0].mxu0
        %v6064 = vadd.f32 %v5975, %v6063
        %v6065 = vpop.f32.mrb[0].mxu0
        %v6066 = vadd.f32 %v5977, %v6065
        %6067 = vdwg.mxu0
        %6068 = vmatprep.subr.mxu0 %v5719
        %6069 = vmatpush1.msra.mxu0 %v5718
        %6070 = vmatprep.subr.mxu0 %v5721
        %6071 = vmatpush1.msra.mxu0 %v5720
        %6072 = vmatprep.subr.mxu0 %v5723
        %6073 = vmatpush1.msra.mxu0 %v5722
        %6074 = vmatprep.subr.mxu0 %v5725
        %6075 = vmatpush1.msra.mxu0 %v5724
        %6076 = vmatprep.subr.mxu0 %v5727
        %6077 = vmatpush1.msra.mxu0 %v5726
        %6078 = vmatprep.subr.mxu0 %v5729
        %6079 = vmatpush1.msra.mxu0 %v5728
        %6080 = vmatprep.subr.mxu0 %v5731
        %6081 = vmatpush1.msra.mxu0 %v5730
        %6082 = vmatprep.subr.mxu0 %v5733
        %6083 = vmatpush1.msra.mxu0 %v5732
        %6084 = vmatprep.subr.mxu0 %v5735
        %6085 = vmatpush1.msra.mxu0 %v5734
        %6086 = vmatprep.subr.mxu0 %v5737
        %6087 = vmatpush1.msra.mxu0 %v5736
        %6088 = vmatprep.subr.mxu0 %v5739
        %6089 = vmatpush1.msra.mxu0 %v5738
        %6090 = vmatprep.subr.mxu0 %v5741
        %6091 = vmatpush1.msra.mxu0 %v5740
        %6092 = vmatprep.subr.mxu0 %v5743
        %6093 = vmatpush1.msra.mxu0 %v5742
        %6094 = vmatprep.subr.mxu0 %v5745
        %6095 = vmatpush1.msra.mxu0 %v5744
        %6096 = vmatprep.subr.mxu0 %v5747
        %6097 = vmatpush1.msra.mxu0 %v5746
        %6098 = vmatprep.subr.mxu0 %v5749
        %6099 = vmatpush1.msra.mxu0 %v5748
        %6100 = vmatprep.subr.mxu0 %v5751
        %6101 = vmatpush1.msra.mxu0 %v5750
        %6102 = vmatprep.subr.mxu0 %v5753
        %6103 = vmatpush1.msra.mxu0 %v5752
        %6104 = vmatprep.subr.mxu0 %v5755
        %6105 = vmatpush1.msra.mxu0 %v5754
        %6106 = vmatprep.subr.mxu0 %v5757
        %6107 = vmatpush1.msra.mxu0 %v5756
        %6108 = vmatprep.subr.mxu0 %v5759
        %6109 = vmatpush1.msra.mxu0 %v5758
        %6110 = vmatprep.subr.mxu0 %v5761
        %6111 = vmatpush1.msra.mxu0 %v5760
        %6112 = vmatprep.subr.mxu0 %v5763
        %6113 = vmatpush1.msra.mxu0 %v5762
        %6114 = vmatprep.subr.mxu0 %v5765
        %6115 = vmatpush1.msra.mxu0 %v5764
        %6116 = vmatprep.subr.mxu0 %v5767
        %6117 = vmatpush1.msra.mxu0 %v5766
        %6118 = vmatprep.subr.mxu0 %v5769
        %6119 = vmatpush1.msra.mxu0 %v5768
        %6120 = vmatprep.subr.mxu0 %v5771
        %6121 = vmatpush1.msra.mxu0 %v5770
        %6122 = vmatprep.subr.mxu0 %v5773
        %6123 = vmatpush1.msra.mxu0 %v5772
        %6124 = vmatprep.subr.mxu0 %v5775
        %6125 = vmatpush1.msra.mxu0 %v5774
        %6126 = vmatprep.subr.mxu0 %v5777
        %6127 = vmatpush1.msra.mxu0 %v5776
        %6128 = vmatprep.subr.mxu0 %v5779
        %6129 = vmatpush1.msra.mxu0 %v5778
        %6130 = vmatprep.subr.mxu0 %v5781
        %6131 = vmatpush1.msra.mxu0 %v5780
        %6132 = vmatprep.mubr.f32.mxu0 %v5574
        %6133 = vmatmul.mubr.f32.gmra.mrb[0].mxu0 %v5570
        %v6134 = vpop.f32.mrb[0].mxu0
        %v6135 = vadd.f32 %v6046, %v6134
        %v6136 = vpop.f32.mrb[0].mxu0
        %v6137 = vadd.f32 %v6048, %v6136
        %6138 = vmatprep.mubr.f32.mxu0 %v5575
        %6139 = vmatmul.mubr.f32.gmra.mrb[0].mxu0 %v5571
        %v6140 = vpop.f32.mrb[0].mxu0
        %v6141 = vadd.f32 %v6052, %v6140
        %v6142 = vpop.f32.mrb[0].mxu0
        %v6143 = vadd.f32 %v6054, %v6142
        %6144 = vmatprep.mubr.f32.mxu0 %v5576
        %6145 = vmatmul.mubr.f32.gmra.mrb[0].mxu0 %v5572
        %v6146 = vpop.f32.mrb[0].mxu0
        %v6147 = vadd.f32 %v6058, %v6146
        %v6148 = vpop.f32.mrb[0].mxu0
        %v6149 = vadd.f32 %v6060, %v6148
        %6150 = vmatprep.mubr.f32.mxu0 %v5577
        %6151 = vmatmul.mubr.f32.gmra.mrb[0].mxu0 %v5573
        %v6152 = vpop.f32.mrb[0].mxu0
        %v6153 = vadd.f32 %v6064, %v6152
        %v6154 = vpop.f32.mrb[0].mxu0
        %v6155 = vadd.f32 %v6066, %v6154
        %6156 = vdwg.mxu0
        %6157 = vmatprep.subr.mxu0 %v5783
        %6158 = vmatpush1.msra.mxu0 %v5782
        %6159 = vmatprep.subr.mxu0 %v5785
        %6160 = vmatpush1.msra.mxu0 %v5784
        %6161 = vmatprep.subr.mxu0 %v5787
        %6162 = vmatpush1.msra.mxu0 %v5786
        %6163 = vmatprep.subr.mxu0 %v5789
        %6164 = vmatpush1.msra.mxu0 %v5788
        %6165 = vmatprep.subr.mxu0 %v5791
        %6166 = vmatpush1.msra.mxu0 %v5790
        %6167 = vmatprep.subr.mxu0 %v5793
        %6168 = vmatpush1.msra.mxu0 %v5792
        %6169 = vmatprep.subr.mxu0 %v5795
        %6170 = vmatpush1.msra.mxu0 %v5794
        %6171 = vmatprep.subr.mxu0 %v5797
        %6172 = vmatpush1.msra.mxu0 %v5796
        %6173 = vmatprep.subr.mxu0 %v5799
        %6174 = vmatpush1.msra.mxu0 %v5798
        %6175 = vmatprep.subr.mxu0 %v5801
        %6176 = vmatpush1.msra.mxu0 %v5800
        %6177 = vmatprep.subr.mxu0 %v5803
        %6178 = vmatpush1.msra.mxu0 %v5802
        %6179 = vmatprep.subr.mxu0 %v5805
        %6180 = vmatpush1.msra.mxu0 %v5804
        %6181 = vmatprep.subr.mxu0 %v5807
        %6182 = vmatpush1.msra.mxu0 %v5806
        %6183 = vmatprep.subr.mxu0 %v5809
        %6184 = vmatpush1.msra.mxu0 %v5808
        %6185 = vmatprep.subr.mxu0 %v5811
        %6186 = vmatpush1.msra.mxu0 %v5810
        %6187 = vmatprep.subr.mxu0 %v5813
        %6188 = vmatpush1.msra.mxu0 %v5812
        %6189 = vmatprep.subr.mxu0 %v5815
        %6190 = vmatpush1.msra.mxu0 %v5814
        %6191 = vmatprep.subr.mxu0 %v5817
        %6192 = vmatpush1.msra.mxu0 %v5816
        %6193 = vmatprep.subr.mxu0 %v5819
        %6194 = vmatpush1.msra.mxu0 %v5818
        %6195 = vmatprep.subr.mxu0 %v5821
        %6196 = vmatpush1.msra.mxu0 %v5820
        %6197 = vmatprep.subr.mxu0 %v5823
        %6198 = vmatpush1.msra.mxu0 %v5822
        %6199 = vmatprep.subr.mxu0 %v5825
        %6200 = vmatpush1.msra.mxu0 %v5824
        %6201 = vmatprep.subr.mxu0 %v5827
        %6202 = vmatpush1.msra.mxu0 %v5826
        %6203 = vmatprep.subr.mxu0 %v5829
        %6204 = vmatpush1.msra.mxu0 %v5828
        %6205 = vmatprep.subr.mxu0 %v5831
        %6206 = vmatpush1.msra.mxu0 %v5830
        %6207 = vmatprep.subr.mxu0 %v5833
        %6208 = vmatpush1.msra.mxu0 %v5832
        %6209 = vmatprep.subr.mxu0 %v5835
        %6210 = vmatpush1.msra.mxu0 %v5834
        %6211 = vmatprep.subr.mxu0 %v5837
        %6212 = vmatpush1.msra.mxu0 %v5836
        %6213 = vmatprep.subr.mxu0 %v5839
        %6214 = vmatpush1.msra.mxu0 %v5838
        %6215 = vmatprep.subr.mxu0 %v5841
        %6216 = vmatpush1.msra.mxu0 %v5840
        %6217 = vmatprep.subr.mxu0 %v5843
        %6218 = vmatpush1.msra.mxu0 %v5842
        %6219 = vmatprep.subr.mxu0 %v5845
        %6220 = vmatpush1.msra.mxu0 %v5844
        %6221 = vmatprep.mubr.f32.mxu0 %v5582
        %6222 = vmatmul.mubr.f32.gmra.mrb[0].mxu0 %v5578
        %v6223 = vpop.f32.mrb[0].mxu0
        %v6224 = vadd.f32 %v6135, %v6223
        %v6225 = vpop.f32.mrb[0].mxu0
        %v6226 = vadd.f32 %v6137, %v6225
        %6227 = vmatprep.mubr.f32.mxu0 %v5583
        %6228 = vmatmul.mubr.f32.gmra.mrb[0].mxu0 %v5579
        %v6229 = vpop.f32.mrb[0].mxu0
        %v6230 = vadd.f32 %v6141, %v6229
        %v6231 = vpop.f32.mrb[0].mxu0
        %v6232 = vadd.f32 %v6143, %v6231
        %6233 = vmatprep.mubr.f32.mxu0 %v5584
        %6234 = vmatmul.mubr.f32.gmra.mrb[0].mxu0 %v5580
        %v6235 = vpop.f32.mrb[0].mxu0
        %v6236 = vadd.f32 %v6147, %v6235
        %v6237 = vpop.f32.mrb[0].mxu0
        %v6238 = vadd.f32 %v6149, %v6237
        %6239 = vmatprep.mubr.f32.mxu0 %v5585
        %6240 = vmatmul.mubr.f32.gmra.mrb[0].mxu0 %v5581
        %v6241 = vpop.f32.mrb[0].mxu0
        %v6242 = vadd.f32 %v6153, %v6241
        %v6243 = vpop.f32.mrb[0].mxu0
        %v6244 = vadd.f32 %v6155, %v6243
        %6245 = vdwg.mxu0
        %6246 = vmatprep.subr.mxu0 %v5847
        %6247 = vmatpush1.msra.mxu0 %v5846
        %6248 = vmatprep.subr.mxu0 %v5849
        %6249 = vmatpush1.msra.mxu0 %v5848
        %6250 = vmatprep.subr.mxu0 %v5851
        %6251 = vmatpush1.msra.mxu0 %v5850
        %6252 = vmatprep.subr.mxu0 %v5853
        %6253 = vmatpush1.msra.mxu0 %v5852
        %6254 = vmatprep.subr.mxu0 %v5855
        %6255 = vmatpush1.msra.mxu0 %v5854
        %6256 = vmatprep.subr.mxu0 %v5857
        %6257 = vmatpush1.msra.mxu0 %v5856
        %6258 = vmatprep.subr.mxu0 %v5859
        %6259 = vmatpush1.msra.mxu0 %v5858
        %6260 = vmatprep.subr.mxu0 %v5861
        %6261 = vmatpush1.msra.mxu0 %v5860
        %6262 = vmatprep.subr.mxu0 %v5863
        %6263 = vmatpush1.msra.mxu0 %v5862
        %6264 = vmatprep.subr.mxu0 %v5865
        %6265 = vmatpush1.msra.mxu0 %v5864
        %6266 = vmatprep.subr.mxu0 %v5867
        %6267 = vmatpush1.msra.mxu0 %v5866
        %6268 = vmatprep.subr.mxu0 %v5869
        %6269 = vmatpush1.msra.mxu0 %v5868
        %6270 = vmatprep.subr.mxu0 %v5871
        %6271 = vmatpush1.msra.mxu0 %v5870
        %6272 = vmatprep.subr.mxu0 %v5873
        %6273 = vmatpush1.msra.mxu0 %v5872
        %6274 = vmatprep.subr.mxu0 %v5875
        %6275 = vmatpush1.msra.mxu0 %v5874
        %6276 = vmatprep.subr.mxu0 %v5877
        %6277 = vmatpush1.msra.mxu0 %v5876
        %6278 = vmatprep.subr.mxu0 0.0
        %6279 = vmatpush1.msra.mxu0 0.0
        %6280 = vmatprep.subr.mxu0 0.0
        %6281 = vmatpush1.msra.mxu0 0.0
        %6282 = vmatprep.subr.mxu0 0.0
        %6283 = vmatpush1.msra.mxu0 0.0
        %6284 = vmatprep.subr.mxu0 0.0
        %6285 = vmatpush1.msra.mxu0 0.0
        %6286 = vmatprep.subr.mxu0 0.0
        %6287 = vmatpush1.msra.mxu0 0.0
        %6288 = vmatprep.subr.mxu0 0.0
        %6289 = vmatpush1.msra.mxu0 0.0
        %6290 = vmatprep.subr.mxu0 0.0
        %6291 = vmatpush1.msra.mxu0 0.0
        %6292 = vmatprep.subr.mxu0 0.0
        %6293 = vmatpush1.msra.mxu0 0.0
        %6294 = vmatprep.subr.mxu0 0.0
        %6295 = vmatpush1.msra.mxu0 0.0
        %6296 = vmatprep.subr.mxu0 0.0
        %6297 = vmatpush1.msra.mxu0 0.0
        %6298 = vmatprep.subr.mxu0 0.0
        %6299 = vmatpush1.msra.mxu0 0.0
        %6300 = vmatprep.subr.mxu0 0.0
        %6301 = vmatpush1.msra.mxu0 0.0
        %6302 = vmatprep.subr.mxu0 0.0
        %6303 = vmatpush1.msra.mxu0 0.0
        %6304 = vmatprep.subr.mxu0 0.0
        %6305 = vmatpush1.msra.mxu0 0.0
        %6306 = vmatprep.subr.mxu0 0.0
        %6307 = vmatpush1.msra.mxu0 0.0
        %6308 = vmatprep.subr.mxu0 0.0
        %6309 = vmatpush1.msra.mxu0 0.0
        %6310 = vmatprep.mubr.f32.mxu0 0.0
        %6311 = vmatmul.mubr.f32.gmra.mrb[0].mxu0 %v5586
        %v6312 = vpop.f32.mrb[0].mxu0
        %v6313 = vadd.f32 %v6224, %v6312
        %v6314 = vpop.f32.mrb[0].mxu0
        %v6315 = vadd.f32 %v6226, %v6314
        %6316 = vmatprep.mubr.f32.mxu0 0.0
        %6317 = vmatmul.mubr.f32.gmra.mrb[0].mxu0 %v5587
        %v6318 = vpop.f32.mrb[0].mxu0
        %v6319 = vadd.f32 %v6230, %v6318
        %v6320 = vpop.f32.mrb[0].mxu0
        %v6321 = vadd.f32 %v6232, %v6320
        %6322 = vmatprep.mubr.f32.mxu0 0.0
        %6323 = vmatmul.mubr.f32.gmra.mrb[0].mxu0 %v5588
        %v6324 = vpop.f32.mrb[0].mxu0
        %v6325 = vadd.f32 %v6236, %v6324
        %v6326 = vpop.f32.mrb[0].mxu0
        %v6327 = vadd.f32 %v6238, %v6326
        %6328 = vmatprep.mubr.f32.mxu0 0.0
        %6329 = vmatmul.mubr.f32.gmra.mrb[0].mxu0 %v5589
        %v6330 = vpop.f32.mrb[0].mxu0
        %v6331 = vadd.f32 %v6242, %v6330
        %v6332 = vpop.f32.mrb[0].mxu0
        %v6333 = vadd.f32 %v6244, %v6332
        %6334 = vdwg.mxu0
        %v6335 = vmax.f32 %v6313, 0.0
        %v6336 = vmax.f32 %v6315, 0.0
        %v6337 = vmax.f32 %v6319, 0.0
        %v6338 = vmax.f32 %v6321, 0.0
        %v6339 = vmax.f32 %v6325, 0.0
        %v6340 = vmax.f32 %v6327, 0.0
        %v6341 = vmax.f32 %v6331, 0.0
        %v6342 = vmax.f32 %v6333, 0.0
        %v6343 = vadd.f32 %v6335, %v6337
        %v6344 = vadd.f32 %v6336, %v6338
        %v6347 = vcombine.low %v6343, %v6344
        %v6348 = vcombine.high %v6343, %v6344
        %v6350 = vunpack.c.l.s4 1983009808
        %v6351 = vunpack.c.0.s8 %v6350
        %v6352 = vlaneseq
        %v6353 = vshrl.u32 %v6352, 7
        %v6354 = vsub.s32 %v6351, %v6353
        %v6355 = vrot.slane %v6347, %v6354
        %v6357 = vunpack.c.l.s4 1983009808
        %v6358 = vunpack.c.0.s8 %v6357
        %v6359 = vlaneseq
        %v6360 = vshrl.u32 %v6359, 7
        %v6361 = vsub.s32 %v6358, %v6360
        %v6362 = vrot.slane %v6348, %v6361
        %v6363 = vcombine.high %v6355, %v6355
        %v6364 = vcombine.high %v6362, %v6362
        %v6366 = vunpack.c.l.s4 1983009808
        %v6367 = vunpack.c.0.s8 %v6366
        %v6368 = vlaneseq
        %v6369 = vshrl.u32 %v6368, 7
        %v6370 = vsub.s32 %v6367, %v6369
        %v6371 = vrot.slane %v6355, %v6370
        %v6372 = vcombine.high %v6371, %v6371
        %v6374 = vunpack.c.l.s4 1983009808
        %v6375 = vunpack.c.0.s8 %v6374
        %v6376 = vlaneseq
        %v6377 = vshrl.u32 %v6376, 7
        %v6378 = vsub.s32 %v6375, %v6377
        %v6379 = vrot.slane %v6363, %v6378
        %v6380 = vcombine.high %v6379, %v6379
        %v6382 = vunpack.c.l.s4 1983009808
        %v6383 = vunpack.c.0.s8 %v6382
        %v6384 = vlaneseq
        %v6385 = vshrl.u32 %v6384, 7
        %v6386 = vsub.s32 %v6383, %v6385
        %v6387 = vrot.slane %v6362, %v6386
        %v6388 = vcombine.high %v6387, %v6387
        %v6390 = vunpack.c.l.s4 1983009808
        %v6391 = vunpack.c.0.s8 %v6390
        %v6392 = vlaneseq
        %v6393 = vshrl.u32 %v6392, 7
        %v6394 = vsub.s32 %v6391, %v6393
        %v6395 = vrot.slane %v6364, %v6394
        %v6396 = vcombine.high %v6395, %v6395
        %v6405 = vsel %vm1572, %v6371, 0.0
        %v6406 = vrot.slane %v6405, 4
        %v6407 = vadd.f32 %v6405, %v6406
        %v6408 = vrot.slane %v6407, 2
        %v6409 = vadd.f32 %v6407, %v6408
        %v6410 = vrot.slane %v6409, 1
        %v6411 = vadd.f32 %v6409, %v6410
        %v6412 = vsel %vm1572, %v6372, 0.0
        %v6413 = vrot.slane %v6412, 4
        %v6414 = vadd.f32 %v6412, %v6413
        %v6415 = vrot.slane %v6414, 2
        %v6416 = vadd.f32 %v6414, %v6415
        %v6417 = vrot.slane %v6416, 1
        %v6418 = vadd.f32 %v6416, %v6417
        %v6419 = vsel %vm1572, %v6379, 0.0
        %v6420 = vrot.slane %v6419, 4
        %v6421 = vadd.f32 %v6419, %v6420
        %v6422 = vrot.slane %v6421, 2
        %v6423 = vadd.f32 %v6421, %v6422
        %v6424 = vrot.slane %v6423, 1
        %v6425 = vadd.f32 %v6423, %v6424
        %v6426 = vsel %vm1572, %v6380, 0.0
        %v6427 = vrot.slane %v6426, 4
        %v6428 = vadd.f32 %v6426, %v6427
        %v6429 = vrot.slane %v6428, 2
        %v6430 = vadd.f32 %v6428, %v6429
        %v6431 = vrot.slane %v6430, 1
        %v6432 = vadd.f32 %v6430, %v6431
        %v6433 = vsel %vm1572, %v6387, 0.0
        %v6434 = vrot.slane %v6433, 4
        %v6435 = vadd.f32 %v6433, %v6434
        %v6436 = vrot.slane %v6435, 2
        %v6437 = vadd.f32 %v6435, %v6436
        %v6438 = vrot.slane %v6437, 1
        %v6439 = vadd.f32 %v6437, %v6438
        %v6440 = vsel %vm1572, %v6388, 0.0
        %v6441 = vrot.slane %v6440, 4
        %v6442 = vadd.f32 %v6440, %v6441
        %v6443 = vrot.slane %v6442, 2
        %v6444 = vadd.f32 %v6442, %v6443
        %v6445 = vrot.slane %v6444, 1
        %v6446 = vadd.f32 %v6444, %v6445
        %v6447 = vsel %vm1572, %v6395, 0.0
        %v6448 = vrot.slane %v6447, 4
        %v6449 = vadd.f32 %v6447, %v6448
        %v6450 = vrot.slane %v6449, 2
        %v6451 = vadd.f32 %v6449, %v6450
        %v6452 = vrot.slane %v6451, 1
        %v6453 = vadd.f32 %v6451, %v6452
        %v6454 = vsel %vm1572, %v6396, 0.0
        %v6455 = vrot.slane %v6454, 4
        %v6456 = vadd.f32 %v6454, %v6455
        %v6457 = vrot.slane %v6456, 2
        %v6458 = vadd.f32 %v6456, %v6457
        %v6459 = vrot.slane %v6458, 1
        %v6460 = vadd.f32 %v6458, %v6459
        %v6461 = vmul.f32 %v6411, 0.25
        %v6462 = vmul.f32 %v6418, 0.25
        %v6463 = vmul.f32 %v6425, 0.25
        %v6464 = vmul.f32 %v6432, 0.25
        %v6465 = vmul.f32 %v6439, 0.25
        %v6466 = vmul.f32 %v6446, 0.25
        %v6467 = vmul.f32 %v6453, 0.25
        %v6468 = vmul.f32 %v6460, 0.25
        %v6477 = vsel %vm1637, %v6463, %v6461
        %v6478 = vsel %vm1639, %v6465, %v6477
        %v6479 = vsel %vm1641, %v6467, %v6478
        %v6480 = vsel %vm1637, %v6464, %v6462
        %v6481 = vsel %vm1639, %v6466, %v6480
        %v6482 = vsel %vm1641, %v6468, %v6481
        %6485 = vst [vmem:[%s360 + $0x10] sm:$0xf] %v6479
        %6486 = vst [vmem:[%s360 + $0x18] sm:$0xf] %v6482
        %v6487 = vadd.f32 %v6339, %v6341
        %v6488 = vadd.f32 %v6340, %v6342
        %v6491 = vcombine.low %v6487, %v6488
        %v6492 = vcombine.high %v6487, %v6488
        %v6494 = vunpack.c.l.s4 1983009808
        %v6495 = vunpack.c.0.s8 %v6494
        %v6496 = vlaneseq
        %v6497 = vshrl.u32 %v6496, 7
        %v6498 = vsub.s32 %v6495, %v6497
        %v6499 = vrot.slane %v6491, %v6498
        %v6501 = vunpack.c.l.s4 1983009808
        %v6502 = vunpack.c.0.s8 %v6501
        %v6503 = vlaneseq
        %v6504 = vshrl.u32 %v6503, 7
        %v6505 = vsub.s32 %v6502, %v6504
        %v6506 = vrot.slane %v6492, %v6505
        %v6507 = vcombine.high %v6499, %v6499
        %v6508 = vcombine.high %v6506, %v6506
        %v6510 = vunpack.c.l.s4 1983009808
        %v6511 = vunpack.c.0.s8 %v6510
        %v6512 = vlaneseq
        %v6513 = vshrl.u32 %v6512, 7
        %v6514 = vsub.s32 %v6511, %v6513
        %v6515 = vrot.slane %v6499, %v6514
        %v6516 = vcombine.high %v6515, %v6515
        %v6518 = vunpack.c.l.s4 1983009808
        %v6519 = vunpack.c.0.s8 %v6518
        %v6520 = vlaneseq
        %v6521 = vshrl.u32 %v6520, 7
        %v6522 = vsub.s32 %v6519, %v6521
        %v6523 = vrot.slane %v6507, %v6522
        %v6524 = vcombine.high %v6523, %v6523
        %v6526 = vunpack.c.l.s4 1983009808
        %v6527 = vunpack.c.0.s8 %v6526
        %v6528 = vlaneseq
        %v6529 = vshrl.u32 %v6528, 7
        %v6530 = vsub.s32 %v6527, %v6529
        %v6531 = vrot.slane %v6506, %v6530
        %v6532 = vcombine.high %v6531, %v6531
        %v6534 = vunpack.c.l.s4 1983009808
        %v6535 = vunpack.c.0.s8 %v6534
        %v6536 = vlaneseq
        %v6537 = vshrl.u32 %v6536, 7
        %v6538 = vsub.s32 %v6535, %v6537
        %v6539 = vrot.slane %v6508, %v6538
        %v6540 = vcombine.high %v6539, %v6539
        %v6549 = vsel %vm1572, %v6515, 0.0
        %v6550 = vrot.slane %v6549, 4
        %v6551 = vadd.f32 %v6549, %v6550
        %v6552 = vrot.slane %v6551, 2
        %v6553 = vadd.f32 %v6551, %v6552
        %v6554 = vrot.slane %v6553, 1
        %v6555 = vadd.f32 %v6553, %v6554
        %v6556 = vsel %vm1572, %v6516, 0.0
        %v6557 = vrot.slane %v6556, 4
        %v6558 = vadd.f32 %v6556, %v6557
        %v6559 = vrot.slane %v6558, 2
        %v6560 = vadd.f32 %v6558, %v6559
        %v6561 = vrot.slane %v6560, 1
        %v6562 = vadd.f32 %v6560, %v6561
        %v6563 = vsel %vm1572, %v6523, 0.0
        %v6564 = vrot.slane %v6563, 4
        %v6565 = vadd.f32 %v6563, %v6564
        %v6566 = vrot.slane %v6565, 2
        %v6567 = vadd.f32 %v6565, %v6566
        %v6568 = vrot.slane %v6567, 1
        %v6569 = vadd.f32 %v6567, %v6568
        %v6570 = vsel %vm1572, %v6524, 0.0
        %v6571 = vrot.slane %v6570, 4
        %v6572 = vadd.f32 %v6570, %v6571
        %v6573 = vrot.slane %v6572, 2
        %v6574 = vadd.f32 %v6572, %v6573
        %v6575 = vrot.slane %v6574, 1
        %v6576 = vadd.f32 %v6574, %v6575
        %v6577 = vsel %vm1572, %v6531, 0.0
        %v6578 = vrot.slane %v6577, 4
        %v6579 = vadd.f32 %v6577, %v6578
        %v6580 = vrot.slane %v6579, 2
        %v6581 = vadd.f32 %v6579, %v6580
        %v6582 = vrot.slane %v6581, 1
        %v6583 = vadd.f32 %v6581, %v6582
        %v6584 = vsel %vm1572, %v6532, 0.0
        %v6585 = vrot.slane %v6584, 4
        %v6586 = vadd.f32 %v6584, %v6585
        %v6587 = vrot.slane %v6586, 2
        %v6588 = vadd.f32 %v6586, %v6587
        %v6589 = vrot.slane %v6588, 1
        %v6590 = vadd.f32 %v6588, %v6589
        %v6591 = vsel %vm1572, %v6539, 0.0
        %v6592 = vrot.slane %v6591, 4
        %v6593 = vadd.f32 %v6591, %v6592
        %v6594 = vrot.slane %v6593, 2
        %v6595 = vadd.f32 %v6593, %v6594
        %v6596 = vrot.slane %v6595, 1
        %v6597 = vadd.f32 %v6595, %v6596
        %v6598 = vsel %vm1572, %v6540, 0.0
        %v6599 = vrot.slane %v6598, 4
        %v6600 = vadd.f32 %v6598, %v6599
        %v6601 = vrot.slane %v6600, 2
        %v6602 = vadd.f32 %v6600, %v6601
        %v6603 = vrot.slane %v6602, 1
        %v6604 = vadd.f32 %v6602, %v6603
        %v6605 = vmul.f32 %v6555, 0.25
        %v6606 = vmul.f32 %v6562, 0.25
        %v6607 = vmul.f32 %v6569, 0.25
        %v6608 = vmul.f32 %v6576, 0.25
        %v6609 = vmul.f32 %v6583, 0.25
        %v6610 = vmul.f32 %v6590, 0.25
        %v6611 = vmul.f32 %v6597, 0.25
        %v6612 = vmul.f32 %v6604, 0.25
        %v6621 = vsel %vm1645, %v6607, %v6605
        %v6622 = vsel %vm1647, %v6609, %v6621
        %v6623 = vsel %vm1649, %v6611, %v6622
        %v6624 = vsel %vm1645, %v6608, %v6606
        %v6625 = vsel %vm1647, %v6610, %v6624
        %v6626 = vsel %vm1649, %v6612, %v6625
        %6629 = vst [vmem:[%s360 + $0x10] sm:$0xf0] %v6623
        %6630 = vst [vmem:[%s360 + $0x18] sm:$0xf0] %v6626
        %p6631 = scmp.lt.s32.totalorder %s22, 1
        %s6632 = scalar_select %p6631, %s22, 1
        %s6633 = smul.addr %s6632, 4
        %s6634 = smul.addr %s6633, 8
        %s6635 = scalar_lea.vmem %s7, %s6634
        // Predicated region
        $region73: #{demo_net_forward.2} parent=47 // pred_check
          %p6636 = pneg %p192
        $region74: #{demo_net_forward.2} parent=47 // pred_check_branch
          %6638 = sbr.rel (%p6636) target = $region76
        $region75: #{demo_net_forward.2} parent=47 // pred_region
          _
        $region76: #{demo_net_forward.2} parent=47 // pred_fallthru
          _
      $region48: #{demo_net_forward.2} parent=5 // pred_fallthru
        _
      %p6639 = scmp.le.s32.totalorder 2, %s17
      // Predicated region
      $region77: #{demo_net_forward.2} parent=5 // pred_check
        %p6640 = pneg %p6639
      $region78: #{demo_net_forward.2} parent=5 // pred_check_branch
        %6642 = sbr.rel (%p6640) target = $region80
      $region79: #{demo_net_forward.2} parent=5 // pred_region
        %s6643 = ssub.s32 %s17, 2
        // Predicated region
        $region81: #{demo_net_forward.2} parent=79 // pred_check
          %p6644 = pneg %p198
        $region82: #{demo_net_forward.2} parent=79 // pred_check_branch
          %6646 = sbr.rel (%p6644) target = $region84
        $region83: #{demo_net_forward.2} parent=79 // pred_region
          %p6647 = scmp.lt.s32.totalorder %s23, 1
          %s6648 = scalar_select %p6647, %s23, 1
          %s6649 = smul.addr %s6648, 4
          %s6650 = smul.addr %s6649, 8
          %s6651 = scalar_lea.vmem %s7, %s6650
        $region84: #{demo_net_forward.2} parent=79 // pred_fallthru
          _
      $region80: #{demo_net_forward.2} parent=5 // pred_fallthru
        _
    $region6: #{demo_net_forward.2} parent=1 // loop_footer
      %s21 = sadd.s32 1, %s17
    $region7: #{demo_net_forward.2} parent=1 // loop_footer_branch
      %16 = sbr.rel target = $region3
    $region8: #{demo_net_forward.2} parent=1 // loop_exit
      _
    %6652 = vsyncpa [#allocation5], 1
    %s6653 = scalar_lea.sflag [#allocation5], 1
    %6654 = vsyncpa %s6653, 1
    %6655 = vsyncpa [#allocation7], 1
    %6656 = vsyncpa [#allocation10], 1
    %6657 = vsyncpa [#allocation13], 1

</llo_original>
